<compile_context>
chip_gen: v5e
topology: v5e:2x2
jax: 0.10.0
libtpu: 0.0.40
codegen_flags: <defaults>
</compile_context>

<pallas_src>
import jax
import jax.numpy as jnp
from jax.experimental import pallas as pl
from jax.experimental.pallas import tpu as pltpu

# --- shapes implied by the module (small synthetic sizes) ---
B, C_IN, F, J = 2, 3, 8, 4            # batch, input channels, frames, joints
C_OUT = 32                            # Spatial_Attn_Unit out_channels
MLP_IN, MLP_HID, MLP_OUT = 32, 64, 128
GRU_H = 128
N_POS = F * J                         # spatial positions per batch (32) = GRU feature dim
N_SEQ = C_OUT                         # GRU sequence length (torch.reshape puts channels on seq axis)
N_NODE = B * F * J                    # total graph nodes across batch/frames (64)


# ------------------------------------------------------------------
# Fused kernel: SSA (1x1 conv + adjacency + 1-head GAT) -> reshape -> MLP -> GRU
# ------------------------------------------------------------------
def acc_modal_kernel(xn_ref, convw_ref, convb_ref, biga_ref, bias_ref,
                     gatw_ref, asrc_ref, adst_ref,
                     w1_ref, b1_ref, w2_ref, b2_ref,
                     wih_ref, bih_ref, whh_ref, bhh_ref,
                     o_ref, gi_ref):
    f32 = jnp.float32
    bf16 = jnp.bfloat16
    H = GRU_H

    # ---------------- Spatial_Attn_Unit (all B*F frames at once) ----------------
    x = xn_ref[...]                                                           # [64, 3]
    # 1x1 Conv2d == per-node channel matmul
    x1 = jnp.dot(x, convw_ref[...], preferred_element_type=f32) + convb_ref[...]        # [64, 32]
    # einsum 'bkcfj,kjw->bcfw' (k=1) == block-diag(A^T) @ node_matrix
    xa = jnp.dot(biga_ref[...], x1, preferred_element_type=f32)                         # [64, 32]
    # single-head additive GAT over joints; block-diag bias keeps frames independent
    h = jnp.dot(xa, gatw_ref[...], preferred_element_type=f32)                          # [64, 32]
    s_src = jnp.dot(h, asrc_ref[...], preferred_element_type=f32)                       # [64, 1]
    s_dst = jnp.einsum('oc,nc->on', adst_ref[...], h, preferred_element_type=f32)       # [1, 64]
    e = s_src + s_dst                                                                   # [64, 64]
    e = jnp.where(e > 0, e, 0.2 * e) + bias_ref[...]        # LeakyReLU(0.2) + additive edge bias
    e = e - jnp.max(e, axis=-1, keepdims=True)
    p = jnp.exp(e)
    alpha = p * pl.reciprocal(jnp.sum(p, axis=-1, keepdims=True), approx=True)
    out_nodes = jnp.dot(alpha, h, preferred_element_type=f32)                           # [64, 32]
    # out_nodes[b*N_POS + (f*J+w), c] == out1[b, c, f, w]

    # -------- torch.reshape(out1,(B,-1,C)) -> batched MLP + hoisted GRU x-proj --------
    # x2[b, s, p] = out1[b, c=s, pos=p]  ==  per-batch transpose of the node block.
    x2 = jnp.concatenate(
        [jnp.transpose(out_nodes[b * N_POS:(b + 1) * N_POS, :]) for b in range(B)],
        axis=0)                                                                          # [64, 32]
    hid = jnp.maximum(
        jnp.dot(x2.astype(bf16), w1_ref[...], preferred_element_type=f32) + b1_ref[...], 0.0)
    mb = jnp.dot(hid.astype(bf16), w2_ref[...], preferred_element_type=f32) + b2_ref[...]   # [64, 128]
    gi = jnp.dot(mb.astype(bf16), wih_ref[...], preferred_element_type=f32) + bih_ref[...]  # [64, 384]
    gi_ref[...] = gi.reshape(B, N_SEQ, 3 * H)            # single contiguous lane-dense store

    # ---------------- GRU recurrence (PyTorch gate order r, z, n) --------------------
    # Both batch chains batched as one [2,128] carry; one bf16 MXU matmul per step.
    whh = whh_ref[...]                                    # [128, 384] bf16
    bhh = bhh_ref[...]
    h_t = jnp.zeros((B, H), f32)
    for t in range(N_SEQ):                                # fully unrolled (32 steps)
        g = gi_ref[:, t, :]                               # [2, 384] f32
        gh = jnp.dot(h_t.astype(bf16), whh, preferred_element_type=f32) + bhh            # [2, 384]
        r = jax.nn.sigmoid(g[:, 0:H] + gh[:, 0:H])
        z = jax.nn.sigmoid(g[:, H:2 * H] + gh[:, H:2 * H])
        n = jnp.tanh(g[:, 2 * H:3 * H] + r * gh[:, 2 * H:3 * H])
        h_t = (1.0 - z) * n + z * h_t

    o_ref[...] = h_t.astype(o_ref.dtype)                  # one [2, 128] store


# ------------------------------------------------------------------
# Wrapper: one tiny host-side layout op on the input, then a single pallas_call.
# ------------------------------------------------------------------
@jax.jit
def acc_modal_forward(x, params):
    b, cin, f, j = x.shape
    # channels-last flattened node features [B*F*J, C_in]
    xn = jnp.transpose(x, (0, 2, 3, 1)).reshape(b * f * j, cin)
    vmem = pl.BlockSpec(memory_space=pltpu.MemorySpace.VMEM)
    return pl.pallas_call(
        acc_modal_kernel,
        out_shape=jax.ShapeDtypeStruct((b, GRU_H), jnp.float32),
        in_specs=[vmem] * 16,
        out_specs=vmem,
        scratch_shapes=[pltpu.VMEM((b, N_SEQ, 3 * GRU_H), jnp.float32)],
    )(xn,
      params['conv_w'], params['conv_b'],
      params['big_adj_t'], params['big_bias'],
      params['gat_w'], params['gat_asrc'], params['gat_adst'],
      params['w1'], params['b1'], params['w2'], params['b2'],
      params['w_ih_t'], params['b_ih'], params['w_hh_t'], params['b_hh'])


def init_params(key):
    ks = jax.random.split(key, 13)
    bf = jnp.bfloat16

    def nrm(k, shape, scale=0.1, dtype=jnp.float32):
        return (scale * jax.random.normal(k, shape)).astype(dtype)

    # Graph(max_hop=1): chain skeleton + self loops, row-normalized. k=1 -> [J, J]
    adj = jnp.eye(J, dtype=jnp.float32)
    idx = jnp.arange(J - 1)
    adj = adj.at[idx, idx + 1].set(1.0)
    adj = adj.at[idx + 1, idx].set(1.0)
    adj = adj / jnp.sum(adj, axis=1, keepdims=True)

    # Host-precomputed block-diagonal operators over all B*F frames:
    #   big_adj_t @ nodes == per-frame A^T @ node_matrix (adjacency einsum)
    #   big_bias          == additive GAT mask: 0 on intra-frame edges, -1e9 elsewhere
    eye_pf = jnp.eye(B * F, dtype=jnp.float32)
    big_adj_t = jnp.kron(eye_pf, adj.T)
    big_mask = jnp.kron(eye_pf, (adj > 0).astype(jnp.float32))
    big_bias = jnp.where(big_mask > 0, 0.0, -1e9).astype(jnp.float32)

    return dict(
        big_adj_t=big_adj_t,                          # [64, 64] f32
        big_bias=big_bias,                            # [64, 64] f32
        conv_w=nrm(ks[0], (C_IN, C_OUT)),             # Conv2d(3,32,1x1) weight stored [Cin, Cout]
        conv_b=nrm(ks[1], (1, C_OUT)),
        gat_w=nrm(ks[2], (C_OUT, C_OUT)),             # GAT linear
        gat_asrc=nrm(ks[3], (C_OUT, 1)),              # GAT attention vectors (col / row)
        gat_adst=nrm(ks[4], (1, C_OUT)),
        w1=nrm(ks[5], (MLP_IN, MLP_HID), dtype=bf),   # Linear(32,64) stored [in, out], bf16 MXU operand
        b1=nrm(ks[6], (1, MLP_HID)),
        w2=nrm(ks[7], (MLP_HID, MLP_OUT), dtype=bf),  # Linear(64,128)
        b2=nrm(ks[8], (1, MLP_OUT)),
        w_ih_t=nrm(ks[9], (MLP_OUT, 3 * GRU_H), dtype=bf),   # GRU W_ih^T (gates r,z,n)
        b_ih=nrm(ks[10], (1, 3 * GRU_H)),
        w_hh_t=nrm(ks[11], (GRU_H, 3 * GRU_H), dtype=bf),    # GRU W_hh^T
        b_hh=nrm(ks[12], (1, 3 * GRU_H)),
    )


if __name__ == "__main__":
    key = jax.random.PRNGKey(0)
    pkey, xkey = jax.random.split(key)
    params = init_params(pkey)
    x = jax.random.normal(xkey, (B, C_IN, F, J), dtype=jnp.float32)
    out = acc_modal_forward(x, params)
    out = jax.block_until_ready(out)
    assert out.shape == (B, GRU_H), out.shape
    print("KERNEL_OK")
</pallas_src>

<mosaic_0001>
module attributes {stable_mosaic.version = 11 : i64} {
  func.func @acc_modal_kernel(%arg0: memref<64x3xf32, #tpu.memory_space<vmem>>, %arg1: memref<3x32xf32, #tpu.memory_space<vmem>>, %arg2: memref<1x32xf32, #tpu.memory_space<vmem>>, %arg3: memref<64x64xf32, #tpu.memory_space<vmem>>, %arg4: memref<64x64xf32, #tpu.memory_space<vmem>>, %arg5: memref<32x32xf32, #tpu.memory_space<vmem>>, %arg6: memref<32x1xf32, #tpu.memory_space<vmem>>, %arg7: memref<1x32xf32, #tpu.memory_space<vmem>>, %arg8: memref<32x64xbf16, #tpu.memory_space<vmem>>, %arg9: memref<1x64xf32, #tpu.memory_space<vmem>>, %arg10: memref<64x128xbf16, #tpu.memory_space<vmem>>, %arg11: memref<1x128xf32, #tpu.memory_space<vmem>>, %arg12: memref<128x384xbf16, #tpu.memory_space<vmem>>, %arg13: memref<1x384xf32, #tpu.memory_space<vmem>>, %arg14: memref<128x384xbf16, #tpu.memory_space<vmem>>, %arg15: memref<1x384xf32, #tpu.memory_space<vmem>>, %arg16: memref<2x128xf32, #tpu.memory_space<vmem>>, %arg17: memref<2x32x384xf32, #tpu.memory_space<vmem>>) attributes {dimension_semantics = [], scalar_prefetch = 0 : i64, scratch_operands = 1 : i64, tpu.core_type = #tpu.core_type<tc>} {
    %c0 = arith.constant 0 : index
    %c0_0 = arith.constant 0 : index
    %0 = vector.load %arg0[%c0, %c0_0] : memref<64x3xf32, #tpu.memory_space<vmem>>, vector<64x3xf32>
    %c0_1 = arith.constant 0 : index
    %c0_2 = arith.constant 0 : index
    %1 = vector.load %arg1[%c0_1, %c0_2] : memref<3x32xf32, #tpu.memory_space<vmem>>, vector<3x32xf32>
    %cst = arith.constant dense<0.000000e+00> : vector<64x32xf32>
    %2 = tpu.matmul %0, %1, %cst {dimension_numbers = #tpu.dot_dimension_numbers<[1], [0], [0], [1], [0, 0, 1, 1], [], []>} : vector<64x3xf32>, vector<3x32xf32>, vector<64x32xf32> -> vector<64x32xf32>
    %c0_3 = arith.constant 0 : index
    %c0_4 = arith.constant 0 : index
    %3 = vector.load %arg2[%c0_3, %c0_4] : memref<1x32xf32, #tpu.memory_space<vmem>>, vector<1x32xf32>
    %4 = vector.broadcast %3 : vector<1x32xf32> to vector<64x32xf32>
    %5 = arith.addf %2, %4 : vector<64x32xf32>
    %c0_5 = arith.constant 0 : index
    %c0_6 = arith.constant 0 : index
    %6 = vector.load %arg3[%c0_5, %c0_6] : memref<64x64xf32, #tpu.memory_space<vmem>>, vector<64x64xf32>
    %cst_7 = arith.constant dense<0.000000e+00> : vector<64x32xf32>
    %7 = tpu.matmul %6, %5, %cst_7 {dimension_numbers = #tpu.dot_dimension_numbers<[1], [0], [0], [1], [0, 0, 1, 1], [], []>} : vector<64x64xf32>, vector<64x32xf32>, vector<64x32xf32> -> vector<64x32xf32>
    %c0_8 = arith.constant 0 : index
    %c0_9 = arith.constant 0 : index
    %8 = vector.load %arg5[%c0_8, %c0_9] : memref<32x32xf32, #tpu.memory_space<vmem>>, vector<32x32xf32>
    %cst_10 = arith.constant dense<0.000000e+00> : vector<64x32xf32>
    %9 = tpu.matmul %7, %8, %cst_10 {dimension_numbers = #tpu.dot_dimension_numbers<[1], [0], [0], [1], [0, 0, 1, 1], [], []>} : vector<64x32xf32>, vector<32x32xf32>, vector<64x32xf32> -> vector<64x32xf32>
    %c0_11 = arith.constant 0 : index
    %c0_12 = arith.constant 0 : index
    %10 = vector.load %arg6[%c0_11, %c0_12] : memref<32x1xf32, #tpu.memory_space<vmem>>, vector<32x1xf32>
    %cst_13 = arith.constant dense<0.000000e+00> : vector<64x1xf32>
    %11 = tpu.matmul %9, %10, %cst_13 {dimension_numbers = #tpu.dot_dimension_numbers<[1], [0], [0], [1], [0, 0, 1, 1], [], []>} : vector<64x32xf32>, vector<32x1xf32>, vector<64x1xf32> -> vector<64x1xf32>
    %c0_14 = arith.constant 0 : index
    %c0_15 = arith.constant 0 : index
    %12 = vector.load %arg7[%c0_14, %c0_15] : memref<1x32xf32, #tpu.memory_space<vmem>>, vector<1x32xf32>
    "tpu.trace_start"() <{level = 10 : i32, message = "oc,nc->on"}> : () -> ()
    %cst_16 = arith.constant dense<0.000000e+00> : vector<1x64xf32>
    %13 = tpu.matmul %12, %9, %cst_16 {dimension_numbers = #tpu.dot_dimension_numbers<[1], [1], [0], [0], [0, 0, 1, 0], [], []>} : vector<1x32xf32>, vector<64x32xf32>, vector<1x64xf32> -> vector<1x64xf32>
    "tpu.trace_stop"() : () -> ()
    %14 = vector.broadcast %11 : vector<64x1xf32> to vector<64x64xf32>
    %15 = vector.broadcast %13 : vector<1x64xf32> to vector<64x64xf32>
    %16 = arith.addf %14, %15 : vector<64x64xf32>
    %cst_17 = arith.constant 0.000000e+00 : f32
    %17 = vector.broadcast %cst_17 : f32 to vector<64x64xf32>
    %18 = arith.cmpf ogt, %16, %17 : vector<64x64xf32>
    %cst_18 = arith.constant 2.000000e-01 : f32
    %19 = vector.broadcast %cst_18 : f32 to vector<64x64xf32>
    %20 = arith.mulf %19, %16 : vector<64x64xf32>
    %21 = arith.select %18, %16, %20 : vector<64x64xi1>, vector<64x64xf32>
    %c0_19 = arith.constant 0 : index
    %c0_20 = arith.constant 0 : index
    %22 = vector.load %arg4[%c0_19, %c0_20] : memref<64x64xf32, #tpu.memory_space<vmem>>, vector<64x64xf32>
    %23 = arith.addf %21, %22 : vector<64x64xf32>
    %cst_21 = arith.constant dense<0xFF800000> : vector<64xf32>
    %24 = vector.multi_reduction <maximumf>, %23, %cst_21 [1] : vector<64x64xf32> to vector<64xf32>
    %25 = vector.shape_cast %24 : vector<64xf32> to vector<64x1xf32>
    %26 = vector.broadcast %25 : vector<64x1xf32> to vector<64x64xf32>
    %27 = arith.subf %23, %26 : vector<64x64xf32>
    %28 = math.exp %27 : vector<64x64xf32>
    %cst_22 = arith.constant dense<0.000000e+00> : vector<64xf32>
    %29 = vector.multi_reduction <add>, %28, %cst_22 [1] : vector<64x64xf32> to vector<64xf32>
    %30 = vector.shape_cast %29 : vector<64xf32> to vector<64x1xf32>
    %31 = tpu.reciprocal %30 {approx = true} : vector<64x1xf32> -> vector<64x1xf32>
    %32 = vector.broadcast %31 : vector<64x1xf32> to vector<64x64xf32>
    %33 = arith.mulf %28, %32 : vector<64x64xf32>
    %cst_23 = arith.constant dense<0.000000e+00> : vector<64x32xf32>
    %34 = tpu.matmul %33, %9, %cst_23 {dimension_numbers = #tpu.dot_dimension_numbers<[1], [0], [0], [1], [0, 0, 1, 1], [], []>} : vector<64x64xf32>, vector<64x32xf32>, vector<64x32xf32> -> vector<64x32xf32>
    %35 = vector.extract_strided_slice %34 {offsets = [0, 0], sizes = [32, 32], strides = [1, 1]} : vector<64x32xf32> to vector<32x32xf32>
    %36 = tpu.transpose %35, [1, 0] : vector<32x32xf32> -> vector<32x32xf32>
    %37 = vector.extract_strided_slice %34 {offsets = [32, 0], sizes = [32, 32], strides = [1, 1]} : vector<64x32xf32> to vector<32x32xf32>
    %38 = tpu.transpose %37, [1, 0] : vector<32x32xf32> -> vector<32x32xf32>
    %39 = tpu.concatenate %36, %38 in 0 : vector<32x32xf32>, vector<32x32xf32> -> vector<64x32xf32>
    %40 = arith.truncf %39 : vector<64x32xf32> to vector<64x32xbf16>
    %c0_24 = arith.constant 0 : index
    %c0_25 = arith.constant 0 : index
    %41 = vector.load %arg8[%c0_24, %c0_25] : memref<32x64xbf16, #tpu.memory_space<vmem>>, vector<32x64xbf16>
    %cst_26 = arith.constant dense<0.000000e+00> : vector<64x64xf32>
    %42 = tpu.matmul %40, %41, %cst_26 {dimension_numbers = #tpu.dot_dimension_numbers<[1], [0], [0], [1], [0, 0, 1, 1], [], []>} : vector<64x32xbf16>, vector<32x64xbf16>, vector<64x64xf32> -> vector<64x64xf32>
    %c0_27 = arith.constant 0 : index
    %c0_28 = arith.constant 0 : index
    %43 = vector.load %arg9[%c0_27, %c0_28] : memref<1x64xf32, #tpu.memory_space<vmem>>, vector<1x64xf32>
    %44 = vector.broadcast %43 : vector<1x64xf32> to vector<64x64xf32>
    %45 = arith.addf %42, %44 : vector<64x64xf32>
    %cst_29 = arith.constant 0.000000e+00 : f32
    %46 = vector.broadcast %cst_29 : f32 to vector<64x64xf32>
    %47 = arith.maximumf %45, %46 : vector<64x64xf32>
    %48 = arith.truncf %47 : vector<64x64xf32> to vector<64x64xbf16>
    %c0_30 = arith.constant 0 : index
    %c0_31 = arith.constant 0 : index
    %49 = vector.load %arg10[%c0_30, %c0_31] : memref<64x128xbf16, #tpu.memory_space<vmem>>, vector<64x128xbf16>
    %cst_32 = arith.constant dense<0.000000e+00> : vector<64x128xf32>
    %50 = tpu.matmul %48, %49, %cst_32 {dimension_numbers = #tpu.dot_dimension_numbers<[1], [0], [0], [1], [0, 0, 1, 1], [], []>} : vector<64x64xbf16>, vector<64x128xbf16>, vector<64x128xf32> -> vector<64x128xf32>
    %c0_33 = arith.constant 0 : index
    %c0_34 = arith.constant 0 : index
    %51 = vector.load %arg11[%c0_33, %c0_34] : memref<1x128xf32, #tpu.memory_space<vmem>>, vector<1x128xf32>
    %52 = vector.broadcast %51 : vector<1x128xf32> to vector<64x128xf32>
    %53 = arith.addf %50, %52 : vector<64x128xf32>
    %54 = arith.truncf %53 : vector<64x128xf32> to vector<64x128xbf16>
    %c0_35 = arith.constant 0 : index
    %c0_36 = arith.constant 0 : index
    %55 = vector.load %arg12[%c0_35, %c0_36] : memref<128x384xbf16, #tpu.memory_space<vmem>>, vector<128x384xbf16>
    %cst_37 = arith.constant dense<0.000000e+00> : vector<64x384xf32>
    %56 = tpu.matmul %54, %55, %cst_37 {dimension_numbers = #tpu.dot_dimension_numbers<[1], [0], [0], [1], [0, 0, 1, 1], [], []>} : vector<64x128xbf16>, vector<128x384xbf16>, vector<64x384xf32> -> vector<64x384xf32>
    %c0_38 = arith.constant 0 : index
    %c0_39 = arith.constant 0 : index
    %57 = vector.load %arg13[%c0_38, %c0_39] : memref<1x384xf32, #tpu.memory_space<vmem>>, vector<1x384xf32>
    %58 = vector.broadcast %57 : vector<1x384xf32> to vector<64x384xf32>
    %59 = arith.addf %56, %58 : vector<64x384xf32>
    %60 = vector.shape_cast %59 : vector<64x384xf32> to vector<2x32x384xf32>
    %c0_40 = arith.constant 0 : index
    %c0_41 = arith.constant 0 : index
    %c0_42 = arith.constant 0 : index
    %61 = vector.load %arg17[%c0_40, %c0_41, %c0_42] : memref<2x32x384xf32, #tpu.memory_space<vmem>>, vector<2x32x384xf32>
    tpu.vector_store %arg17[%c0_40, %c0_41, %c0_42], %60 {strides = array<i32>} : memref<2x32x384xf32, #tpu.memory_space<vmem>>, vector<2x32x384xf32>,
    %c0_43 = arith.constant 0 : index
    %c0_44 = arith.constant 0 : index
    %62 = vector.load %arg14[%c0_43, %c0_44] : memref<128x384xbf16, #tpu.memory_space<vmem>>, vector<128x384xbf16>
    %c0_45 = arith.constant 0 : index
    %c0_46 = arith.constant 0 : index
    %63 = vector.load %arg15[%c0_45, %c0_46] : memref<1x384xf32, #tpu.memory_space<vmem>>, vector<1x384xf32>
    %cst_47 = arith.constant 0.000000e+00 : f32
    %64 = vector.broadcast %cst_47 : f32 to vector<2x128xf32>
    %c0_48 = arith.constant 0 : index
    %c0_49 = arith.constant 0 : index
    %c0_50 = arith.constant 0 : index
    %65 = vector.load %arg17[%c0_48, %c0_49, %c0_50] : memref<2x32x384xf32, #tpu.memory_space<vmem>>, vector<2x1x384xf32>
    %66 = vector.shape_cast %65 : vector<2x1x384xf32> to vector<2x384xf32>
    %67 = arith.truncf %64 : vector<2x128xf32> to vector<2x128xbf16>
    %cst_51 = arith.constant dense<0.000000e+00> : vector<2x384xf32>
    %68 = tpu.matmul %67, %62, %cst_51 {dimension_numbers = #tpu.dot_dimension_numbers<[1], [0], [0], [1], [0, 0, 1, 1], [], []>} : vector<2x128xbf16>, vector<128x384xbf16>, vector<2x384xf32> -> vector<2x384xf32>
    %69 = vector.broadcast %63 : vector<1x384xf32> to vector<2x384xf32>
    %70 = arith.addf %68, %69 : vector<2x384xf32>
    %71 = vector.extract_strided_slice %66 {offsets = [0, 0], sizes = [2, 128], strides = [1, 1]} : vector<2x384xf32> to vector<2x128xf32>
    %72 = vector.extract_strided_slice %70 {offsets = [0, 0], sizes = [2, 128], strides = [1, 1]} : vector<2x384xf32> to vector<2x128xf32>
    %73 = arith.addf %71, %72 : vector<2x128xf32>
    %74 = arith.negf %73 : vector<2x128xf32>
    %75 = math.exp %74 : vector<2x128xf32>
    %cst_52 = arith.constant 1.000000e+00 : f32
    %76 = vector.broadcast %cst_52 : f32 to vector<2x128xf32>
    %77 = arith.addf %76, %75 : vector<2x128xf32>
    %78 = arith.divf %76, %77 : vector<2x128xf32>
    %79 = vector.extract_strided_slice %66 {offsets = [0, 128], sizes = [2, 128], strides = [1, 1]} : vector<2x384xf32> to vector<2x128xf32>
    %80 = vector.extract_strided_slice %70 {offsets = [0, 128], sizes = [2, 128], strides = [1, 1]} : vector<2x384xf32> to vector<2x128xf32>
    %81 = arith.addf %79, %80 : vector<2x128xf32>
    %82 = arith.negf %81 : vector<2x128xf32>
    %83 = math.exp %82 : vector<2x128xf32>
    %cst_53 = arith.constant 1.000000e+00 : f32
    %84 = vector.broadcast %cst_53 : f32 to vector<2x128xf32>
    %85 = arith.addf %84, %83 : vector<2x128xf32>
    %86 = arith.divf %84, %85 : vector<2x128xf32>
    %87 = vector.extract_strided_slice %66 {offsets = [0, 256], sizes = [2, 128], strides = [1, 1]} : vector<2x384xf32> to vector<2x128xf32>
    %88 = vector.extract_strided_slice %70 {offsets = [0, 256], sizes = [2, 128], strides = [1, 1]} : vector<2x384xf32> to vector<2x128xf32>
    %89 = arith.mulf %78, %88 : vector<2x128xf32>
    %90 = arith.addf %87, %89 : vector<2x128xf32>
    %91 = math.tanh %90 : vector<2x128xf32>
    %cst_54 = arith.constant 1.000000e+00 : f32
    %92 = vector.broadcast %cst_54 : f32 to vector<2x128xf32>
    %93 = arith.subf %92, %86 : vector<2x128xf32>
    %94 = arith.mulf %93, %91 : vector<2x128xf32>
    %95 = arith.mulf %86, %64 : vector<2x128xf32>
    %96 = arith.addf %94, %95 : vector<2x128xf32>
    %c0_55 = arith.constant 0 : index
    %c1 = arith.constant 1 : index
    %c0_56 = arith.constant 0 : index
    %97 = vector.load %arg17[%c0_55, %c1, %c0_56] : memref<2x32x384xf32, #tpu.memory_space<vmem>>, vector<2x1x384xf32>
    %98 = vector.shape_cast %97 : vector<2x1x384xf32> to vector<2x384xf32>
    %99 = arith.truncf %96 : vector<2x128xf32> to vector<2x128xbf16>
    %cst_57 = arith.constant dense<0.000000e+00> : vector<2x384xf32>
    %100 = tpu.matmul %99, %62, %cst_57 {dimension_numbers = #tpu.dot_dimension_numbers<[1], [0], [0], [1], [0, 0, 1, 1], [], []>} : vector<2x128xbf16>, vector<128x384xbf16>, vector<2x384xf32> -> vector<2x384xf32>
    %101 = vector.broadcast %63 : vector<1x384xf32> to vector<2x384xf32>
    %102 = arith.addf %100, %101 : vector<2x384xf32>
    %103 = vector.extract_strided_slice %98 {offsets = [0, 0], sizes = [2, 128], strides = [1, 1]} : vector<2x384xf32> to vector<2x128xf32>
    %104 = vector.extract_strided_slice %102 {offsets = [0, 0], sizes = [2, 128], strides = [1, 1]} : vector<2x384xf32> to vector<2x128xf32>
    %105 = arith.addf %103, %104 : vector<2x128xf32>
    %106 = arith.negf %105 : vector<2x128xf32>
    %107 = math.exp %106 : vector<2x128xf32>
    %cst_58 = arith.constant 1.000000e+00 : f32
    %108 = vector.broadcast %cst_58 : f32 to vector<2x128xf32>
    %109 = arith.addf %108, %107 : vector<2x128xf32>
    %110 = arith.divf %108, %109 : vector<2x128xf32>
    %111 = vector.extract_strided_slice %98 {offsets = [0, 128], sizes = [2, 128], strides = [1, 1]} : vector<2x384xf32> to vector<2x128xf32>
    %112 = vector.extract_strided_slice %102 {offsets = [0, 128], sizes = [2, 128], strides = [1, 1]} : vector<2x384xf32> to vector<2x128xf32>
    %113 = arith.addf %111, %112 : vector<2x128xf32>
    %114 = arith.negf %113 : vector<2x128xf32>
    %115 = math.exp %114 : vector<2x128xf32>
    %cst_59 = arith.constant 1.000000e+00 : f32
    %116 = vector.broadcast %cst_59 : f32 to vector<2x128xf32>
    %117 = arith.addf %116, %115 : vector<2x128xf32>
    %118 = arith.divf %116, %117 : vector<2x128xf32>
    %119 = vector.extract_strided_slice %98 {offsets = [0, 256], sizes = [2, 128], strides = [1, 1]} : vector<2x384xf32> to vector<2x128xf32>
    %120 = vector.extract_strided_slice %102 {offsets = [0, 256], sizes = [2, 128], strides = [1, 1]} : vector<2x384xf32> to vector<2x128xf32>
    %121 = arith.mulf %110, %120 : vector<2x128xf32>
    %122 = arith.addf %119, %121 : vector<2x128xf32>
    %123 = math.tanh %122 : vector<2x128xf32>
    %cst_60 = arith.constant 1.000000e+00 : f32
    %124 = vector.broadcast %cst_60 : f32 to vector<2x128xf32>
    %125 = arith.subf %124, %118 : vector<2x128xf32>
    %126 = arith.mulf %125, %123 : vector<2x128xf32>
    %127 = arith.mulf %118, %96 : vector<2x128xf32>
    %128 = arith.addf %126, %127 : vector<2x128xf32>
    %c0_61 = arith.constant 0 : index
    %c2 = arith.constant 2 : index
    %c0_62 = arith.constant 0 : index
    %129 = vector.load %arg17[%c0_61, %c2, %c0_62] : memref<2x32x384xf32, #tpu.memory_space<vmem>>, vector<2x1x384xf32>
    %130 = vector.shape_cast %129 : vector<2x1x384xf32> to vector<2x384xf32>
    %131 = arith.truncf %128 : vector<2x128xf32> to vector<2x128xbf16>
    %cst_63 = arith.constant dense<0.000000e+00> : vector<2x384xf32>
    %132 = tpu.matmul %131, %62, %cst_63 {dimension_numbers = #tpu.dot_dimension_numbers<[1], [0], [0], [1], [0, 0, 1, 1], [], []>} : vector<2x128xbf16>, vector<128x384xbf16>, vector<2x384xf32> -> vector<2x384xf32>
    %133 = vector.broadcast %63 : vector<1x384xf32> to vector<2x384xf32>
    %134 = arith.addf %132, %133 : vector<2x384xf32>
    %135 = vector.extract_strided_slice %130 {offsets = [0, 0], sizes = [2, 128], strides = [1, 1]} : vector<2x384xf32> to vector<2x128xf32>
    %136 = vector.extract_strided_slice %134 {offsets = [0, 0], sizes = [2, 128], strides = [1, 1]} : vector<2x384xf32> to vector<2x128xf32>
    %137 = arith.addf %135, %136 : vector<2x128xf32>
    %138 = arith.negf %137 : vector<2x128xf32>
    %139 = math.exp %138 : vector<2x128xf32>
    %cst_64 = arith.constant 1.000000e+00 : f32
    %140 = vector.broadcast %cst_64 : f32 to vector<2x128xf32>
    %141 = arith.addf %140, %139 : vector<2x128xf32>
    %142 = arith.divf %140, %141 : vector<2x128xf32>
    %143 = vector.extract_strided_slice %130 {offsets = [0, 128], sizes = [2, 128], strides = [1, 1]} : vector<2x384xf32> to vector<2x128xf32>
    %144 = vector.extract_strided_slice %134 {offsets = [0, 128], sizes = [2, 128], strides = [1, 1]} : vector<2x384xf32> to vector<2x128xf32>
    %145 = arith.addf %143, %144 : vector<2x128xf32>
    %146 = arith.negf %145 : vector<2x128xf32>
    %147 = math.exp %146 : vector<2x128xf32>
    %cst_65 = arith.constant 1.000000e+00 : f32
    %148 = vector.broadcast %cst_65 : f32 to vector<2x128xf32>
    %149 = arith.addf %148, %147 : vector<2x128xf32>
    %150 = arith.divf %148, %149 : vector<2x128xf32>
    %151 = vector.extract_strided_slice %130 {offsets = [0, 256], sizes = [2, 128], strides = [1, 1]} : vector<2x384xf32> to vector<2x128xf32>
    %152 = vector.extract_strided_slice %134 {offsets = [0, 256], sizes = [2, 128], strides = [1, 1]} : vector<2x384xf32> to vector<2x128xf32>
    %153 = arith.mulf %142, %152 : vector<2x128xf32>
    %154 = arith.addf %151, %153 : vector<2x128xf32>
    %155 = math.tanh %154 : vector<2x128xf32>
    %cst_66 = arith.constant 1.000000e+00 : f32
    %156 = vector.broadcast %cst_66 : f32 to vector<2x128xf32>
    %157 = arith.subf %156, %150 : vector<2x128xf32>
    %158 = arith.mulf %157, %155 : vector<2x128xf32>
    %159 = arith.mulf %150, %128 : vector<2x128xf32>
    %160 = arith.addf %158, %159 : vector<2x128xf32>
    %c0_67 = arith.constant 0 : index
    %c3 = arith.constant 3 : index
    %c0_68 = arith.constant 0 : index
    %161 = vector.load %arg17[%c0_67, %c3, %c0_68] : memref<2x32x384xf32, #tpu.memory_space<vmem>>, vector<2x1x384xf32>
    %162 = vector.shape_cast %161 : vector<2x1x384xf32> to vector<2x384xf32>
    %163 = arith.truncf %160 : vector<2x128xf32> to vector<2x128xbf16>
    %cst_69 = arith.constant dense<0.000000e+00> : vector<2x384xf32>
    %164 = tpu.matmul %163, %62, %cst_69 {dimension_numbers = #tpu.dot_dimension_numbers<[1], [0], [0], [1], [0, 0, 1, 1], [], []>} : vector<2x128xbf16>, vector<128x384xbf16>, vector<2x384xf32> -> vector<2x384xf32>
    %165 = vector.broadcast %63 : vector<1x384xf32> to vector<2x384xf32>
    %166 = arith.addf %164, %165 : vector<2x384xf32>
    %167 = vector.extract_strided_slice %162 {offsets = [0, 0], sizes = [2, 128], strides = [1, 1]} : vector<2x384xf32> to vector<2x128xf32>
    %168 = vector.extract_strided_slice %166 {offsets = [0, 0], sizes = [2, 128], strides = [1, 1]} : vector<2x384xf32> to vector<2x128xf32>
    %169 = arith.addf %167, %168 : vector<2x128xf32>
    %170 = arith.negf %169 : vector<2x128xf32>
    %171 = math.exp %170 : vector<2x128xf32>
    %cst_70 = arith.constant 1.000000e+00 : f32
    %172 = vector.broadcast %cst_70 : f32 to vector<2x128xf32>
    %173 = arith.addf %172, %171 : vector<2x128xf32>
    %174 = arith.divf %172, %173 : vector<2x128xf32>
    %175 = vector.extract_strided_slice %162 {offsets = [0, 128], sizes = [2, 128], strides = [1, 1]} : vector<2x384xf32> to vector<2x128xf32>
    %176 = vector.extract_strided_slice %166 {offsets = [0, 128], sizes = [2, 128], strides = [1, 1]} : vector<2x384xf32> to vector<2x128xf32>
    %177 = arith.addf %175, %176 : vector<2x128xf32>
    %178 = arith.negf %177 : vector<2x128xf32>
    %179 = math.exp %178 : vector<2x128xf32>
    %cst_71 = arith.constant 1.000000e+00 : f32
    %180 = vector.broadcast %cst_71 : f32 to vector<2x128xf32>
    %181 = arith.addf %180, %179 : vector<2x128xf32>
    %182 = arith.divf %180, %181 : vector<2x128xf32>
    %183 = vector.extract_strided_slice %162 {offsets = [0, 256], sizes = [2, 128], strides = [1, 1]} : vector<2x384xf32> to vector<2x128xf32>
    %184 = vector.extract_strided_slice %166 {offsets = [0, 256], sizes = [2, 128], strides = [1, 1]} : vector<2x384xf32> to vector<2x128xf32>
    %185 = arith.mulf %174, %184 : vector<2x128xf32>
    %186 = arith.addf %183, %185 : vector<2x128xf32>
    %187 = math.tanh %186 : vector<2x128xf32>
    %cst_72 = arith.constant 1.000000e+00 : f32
    %188 = vector.broadcast %cst_72 : f32 to vector<2x128xf32>
    %189 = arith.subf %188, %182 : vector<2x128xf32>
    %190 = arith.mulf %189, %187 : vector<2x128xf32>
    %191 = arith.mulf %182, %160 : vector<2x128xf32>
    %192 = arith.addf %190, %191 : vector<2x128xf32>
    %c0_73 = arith.constant 0 : index
    %c4 = arith.constant 4 : index
    %c0_74 = arith.constant 0 : index
    %193 = vector.load %arg17[%c0_73, %c4, %c0_74] : memref<2x32x384xf32, #tpu.memory_space<vmem>>, vector<2x1x384xf32>
    %194 = vector.shape_cast %193 : vector<2x1x384xf32> to vector<2x384xf32>
    %195 = arith.truncf %192 : vector<2x128xf32> to vector<2x128xbf16>
    %cst_75 = arith.constant dense<0.000000e+00> : vector<2x384xf32>
    %196 = tpu.matmul %195, %62, %cst_75 {dimension_numbers = #tpu.dot_dimension_numbers<[1], [0], [0], [1], [0, 0, 1, 1], [], []>} : vector<2x128xbf16>, vector<128x384xbf16>, vector<2x384xf32> -> vector<2x384xf32>
    %197 = vector.broadcast %63 : vector<1x384xf32> to vector<2x384xf32>
    %198 = arith.addf %196, %197 : vector<2x384xf32>
    %199 = vector.extract_strided_slice %194 {offsets = [0, 0], sizes = [2, 128], strides = [1, 1]} : vector<2x384xf32> to vector<2x128xf32>
    %200 = vector.extract_strided_slice %198 {offsets = [0, 0], sizes = [2, 128], strides = [1, 1]} : vector<2x384xf32> to vector<2x128xf32>
    %201 = arith.addf %199, %200 : vector<2x128xf32>
    %202 = arith.negf %201 : vector<2x128xf32>
    %203 = math.exp %202 : vector<2x128xf32>
    %cst_76 = arith.constant 1.000000e+00 : f32
    %204 = vector.broadcast %cst_76 : f32 to vector<2x128xf32>
    %205 = arith.addf %204, %203 : vector<2x128xf32>
    %206 = arith.divf %204, %205 : vector<2x128xf32>
    %207 = vector.extract_strided_slice %194 {offsets = [0, 128], sizes = [2, 128], strides = [1, 1]} : vector<2x384xf32> to vector<2x128xf32>
    %208 = vector.extract_strided_slice %198 {offsets = [0, 128], sizes = [2, 128], strides = [1, 1]} : vector<2x384xf32> to vector<2x128xf32>
    %209 = arith.addf %207, %208 : vector<2x128xf32>
    %210 = arith.negf %209 : vector<2x128xf32>
    %211 = math.exp %210 : vector<2x128xf32>
    %cst_77 = arith.constant 1.000000e+00 : f32
    %212 = vector.broadcast %cst_77 : f32 to vector<2x128xf32>
    %213 = arith.addf %212, %211 : vector<2x128xf32>
    %214 = arith.divf %212, %213 : vector<2x128xf32>
    %215 = vector.extract_strided_slice %194 {offsets = [0, 256], sizes = [2, 128], strides = [1, 1]} : vector<2x384xf32> to vector<2x128xf32>
    %216 = vector.extract_strided_slice %198 {offsets = [0, 256], sizes = [2, 128], strides = [1, 1]} : vector<2x384xf32> to vector<2x128xf32>
    %217 = arith.mulf %206, %216 : vector<2x128xf32>
    %218 = arith.addf %215, %217 : vector<2x128xf32>
    %219 = math.tanh %218 : vector<2x128xf32>
    %cst_78 = arith.constant 1.000000e+00 : f32
    %220 = vector.broadcast %cst_78 : f32 to vector<2x128xf32>
    %221 = arith.subf %220, %214 : vector<2x128xf32>
    %222 = arith.mulf %221, %219 : vector<2x128xf32>
    %223 = arith.mulf %214, %192 : vector<2x128xf32>
    %224 = arith.addf %222, %223 : vector<2x128xf32>
    %c0_79 = arith.constant 0 : index
    %c5 = arith.constant 5 : index
    %c0_80 = arith.constant 0 : index
    %225 = vector.load %arg17[%c0_79, %c5, %c0_80] : memref<2x32x384xf32, #tpu.memory_space<vmem>>, vector<2x1x384xf32>
    %226 = vector.shape_cast %225 : vector<2x1x384xf32> to vector<2x384xf32>
    %227 = arith.truncf %224 : vector<2x128xf32> to vector<2x128xbf16>
    %cst_81 = arith.constant dense<0.000000e+00> : vector<2x384xf32>
    %228 = tpu.matmul %227, %62, %cst_81 {dimension_numbers = #tpu.dot_dimension_numbers<[1], [0], [0], [1], [0, 0, 1, 1], [], []>} : vector<2x128xbf16>, vector<128x384xbf16>, vector<2x384xf32> -> vector<2x384xf32>
    %229 = vector.broadcast %63 : vector<1x384xf32> to vector<2x384xf32>
    %230 = arith.addf %228, %229 : vector<2x384xf32>
    %231 = vector.extract_strided_slice %226 {offsets = [0, 0], sizes = [2, 128], strides = [1, 1]} : vector<2x384xf32> to vector<2x128xf32>
    %232 = vector.extract_strided_slice %230 {offsets = [0, 0], sizes = [2, 128], strides = [1, 1]} : vector<2x384xf32> to vector<2x128xf32>
    %233 = arith.addf %231, %232 : vector<2x128xf32>
    %234 = arith.negf %233 : vector<2x128xf32>
    %235 = math.exp %234 : vector<2x128xf32>
    %cst_82 = arith.constant 1.000000e+00 : f32
    %236 = vector.broadcast %cst_82 : f32 to vector<2x128xf32>
    %237 = arith.addf %236, %235 : vector<2x128xf32>
    %238 = arith.divf %236, %237 : vector<2x128xf32>
    %239 = vector.extract_strided_slice %226 {offsets = [0, 128], sizes = [2, 128], strides = [1, 1]} : vector<2x384xf32> to vector<2x128xf32>
    %240 = vector.extract_strided_slice %230 {offsets = [0, 128], sizes = [2, 128], strides = [1, 1]} : vector<2x384xf32> to vector<2x128xf32>
    %241 = arith.addf %239, %240 : vector<2x128xf32>
    %242 = arith.negf %241 : vector<2x128xf32>
    %243 = math.exp %242 : vector<2x128xf32>
    %cst_83 = arith.constant 1.000000e+00 : f32
    %244 = vector.broadcast %cst_83 : f32 to vector<2x128xf32>
    %245 = arith.addf %244, %243 : vector<2x128xf32>
    %246 = arith.divf %244, %245 : vector<2x128xf32>
    %247 = vector.extract_strided_slice %226 {offsets = [0, 256], sizes = [2, 128], strides = [1, 1]} : vector<2x384xf32> to vector<2x128xf32>
    %248 = vector.extract_strided_slice %230 {offsets = [0, 256], sizes = [2, 128], strides = [1, 1]} : vector<2x384xf32> to vector<2x128xf32>
    %249 = arith.mulf %238, %248 : vector<2x128xf32>
    %250 = arith.addf %247, %249 : vector<2x128xf32>
    %251 = math.tanh %250 : vector<2x128xf32>
    %cst_84 = arith.constant 1.000000e+00 : f32
    %252 = vector.broadcast %cst_84 : f32 to vector<2x128xf32>
    %253 = arith.subf %252, %246 : vector<2x128xf32>
    %254 = arith.mulf %253, %251 : vector<2x128xf32>
    %255 = arith.mulf %246, %224 : vector<2x128xf32>
    %256 = arith.addf %254, %255 : vector<2x128xf32>
    %c0_85 = arith.constant 0 : index
    %c6 = arith.constant 6 : index
    %c0_86 = arith.constant 0 : index
    %257 = vector.load %arg17[%c0_85, %c6, %c0_86] : memref<2x32x384xf32, #tpu.memory_space<vmem>>, vector<2x1x384xf32>
    %258 = vector.shape_cast %257 : vector<2x1x384xf32> to vector<2x384xf32>
    %259 = arith.truncf %256 : vector<2x128xf32> to vector<2x128xbf16>
    %cst_87 = arith.constant dense<0.000000e+00> : vector<2x384xf32>
    %260 = tpu.matmul %259, %62, %cst_87 {dimension_numbers = #tpu.dot_dimension_numbers<[1], [0], [0], [1], [0, 0, 1, 1], [], []>} : vector<2x128xbf16>, vector<128x384xbf16>, vector<2x384xf32> -> vector<2x384xf32>
    %261 = vector.broadcast %63 : vector<1x384xf32> to vector<2x384xf32>
    %262 = arith.addf %260, %261 : vector<2x384xf32>
    %263 = vector.extract_strided_slice %258 {offsets = [0, 0], sizes = [2, 128], strides = [1, 1]} : vector<2x384xf32> to vector<2x128xf32>
    %264 = vector.extract_strided_slice %262 {offsets = [0, 0], sizes = [2, 128], strides = [1, 1]} : vector<2x384xf32> to vector<2x128xf32>
    %265 = arith.addf %263, %264 : vector<2x128xf32>
    %266 = arith.negf %265 : vector<2x128xf32>
    %267 = math.exp %266 : vector<2x128xf32>
    %cst_88 = arith.constant 1.000000e+00 : f32
    %268 = vector.broadcast %cst_88 : f32 to vector<2x128xf32>
    %269 = arith.addf %268, %267 : vector<2x128xf32>
    %270 = arith.divf %268, %269 : vector<2x128xf32>
    %271 = vector.extract_strided_slice %258 {offsets = [0, 128], sizes = [2, 128], strides = [1, 1]} : vector<2x384xf32> to vector<2x128xf32>
    %272 = vector.extract_strided_slice %262 {offsets = [0, 128], sizes = [2, 128], strides = [1, 1]} : vector<2x384xf32> to vector<2x128xf32>
    %273 = arith.addf %271, %272 : vector<2x128xf32>
    %274 = arith.negf %273 : vector<2x128xf32>
    %275 = math.exp %274 : vector<2x128xf32>
    %cst_89 = arith.constant 1.000000e+00 : f32
    %276 = vector.broadcast %cst_89 : f32 to vector<2x128xf32>
    %277 = arith.addf %276, %275 : vector<2x128xf32>
    %278 = arith.divf %276, %277 : vector<2x128xf32>
    %279 = vector.extract_strided_slice %258 {offsets = [0, 256], sizes = [2, 128], strides = [1, 1]} : vector<2x384xf32> to vector<2x128xf32>
    %280 = vector.extract_strided_slice %262 {offsets = [0, 256], sizes = [2, 128], strides = [1, 1]} : vector<2x384xf32> to vector<2x128xf32>
    %281 = arith.mulf %270, %280 : vector<2x128xf32>
    %282 = arith.addf %279, %281 : vector<2x128xf32>
    %283 = math.tanh %282 : vector<2x128xf32>
    %cst_90 = arith.constant 1.000000e+00 : f32
    %284 = vector.broadcast %cst_90 : f32 to vector<2x128xf32>
    %285 = arith.subf %284, %278 : vector<2x128xf32>
    %286 = arith.mulf %285, %283 : vector<2x128xf32>
    %287 = arith.mulf %278, %256 : vector<2x128xf32>
    %288 = arith.addf %286, %287 : vector<2x128xf32>
    %c0_91 = arith.constant 0 : index
    %c7 = arith.constant 7 : index
    %c0_92 = arith.constant 0 : index
    %289 = vector.load %arg17[%c0_91, %c7, %c0_92] : memref<2x32x384xf32, #tpu.memory_space<vmem>>, vector<2x1x384xf32>
    %290 = vector.shape_cast %289 : vector<2x1x384xf32> to vector<2x384xf32>
    %291 = arith.truncf %288 : vector<2x128xf32> to vector<2x128xbf16>
    %cst_93 = arith.constant dense<0.000000e+00> : vector<2x384xf32>
    %292 = tpu.matmul %291, %62, %cst_93 {dimension_numbers = #tpu.dot_dimension_numbers<[1], [0], [0], [1], [0, 0, 1, 1], [], []>} : vector<2x128xbf16>, vector<128x384xbf16>, vector<2x384xf32> -> vector<2x384xf32>
    %293 = vector.broadcast %63 : vector<1x384xf32> to vector<2x384xf32>
    %294 = arith.addf %292, %293 : vector<2x384xf32>
    %295 = vector.extract_strided_slice %290 {offsets = [0, 0], sizes = [2, 128], strides = [1, 1]} : vector<2x384xf32> to vector<2x128xf32>
    %296 = vector.extract_strided_slice %294 {offsets = [0, 0], sizes = [2, 128], strides = [1, 1]} : vector<2x384xf32> to vector<2x128xf32>
    %297 = arith.addf %295, %296 : vector<2x128xf32>
    %298 = arith.negf %297 : vector<2x128xf32>
    %299 = math.exp %298 : vector<2x128xf32>
    %cst_94 = arith.constant 1.000000e+00 : f32
    %300 = vector.broadcast %cst_94 : f32 to vector<2x128xf32>
    %301 = arith.addf %300, %299 : vector<2x128xf32>
    %302 = arith.divf %300, %301 : vector<2x128xf32>
    %303 = vector.extract_strided_slice %290 {offsets = [0, 128], sizes = [2, 128], strides = [1, 1]} : vector<2x384xf32> to vector<2x128xf32>
    %304 = vector.extract_strided_slice %294 {offsets = [0, 128], sizes = [2, 128], strides = [1, 1]} : vector<2x384xf32> to vector<2x128xf32>
    %305 = arith.addf %303, %304 : vector<2x128xf32>
    %306 = arith.negf %305 : vector<2x128xf32>
    %307 = math.exp %306 : vector<2x128xf32>
    %cst_95 = arith.constant 1.000000e+00 : f32
    %308 = vector.broadcast %cst_95 : f32 to vector<2x128xf32>
    %309 = arith.addf %308, %307 : vector<2x128xf32>
    %310 = arith.divf %308, %309 : vector<2x128xf32>
    %311 = vector.extract_strided_slice %290 {offsets = [0, 256], sizes = [2, 128], strides = [1, 1]} : vector<2x384xf32> to vector<2x128xf32>
    %312 = vector.extract_strided_slice %294 {offsets = [0, 256], sizes = [2, 128], strides = [1, 1]} : vector<2x384xf32> to vector<2x128xf32>
    %313 = arith.mulf %302, %312 : vector<2x128xf32>
    %314 = arith.addf %311, %313 : vector<2x128xf32>
    %315 = math.tanh %314 : vector<2x128xf32>
    %cst_96 = arith.constant 1.000000e+00 : f32
    %316 = vector.broadcast %cst_96 : f32 to vector<2x128xf32>
    %317 = arith.subf %316, %310 : vector<2x128xf32>
    %318 = arith.mulf %317, %315 : vector<2x128xf32>
    %319 = arith.mulf %310, %288 : vector<2x128xf32>
    %320 = arith.addf %318, %319 : vector<2x128xf32>
    %c0_97 = arith.constant 0 : index
    %c8 = arith.constant 8 : index
    %c0_98 = arith.constant 0 : index
    %321 = vector.load %arg17[%c0_97, %c8, %c0_98] : memref<2x32x384xf32, #tpu.memory_space<vmem>>, vector<2x1x384xf32>
    %322 = vector.shape_cast %321 : vector<2x1x384xf32> to vector<2x384xf32>
    %323 = arith.truncf %320 : vector<2x128xf32> to vector<2x128xbf16>
    %cst_99 = arith.constant dense<0.000000e+00> : vector<2x384xf32>
    %324 = tpu.matmul %323, %62, %cst_99 {dimension_numbers = #tpu.dot_dimension_numbers<[1], [0], [0], [1], [0, 0, 1, 1], [], []>} : vector<2x128xbf16>, vector<128x384xbf16>, vector<2x384xf32> -> vector<2x384xf32>
    %325 = vector.broadcast %63 : vector<1x384xf32> to vector<2x384xf32>
    %326 = arith.addf %324, %325 : vector<2x384xf32>
    %327 = vector.extract_strided_slice %322 {offsets = [0, 0], sizes = [2, 128], strides = [1, 1]} : vector<2x384xf32> to vector<2x128xf32>
    %328 = vector.extract_strided_slice %326 {offsets = [0, 0], sizes = [2, 128], strides = [1, 1]} : vector<2x384xf32> to vector<2x128xf32>
    %329 = arith.addf %327, %328 : vector<2x128xf32>
    %330 = arith.negf %329 : vector<2x128xf32>
    %331 = math.exp %330 : vector<2x128xf32>
    %cst_100 = arith.constant 1.000000e+00 : f32
    %332 = vector.broadcast %cst_100 : f32 to vector<2x128xf32>
    %333 = arith.addf %332, %331 : vector<2x128xf32>
    %334 = arith.divf %332, %333 : vector<2x128xf32>
    %335 = vector.extract_strided_slice %322 {offsets = [0, 128], sizes = [2, 128], strides = [1, 1]} : vector<2x384xf32> to vector<2x128xf32>
    %336 = vector.extract_strided_slice %326 {offsets = [0, 128], sizes = [2, 128], strides = [1, 1]} : vector<2x384xf32> to vector<2x128xf32>
    %337 = arith.addf %335, %336 : vector<2x128xf32>
    %338 = arith.negf %337 : vector<2x128xf32>
    %339 = math.exp %338 : vector<2x128xf32>
    %cst_101 = arith.constant 1.000000e+00 : f32
    %340 = vector.broadcast %cst_101 : f32 to vector<2x128xf32>
    %341 = arith.addf %340, %339 : vector<2x128xf32>
    %342 = arith.divf %340, %341 : vector<2x128xf32>
    %343 = vector.extract_strided_slice %322 {offsets = [0, 256], sizes = [2, 128], strides = [1, 1]} : vector<2x384xf32> to vector<2x128xf32>
    %344 = vector.extract_strided_slice %326 {offsets = [0, 256], sizes = [2, 128], strides = [1, 1]} : vector<2x384xf32> to vector<2x128xf32>
    %345 = arith.mulf %334, %344 : vector<2x128xf32>
    %346 = arith.addf %343, %345 : vector<2x128xf32>
    %347 = math.tanh %346 : vector<2x128xf32>
    %cst_102 = arith.constant 1.000000e+00 : f32
    %348 = vector.broadcast %cst_102 : f32 to vector<2x128xf32>
    %349 = arith.subf %348, %342 : vector<2x128xf32>
    %350 = arith.mulf %349, %347 : vector<2x128xf32>
    %351 = arith.mulf %342, %320 : vector<2x128xf32>
    %352 = arith.addf %350, %351 : vector<2x128xf32>
    %c0_103 = arith.constant 0 : index
    %c9 = arith.constant 9 : index
    %c0_104 = arith.constant 0 : index
    %353 = vector.load %arg17[%c0_103, %c9, %c0_104] : memref<2x32x384xf32, #tpu.memory_space<vmem>>, vector<2x1x384xf32>
    %354 = vector.shape_cast %353 : vector<2x1x384xf32> to vector<2x384xf32>
    %355 = arith.truncf %352 : vector<2x128xf32> to vector<2x128xbf16>
    %cst_105 = arith.constant dense<0.000000e+00> : vector<2x384xf32>
    %356 = tpu.matmul %355, %62, %cst_105 {dimension_numbers = #tpu.dot_dimension_numbers<[1], [0], [0], [1], [0, 0, 1, 1], [], []>} : vector<2x128xbf16>, vector<128x384xbf16>, vector<2x384xf32> -> vector<2x384xf32>
    %357 = vector.broadcast %63 : vector<1x384xf32> to vector<2x384xf32>
    %358 = arith.addf %356, %357 : vector<2x384xf32>
    %359 = vector.extract_strided_slice %354 {offsets = [0, 0], sizes = [2, 128], strides = [1, 1]} : vector<2x384xf32> to vector<2x128xf32>
    %360 = vector.extract_strided_slice %358 {offsets = [0, 0], sizes = [2, 128], strides = [1, 1]} : vector<2x384xf32> to vector<2x128xf32>
    %361 = arith.addf %359, %360 : vector<2x128xf32>
    %362 = arith.negf %361 : vector<2x128xf32>
    %363 = math.exp %362 : vector<2x128xf32>
    %cst_106 = arith.constant 1.000000e+00 : f32
    %364 = vector.broadcast %cst_106 : f32 to vector<2x128xf32>
    %365 = arith.addf %364, %363 : vector<2x128xf32>
    %366 = arith.divf %364, %365 : vector<2x128xf32>
    %367 = vector.extract_strided_slice %354 {offsets = [0, 128], sizes = [2, 128], strides = [1, 1]} : vector<2x384xf32> to vector<2x128xf32>
    %368 = vector.extract_strided_slice %358 {offsets = [0, 128], sizes = [2, 128], strides = [1, 1]} : vector<2x384xf32> to vector<2x128xf32>
    %369 = arith.addf %367, %368 : vector<2x128xf32>
    %370 = arith.negf %369 : vector<2x128xf32>
    %371 = math.exp %370 : vector<2x128xf32>
    %cst_107 = arith.constant 1.000000e+00 : f32
    %372 = vector.broadcast %cst_107 : f32 to vector<2x128xf32>
    %373 = arith.addf %372, %371 : vector<2x128xf32>
    %374 = arith.divf %372, %373 : vector<2x128xf32>
    %375 = vector.extract_strided_slice %354 {offsets = [0, 256], sizes = [2, 128], strides = [1, 1]} : vector<2x384xf32> to vector<2x128xf32>
    %376 = vector.extract_strided_slice %358 {offsets = [0, 256], sizes = [2, 128], strides = [1, 1]} : vector<2x384xf32> to vector<2x128xf32>
    %377 = arith.mulf %366, %376 : vector<2x128xf32>
    %378 = arith.addf %375, %377 : vector<2x128xf32>
    %379 = math.tanh %378 : vector<2x128xf32>
    %cst_108 = arith.constant 1.000000e+00 : f32
    %380 = vector.broadcast %cst_108 : f32 to vector<2x128xf32>
    %381 = arith.subf %380, %374 : vector<2x128xf32>
    %382 = arith.mulf %381, %379 : vector<2x128xf32>
    %383 = arith.mulf %374, %352 : vector<2x128xf32>
    %384 = arith.addf %382, %383 : vector<2x128xf32>
    %c0_109 = arith.constant 0 : index
    %c10 = arith.constant 10 : index
    %c0_110 = arith.constant 0 : index
    %385 = vector.load %arg17[%c0_109, %c10, %c0_110] : memref<2x32x384xf32, #tpu.memory_space<vmem>>, vector<2x1x384xf32>
    %386 = vector.shape_cast %385 : vector<2x1x384xf32> to vector<2x384xf32>
    %387 = arith.truncf %384 : vector<2x128xf32> to vector<2x128xbf16>
    %cst_111 = arith.constant dense<0.000000e+00> : vector<2x384xf32>
    %388 = tpu.matmul %387, %62, %cst_111 {dimension_numbers = #tpu.dot_dimension_numbers<[1], [0], [0], [1], [0, 0, 1, 1], [], []>} : vector<2x128xbf16>, vector<128x384xbf16>, vector<2x384xf32> -> vector<2x384xf32>
    %389 = vector.broadcast %63 : vector<1x384xf32> to vector<2x384xf32>
    %390 = arith.addf %388, %389 : vector<2x384xf32>
    %391 = vector.extract_strided_slice %386 {offsets = [0, 0], sizes = [2, 128], strides = [1, 1]} : vector<2x384xf32> to vector<2x128xf32>
    %392 = vector.extract_strided_slice %390 {offsets = [0, 0], sizes = [2, 128], strides = [1, 1]} : vector<2x384xf32> to vector<2x128xf32>
    %393 = arith.addf %391, %392 : vector<2x128xf32>
    %394 = arith.negf %393 : vector<2x128xf32>
    %395 = math.exp %394 : vector<2x128xf32>
    %cst_112 = arith.constant 1.000000e+00 : f32
    %396 = vector.broadcast %cst_112 : f32 to vector<2x128xf32>
    %397 = arith.addf %396, %395 : vector<2x128xf32>
    %398 = arith.divf %396, %397 : vector<2x128xf32>
    %399 = vector.extract_strided_slice %386 {offsets = [0, 128], sizes = [2, 128], strides = [1, 1]} : vector<2x384xf32> to vector<2x128xf32>
    %400 = vector.extract_strided_slice %390 {offsets = [0, 128], sizes = [2, 128], strides = [1, 1]} : vector<2x384xf32> to vector<2x128xf32>
    %401 = arith.addf %399, %400 : vector<2x128xf32>
    %402 = arith.negf %401 : vector<2x128xf32>
    %403 = math.exp %402 : vector<2x128xf32>
    %cst_113 = arith.constant 1.000000e+00 : f32
    %404 = vector.broadcast %cst_113 : f32 to vector<2x128xf32>
    %405 = arith.addf %404, %403 : vector<2x128xf32>
    %406 = arith.divf %404, %405 : vector<2x128xf32>
    %407 = vector.extract_strided_slice %386 {offsets = [0, 256], sizes = [2, 128], strides = [1, 1]} : vector<2x384xf32> to vector<2x128xf32>
    %408 = vector.extract_strided_slice %390 {offsets = [0, 256], sizes = [2, 128], strides = [1, 1]} : vector<2x384xf32> to vector<2x128xf32>
    %409 = arith.mulf %398, %408 : vector<2x128xf32>
    %410 = arith.addf %407, %409 : vector<2x128xf32>
    %411 = math.tanh %410 : vector<2x128xf32>
    %cst_114 = arith.constant 1.000000e+00 : f32
    %412 = vector.broadcast %cst_114 : f32 to vector<2x128xf32>
    %413 = arith.subf %412, %406 : vector<2x128xf32>
    %414 = arith.mulf %413, %411 : vector<2x128xf32>
    %415 = arith.mulf %406, %384 : vector<2x128xf32>
    %416 = arith.addf %414, %415 : vector<2x128xf32>
    %c0_115 = arith.constant 0 : index
    %c11 = arith.constant 11 : index
    %c0_116 = arith.constant 0 : index
    %417 = vector.load %arg17[%c0_115, %c11, %c0_116] : memref<2x32x384xf32, #tpu.memory_space<vmem>>, vector<2x1x384xf32>
    %418 = vector.shape_cast %417 : vector<2x1x384xf32> to vector<2x384xf32>
    %419 = arith.truncf %416 : vector<2x128xf32> to vector<2x128xbf16>
    %cst_117 = arith.constant dense<0.000000e+00> : vector<2x384xf32>
    %420 = tpu.matmul %419, %62, %cst_117 {dimension_numbers = #tpu.dot_dimension_numbers<[1], [0], [0], [1], [0, 0, 1, 1], [], []>} : vector<2x128xbf16>, vector<128x384xbf16>, vector<2x384xf32> -> vector<2x384xf32>
    %421 = vector.broadcast %63 : vector<1x384xf32> to vector<2x384xf32>
    %422 = arith.addf %420, %421 : vector<2x384xf32>
    %423 = vector.extract_strided_slice %418 {offsets = [0, 0], sizes = [2, 128], strides = [1, 1]} : vector<2x384xf32> to vector<2x128xf32>
    %424 = vector.extract_strided_slice %422 {offsets = [0, 0], sizes = [2, 128], strides = [1, 1]} : vector<2x384xf32> to vector<2x128xf32>
    %425 = arith.addf %423, %424 : vector<2x128xf32>
    %426 = arith.negf %425 : vector<2x128xf32>
    %427 = math.exp %426 : vector<2x128xf32>
    %cst_118 = arith.constant 1.000000e+00 : f32
    %428 = vector.broadcast %cst_118 : f32 to vector<2x128xf32>
    %429 = arith.addf %428, %427 : vector<2x128xf32>
    %430 = arith.divf %428, %429 : vector<2x128xf32>
    %431 = vector.extract_strided_slice %418 {offsets = [0, 128], sizes = [2, 128], strides = [1, 1]} : vector<2x384xf32> to vector<2x128xf32>
    %432 = vector.extract_strided_slice %422 {offsets = [0, 128], sizes = [2, 128], strides = [1, 1]} : vector<2x384xf32> to vector<2x128xf32>
    %433 = arith.addf %431, %432 : vector<2x128xf32>
    %434 = arith.negf %433 : vector<2x128xf32>
    %435 = math.exp %434 : vector<2x128xf32>
    %cst_119 = arith.constant 1.000000e+00 : f32
    %436 = vector.broadcast %cst_119 : f32 to vector<2x128xf32>
    %437 = arith.addf %436, %435 : vector<2x128xf32>
    %438 = arith.divf %436, %437 : vector<2x128xf32>
    %439 = vector.extract_strided_slice %418 {offsets = [0, 256], sizes = [2, 128], strides = [1, 1]} : vector<2x384xf32> to vector<2x128xf32>
    %440 = vector.extract_strided_slice %422 {offsets = [0, 256], sizes = [2, 128], strides = [1, 1]} : vector<2x384xf32> to vector<2x128xf32>
    %441 = arith.mulf %430, %440 : vector<2x128xf32>
    %442 = arith.addf %439, %441 : vector<2x128xf32>
    %443 = math.tanh %442 : vector<2x128xf32>
    %cst_120 = arith.constant 1.000000e+00 : f32
    %444 = vector.broadcast %cst_120 : f32 to vector<2x128xf32>
    %445 = arith.subf %444, %438 : vector<2x128xf32>
    %446 = arith.mulf %445, %443 : vector<2x128xf32>
    %447 = arith.mulf %438, %416 : vector<2x128xf32>
    %448 = arith.addf %446, %447 : vector<2x128xf32>
    %c0_121 = arith.constant 0 : index
    %c12 = arith.constant 12 : index
    %c0_122 = arith.constant 0 : index
    %449 = vector.load %arg17[%c0_121, %c12, %c0_122] : memref<2x32x384xf32, #tpu.memory_space<vmem>>, vector<2x1x384xf32>
    %450 = vector.shape_cast %449 : vector<2x1x384xf32> to vector<2x384xf32>
    %451 = arith.truncf %448 : vector<2x128xf32> to vector<2x128xbf16>
    %cst_123 = arith.constant dense<0.000000e+00> : vector<2x384xf32>
    %452 = tpu.matmul %451, %62, %cst_123 {dimension_numbers = #tpu.dot_dimension_numbers<[1], [0], [0], [1], [0, 0, 1, 1], [], []>} : vector<2x128xbf16>, vector<128x384xbf16>, vector<2x384xf32> -> vector<2x384xf32>
    %453 = vector.broadcast %63 : vector<1x384xf32> to vector<2x384xf32>
    %454 = arith.addf %452, %453 : vector<2x384xf32>
    %455 = vector.extract_strided_slice %450 {offsets = [0, 0], sizes = [2, 128], strides = [1, 1]} : vector<2x384xf32> to vector<2x128xf32>
    %456 = vector.extract_strided_slice %454 {offsets = [0, 0], sizes = [2, 128], strides = [1, 1]} : vector<2x384xf32> to vector<2x128xf32>
    %457 = arith.addf %455, %456 : vector<2x128xf32>
    %458 = arith.negf %457 : vector<2x128xf32>
    %459 = math.exp %458 : vector<2x128xf32>
    %cst_124 = arith.constant 1.000000e+00 : f32
    %460 = vector.broadcast %cst_124 : f32 to vector<2x128xf32>
    %461 = arith.addf %460, %459 : vector<2x128xf32>
    %462 = arith.divf %460, %461 : vector<2x128xf32>
    %463 = vector.extract_strided_slice %450 {offsets = [0, 128], sizes = [2, 128], strides = [1, 1]} : vector<2x384xf32> to vector<2x128xf32>
    %464 = vector.extract_strided_slice %454 {offsets = [0, 128], sizes = [2, 128], strides = [1, 1]} : vector<2x384xf32> to vector<2x128xf32>
    %465 = arith.addf %463, %464 : vector<2x128xf32>
    %466 = arith.negf %465 : vector<2x128xf32>
    %467 = math.exp %466 : vector<2x128xf32>
    %cst_125 = arith.constant 1.000000e+00 : f32
    %468 = vector.broadcast %cst_125 : f32 to vector<2x128xf32>
    %469 = arith.addf %468, %467 : vector<2x128xf32>
    %470 = arith.divf %468, %469 : vector<2x128xf32>
    %471 = vector.extract_strided_slice %450 {offsets = [0, 256], sizes = [2, 128], strides = [1, 1]} : vector<2x384xf32> to vector<2x128xf32>
    %472 = vector.extract_strided_slice %454 {offsets = [0, 256], sizes = [2, 128], strides = [1, 1]} : vector<2x384xf32> to vector<2x128xf32>
    %473 = arith.mulf %462, %472 : vector<2x128xf32>
    %474 = arith.addf %471, %473 : vector<2x128xf32>
    %475 = math.tanh %474 : vector<2x128xf32>
    %cst_126 = arith.constant 1.000000e+00 : f32
    %476 = vector.broadcast %cst_126 : f32 to vector<2x128xf32>
    %477 = arith.subf %476, %470 : vector<2x128xf32>
    %478 = arith.mulf %477, %475 : vector<2x128xf32>
    %479 = arith.mulf %470, %448 : vector<2x128xf32>
    %480 = arith.addf %478, %479 : vector<2x128xf32>
    %c0_127 = arith.constant 0 : index
    %c13 = arith.constant 13 : index
    %c0_128 = arith.constant 0 : index
    %481 = vector.load %arg17[%c0_127, %c13, %c0_128] : memref<2x32x384xf32, #tpu.memory_space<vmem>>, vector<2x1x384xf32>
    %482 = vector.shape_cast %481 : vector<2x1x384xf32> to vector<2x384xf32>
    %483 = arith.truncf %480 : vector<2x128xf32> to vector<2x128xbf16>
    %cst_129 = arith.constant dense<0.000000e+00> : vector<2x384xf32>
    %484 = tpu.matmul %483, %62, %cst_129 {dimension_numbers = #tpu.dot_dimension_numbers<[1], [0], [0], [1], [0, 0, 1, 1], [], []>} : vector<2x128xbf16>, vector<128x384xbf16>, vector<2x384xf32> -> vector<2x384xf32>
    %485 = vector.broadcast %63 : vector<1x384xf32> to vector<2x384xf32>
    %486 = arith.addf %484, %485 : vector<2x384xf32>
    %487 = vector.extract_strided_slice %482 {offsets = [0, 0], sizes = [2, 128], strides = [1, 1]} : vector<2x384xf32> to vector<2x128xf32>
    %488 = vector.extract_strided_slice %486 {offsets = [0, 0], sizes = [2, 128], strides = [1, 1]} : vector<2x384xf32> to vector<2x128xf32>
    %489 = arith.addf %487, %488 : vector<2x128xf32>
    %490 = arith.negf %489 : vector<2x128xf32>
    %491 = math.exp %490 : vector<2x128xf32>
    %cst_130 = arith.constant 1.000000e+00 : f32
    %492 = vector.broadcast %cst_130 : f32 to vector<2x128xf32>
    %493 = arith.addf %492, %491 : vector<2x128xf32>
    %494 = arith.divf %492, %493 : vector<2x128xf32>
    %495 = vector.extract_strided_slice %482 {offsets = [0, 128], sizes = [2, 128], strides = [1, 1]} : vector<2x384xf32> to vector<2x128xf32>
    %496 = vector.extract_strided_slice %486 {offsets = [0, 128], sizes = [2, 128], strides = [1, 1]} : vector<2x384xf32> to vector<2x128xf32>
    %497 = arith.addf %495, %496 : vector<2x128xf32>
    %498 = arith.negf %497 : vector<2x128xf32>
    %499 = math.exp %498 : vector<2x128xf32>
    %cst_131 = arith.constant 1.000000e+00 : f32
    %500 = vector.broadcast %cst_131 : f32 to vector<2x128xf32>
    %501 = arith.addf %500, %499 : vector<2x128xf32>
    %502 = arith.divf %500, %501 : vector<2x128xf32>
    %503 = vector.extract_strided_slice %482 {offsets = [0, 256], sizes = [2, 128], strides = [1, 1]} : vector<2x384xf32> to vector<2x128xf32>
    %504 = vector.extract_strided_slice %486 {offsets = [0, 256], sizes = [2, 128], strides = [1, 1]} : vector<2x384xf32> to vector<2x128xf32>
    %505 = arith.mulf %494, %504 : vector<2x128xf32>
    %506 = arith.addf %503, %505 : vector<2x128xf32>
    %507 = math.tanh %506 : vector<2x128xf32>
    %cst_132 = arith.constant 1.000000e+00 : f32
    %508 = vector.broadcast %cst_132 : f32 to vector<2x128xf32>
    %509 = arith.subf %508, %502 : vector<2x128xf32>
    %510 = arith.mulf %509, %507 : vector<2x128xf32>
    %511 = arith.mulf %502, %480 : vector<2x128xf32>
    %512 = arith.addf %510, %511 : vector<2x128xf32>
    %c0_133 = arith.constant 0 : index
    %c14 = arith.constant 14 : index
    %c0_134 = arith.constant 0 : index
    %513 = vector.load %arg17[%c0_133, %c14, %c0_134] : memref<2x32x384xf32, #tpu.memory_space<vmem>>, vector<2x1x384xf32>
    %514 = vector.shape_cast %513 : vector<2x1x384xf32> to vector<2x384xf32>
    %515 = arith.truncf %512 : vector<2x128xf32> to vector<2x128xbf16>
    %cst_135 = arith.constant dense<0.000000e+00> : vector<2x384xf32>
    %516 = tpu.matmul %515, %62, %cst_135 {dimension_numbers = #tpu.dot_dimension_numbers<[1], [0], [0], [1], [0, 0, 1, 1], [], []>} : vector<2x128xbf16>, vector<128x384xbf16>, vector<2x384xf32> -> vector<2x384xf32>
    %517 = vector.broadcast %63 : vector<1x384xf32> to vector<2x384xf32>
    %518 = arith.addf %516, %517 : vector<2x384xf32>
    %519 = vector.extract_strided_slice %514 {offsets = [0, 0], sizes = [2, 128], strides = [1, 1]} : vector<2x384xf32> to vector<2x128xf32>
    %520 = vector.extract_strided_slice %518 {offsets = [0, 0], sizes = [2, 128], strides = [1, 1]} : vector<2x384xf32> to vector<2x128xf32>
    %521 = arith.addf %519, %520 : vector<2x128xf32>
    %522 = arith.negf %521 : vector<2x128xf32>
    %523 = math.exp %522 : vector<2x128xf32>
    %cst_136 = arith.constant 1.000000e+00 : f32
    %524 = vector.broadcast %cst_136 : f32 to vector<2x128xf32>
    %525 = arith.addf %524, %523 : vector<2x128xf32>
    %526 = arith.divf %524, %525 : vector<2x128xf32>
    %527 = vector.extract_strided_slice %514 {offsets = [0, 128], sizes = [2, 128], strides = [1, 1]} : vector<2x384xf32> to vector<2x128xf32>
    %528 = vector.extract_strided_slice %518 {offsets = [0, 128], sizes = [2, 128], strides = [1, 1]} : vector<2x384xf32> to vector<2x128xf32>
    %529 = arith.addf %527, %528 : vector<2x128xf32>
    %530 = arith.negf %529 : vector<2x128xf32>
    %531 = math.exp %530 : vector<2x128xf32>
    %cst_137 = arith.constant 1.000000e+00 : f32
    %532 = vector.broadcast %cst_137 : f32 to vector<2x128xf32>
    %533 = arith.addf %532, %531 : vector<2x128xf32>
    %534 = arith.divf %532, %533 : vector<2x128xf32>
    %535 = vector.extract_strided_slice %514 {offsets = [0, 256], sizes = [2, 128], strides = [1, 1]} : vector<2x384xf32> to vector<2x128xf32>
    %536 = vector.extract_strided_slice %518 {offsets = [0, 256], sizes = [2, 128], strides = [1, 1]} : vector<2x384xf32> to vector<2x128xf32>
    %537 = arith.mulf %526, %536 : vector<2x128xf32>
    %538 = arith.addf %535, %537 : vector<2x128xf32>
    %539 = math.tanh %538 : vector<2x128xf32>
    %cst_138 = arith.constant 1.000000e+00 : f32
    %540 = vector.broadcast %cst_138 : f32 to vector<2x128xf32>
    %541 = arith.subf %540, %534 : vector<2x128xf32>
    %542 = arith.mulf %541, %539 : vector<2x128xf32>
    %543 = arith.mulf %534, %512 : vector<2x128xf32>
    %544 = arith.addf %542, %543 : vector<2x128xf32>
    %c0_139 = arith.constant 0 : index
    %c15 = arith.constant 15 : index
    %c0_140 = arith.constant 0 : index
    %545 = vector.load %arg17[%c0_139, %c15, %c0_140] : memref<2x32x384xf32, #tpu.memory_space<vmem>>, vector<2x1x384xf32>
    %546 = vector.shape_cast %545 : vector<2x1x384xf32> to vector<2x384xf32>
    %547 = arith.truncf %544 : vector<2x128xf32> to vector<2x128xbf16>
    %cst_141 = arith.constant dense<0.000000e+00> : vector<2x384xf32>
    %548 = tpu.matmul %547, %62, %cst_141 {dimension_numbers = #tpu.dot_dimension_numbers<[1], [0], [0], [1], [0, 0, 1, 1], [], []>} : vector<2x128xbf16>, vector<128x384xbf16>, vector<2x384xf32> -> vector<2x384xf32>
    %549 = vector.broadcast %63 : vector<1x384xf32> to vector<2x384xf32>
    %550 = arith.addf %548, %549 : vector<2x384xf32>
    %551 = vector.extract_strided_slice %546 {offsets = [0, 0], sizes = [2, 128], strides = [1, 1]} : vector<2x384xf32> to vector<2x128xf32>
    %552 = vector.extract_strided_slice %550 {offsets = [0, 0], sizes = [2, 128], strides = [1, 1]} : vector<2x384xf32> to vector<2x128xf32>
    %553 = arith.addf %551, %552 : vector<2x128xf32>
    %554 = arith.negf %553 : vector<2x128xf32>
    %555 = math.exp %554 : vector<2x128xf32>
    %cst_142 = arith.constant 1.000000e+00 : f32
    %556 = vector.broadcast %cst_142 : f32 to vector<2x128xf32>
    %557 = arith.addf %556, %555 : vector<2x128xf32>
    %558 = arith.divf %556, %557 : vector<2x128xf32>
    %559 = vector.extract_strided_slice %546 {offsets = [0, 128], sizes = [2, 128], strides = [1, 1]} : vector<2x384xf32> to vector<2x128xf32>
    %560 = vector.extract_strided_slice %550 {offsets = [0, 128], sizes = [2, 128], strides = [1, 1]} : vector<2x384xf32> to vector<2x128xf32>
    %561 = arith.addf %559, %560 : vector<2x128xf32>
    %562 = arith.negf %561 : vector<2x128xf32>
    %563 = math.exp %562 : vector<2x128xf32>
    %cst_143 = arith.constant 1.000000e+00 : f32
    %564 = vector.broadcast %cst_143 : f32 to vector<2x128xf32>
    %565 = arith.addf %564, %563 : vector<2x128xf32>
    %566 = arith.divf %564, %565 : vector<2x128xf32>
    %567 = vector.extract_strided_slice %546 {offsets = [0, 256], sizes = [2, 128], strides = [1, 1]} : vector<2x384xf32> to vector<2x128xf32>
    %568 = vector.extract_strided_slice %550 {offsets = [0, 256], sizes = [2, 128], strides = [1, 1]} : vector<2x384xf32> to vector<2x128xf32>
    %569 = arith.mulf %558, %568 : vector<2x128xf32>
    %570 = arith.addf %567, %569 : vector<2x128xf32>
    %571 = math.tanh %570 : vector<2x128xf32>
    %cst_144 = arith.constant 1.000000e+00 : f32
    %572 = vector.broadcast %cst_144 : f32 to vector<2x128xf32>
    %573 = arith.subf %572, %566 : vector<2x128xf32>
    %574 = arith.mulf %573, %571 : vector<2x128xf32>
    %575 = arith.mulf %566, %544 : vector<2x128xf32>
    %576 = arith.addf %574, %575 : vector<2x128xf32>
    %c0_145 = arith.constant 0 : index
    %c16 = arith.constant 16 : index
    %c0_146 = arith.constant 0 : index
    %577 = vector.load %arg17[%c0_145, %c16, %c0_146] : memref<2x32x384xf32, #tpu.memory_space<vmem>>, vector<2x1x384xf32>
    %578 = vector.shape_cast %577 : vector<2x1x384xf32> to vector<2x384xf32>
    %579 = arith.truncf %576 : vector<2x128xf32> to vector<2x128xbf16>
    %cst_147 = arith.constant dense<0.000000e+00> : vector<2x384xf32>
    %580 = tpu.matmul %579, %62, %cst_147 {dimension_numbers = #tpu.dot_dimension_numbers<[1], [0], [0], [1], [0, 0, 1, 1], [], []>} : vector<2x128xbf16>, vector<128x384xbf16>, vector<2x384xf32> -> vector<2x384xf32>
    %581 = vector.broadcast %63 : vector<1x384xf32> to vector<2x384xf32>
    %582 = arith.addf %580, %581 : vector<2x384xf32>
    %583 = vector.extract_strided_slice %578 {offsets = [0, 0], sizes = [2, 128], strides = [1, 1]} : vector<2x384xf32> to vector<2x128xf32>
    %584 = vector.extract_strided_slice %582 {offsets = [0, 0], sizes = [2, 128], strides = [1, 1]} : vector<2x384xf32> to vector<2x128xf32>
    %585 = arith.addf %583, %584 : vector<2x128xf32>
    %586 = arith.negf %585 : vector<2x128xf32>
    %587 = math.exp %586 : vector<2x128xf32>
    %cst_148 = arith.constant 1.000000e+00 : f32
    %588 = vector.broadcast %cst_148 : f32 to vector<2x128xf32>
    %589 = arith.addf %588, %587 : vector<2x128xf32>
    %590 = arith.divf %588, %589 : vector<2x128xf32>
    %591 = vector.extract_strided_slice %578 {offsets = [0, 128], sizes = [2, 128], strides = [1, 1]} : vector<2x384xf32> to vector<2x128xf32>
    %592 = vector.extract_strided_slice %582 {offsets = [0, 128], sizes = [2, 128], strides = [1, 1]} : vector<2x384xf32> to vector<2x128xf32>
    %593 = arith.addf %591, %592 : vector<2x128xf32>
    %594 = arith.negf %593 : vector<2x128xf32>
    %595 = math.exp %594 : vector<2x128xf32>
    %cst_149 = arith.constant 1.000000e+00 : f32
    %596 = vector.broadcast %cst_149 : f32 to vector<2x128xf32>
    %597 = arith.addf %596, %595 : vector<2x128xf32>
    %598 = arith.divf %596, %597 : vector<2x128xf32>
    %599 = vector.extract_strided_slice %578 {offsets = [0, 256], sizes = [2, 128], strides = [1, 1]} : vector<2x384xf32> to vector<2x128xf32>
    %600 = vector.extract_strided_slice %582 {offsets = [0, 256], sizes = [2, 128], strides = [1, 1]} : vector<2x384xf32> to vector<2x128xf32>
    %601 = arith.mulf %590, %600 : vector<2x128xf32>
    %602 = arith.addf %599, %601 : vector<2x128xf32>
    %603 = math.tanh %602 : vector<2x128xf32>
    %cst_150 = arith.constant 1.000000e+00 : f32
    %604 = vector.broadcast %cst_150 : f32 to vector<2x128xf32>
    %605 = arith.subf %604, %598 : vector<2x128xf32>
    %606 = arith.mulf %605, %603 : vector<2x128xf32>
    %607 = arith.mulf %598, %576 : vector<2x128xf32>
    %608 = arith.addf %606, %607 : vector<2x128xf32>
    %c0_151 = arith.constant 0 : index
    %c17 = arith.constant 17 : index
    %c0_152 = arith.constant 0 : index
    %609 = vector.load %arg17[%c0_151, %c17, %c0_152] : memref<2x32x384xf32, #tpu.memory_space<vmem>>, vector<2x1x384xf32>
    %610 = vector.shape_cast %609 : vector<2x1x384xf32> to vector<2x384xf32>
    %611 = arith.truncf %608 : vector<2x128xf32> to vector<2x128xbf16>
    %cst_153 = arith.constant dense<0.000000e+00> : vector<2x384xf32>
    %612 = tpu.matmul %611, %62, %cst_153 {dimension_numbers = #tpu.dot_dimension_numbers<[1], [0], [0], [1], [0, 0, 1, 1], [], []>} : vector<2x128xbf16>, vector<128x384xbf16>, vector<2x384xf32> -> vector<2x384xf32>
    %613 = vector.broadcast %63 : vector<1x384xf32> to vector<2x384xf32>
    %614 = arith.addf %612, %613 : vector<2x384xf32>
    %615 = vector.extract_strided_slice %610 {offsets = [0, 0], sizes = [2, 128], strides = [1, 1]} : vector<2x384xf32> to vector<2x128xf32>
    %616 = vector.extract_strided_slice %614 {offsets = [0, 0], sizes = [2, 128], strides = [1, 1]} : vector<2x384xf32> to vector<2x128xf32>
    %617 = arith.addf %615, %616 : vector<2x128xf32>
    %618 = arith.negf %617 : vector<2x128xf32>
    %619 = math.exp %618 : vector<2x128xf32>
    %cst_154 = arith.constant 1.000000e+00 : f32
    %620 = vector.broadcast %cst_154 : f32 to vector<2x128xf32>
    %621 = arith.addf %620, %619 : vector<2x128xf32>
    %622 = arith.divf %620, %621 : vector<2x128xf32>
    %623 = vector.extract_strided_slice %610 {offsets = [0, 128], sizes = [2, 128], strides = [1, 1]} : vector<2x384xf32> to vector<2x128xf32>
    %624 = vector.extract_strided_slice %614 {offsets = [0, 128], sizes = [2, 128], strides = [1, 1]} : vector<2x384xf32> to vector<2x128xf32>
    %625 = arith.addf %623, %624 : vector<2x128xf32>
    %626 = arith.negf %625 : vector<2x128xf32>
    %627 = math.exp %626 : vector<2x128xf32>
    %cst_155 = arith.constant 1.000000e+00 : f32
    %628 = vector.broadcast %cst_155 : f32 to vector<2x128xf32>
    %629 = arith.addf %628, %627 : vector<2x128xf32>
    %630 = arith.divf %628, %629 : vector<2x128xf32>
    %631 = vector.extract_strided_slice %610 {offsets = [0, 256], sizes = [2, 128], strides = [1, 1]} : vector<2x384xf32> to vector<2x128xf32>
    %632 = vector.extract_strided_slice %614 {offsets = [0, 256], sizes = [2, 128], strides = [1, 1]} : vector<2x384xf32> to vector<2x128xf32>
    %633 = arith.mulf %622, %632 : vector<2x128xf32>
    %634 = arith.addf %631, %633 : vector<2x128xf32>
    %635 = math.tanh %634 : vector<2x128xf32>
    %cst_156 = arith.constant 1.000000e+00 : f32
    %636 = vector.broadcast %cst_156 : f32 to vector<2x128xf32>
    %637 = arith.subf %636, %630 : vector<2x128xf32>
    %638 = arith.mulf %637, %635 : vector<2x128xf32>
    %639 = arith.mulf %630, %608 : vector<2x128xf32>
    %640 = arith.addf %638, %639 : vector<2x128xf32>
    %c0_157 = arith.constant 0 : index
    %c18 = arith.constant 18 : index
    %c0_158 = arith.constant 0 : index
    %641 = vector.load %arg17[%c0_157, %c18, %c0_158] : memref<2x32x384xf32, #tpu.memory_space<vmem>>, vector<2x1x384xf32>
    %642 = vector.shape_cast %641 : vector<2x1x384xf32> to vector<2x384xf32>
    %643 = arith.truncf %640 : vector<2x128xf32> to vector<2x128xbf16>
    %cst_159 = arith.constant dense<0.000000e+00> : vector<2x384xf32>
    %644 = tpu.matmul %643, %62, %cst_159 {dimension_numbers = #tpu.dot_dimension_numbers<[1], [0], [0], [1], [0, 0, 1, 1], [], []>} : vector<2x128xbf16>, vector<128x384xbf16>, vector<2x384xf32> -> vector<2x384xf32>
    %645 = vector.broadcast %63 : vector<1x384xf32> to vector<2x384xf32>
    %646 = arith.addf %644, %645 : vector<2x384xf32>
    %647 = vector.extract_strided_slice %642 {offsets = [0, 0], sizes = [2, 128], strides = [1, 1]} : vector<2x384xf32> to vector<2x128xf32>
    %648 = vector.extract_strided_slice %646 {offsets = [0, 0], sizes = [2, 128], strides = [1, 1]} : vector<2x384xf32> to vector<2x128xf32>
    %649 = arith.addf %647, %648 : vector<2x128xf32>
    %650 = arith.negf %649 : vector<2x128xf32>
    %651 = math.exp %650 : vector<2x128xf32>
    %cst_160 = arith.constant 1.000000e+00 : f32
    %652 = vector.broadcast %cst_160 : f32 to vector<2x128xf32>
    %653 = arith.addf %652, %651 : vector<2x128xf32>
    %654 = arith.divf %652, %653 : vector<2x128xf32>
    %655 = vector.extract_strided_slice %642 {offsets = [0, 128], sizes = [2, 128], strides = [1, 1]} : vector<2x384xf32> to vector<2x128xf32>
    %656 = vector.extract_strided_slice %646 {offsets = [0, 128], sizes = [2, 128], strides = [1, 1]} : vector<2x384xf32> to vector<2x128xf32>
    %657 = arith.addf %655, %656 : vector<2x128xf32>
    %658 = arith.negf %657 : vector<2x128xf32>
    %659 = math.exp %658 : vector<2x128xf32>
    %cst_161 = arith.constant 1.000000e+00 : f32
    %660 = vector.broadcast %cst_161 : f32 to vector<2x128xf32>
    %661 = arith.addf %660, %659 : vector<2x128xf32>
    %662 = arith.divf %660, %661 : vector<2x128xf32>
    %663 = vector.extract_strided_slice %642 {offsets = [0, 256], sizes = [2, 128], strides = [1, 1]} : vector<2x384xf32> to vector<2x128xf32>
    %664 = vector.extract_strided_slice %646 {offsets = [0, 256], sizes = [2, 128], strides = [1, 1]} : vector<2x384xf32> to vector<2x128xf32>
    %665 = arith.mulf %654, %664 : vector<2x128xf32>
    %666 = arith.addf %663, %665 : vector<2x128xf32>
    %667 = math.tanh %666 : vector<2x128xf32>
    %cst_162 = arith.constant 1.000000e+00 : f32
    %668 = vector.broadcast %cst_162 : f32 to vector<2x128xf32>
    %669 = arith.subf %668, %662 : vector<2x128xf32>
    %670 = arith.mulf %669, %667 : vector<2x128xf32>
    %671 = arith.mulf %662, %640 : vector<2x128xf32>
    %672 = arith.addf %670, %671 : vector<2x128xf32>
    %c0_163 = arith.constant 0 : index
    %c19 = arith.constant 19 : index
    %c0_164 = arith.constant 0 : index
    %673 = vector.load %arg17[%c0_163, %c19, %c0_164] : memref<2x32x384xf32, #tpu.memory_space<vmem>>, vector<2x1x384xf32>
    %674 = vector.shape_cast %673 : vector<2x1x384xf32> to vector<2x384xf32>
    %675 = arith.truncf %672 : vector<2x128xf32> to vector<2x128xbf16>
    %cst_165 = arith.constant dense<0.000000e+00> : vector<2x384xf32>
    %676 = tpu.matmul %675, %62, %cst_165 {dimension_numbers = #tpu.dot_dimension_numbers<[1], [0], [0], [1], [0, 0, 1, 1], [], []>} : vector<2x128xbf16>, vector<128x384xbf16>, vector<2x384xf32> -> vector<2x384xf32>
    %677 = vector.broadcast %63 : vector<1x384xf32> to vector<2x384xf32>
    %678 = arith.addf %676, %677 : vector<2x384xf32>
    %679 = vector.extract_strided_slice %674 {offsets = [0, 0], sizes = [2, 128], strides = [1, 1]} : vector<2x384xf32> to vector<2x128xf32>
    %680 = vector.extract_strided_slice %678 {offsets = [0, 0], sizes = [2, 128], strides = [1, 1]} : vector<2x384xf32> to vector<2x128xf32>
    %681 = arith.addf %679, %680 : vector<2x128xf32>
    %682 = arith.negf %681 : vector<2x128xf32>
    %683 = math.exp %682 : vector<2x128xf32>
    %cst_166 = arith.constant 1.000000e+00 : f32
    %684 = vector.broadcast %cst_166 : f32 to vector<2x128xf32>
    %685 = arith.addf %684, %683 : vector<2x128xf32>
    %686 = arith.divf %684, %685 : vector<2x128xf32>
    %687 = vector.extract_strided_slice %674 {offsets = [0, 128], sizes = [2, 128], strides = [1, 1]} : vector<2x384xf32> to vector<2x128xf32>
    %688 = vector.extract_strided_slice %678 {offsets = [0, 128], sizes = [2, 128], strides = [1, 1]} : vector<2x384xf32> to vector<2x128xf32>
    %689 = arith.addf %687, %688 : vector<2x128xf32>
    %690 = arith.negf %689 : vector<2x128xf32>
    %691 = math.exp %690 : vector<2x128xf32>
    %cst_167 = arith.constant 1.000000e+00 : f32
    %692 = vector.broadcast %cst_167 : f32 to vector<2x128xf32>
    %693 = arith.addf %692, %691 : vector<2x128xf32>
    %694 = arith.divf %692, %693 : vector<2x128xf32>
    %695 = vector.extract_strided_slice %674 {offsets = [0, 256], sizes = [2, 128], strides = [1, 1]} : vector<2x384xf32> to vector<2x128xf32>
    %696 = vector.extract_strided_slice %678 {offsets = [0, 256], sizes = [2, 128], strides = [1, 1]} : vector<2x384xf32> to vector<2x128xf32>
    %697 = arith.mulf %686, %696 : vector<2x128xf32>
    %698 = arith.addf %695, %697 : vector<2x128xf32>
    %699 = math.tanh %698 : vector<2x128xf32>
    %cst_168 = arith.constant 1.000000e+00 : f32
    %700 = vector.broadcast %cst_168 : f32 to vector<2x128xf32>
    %701 = arith.subf %700, %694 : vector<2x128xf32>
    %702 = arith.mulf %701, %699 : vector<2x128xf32>
    %703 = arith.mulf %694, %672 : vector<2x128xf32>
    %704 = arith.addf %702, %703 : vector<2x128xf32>
    %c0_169 = arith.constant 0 : index
    %c20 = arith.constant 20 : index
    %c0_170 = arith.constant 0 : index
    %705 = vector.load %arg17[%c0_169, %c20, %c0_170] : memref<2x32x384xf32, #tpu.memory_space<vmem>>, vector<2x1x384xf32>
    %706 = vector.shape_cast %705 : vector<2x1x384xf32> to vector<2x384xf32>
    %707 = arith.truncf %704 : vector<2x128xf32> to vector<2x128xbf16>
    %cst_171 = arith.constant dense<0.000000e+00> : vector<2x384xf32>
    %708 = tpu.matmul %707, %62, %cst_171 {dimension_numbers = #tpu.dot_dimension_numbers<[1], [0], [0], [1], [0, 0, 1, 1], [], []>} : vector<2x128xbf16>, vector<128x384xbf16>, vector<2x384xf32> -> vector<2x384xf32>
    %709 = vector.broadcast %63 : vector<1x384xf32> to vector<2x384xf32>
    %710 = arith.addf %708, %709 : vector<2x384xf32>
    %711 = vector.extract_strided_slice %706 {offsets = [0, 0], sizes = [2, 128], strides = [1, 1]} : vector<2x384xf32> to vector<2x128xf32>
    %712 = vector.extract_strided_slice %710 {offsets = [0, 0], sizes = [2, 128], strides = [1, 1]} : vector<2x384xf32> to vector<2x128xf32>
    %713 = arith.addf %711, %712 : vector<2x128xf32>
    %714 = arith.negf %713 : vector<2x128xf32>
    %715 = math.exp %714 : vector<2x128xf32>
    %cst_172 = arith.constant 1.000000e+00 : f32
    %716 = vector.broadcast %cst_172 : f32 to vector<2x128xf32>
    %717 = arith.addf %716, %715 : vector<2x128xf32>
    %718 = arith.divf %716, %717 : vector<2x128xf32>
    %719 = vector.extract_strided_slice %706 {offsets = [0, 128], sizes = [2, 128], strides = [1, 1]} : vector<2x384xf32> to vector<2x128xf32>
    %720 = vector.extract_strided_slice %710 {offsets = [0, 128], sizes = [2, 128], strides = [1, 1]} : vector<2x384xf32> to vector<2x128xf32>
    %721 = arith.addf %719, %720 : vector<2x128xf32>
    %722 = arith.negf %721 : vector<2x128xf32>
    %723 = math.exp %722 : vector<2x128xf32>
    %cst_173 = arith.constant 1.000000e+00 : f32
    %724 = vector.broadcast %cst_173 : f32 to vector<2x128xf32>
    %725 = arith.addf %724, %723 : vector<2x128xf32>
    %726 = arith.divf %724, %725 : vector<2x128xf32>
    %727 = vector.extract_strided_slice %706 {offsets = [0, 256], sizes = [2, 128], strides = [1, 1]} : vector<2x384xf32> to vector<2x128xf32>
    %728 = vector.extract_strided_slice %710 {offsets = [0, 256], sizes = [2, 128], strides = [1, 1]} : vector<2x384xf32> to vector<2x128xf32>
    %729 = arith.mulf %718, %728 : vector<2x128xf32>
    %730 = arith.addf %727, %729 : vector<2x128xf32>
    %731 = math.tanh %730 : vector<2x128xf32>
    %cst_174 = arith.constant 1.000000e+00 : f32
    %732 = vector.broadcast %cst_174 : f32 to vector<2x128xf32>
    %733 = arith.subf %732, %726 : vector<2x128xf32>
    %734 = arith.mulf %733, %731 : vector<2x128xf32>
    %735 = arith.mulf %726, %704 : vector<2x128xf32>
    %736 = arith.addf %734, %735 : vector<2x128xf32>
    %c0_175 = arith.constant 0 : index
    %c21 = arith.constant 21 : index
    %c0_176 = arith.constant 0 : index
    %737 = vector.load %arg17[%c0_175, %c21, %c0_176] : memref<2x32x384xf32, #tpu.memory_space<vmem>>, vector<2x1x384xf32>
    %738 = vector.shape_cast %737 : vector<2x1x384xf32> to vector<2x384xf32>
    %739 = arith.truncf %736 : vector<2x128xf32> to vector<2x128xbf16>
    %cst_177 = arith.constant dense<0.000000e+00> : vector<2x384xf32>
    %740 = tpu.matmul %739, %62, %cst_177 {dimension_numbers = #tpu.dot_dimension_numbers<[1], [0], [0], [1], [0, 0, 1, 1], [], []>} : vector<2x128xbf16>, vector<128x384xbf16>, vector<2x384xf32> -> vector<2x384xf32>
    %741 = vector.broadcast %63 : vector<1x384xf32> to vector<2x384xf32>
    %742 = arith.addf %740, %741 : vector<2x384xf32>
    %743 = vector.extract_strided_slice %738 {offsets = [0, 0], sizes = [2, 128], strides = [1, 1]} : vector<2x384xf32> to vector<2x128xf32>
    %744 = vector.extract_strided_slice %742 {offsets = [0, 0], sizes = [2, 128], strides = [1, 1]} : vector<2x384xf32> to vector<2x128xf32>
    %745 = arith.addf %743, %744 : vector<2x128xf32>
    %746 = arith.negf %745 : vector<2x128xf32>
    %747 = math.exp %746 : vector<2x128xf32>
    %cst_178 = arith.constant 1.000000e+00 : f32
    %748 = vector.broadcast %cst_178 : f32 to vector<2x128xf32>
    %749 = arith.addf %748, %747 : vector<2x128xf32>
    %750 = arith.divf %748, %749 : vector<2x128xf32>
    %751 = vector.extract_strided_slice %738 {offsets = [0, 128], sizes = [2, 128], strides = [1, 1]} : vector<2x384xf32> to vector<2x128xf32>
    %752 = vector.extract_strided_slice %742 {offsets = [0, 128], sizes = [2, 128], strides = [1, 1]} : vector<2x384xf32> to vector<2x128xf32>
    %753 = arith.addf %751, %752 : vector<2x128xf32>
    %754 = arith.negf %753 : vector<2x128xf32>
    %755 = math.exp %754 : vector<2x128xf32>
    %cst_179 = arith.constant 1.000000e+00 : f32
    %756 = vector.broadcast %cst_179 : f32 to vector<2x128xf32>
    %757 = arith.addf %756, %755 : vector<2x128xf32>
    %758 = arith.divf %756, %757 : vector<2x128xf32>
    %759 = vector.extract_strided_slice %738 {offsets = [0, 256], sizes = [2, 128], strides = [1, 1]} : vector<2x384xf32> to vector<2x128xf32>
    %760 = vector.extract_strided_slice %742 {offsets = [0, 256], sizes = [2, 128], strides = [1, 1]} : vector<2x384xf32> to vector<2x128xf32>
    %761 = arith.mulf %750, %760 : vector<2x128xf32>
    %762 = arith.addf %759, %761 : vector<2x128xf32>
    %763 = math.tanh %762 : vector<2x128xf32>
    %cst_180 = arith.constant 1.000000e+00 : f32
    %764 = vector.broadcast %cst_180 : f32 to vector<2x128xf32>
    %765 = arith.subf %764, %758 : vector<2x128xf32>
    %766 = arith.mulf %765, %763 : vector<2x128xf32>
    %767 = arith.mulf %758, %736 : vector<2x128xf32>
    %768 = arith.addf %766, %767 : vector<2x128xf32>
    %c0_181 = arith.constant 0 : index
    %c22 = arith.constant 22 : index
    %c0_182 = arith.constant 0 : index
    %769 = vector.load %arg17[%c0_181, %c22, %c0_182] : memref<2x32x384xf32, #tpu.memory_space<vmem>>, vector<2x1x384xf32>
    %770 = vector.shape_cast %769 : vector<2x1x384xf32> to vector<2x384xf32>
    %771 = arith.truncf %768 : vector<2x128xf32> to vector<2x128xbf16>
    %cst_183 = arith.constant dense<0.000000e+00> : vector<2x384xf32>
    %772 = tpu.matmul %771, %62, %cst_183 {dimension_numbers = #tpu.dot_dimension_numbers<[1], [0], [0], [1], [0, 0, 1, 1], [], []>} : vector<2x128xbf16>, vector<128x384xbf16>, vector<2x384xf32> -> vector<2x384xf32>
    %773 = vector.broadcast %63 : vector<1x384xf32> to vector<2x384xf32>
    %774 = arith.addf %772, %773 : vector<2x384xf32>
    %775 = vector.extract_strided_slice %770 {offsets = [0, 0], sizes = [2, 128], strides = [1, 1]} : vector<2x384xf32> to vector<2x128xf32>
    %776 = vector.extract_strided_slice %774 {offsets = [0, 0], sizes = [2, 128], strides = [1, 1]} : vector<2x384xf32> to vector<2x128xf32>
    %777 = arith.addf %775, %776 : vector<2x128xf32>
    %778 = arith.negf %777 : vector<2x128xf32>
    %779 = math.exp %778 : vector<2x128xf32>
    %cst_184 = arith.constant 1.000000e+00 : f32
    %780 = vector.broadcast %cst_184 : f32 to vector<2x128xf32>
    %781 = arith.addf %780, %779 : vector<2x128xf32>
    %782 = arith.divf %780, %781 : vector<2x128xf32>
    %783 = vector.extract_strided_slice %770 {offsets = [0, 128], sizes = [2, 128], strides = [1, 1]} : vector<2x384xf32> to vector<2x128xf32>
    %784 = vector.extract_strided_slice %774 {offsets = [0, 128], sizes = [2, 128], strides = [1, 1]} : vector<2x384xf32> to vector<2x128xf32>
    %785 = arith.addf %783, %784 : vector<2x128xf32>
    %786 = arith.negf %785 : vector<2x128xf32>
    %787 = math.exp %786 : vector<2x128xf32>
    %cst_185 = arith.constant 1.000000e+00 : f32
    %788 = vector.broadcast %cst_185 : f32 to vector<2x128xf32>
    %789 = arith.addf %788, %787 : vector<2x128xf32>
    %790 = arith.divf %788, %789 : vector<2x128xf32>
    %791 = vector.extract_strided_slice %770 {offsets = [0, 256], sizes = [2, 128], strides = [1, 1]} : vector<2x384xf32> to vector<2x128xf32>
    %792 = vector.extract_strided_slice %774 {offsets = [0, 256], sizes = [2, 128], strides = [1, 1]} : vector<2x384xf32> to vector<2x128xf32>
    %793 = arith.mulf %782, %792 : vector<2x128xf32>
    %794 = arith.addf %791, %793 : vector<2x128xf32>
    %795 = math.tanh %794 : vector<2x128xf32>
    %cst_186 = arith.constant 1.000000e+00 : f32
    %796 = vector.broadcast %cst_186 : f32 to vector<2x128xf32>
    %797 = arith.subf %796, %790 : vector<2x128xf32>
    %798 = arith.mulf %797, %795 : vector<2x128xf32>
    %799 = arith.mulf %790, %768 : vector<2x128xf32>
    %800 = arith.addf %798, %799 : vector<2x128xf32>
    %c0_187 = arith.constant 0 : index
    %c23 = arith.constant 23 : index
    %c0_188 = arith.constant 0 : index
    %801 = vector.load %arg17[%c0_187, %c23, %c0_188] : memref<2x32x384xf32, #tpu.memory_space<vmem>>, vector<2x1x384xf32>
    %802 = vector.shape_cast %801 : vector<2x1x384xf32> to vector<2x384xf32>
    %803 = arith.truncf %800 : vector<2x128xf32> to vector<2x128xbf16>
    %cst_189 = arith.constant dense<0.000000e+00> : vector<2x384xf32>
    %804 = tpu.matmul %803, %62, %cst_189 {dimension_numbers = #tpu.dot_dimension_numbers<[1], [0], [0], [1], [0, 0, 1, 1], [], []>} : vector<2x128xbf16>, vector<128x384xbf16>, vector<2x384xf32> -> vector<2x384xf32>
    %805 = vector.broadcast %63 : vector<1x384xf32> to vector<2x384xf32>
    %806 = arith.addf %804, %805 : vector<2x384xf32>
    %807 = vector.extract_strided_slice %802 {offsets = [0, 0], sizes = [2, 128], strides = [1, 1]} : vector<2x384xf32> to vector<2x128xf32>
    %808 = vector.extract_strided_slice %806 {offsets = [0, 0], sizes = [2, 128], strides = [1, 1]} : vector<2x384xf32> to vector<2x128xf32>
    %809 = arith.addf %807, %808 : vector<2x128xf32>
    %810 = arith.negf %809 : vector<2x128xf32>
    %811 = math.exp %810 : vector<2x128xf32>
    %cst_190 = arith.constant 1.000000e+00 : f32
    %812 = vector.broadcast %cst_190 : f32 to vector<2x128xf32>
    %813 = arith.addf %812, %811 : vector<2x128xf32>
    %814 = arith.divf %812, %813 : vector<2x128xf32>
    %815 = vector.extract_strided_slice %802 {offsets = [0, 128], sizes = [2, 128], strides = [1, 1]} : vector<2x384xf32> to vector<2x128xf32>
    %816 = vector.extract_strided_slice %806 {offsets = [0, 128], sizes = [2, 128], strides = [1, 1]} : vector<2x384xf32> to vector<2x128xf32>
    %817 = arith.addf %815, %816 : vector<2x128xf32>
    %818 = arith.negf %817 : vector<2x128xf32>
    %819 = math.exp %818 : vector<2x128xf32>
    %cst_191 = arith.constant 1.000000e+00 : f32
    %820 = vector.broadcast %cst_191 : f32 to vector<2x128xf32>
    %821 = arith.addf %820, %819 : vector<2x128xf32>
    %822 = arith.divf %820, %821 : vector<2x128xf32>
    %823 = vector.extract_strided_slice %802 {offsets = [0, 256], sizes = [2, 128], strides = [1, 1]} : vector<2x384xf32> to vector<2x128xf32>
    %824 = vector.extract_strided_slice %806 {offsets = [0, 256], sizes = [2, 128], strides = [1, 1]} : vector<2x384xf32> to vector<2x128xf32>
    %825 = arith.mulf %814, %824 : vector<2x128xf32>
    %826 = arith.addf %823, %825 : vector<2x128xf32>
    %827 = math.tanh %826 : vector<2x128xf32>
    %cst_192 = arith.constant 1.000000e+00 : f32
    %828 = vector.broadcast %cst_192 : f32 to vector<2x128xf32>
    %829 = arith.subf %828, %822 : vector<2x128xf32>
    %830 = arith.mulf %829, %827 : vector<2x128xf32>
    %831 = arith.mulf %822, %800 : vector<2x128xf32>
    %832 = arith.addf %830, %831 : vector<2x128xf32>
    %c0_193 = arith.constant 0 : index
    %c24 = arith.constant 24 : index
    %c0_194 = arith.constant 0 : index
    %833 = vector.load %arg17[%c0_193, %c24, %c0_194] : memref<2x32x384xf32, #tpu.memory_space<vmem>>, vector<2x1x384xf32>
    %834 = vector.shape_cast %833 : vector<2x1x384xf32> to vector<2x384xf32>
    %835 = arith.truncf %832 : vector<2x128xf32> to vector<2x128xbf16>
    %cst_195 = arith.constant dense<0.000000e+00> : vector<2x384xf32>
    %836 = tpu.matmul %835, %62, %cst_195 {dimension_numbers = #tpu.dot_dimension_numbers<[1], [0], [0], [1], [0, 0, 1, 1], [], []>} : vector<2x128xbf16>, vector<128x384xbf16>, vector<2x384xf32> -> vector<2x384xf32>
    %837 = vector.broadcast %63 : vector<1x384xf32> to vector<2x384xf32>
    %838 = arith.addf %836, %837 : vector<2x384xf32>
    %839 = vector.extract_strided_slice %834 {offsets = [0, 0], sizes = [2, 128], strides = [1, 1]} : vector<2x384xf32> to vector<2x128xf32>
    %840 = vector.extract_strided_slice %838 {offsets = [0, 0], sizes = [2, 128], strides = [1, 1]} : vector<2x384xf32> to vector<2x128xf32>
    %841 = arith.addf %839, %840 : vector<2x128xf32>
    %842 = arith.negf %841 : vector<2x128xf32>
    %843 = math.exp %842 : vector<2x128xf32>
    %cst_196 = arith.constant 1.000000e+00 : f32
    %844 = vector.broadcast %cst_196 : f32 to vector<2x128xf32>
    %845 = arith.addf %844, %843 : vector<2x128xf32>
    %846 = arith.divf %844, %845 : vector<2x128xf32>
    %847 = vector.extract_strided_slice %834 {offsets = [0, 128], sizes = [2, 128], strides = [1, 1]} : vector<2x384xf32> to vector<2x128xf32>
    %848 = vector.extract_strided_slice %838 {offsets = [0, 128], sizes = [2, 128], strides = [1, 1]} : vector<2x384xf32> to vector<2x128xf32>
    %849 = arith.addf %847, %848 : vector<2x128xf32>
    %850 = arith.negf %849 : vector<2x128xf32>
    %851 = math.exp %850 : vector<2x128xf32>
    %cst_197 = arith.constant 1.000000e+00 : f32
    %852 = vector.broadcast %cst_197 : f32 to vector<2x128xf32>
    %853 = arith.addf %852, %851 : vector<2x128xf32>
    %854 = arith.divf %852, %853 : vector<2x128xf32>
    %855 = vector.extract_strided_slice %834 {offsets = [0, 256], sizes = [2, 128], strides = [1, 1]} : vector<2x384xf32> to vector<2x128xf32>
    %856 = vector.extract_strided_slice %838 {offsets = [0, 256], sizes = [2, 128], strides = [1, 1]} : vector<2x384xf32> to vector<2x128xf32>
    %857 = arith.mulf %846, %856 : vector<2x128xf32>
    %858 = arith.addf %855, %857 : vector<2x128xf32>
    %859 = math.tanh %858 : vector<2x128xf32>
    %cst_198 = arith.constant 1.000000e+00 : f32
    %860 = vector.broadcast %cst_198 : f32 to vector<2x128xf32>
    %861 = arith.subf %860, %854 : vector<2x128xf32>
    %862 = arith.mulf %861, %859 : vector<2x128xf32>
    %863 = arith.mulf %854, %832 : vector<2x128xf32>
    %864 = arith.addf %862, %863 : vector<2x128xf32>
    %c0_199 = arith.constant 0 : index
    %c25 = arith.constant 25 : index
    %c0_200 = arith.constant 0 : index
    %865 = vector.load %arg17[%c0_199, %c25, %c0_200] : memref<2x32x384xf32, #tpu.memory_space<vmem>>, vector<2x1x384xf32>
    %866 = vector.shape_cast %865 : vector<2x1x384xf32> to vector<2x384xf32>
    %867 = arith.truncf %864 : vector<2x128xf32> to vector<2x128xbf16>
    %cst_201 = arith.constant dense<0.000000e+00> : vector<2x384xf32>
    %868 = tpu.matmul %867, %62, %cst_201 {dimension_numbers = #tpu.dot_dimension_numbers<[1], [0], [0], [1], [0, 0, 1, 1], [], []>} : vector<2x128xbf16>, vector<128x384xbf16>, vector<2x384xf32> -> vector<2x384xf32>
    %869 = vector.broadcast %63 : vector<1x384xf32> to vector<2x384xf32>
    %870 = arith.addf %868, %869 : vector<2x384xf32>
    %871 = vector.extract_strided_slice %866 {offsets = [0, 0], sizes = [2, 128], strides = [1, 1]} : vector<2x384xf32> to vector<2x128xf32>
    %872 = vector.extract_strided_slice %870 {offsets = [0, 0], sizes = [2, 128], strides = [1, 1]} : vector<2x384xf32> to vector<2x128xf32>
    %873 = arith.addf %871, %872 : vector<2x128xf32>
    %874 = arith.negf %873 : vector<2x128xf32>
    %875 = math.exp %874 : vector<2x128xf32>
    %cst_202 = arith.constant 1.000000e+00 : f32
    %876 = vector.broadcast %cst_202 : f32 to vector<2x128xf32>
    %877 = arith.addf %876, %875 : vector<2x128xf32>
    %878 = arith.divf %876, %877 : vector<2x128xf32>
    %879 = vector.extract_strided_slice %866 {offsets = [0, 128], sizes = [2, 128], strides = [1, 1]} : vector<2x384xf32> to vector<2x128xf32>
    %880 = vector.extract_strided_slice %870 {offsets = [0, 128], sizes = [2, 128], strides = [1, 1]} : vector<2x384xf32> to vector<2x128xf32>
    %881 = arith.addf %879, %880 : vector<2x128xf32>
    %882 = arith.negf %881 : vector<2x128xf32>
    %883 = math.exp %882 : vector<2x128xf32>
    %cst_203 = arith.constant 1.000000e+00 : f32
    %884 = vector.broadcast %cst_203 : f32 to vector<2x128xf32>
    %885 = arith.addf %884, %883 : vector<2x128xf32>
    %886 = arith.divf %884, %885 : vector<2x128xf32>
    %887 = vector.extract_strided_slice %866 {offsets = [0, 256], sizes = [2, 128], strides = [1, 1]} : vector<2x384xf32> to vector<2x128xf32>
    %888 = vector.extract_strided_slice %870 {offsets = [0, 256], sizes = [2, 128], strides = [1, 1]} : vector<2x384xf32> to vector<2x128xf32>
    %889 = arith.mulf %878, %888 : vector<2x128xf32>
    %890 = arith.addf %887, %889 : vector<2x128xf32>
    %891 = math.tanh %890 : vector<2x128xf32>
    %cst_204 = arith.constant 1.000000e+00 : f32
    %892 = vector.broadcast %cst_204 : f32 to vector<2x128xf32>
    %893 = arith.subf %892, %886 : vector<2x128xf32>
    %894 = arith.mulf %893, %891 : vector<2x128xf32>
    %895 = arith.mulf %886, %864 : vector<2x128xf32>
    %896 = arith.addf %894, %895 : vector<2x128xf32>
    %c0_205 = arith.constant 0 : index
    %c26 = arith.constant 26 : index
    %c0_206 = arith.constant 0 : index
    %897 = vector.load %arg17[%c0_205, %c26, %c0_206] : memref<2x32x384xf32, #tpu.memory_space<vmem>>, vector<2x1x384xf32>
    %898 = vector.shape_cast %897 : vector<2x1x384xf32> to vector<2x384xf32>
    %899 = arith.truncf %896 : vector<2x128xf32> to vector<2x128xbf16>
    %cst_207 = arith.constant dense<0.000000e+00> : vector<2x384xf32>
    %900 = tpu.matmul %899, %62, %cst_207 {dimension_numbers = #tpu.dot_dimension_numbers<[1], [0], [0], [1], [0, 0, 1, 1], [], []>} : vector<2x128xbf16>, vector<128x384xbf16>, vector<2x384xf32> -> vector<2x384xf32>
    %901 = vector.broadcast %63 : vector<1x384xf32> to vector<2x384xf32>
    %902 = arith.addf %900, %901 : vector<2x384xf32>
    %903 = vector.extract_strided_slice %898 {offsets = [0, 0], sizes = [2, 128], strides = [1, 1]} : vector<2x384xf32> to vector<2x128xf32>
    %904 = vector.extract_strided_slice %902 {offsets = [0, 0], sizes = [2, 128], strides = [1, 1]} : vector<2x384xf32> to vector<2x128xf32>
    %905 = arith.addf %903, %904 : vector<2x128xf32>
    %906 = arith.negf %905 : vector<2x128xf32>
    %907 = math.exp %906 : vector<2x128xf32>
    %cst_208 = arith.constant 1.000000e+00 : f32
    %908 = vector.broadcast %cst_208 : f32 to vector<2x128xf32>
    %909 = arith.addf %908, %907 : vector<2x128xf32>
    %910 = arith.divf %908, %909 : vector<2x128xf32>
    %911 = vector.extract_strided_slice %898 {offsets = [0, 128], sizes = [2, 128], strides = [1, 1]} : vector<2x384xf32> to vector<2x128xf32>
    %912 = vector.extract_strided_slice %902 {offsets = [0, 128], sizes = [2, 128], strides = [1, 1]} : vector<2x384xf32> to vector<2x128xf32>
    %913 = arith.addf %911, %912 : vector<2x128xf32>
    %914 = arith.negf %913 : vector<2x128xf32>
    %915 = math.exp %914 : vector<2x128xf32>
    %cst_209 = arith.constant 1.000000e+00 : f32
    %916 = vector.broadcast %cst_209 : f32 to vector<2x128xf32>
    %917 = arith.addf %916, %915 : vector<2x128xf32>
    %918 = arith.divf %916, %917 : vector<2x128xf32>
    %919 = vector.extract_strided_slice %898 {offsets = [0, 256], sizes = [2, 128], strides = [1, 1]} : vector<2x384xf32> to vector<2x128xf32>
    %920 = vector.extract_strided_slice %902 {offsets = [0, 256], sizes = [2, 128], strides = [1, 1]} : vector<2x384xf32> to vector<2x128xf32>
    %921 = arith.mulf %910, %920 : vector<2x128xf32>
    %922 = arith.addf %919, %921 : vector<2x128xf32>
    %923 = math.tanh %922 : vector<2x128xf32>
    %cst_210 = arith.constant 1.000000e+00 : f32
    %924 = vector.broadcast %cst_210 : f32 to vector<2x128xf32>
    %925 = arith.subf %924, %918 : vector<2x128xf32>
    %926 = arith.mulf %925, %923 : vector<2x128xf32>
    %927 = arith.mulf %918, %896 : vector<2x128xf32>
    %928 = arith.addf %926, %927 : vector<2x128xf32>
    %c0_211 = arith.constant 0 : index
    %c27 = arith.constant 27 : index
    %c0_212 = arith.constant 0 : index
    %929 = vector.load %arg17[%c0_211, %c27, %c0_212] : memref<2x32x384xf32, #tpu.memory_space<vmem>>, vector<2x1x384xf32>
    %930 = vector.shape_cast %929 : vector<2x1x384xf32> to vector<2x384xf32>
    %931 = arith.truncf %928 : vector<2x128xf32> to vector<2x128xbf16>
    %cst_213 = arith.constant dense<0.000000e+00> : vector<2x384xf32>
    %932 = tpu.matmul %931, %62, %cst_213 {dimension_numbers = #tpu.dot_dimension_numbers<[1], [0], [0], [1], [0, 0, 1, 1], [], []>} : vector<2x128xbf16>, vector<128x384xbf16>, vector<2x384xf32> -> vector<2x384xf32>
    %933 = vector.broadcast %63 : vector<1x384xf32> to vector<2x384xf32>
    %934 = arith.addf %932, %933 : vector<2x384xf32>
    %935 = vector.extract_strided_slice %930 {offsets = [0, 0], sizes = [2, 128], strides = [1, 1]} : vector<2x384xf32> to vector<2x128xf32>
    %936 = vector.extract_strided_slice %934 {offsets = [0, 0], sizes = [2, 128], strides = [1, 1]} : vector<2x384xf32> to vector<2x128xf32>
    %937 = arith.addf %935, %936 : vector<2x128xf32>
    %938 = arith.negf %937 : vector<2x128xf32>
    %939 = math.exp %938 : vector<2x128xf32>
    %cst_214 = arith.constant 1.000000e+00 : f32
    %940 = vector.broadcast %cst_214 : f32 to vector<2x128xf32>
    %941 = arith.addf %940, %939 : vector<2x128xf32>
    %942 = arith.divf %940, %941 : vector<2x128xf32>
    %943 = vector.extract_strided_slice %930 {offsets = [0, 128], sizes = [2, 128], strides = [1, 1]} : vector<2x384xf32> to vector<2x128xf32>
    %944 = vector.extract_strided_slice %934 {offsets = [0, 128], sizes = [2, 128], strides = [1, 1]} : vector<2x384xf32> to vector<2x128xf32>
    %945 = arith.addf %943, %944 : vector<2x128xf32>
    %946 = arith.negf %945 : vector<2x128xf32>
    %947 = math.exp %946 : vector<2x128xf32>
    %cst_215 = arith.constant 1.000000e+00 : f32
    %948 = vector.broadcast %cst_215 : f32 to vector<2x128xf32>
    %949 = arith.addf %948, %947 : vector<2x128xf32>
    %950 = arith.divf %948, %949 : vector<2x128xf32>
    %951 = vector.extract_strided_slice %930 {offsets = [0, 256], sizes = [2, 128], strides = [1, 1]} : vector<2x384xf32> to vector<2x128xf32>
    %952 = vector.extract_strided_slice %934 {offsets = [0, 256], sizes = [2, 128], strides = [1, 1]} : vector<2x384xf32> to vector<2x128xf32>
    %953 = arith.mulf %942, %952 : vector<2x128xf32>
    %954 = arith.addf %951, %953 : vector<2x128xf32>
    %955 = math.tanh %954 : vector<2x128xf32>
    %cst_216 = arith.constant 1.000000e+00 : f32
    %956 = vector.broadcast %cst_216 : f32 to vector<2x128xf32>
    %957 = arith.subf %956, %950 : vector<2x128xf32>
    %958 = arith.mulf %957, %955 : vector<2x128xf32>
    %959 = arith.mulf %950, %928 : vector<2x128xf32>
    %960 = arith.addf %958, %959 : vector<2x128xf32>
    %c0_217 = arith.constant 0 : index
    %c28 = arith.constant 28 : index
    %c0_218 = arith.constant 0 : index
    %961 = vector.load %arg17[%c0_217, %c28, %c0_218] : memref<2x32x384xf32, #tpu.memory_space<vmem>>, vector<2x1x384xf32>
    %962 = vector.shape_cast %961 : vector<2x1x384xf32> to vector<2x384xf32>
    %963 = arith.truncf %960 : vector<2x128xf32> to vector<2x128xbf16>
    %cst_219 = arith.constant dense<0.000000e+00> : vector<2x384xf32>
    %964 = tpu.matmul %963, %62, %cst_219 {dimension_numbers = #tpu.dot_dimension_numbers<[1], [0], [0], [1], [0, 0, 1, 1], [], []>} : vector<2x128xbf16>, vector<128x384xbf16>, vector<2x384xf32> -> vector<2x384xf32>
    %965 = vector.broadcast %63 : vector<1x384xf32> to vector<2x384xf32>
    %966 = arith.addf %964, %965 : vector<2x384xf32>
    %967 = vector.extract_strided_slice %962 {offsets = [0, 0], sizes = [2, 128], strides = [1, 1]} : vector<2x384xf32> to vector<2x128xf32>
    %968 = vector.extract_strided_slice %966 {offsets = [0, 0], sizes = [2, 128], strides = [1, 1]} : vector<2x384xf32> to vector<2x128xf32>
    %969 = arith.addf %967, %968 : vector<2x128xf32>
    %970 = arith.negf %969 : vector<2x128xf32>
    %971 = math.exp %970 : vector<2x128xf32>
    %cst_220 = arith.constant 1.000000e+00 : f32
    %972 = vector.broadcast %cst_220 : f32 to vector<2x128xf32>
    %973 = arith.addf %972, %971 : vector<2x128xf32>
    %974 = arith.divf %972, %973 : vector<2x128xf32>
    %975 = vector.extract_strided_slice %962 {offsets = [0, 128], sizes = [2, 128], strides = [1, 1]} : vector<2x384xf32> to vector<2x128xf32>
    %976 = vector.extract_strided_slice %966 {offsets = [0, 128], sizes = [2, 128], strides = [1, 1]} : vector<2x384xf32> to vector<2x128xf32>
    %977 = arith.addf %975, %976 : vector<2x128xf32>
    %978 = arith.negf %977 : vector<2x128xf32>
    %979 = math.exp %978 : vector<2x128xf32>
    %cst_221 = arith.constant 1.000000e+00 : f32
    %980 = vector.broadcast %cst_221 : f32 to vector<2x128xf32>
    %981 = arith.addf %980, %979 : vector<2x128xf32>
    %982 = arith.divf %980, %981 : vector<2x128xf32>
    %983 = vector.extract_strided_slice %962 {offsets = [0, 256], sizes = [2, 128], strides = [1, 1]} : vector<2x384xf32> to vector<2x128xf32>
    %984 = vector.extract_strided_slice %966 {offsets = [0, 256], sizes = [2, 128], strides = [1, 1]} : vector<2x384xf32> to vector<2x128xf32>
    %985 = arith.mulf %974, %984 : vector<2x128xf32>
    %986 = arith.addf %983, %985 : vector<2x128xf32>
    %987 = math.tanh %986 : vector<2x128xf32>
    %cst_222 = arith.constant 1.000000e+00 : f32
    %988 = vector.broadcast %cst_222 : f32 to vector<2x128xf32>
    %989 = arith.subf %988, %982 : vector<2x128xf32>
    %990 = arith.mulf %989, %987 : vector<2x128xf32>
    %991 = arith.mulf %982, %960 : vector<2x128xf32>
    %992 = arith.addf %990, %991 : vector<2x128xf32>
    %c0_223 = arith.constant 0 : index
    %c29 = arith.constant 29 : index
    %c0_224 = arith.constant 0 : index
    %993 = vector.load %arg17[%c0_223, %c29, %c0_224] : memref<2x32x384xf32, #tpu.memory_space<vmem>>, vector<2x1x384xf32>
    %994 = vector.shape_cast %993 : vector<2x1x384xf32> to vector<2x384xf32>
    %995 = arith.truncf %992 : vector<2x128xf32> to vector<2x128xbf16>
    %cst_225 = arith.constant dense<0.000000e+00> : vector<2x384xf32>
    %996 = tpu.matmul %995, %62, %cst_225 {dimension_numbers = #tpu.dot_dimension_numbers<[1], [0], [0], [1], [0, 0, 1, 1], [], []>} : vector<2x128xbf16>, vector<128x384xbf16>, vector<2x384xf32> -> vector<2x384xf32>
    %997 = vector.broadcast %63 : vector<1x384xf32> to vector<2x384xf32>
    %998 = arith.addf %996, %997 : vector<2x384xf32>
    %999 = vector.extract_strided_slice %994 {offsets = [0, 0], sizes = [2, 128], strides = [1, 1]} : vector<2x384xf32> to vector<2x128xf32>
    %1000 = vector.extract_strided_slice %998 {offsets = [0, 0], sizes = [2, 128], strides = [1, 1]} : vector<2x384xf32> to vector<2x128xf32>
    %1001 = arith.addf %999, %1000 : vector<2x128xf32>
    %1002 = arith.negf %1001 : vector<2x128xf32>
    %1003 = math.exp %1002 : vector<2x128xf32>
    %cst_226 = arith.constant 1.000000e+00 : f32
    %1004 = vector.broadcast %cst_226 : f32 to vector<2x128xf32>
    %1005 = arith.addf %1004, %1003 : vector<2x128xf32>
    %1006 = arith.divf %1004, %1005 : vector<2x128xf32>
    %1007 = vector.extract_strided_slice %994 {offsets = [0, 128], sizes = [2, 128], strides = [1, 1]} : vector<2x384xf32> to vector<2x128xf32>
    %1008 = vector.extract_strided_slice %998 {offsets = [0, 128], sizes = [2, 128], strides = [1, 1]} : vector<2x384xf32> to vector<2x128xf32>
    %1009 = arith.addf %1007, %1008 : vector<2x128xf32>
    %1010 = arith.negf %1009 : vector<2x128xf32>
    %1011 = math.exp %1010 : vector<2x128xf32>
    %cst_227 = arith.constant 1.000000e+00 : f32
    %1012 = vector.broadcast %cst_227 : f32 to vector<2x128xf32>
    %1013 = arith.addf %1012, %1011 : vector<2x128xf32>
    %1014 = arith.divf %1012, %1013 : vector<2x128xf32>
    %1015 = vector.extract_strided_slice %994 {offsets = [0, 256], sizes = [2, 128], strides = [1, 1]} : vector<2x384xf32> to vector<2x128xf32>
    %1016 = vector.extract_strided_slice %998 {offsets = [0, 256], sizes = [2, 128], strides = [1, 1]} : vector<2x384xf32> to vector<2x128xf32>
    %1017 = arith.mulf %1006, %1016 : vector<2x128xf32>
    %1018 = arith.addf %1015, %1017 : vector<2x128xf32>
    %1019 = math.tanh %1018 : vector<2x128xf32>
    %cst_228 = arith.constant 1.000000e+00 : f32
    %1020 = vector.broadcast %cst_228 : f32 to vector<2x128xf32>
    %1021 = arith.subf %1020, %1014 : vector<2x128xf32>
    %1022 = arith.mulf %1021, %1019 : vector<2x128xf32>
    %1023 = arith.mulf %1014, %992 : vector<2x128xf32>
    %1024 = arith.addf %1022, %1023 : vector<2x128xf32>
    %c0_229 = arith.constant 0 : index
    %c30 = arith.constant 30 : index
    %c0_230 = arith.constant 0 : index
    %1025 = vector.load %arg17[%c0_229, %c30, %c0_230] : memref<2x32x384xf32, #tpu.memory_space<vmem>>, vector<2x1x384xf32>
    %1026 = vector.shape_cast %1025 : vector<2x1x384xf32> to vector<2x384xf32>
    %1027 = arith.truncf %1024 : vector<2x128xf32> to vector<2x128xbf16>
    %cst_231 = arith.constant dense<0.000000e+00> : vector<2x384xf32>
    %1028 = tpu.matmul %1027, %62, %cst_231 {dimension_numbers = #tpu.dot_dimension_numbers<[1], [0], [0], [1], [0, 0, 1, 1], [], []>} : vector<2x128xbf16>, vector<128x384xbf16>, vector<2x384xf32> -> vector<2x384xf32>
    %1029 = vector.broadcast %63 : vector<1x384xf32> to vector<2x384xf32>
    %1030 = arith.addf %1028, %1029 : vector<2x384xf32>
    %1031 = vector.extract_strided_slice %1026 {offsets = [0, 0], sizes = [2, 128], strides = [1, 1]} : vector<2x384xf32> to vector<2x128xf32>
    %1032 = vector.extract_strided_slice %1030 {offsets = [0, 0], sizes = [2, 128], strides = [1, 1]} : vector<2x384xf32> to vector<2x128xf32>
    %1033 = arith.addf %1031, %1032 : vector<2x128xf32>
    %1034 = arith.negf %1033 : vector<2x128xf32>
    %1035 = math.exp %1034 : vector<2x128xf32>
    %cst_232 = arith.constant 1.000000e+00 : f32
    %1036 = vector.broadcast %cst_232 : f32 to vector<2x128xf32>
    %1037 = arith.addf %1036, %1035 : vector<2x128xf32>
    %1038 = arith.divf %1036, %1037 : vector<2x128xf32>
    %1039 = vector.extract_strided_slice %1026 {offsets = [0, 128], sizes = [2, 128], strides = [1, 1]} : vector<2x384xf32> to vector<2x128xf32>
    %1040 = vector.extract_strided_slice %1030 {offsets = [0, 128], sizes = [2, 128], strides = [1, 1]} : vector<2x384xf32> to vector<2x128xf32>
    %1041 = arith.addf %1039, %1040 : vector<2x128xf32>
    %1042 = arith.negf %1041 : vector<2x128xf32>
    %1043 = math.exp %1042 : vector<2x128xf32>
    %cst_233 = arith.constant 1.000000e+00 : f32
    %1044 = vector.broadcast %cst_233 : f32 to vector<2x128xf32>
    %1045 = arith.addf %1044, %1043 : vector<2x128xf32>
    %1046 = arith.divf %1044, %1045 : vector<2x128xf32>
    %1047 = vector.extract_strided_slice %1026 {offsets = [0, 256], sizes = [2, 128], strides = [1, 1]} : vector<2x384xf32> to vector<2x128xf32>
    %1048 = vector.extract_strided_slice %1030 {offsets = [0, 256], sizes = [2, 128], strides = [1, 1]} : vector<2x384xf32> to vector<2x128xf32>
    %1049 = arith.mulf %1038, %1048 : vector<2x128xf32>
    %1050 = arith.addf %1047, %1049 : vector<2x128xf32>
    %1051 = math.tanh %1050 : vector<2x128xf32>
    %cst_234 = arith.constant 1.000000e+00 : f32
    %1052 = vector.broadcast %cst_234 : f32 to vector<2x128xf32>
    %1053 = arith.subf %1052, %1046 : vector<2x128xf32>
    %1054 = arith.mulf %1053, %1051 : vector<2x128xf32>
    %1055 = arith.mulf %1046, %1024 : vector<2x128xf32>
    %1056 = arith.addf %1054, %1055 : vector<2x128xf32>
    %c0_235 = arith.constant 0 : index
    %c31 = arith.constant 31 : index
    %c0_236 = arith.constant 0 : index
    %1057 = vector.load %arg17[%c0_235, %c31, %c0_236] : memref<2x32x384xf32, #tpu.memory_space<vmem>>, vector<2x1x384xf32>
    %1058 = vector.shape_cast %1057 : vector<2x1x384xf32> to vector<2x384xf32>
    %1059 = arith.truncf %1056 : vector<2x128xf32> to vector<2x128xbf16>
    %cst_237 = arith.constant dense<0.000000e+00> : vector<2x384xf32>
    %1060 = tpu.matmul %1059, %62, %cst_237 {dimension_numbers = #tpu.dot_dimension_numbers<[1], [0], [0], [1], [0, 0, 1, 1], [], []>} : vector<2x128xbf16>, vector<128x384xbf16>, vector<2x384xf32> -> vector<2x384xf32>
    %1061 = vector.broadcast %63 : vector<1x384xf32> to vector<2x384xf32>
    %1062 = arith.addf %1060, %1061 : vector<2x384xf32>
    %1063 = vector.extract_strided_slice %1058 {offsets = [0, 0], sizes = [2, 128], strides = [1, 1]} : vector<2x384xf32> to vector<2x128xf32>
    %1064 = vector.extract_strided_slice %1062 {offsets = [0, 0], sizes = [2, 128], strides = [1, 1]} : vector<2x384xf32> to vector<2x128xf32>
    %1065 = arith.addf %1063, %1064 : vector<2x128xf32>
    %1066 = arith.negf %1065 : vector<2x128xf32>
    %1067 = math.exp %1066 : vector<2x128xf32>
    %cst_238 = arith.constant 1.000000e+00 : f32
    %1068 = vector.broadcast %cst_238 : f32 to vector<2x128xf32>
    %1069 = arith.addf %1068, %1067 : vector<2x128xf32>
    %1070 = arith.divf %1068, %1069 : vector<2x128xf32>
    %1071 = vector.extract_strided_slice %1058 {offsets = [0, 128], sizes = [2, 128], strides = [1, 1]} : vector<2x384xf32> to vector<2x128xf32>
    %1072 = vector.extract_strided_slice %1062 {offsets = [0, 128], sizes = [2, 128], strides = [1, 1]} : vector<2x384xf32> to vector<2x128xf32>
    %1073 = arith.addf %1071, %1072 : vector<2x128xf32>
    %1074 = arith.negf %1073 : vector<2x128xf32>
    %1075 = math.exp %1074 : vector<2x128xf32>
    %cst_239 = arith.constant 1.000000e+00 : f32
    %1076 = vector.broadcast %cst_239 : f32 to vector<2x128xf32>
    %1077 = arith.addf %1076, %1075 : vector<2x128xf32>
    %1078 = arith.divf %1076, %1077 : vector<2x128xf32>
    %1079 = vector.extract_strided_slice %1058 {offsets = [0, 256], sizes = [2, 128], strides = [1, 1]} : vector<2x384xf32> to vector<2x128xf32>
    %1080 = vector.extract_strided_slice %1062 {offsets = [0, 256], sizes = [2, 128], strides = [1, 1]} : vector<2x384xf32> to vector<2x128xf32>
    %1081 = arith.mulf %1070, %1080 : vector<2x128xf32>
    %1082 = arith.addf %1079, %1081 : vector<2x128xf32>
    %1083 = math.tanh %1082 : vector<2x128xf32>
    %cst_240 = arith.constant 1.000000e+00 : f32
    %1084 = vector.broadcast %cst_240 : f32 to vector<2x128xf32>
    %1085 = arith.subf %1084, %1078 : vector<2x128xf32>
    %1086 = arith.mulf %1085, %1083 : vector<2x128xf32>
    %1087 = arith.mulf %1078, %1056 : vector<2x128xf32>
    %1088 = arith.addf %1086, %1087 : vector<2x128xf32>
    %c0_241 = arith.constant 0 : index
    %c0_242 = arith.constant 0 : index
    %1089 = vector.load %arg16[%c0_241, %c0_242] : memref<2x128xf32, #tpu.memory_space<vmem>>, vector<2x128xf32>
    tpu.vector_store %arg16[%c0_241, %c0_242], %1088 {strides = array<i32>} : memref<2x128xf32, #tpu.memory_space<vmem>>, vector<2x128xf32>,
    return
  }
}

</mosaic_0001>

<llo_original>
// kernel: acc_modal_forward.1
$region0: #{acc_modal_forward.1}
  #allocation0 [shape = 'u32[]', space=smem, size = 0x4, offset = 0x4, fixed_abs, tag = 'smem constant byte address 0x4 - core index']
  #allocation1 [shape = 'u32[72,128]{1,0:T(1,128)}', space=vmem, size = 0x9000, scoped, tag = 'internal scratch']
  #allocation2 [shape = 'f32[2,32,384]{2,1,0:T(8,128)}', space=vmem, size = 0x18000, scoped, tag = 'scratch operand']
  %s0 = inlined_call_operand.vmem [shape: f32[64,3], index: 0, kind: input, shape index: {}]
  %s1 = inlined_call_operand.vmem [shape: f32[3,32], index: 1, kind: input, shape index: {}]
  %s2 = inlined_call_operand.vmem [shape: f32[1,32], index: 2, kind: input, shape index: {}]
  %s3 = inlined_call_operand.vmem [shape: f32[64,64], index: 3, kind: input, shape index: {}]
  %s4 = inlined_call_operand.hbm [shape: f32[64,64], index: 4, kind: input, shape index: {}]
  %s5 = inlined_call_operand.vmem [shape: f32[32,32], index: 5, kind: input, shape index: {}]
  %s6 = inlined_call_operand.vmem [shape: f32[32,1], index: 6, kind: input, shape index: {}]
  %s7 = inlined_call_operand.vmem [shape: f32[1,32], index: 7, kind: input, shape index: {}]
  %s8 = inlined_call_operand.hbm [shape: bf16[32,64], index: 8, kind: input, shape index: {}]
  %s9 = inlined_call_operand.hbm [shape: f32[1,64], index: 9, kind: input, shape index: {}]
  %s10 = inlined_call_operand.hbm [shape: bf16[64,128], index: 10, kind: input, shape index: {}]
  %s11 = inlined_call_operand.hbm [shape: f32[1,128], index: 11, kind: input, shape index: {}]
  %s12 = inlined_call_operand.hbm [shape: bf16[128,384], index: 12, kind: input, shape index: {}]
  %s13 = inlined_call_operand.hbm [shape: f32[1,384], index: 13, kind: input, shape index: {}]
  %s14 = inlined_call_operand.hbm [shape: bf16[128,384], index: 14, kind: input, shape index: {}]
  %s15 = inlined_call_operand.hbm [shape: f32[1,384], index: 15, kind: input, shape index: {}]
  %s16 = inlined_call_operand.hbm [shape: f32[2,128], index: 16, kind: output, shape index: {}]
  %s17 = sld [smem:[#allocation0]]
  $region110: #{acc_modal_forward.1} parent=0
    _
  %s19 = ssub.s32 1, %s17
  %s20 = scalar_select 0, %s19, %s17
  $region1: #{acc_modal_forward.1} parent=0
    #allocation3 [shape = 'u8[32768]{0}', space=vmem, size = 0x8000, scoped, tag = 'input window, operand 4, single buffered']
    #allocation4 [shape = 's32[1]{0}', space=sflag, size = 0x4, scoped, tag = 'scoped memory for acc_modal_forward.1']
    #allocation5 [shape = 's32[1]{0}', space=sflag, size = 0x4, scoped, tag = 'scoped memory for acc_modal_forward.1']
    #allocation6 [shape = 'u8[8192]{0}', space=vmem, size = 0x2000, scoped, tag = 'input window, operand 8, single buffered']
    #allocation7 [shape = 's32[1]{0}', space=sflag, size = 0x4, scoped, tag = 'scoped memory for acc_modal_forward.1']
    #allocation8 [shape = 'u8[512]{0}', space=vmem, size = 0x400, scoped, tag = 'input window, operand 9, single buffered']
    #allocation9 [shape = 'u8[16384]{0}', space=vmem, size = 0x4000, scoped, tag = 'input window, operand 10, single buffered']
    #allocation10 [shape = 's32[1]{0}', space=sflag, size = 0x4, scoped, tag = 'scoped memory for acc_modal_forward.1']
    #allocation11 [shape = 'u8[512]{0}', space=vmem, size = 0x400, scoped, tag = 'input window, operand 11, single buffered']
    #allocation12 [shape = 'u8[98304]{0}', space=vmem, size = 0x18000, scoped, tag = 'input window, operand 12, single buffered']
    #allocation13 [shape = 's32[1]{0}', space=sflag, size = 0x4, scoped, tag = 'scoped memory for acc_modal_forward.1']
    #allocation14 [shape = 'u8[1536]{0}', space=vmem, size = 0x800, scoped, tag = 'input window, operand 13, single buffered']
    #allocation15 [shape = 'u8[98304]{0}', space=vmem, size = 0x18000, scoped, tag = 'input window, operand 14, single buffered']
    #allocation16 [shape = 's32[1]{0}', space=sflag, size = 0x4, scoped, tag = 'scoped memory for acc_modal_forward.1']
    #allocation17 [shape = 'u8[1536]{0}', space=vmem, size = 0x800, scoped, tag = 'input window, operand 15, single buffered']
    #allocation18 [shape = 'u8[1024]{0}', space=vmem, size = 0x400, scoped, tag = 'output window, operand 0, single buffered']
    %21 = vsyncpa [#allocation4], 0
    %22 = vsyncpa [#allocation7], 0
    %23 = vsyncpa [#allocation10], 0
    %24 = vsyncpa [#allocation13], 0
    %25 = vsyncpa [#allocation16], 0
    %26 = vsyncpa [#allocation5], 0
    // Predicated region
    $region2: #{acc_modal_forward.1} parent=1 // pred_check
      _
    $region3: #{acc_modal_forward.1} parent=1 // pred_check_branch
      %28 = sbr.rel (0) target = $region5
    $region4: #{acc_modal_forward.1} parent=1 // pred_region
      _
    $region5: #{acc_modal_forward.1} parent=1 // pred_fallthru
      _
    // Predicated region
    $region6: #{acc_modal_forward.1} parent=1 // pred_check
      _
    $region7: #{acc_modal_forward.1} parent=1 // pred_check_branch
      %30 = sbr.rel (0) target = $region9
    $region8: #{acc_modal_forward.1} parent=1 // pred_region
      _
    $region9: #{acc_modal_forward.1} parent=1 // pred_fallthru
      _
    // Predicated region
    $region10: #{acc_modal_forward.1} parent=1 // pred_check
      _
    $region11: #{acc_modal_forward.1} parent=1 // pred_check_branch
      %32 = sbr.rel (0) target = $region13
    $region12: #{acc_modal_forward.1} parent=1 // pred_region
      _
    $region13: #{acc_modal_forward.1} parent=1 // pred_fallthru
      _
    // Predicated region
    $region14: #{acc_modal_forward.1} parent=1 // pred_check
      _
    $region15: #{acc_modal_forward.1} parent=1 // pred_check_branch
      %34 = sbr.rel (0) target = $region17
    $region16: #{acc_modal_forward.1} parent=1 // pred_region
      _
    $region17: #{acc_modal_forward.1} parent=1 // pred_fallthru
      _
    // Predicated region
    $region18: #{acc_modal_forward.1} parent=1 // pred_check
      _
    $region19: #{acc_modal_forward.1} parent=1 // pred_check_branch
      %36 = sbr.rel (0) target = $region21
    $region20: #{acc_modal_forward.1} parent=1 // pred_region
      %38 = vsyncadd [#allocation4], 0
      %s39 = sshll.u32 %s4, 4
      %s40 = int_to_ptr.hbm [resolvable:$true] %s39
      %s41 = sshll.u32 [#allocation3], 4
      %s42 = int_to_ptr.vmem [resolvable:$true] %s41
      %47 = dma.hbm_to_vmem [thread:$0]  %s40, 1024, %s42, [#allocation4], 128, 128, 8
    $region21: #{acc_modal_forward.1} parent=1 // pred_fallthru
      _
    // Predicated region
    $region22: #{acc_modal_forward.1} parent=1 // pred_check
      _
    $region23: #{acc_modal_forward.1} parent=1 // pred_check_branch
      %49 = sbr.rel (0) target = $region25
    $region24: #{acc_modal_forward.1} parent=1 // pred_region
      _
    $region25: #{acc_modal_forward.1} parent=1 // pred_fallthru
      _
    // Predicated region
    $region26: #{acc_modal_forward.1} parent=1 // pred_check
      _
    $region27: #{acc_modal_forward.1} parent=1 // pred_check_branch
      %51 = sbr.rel (0) target = $region29
    $region28: #{acc_modal_forward.1} parent=1 // pred_region
      _
    $region29: #{acc_modal_forward.1} parent=1 // pred_fallthru
      _
    // Predicated region
    $region30: #{acc_modal_forward.1} parent=1 // pred_check
      _
    $region31: #{acc_modal_forward.1} parent=1 // pred_check_branch
      %53 = sbr.rel (0) target = $region33
    $region32: #{acc_modal_forward.1} parent=1 // pred_region
      _
    $region33: #{acc_modal_forward.1} parent=1 // pred_fallthru
      _
    // Predicated region
    $region34: #{acc_modal_forward.1} parent=1 // pred_check
      _
    $region35: #{acc_modal_forward.1} parent=1 // pred_check_branch
      %55 = sbr.rel (0) target = $region37
    $region36: #{acc_modal_forward.1} parent=1 // pred_region
      %57 = vsyncadd [#allocation7], 0
      %s58 = sshll.u32 %s8, 4
      %s59 = int_to_ptr.hbm [resolvable:$true] %s58
      %s60 = sshll.u32 [#allocation6], 4
      %s61 = int_to_ptr.vmem [resolvable:$true] %s60
      %66 = dma.hbm_to_vmem [thread:$0]  %s59, 256, %s61, [#allocation7], 64, 64, 4
    $region37: #{acc_modal_forward.1} parent=1 // pred_fallthru
      _
    // Predicated region
    $region38: #{acc_modal_forward.1} parent=1 // pred_check
      _
    $region39: #{acc_modal_forward.1} parent=1 // pred_check_branch
      %68 = sbr.rel (0) target = $region41
    $region40: #{acc_modal_forward.1} parent=1 // pred_region
      %70 = vsyncadd [#allocation7], 0
      %s72 = sshll.u32 %s9, 4
      %s73 = int_to_ptr.hbm [resolvable:$true] %s72
      %s74 = sshll.u32 [#allocation8], 4
      %s75 = int_to_ptr.vmem [resolvable:$true] %s74
      %77 = dma.hbm_to_vmem [thread:$0]  %s73, 16, %s75, [#allocation7]
    $region41: #{acc_modal_forward.1} parent=1 // pred_fallthru
      _
    // Predicated region
    $region42: #{acc_modal_forward.1} parent=1 // pred_check
      _
    $region43: #{acc_modal_forward.1} parent=1 // pred_check_branch
      %79 = sbr.rel (0) target = $region45
    $region44: #{acc_modal_forward.1} parent=1 // pred_region
      %81 = vsyncadd [#allocation10], 0
      %s82 = sshll.u32 %s10, 4
      %s83 = int_to_ptr.hbm [resolvable:$true] %s82
      %s84 = sshll.u32 [#allocation9], 4
      %s85 = int_to_ptr.vmem [resolvable:$true] %s84
      %90 = dma.hbm_to_vmem [thread:$0]  %s83, 512, %s85, [#allocation10], 64, 64, 4
    $region45: #{acc_modal_forward.1} parent=1 // pred_fallthru
      _
    // Predicated region
    $region46: #{acc_modal_forward.1} parent=1 // pred_check
      _
    $region47: #{acc_modal_forward.1} parent=1 // pred_check_branch
      %92 = sbr.rel (0) target = $region49
    $region48: #{acc_modal_forward.1} parent=1 // pred_region
      %94 = vsyncadd [#allocation10], 0
      %s96 = sshll.u32 %s11, 4
      %s97 = int_to_ptr.hbm [resolvable:$true] %s96
      %s98 = sshll.u32 [#allocation11], 4
      %s99 = int_to_ptr.vmem [resolvable:$true] %s98
      %101 = dma.hbm_to_vmem [thread:$0]  %s97, 16, %s99, [#allocation10]
    $region49: #{acc_modal_forward.1} parent=1 // pred_fallthru
      _
    // Predicated region
    $region50: #{acc_modal_forward.1} parent=1 // pred_check
      _
    $region51: #{acc_modal_forward.1} parent=1 // pred_check_branch
      %103 = sbr.rel (0) target = $region53
    $region52: #{acc_modal_forward.1} parent=1 // pred_region
      %105 = vsyncadd [#allocation13], 0
      %s106 = sshll.u32 %s12, 4
      %s107 = int_to_ptr.hbm [resolvable:$true] %s106
      %s108 = sshll.u32 [#allocation12], 4
      %s109 = int_to_ptr.vmem [resolvable:$true] %s108
      %114 = dma.hbm_to_vmem [thread:$0]  %s107, 3072, %s109, [#allocation13], 192, 192, 12
    $region53: #{acc_modal_forward.1} parent=1 // pred_fallthru
      _
    // Predicated region
    $region54: #{acc_modal_forward.1} parent=1 // pred_check
      _
    $region55: #{acc_modal_forward.1} parent=1 // pred_check_branch
      %116 = sbr.rel (0) target = $region57
    $region56: #{acc_modal_forward.1} parent=1 // pred_region
      %118 = vsyncadd [#allocation13], 0
      %s120 = sshll.u32 %s13, 4
      %s121 = int_to_ptr.hbm [resolvable:$true] %s120
      %s122 = sshll.u32 [#allocation14], 4
      %s123 = int_to_ptr.vmem [resolvable:$true] %s122
      %125 = dma.hbm_to_vmem [thread:$0]  %s121, 48, %s123, [#allocation13]
    $region57: #{acc_modal_forward.1} parent=1 // pred_fallthru
      _
    // Predicated region
    $region58: #{acc_modal_forward.1} parent=1 // pred_check
      _
    $region59: #{acc_modal_forward.1} parent=1 // pred_check_branch
      %127 = sbr.rel (0) target = $region61
    $region60: #{acc_modal_forward.1} parent=1 // pred_region
      %129 = vsyncadd [#allocation16], 0
      %s130 = sshll.u32 %s14, 4
      %s131 = int_to_ptr.hbm [resolvable:$true] %s130
      %s132 = sshll.u32 [#allocation15], 4
      %s133 = int_to_ptr.vmem [resolvable:$true] %s132
      %138 = dma.hbm_to_vmem [thread:$0]  %s131, 3072, %s133, [#allocation16], 192, 192, 12
    $region61: #{acc_modal_forward.1} parent=1 // pred_fallthru
      _
    // Predicated region
    $region62: #{acc_modal_forward.1} parent=1 // pred_check
      _
    $region63: #{acc_modal_forward.1} parent=1 // pred_check_branch
      %140 = sbr.rel (0) target = $region65
    $region64: #{acc_modal_forward.1} parent=1 // pred_region
      %142 = vsyncadd [#allocation16], 0
      %s144 = sshll.u32 %s15, 4
      %s145 = int_to_ptr.hbm [resolvable:$true] %s144
      %s146 = sshll.u32 [#allocation17], 4
      %s147 = int_to_ptr.vmem [resolvable:$true] %s146
      %149 = dma.hbm_to_vmem [thread:$0]  %s145, 48, %s147, [#allocation16]
    $region65: #{acc_modal_forward.1} parent=1 // pred_fallthru
      _
    // Predicated region
    $region66: #{acc_modal_forward.1} parent=1 // pred_check
      _
    $region67: #{acc_modal_forward.1} parent=1 // pred_check_branch
      %151 = sbr.rel (0) target = $region69
    $region68: #{acc_modal_forward.1} parent=1 // pred_region
      %153 = dma.done [#allocation4], 1024
    $region69: #{acc_modal_forward.1} parent=1 // pred_fallthru
      _
    // Predicated region
    $region70: #{acc_modal_forward.1} parent=1 // pred_check
      _
    $region71: #{acc_modal_forward.1} parent=1 // pred_check_branch
      %155 = sbr.rel (0) target = $region73
    $region72: #{acc_modal_forward.1} parent=1 // pred_region
      %157 = dma.done [#allocation7], 256
    $region73: #{acc_modal_forward.1} parent=1 // pred_fallthru
      _
    // Predicated region
    $region74: #{acc_modal_forward.1} parent=1 // pred_check
      _
    $region75: #{acc_modal_forward.1} parent=1 // pred_check_branch
      %159 = sbr.rel (0) target = $region77
    $region76: #{acc_modal_forward.1} parent=1 // pred_region
      %161 = dma.done [#allocation7], 16
    $region77: #{acc_modal_forward.1} parent=1 // pred_fallthru
      _
    // Predicated region
    $region78: #{acc_modal_forward.1} parent=1 // pred_check
      _
    $region79: #{acc_modal_forward.1} parent=1 // pred_check_branch
      %163 = sbr.rel (0) target = $region81
    $region80: #{acc_modal_forward.1} parent=1 // pred_region
      %165 = dma.done [#allocation10], 512
    $region81: #{acc_modal_forward.1} parent=1 // pred_fallthru
      _
    // Predicated region
    $region82: #{acc_modal_forward.1} parent=1 // pred_check
      _
    $region83: #{acc_modal_forward.1} parent=1 // pred_check_branch
      %167 = sbr.rel (0) target = $region85
    $region84: #{acc_modal_forward.1} parent=1 // pred_region
      %169 = dma.done [#allocation10], 16
    $region85: #{acc_modal_forward.1} parent=1 // pred_fallthru
      _
    // Predicated region
    $region86: #{acc_modal_forward.1} parent=1 // pred_check
      _
    $region87: #{acc_modal_forward.1} parent=1 // pred_check_branch
      %171 = sbr.rel (0) target = $region89
    $region88: #{acc_modal_forward.1} parent=1 // pred_region
      %173 = dma.done [#allocation13], 3072
    $region89: #{acc_modal_forward.1} parent=1 // pred_fallthru
      _
    // Predicated region
    $region90: #{acc_modal_forward.1} parent=1 // pred_check
      _
    $region91: #{acc_modal_forward.1} parent=1 // pred_check_branch
      %175 = sbr.rel (0) target = $region93
    $region92: #{acc_modal_forward.1} parent=1 // pred_region
      %177 = dma.done [#allocation13], 48
    $region93: #{acc_modal_forward.1} parent=1 // pred_fallthru
      _
    // Predicated region
    $region94: #{acc_modal_forward.1} parent=1 // pred_check
      _
    $region95: #{acc_modal_forward.1} parent=1 // pred_check_branch
      %179 = sbr.rel (0) target = $region97
    $region96: #{acc_modal_forward.1} parent=1 // pred_region
      %181 = dma.done [#allocation16], 3072
    $region97: #{acc_modal_forward.1} parent=1 // pred_fallthru
      _
    // Predicated region
    $region98: #{acc_modal_forward.1} parent=1 // pred_check
      _
    $region99: #{acc_modal_forward.1} parent=1 // pred_check_branch
      %183 = sbr.rel (0) target = $region101
    $region100: #{acc_modal_forward.1} parent=1 // pred_region
      %185 = dma.done [#allocation16], 48
    $region101: #{acc_modal_forward.1} parent=1 // pred_fallthru
      _
    %v187 = vld [vmem:[%s0] sm:$0xff]
    %v188 = vld [vmem:[%s0 + $0x8] sm:$0xff]
    %v189 = vld [vmem:[%s0 + $0x10] sm:$0xff]
    %v190 = vld [vmem:[%s0 + $0x18] sm:$0xff]
    %v191 = vld [vmem:[%s0 + $0x20] sm:$0xff]
    %v192 = vld [vmem:[%s0 + $0x28] sm:$0xff]
    %v193 = vld [vmem:[%s0 + $0x30] sm:$0xff]
    %v194 = vld [vmem:[%s0 + $0x38] sm:$0xff]
    %v195 = vld [vmem:[%s1] sm:$0x7]
    %v196 = vld [vmem:[%s2] sm:$0x1]
    %v198 = vperm.slane %v196, 0
    %vm200 = vcmask 23552
    %v202 = vsel %vm200, %v187, 0
    %v205 = vsel %vm200, %v188, 0
    %v208 = vsel %vm200, %v189, 0
    %v211 = vsel %vm200, %v190, 0
    %v214 = vsel %vm200, %v191, 0
    %v217 = vsel %vm200, %v192, 0
    %v220 = vsel %vm200, %v193, 0
    %v223 = vsel %vm200, %v194, 0
    %vm225 = vcmask 1042432
    %v227 = vsel %vm225, %v195, 0
    %229 = vmatpush.msra.mxu0 0.0
    %230 = vmatpush.msra.mxu0 0.0
    %231 = vmatpush.msra.mxu0 0.0
    %232 = vmatpush.msra.mxu0 0.0
    %233 = vmatpush.msra.mxu0 0.0
    %234 = vmatpush.msra.mxu0 0.0
    %235 = vmatpush.msra.mxu0 0.0
    %236 = vmatpush.msra.mxu0 0.0
    %237 = vmatpush.msra.mxu0 0.0
    %238 = vmatpush.msra.mxu0 0.0
    %239 = vmatpush.msra.mxu0 0.0
    %240 = vmatpush.msra.mxu0 0.0
    %241 = vmatpush.msra.mxu0 0.0
    %242 = vmatpush.msra.mxu0 0.0
    %243 = vmatpush.msra.mxu0 0.0
    %244 = vmatpush.msra.mxu0 %v227
    %245 = vmatmul.f32.gmra.mxu0 %v202
    %v246 = vpop.f32.mrf.mxu0
    %v247 = vadd.f32 %v198, %v246
    %248 = vmatmul.f32.gmra.mxu0 %v205
    %v249 = vpop.f32.mrf.mxu0
    %v250 = vadd.f32 %v198, %v249
    %251 = vmatmul.f32.gmra.mxu0 %v208
    %v252 = vpop.f32.mrf.mxu0
    %v253 = vadd.f32 %v198, %v252
    %254 = vmatmul.f32.gmra.mxu0 %v211
    %v255 = vpop.f32.mrf.mxu0
    %v256 = vadd.f32 %v198, %v255
    %257 = vmatmul.f32.gmra.mxu0 %v214
    %v258 = vpop.f32.mrf.mxu0
    %v259 = vadd.f32 %v198, %v258
    %260 = vmatmul.f32.gmra.mxu0 %v217
    %v261 = vpop.f32.mrf.mxu0
    %v262 = vadd.f32 %v198, %v261
    %263 = vmatmul.f32.gmra.mxu0 %v220
    %v264 = vpop.f32.mrf.mxu0
    %v265 = vadd.f32 %v198, %v264
    %266 = vmatmul.f32.gmra.mxu0 %v223
    %v267 = vpop.f32.mrf.mxu0
    %v268 = vadd.f32 %v198, %v267
    %269 = vdwg.mxu0
    %v270 = vld [vmem:[%s3] sm:$0xff]
    %v271 = vld [vmem:[%s3 + $0x8] sm:$0xff]
    %v272 = vld [vmem:[%s3 + $0x10] sm:$0xff]
    %v273 = vld [vmem:[%s3 + $0x18] sm:$0xff]
    %v274 = vld [vmem:[%s3 + $0x20] sm:$0xff]
    %v275 = vld [vmem:[%s3 + $0x28] sm:$0xff]
    %v276 = vld [vmem:[%s3 + $0x30] sm:$0xff]
    %v277 = vld [vmem:[%s3 + $0x38] sm:$0xff]
    %vm278 = vcmask 523264
    %v280 = vsel %vm278, %v270, 0
    %v283 = vsel %vm278, %v271, 0
    %v286 = vsel %vm278, %v272, 0
    %v289 = vsel %vm278, %v273, 0
    %v292 = vsel %vm278, %v274, 0
    %v295 = vsel %vm278, %v275, 0
    %v298 = vsel %vm278, %v276, 0
    %v301 = vsel %vm278, %v277, 0
    %303 = vmatpush.msra.mxu0 0.0
    %304 = vmatpush.msra.mxu0 0.0
    %305 = vmatpush.msra.mxu0 0.0
    %306 = vmatpush.msra.mxu0 0.0
    %307 = vmatpush.msra.mxu0 0.0
    %308 = vmatpush.msra.mxu0 0.0
    %309 = vmatpush.msra.mxu0 0.0
    %310 = vmatpush.msra.mxu0 0.0
    %311 = vmatpush.msra.mxu0 %v268
    %312 = vmatpush.msra.mxu0 %v265
    %313 = vmatpush.msra.mxu0 %v262
    %314 = vmatpush.msra.mxu0 %v259
    %315 = vmatpush.msra.mxu0 %v256
    %316 = vmatpush.msra.mxu0 %v253
    %317 = vmatpush.msra.mxu0 %v250
    %318 = vmatpush.msra.mxu0 %v247
    %319 = vmatmul.f32.gmra.mxu0 %v280
    %v320 = vpop.f32.mrf.mxu0
    %v321 = vadd.f32 0.0, %v320
    %322 = vmatmul.f32.gmra.mxu0 %v283
    %v323 = vpop.f32.mrf.mxu0
    %v324 = vadd.f32 0.0, %v323
    %325 = vmatmul.f32.gmra.mxu0 %v286
    %v326 = vpop.f32.mrf.mxu0
    %v327 = vadd.f32 0.0, %v326
    %328 = vmatmul.f32.gmra.mxu0 %v289
    %v329 = vpop.f32.mrf.mxu0
    %v330 = vadd.f32 0.0, %v329
    %331 = vmatmul.f32.gmra.mxu0 %v292
    %v332 = vpop.f32.mrf.mxu0
    %v333 = vadd.f32 0.0, %v332
    %334 = vmatmul.f32.gmra.mxu0 %v295
    %v335 = vpop.f32.mrf.mxu0
    %v336 = vadd.f32 0.0, %v335
    %337 = vmatmul.f32.gmra.mxu0 %v298
    %v338 = vpop.f32.mrf.mxu0
    %v339 = vadd.f32 0.0, %v338
    %340 = vmatmul.f32.gmra.mxu0 %v301
    %v341 = vpop.f32.mrf.mxu0
    %v342 = vadd.f32 0.0, %v341
    %343 = vdwg.mxu0
    %v344 = vld [vmem:[%s5] sm:$0xff]
    %v345 = vld [vmem:[%s5 + $0x8] sm:$0xff]
    %v346 = vld [vmem:[%s5 + $0x10] sm:$0xff]
    %v347 = vld [vmem:[%s5 + $0x18] sm:$0xff]
    %vm348 = vcmask 261120
    %v350 = vsel %vm348, %v321, 0
    %v353 = vsel %vm348, %v324, 0
    %v356 = vsel %vm348, %v327, 0
    %v359 = vsel %vm348, %v330, 0
    %v362 = vsel %vm348, %v333, 0
    %v365 = vsel %vm348, %v336, 0
    %v368 = vsel %vm348, %v339, 0
    %v371 = vsel %vm348, %v342, 0
    %373 = vmatpush.msra.mxu0 0.0
    %374 = vmatpush.msra.mxu0 0.0
    %375 = vmatpush.msra.mxu0 0.0
    %376 = vmatpush.msra.mxu0 0.0
    %377 = vmatpush.msra.mxu0 0.0
    %378 = vmatpush.msra.mxu0 0.0
    %379 = vmatpush.msra.mxu0 0.0
    %380 = vmatpush.msra.mxu0 0.0
    %381 = vmatpush.msra.mxu0 0.0
    %382 = vmatpush.msra.mxu0 0.0
    %383 = vmatpush.msra.mxu0 0.0
    %384 = vmatpush.msra.mxu0 0.0
    %385 = vmatpush.msra.mxu0 %v347
    %386 = vmatpush.msra.mxu0 %v346
    %387 = vmatpush.msra.mxu0 %v345
    %388 = vmatpush.msra.mxu0 %v344
    %389 = vmatmul.f32.gmra.mxu0 %v350
    %v390 = vpop.f32.mrf.mxu0
    %v391 = vadd.f32 0.0, %v390
    %392 = vmatmul.f32.gmra.mxu0 %v353
    %v393 = vpop.f32.mrf.mxu0
    %v394 = vadd.f32 0.0, %v393
    %395 = vmatmul.f32.gmra.mxu0 %v356
    %v396 = vpop.f32.mrf.mxu0
    %v397 = vadd.f32 0.0, %v396
    %398 = vmatmul.f32.gmra.mxu0 %v359
    %v399 = vpop.f32.mrf.mxu0
    %v400 = vadd.f32 0.0, %v399
    %401 = vmatmul.f32.gmra.mxu0 %v362
    %v402 = vpop.f32.mrf.mxu0
    %v403 = vadd.f32 0.0, %v402
    %404 = vmatmul.f32.gmra.mxu0 %v365
    %v405 = vpop.f32.mrf.mxu0
    %v406 = vadd.f32 0.0, %v405
    %407 = vmatmul.f32.gmra.mxu0 %v368
    %v408 = vpop.f32.mrf.mxu0
    %v409 = vadd.f32 0.0, %v408
    %410 = vmatmul.f32.gmra.mxu0 %v371
    %v411 = vpop.f32.mrf.mxu0
    %v412 = vadd.f32 0.0, %v411
    %413 = vdwg.mxu0
    %v414 = vld [vmem:[%s6] sm:$0xff]
    %v415 = vld [vmem:[%s6 + $0x8] sm:$0xff]
    %v416 = vld [vmem:[%s6 + $0x10] sm:$0xff]
    %v417 = vld [vmem:[%s6 + $0x18] sm:$0xff]
    %v419 = vsel %vm348, %v391, 0
    %v422 = vsel %vm348, %v394, 0
    %v425 = vsel %vm348, %v397, 0
    %v428 = vsel %vm348, %v400, 0
    %v431 = vsel %vm348, %v403, 0
    %v434 = vsel %vm348, %v406, 0
    %v437 = vsel %vm348, %v409, 0
    %v440 = vsel %vm348, %v412, 0
    %442 = vmatpush.msra.mxu0 0.0
    %443 = vmatpush.msra.mxu0 0.0
    %444 = vmatpush.msra.mxu0 0.0
    %445 = vmatpush.msra.mxu0 0.0
    %446 = vmatpush.msra.mxu0 0.0
    %447 = vmatpush.msra.mxu0 0.0
    %448 = vmatpush.msra.mxu0 0.0
    %449 = vmatpush.msra.mxu0 0.0
    %450 = vmatpush.msra.mxu0 0.0
    %451 = vmatpush.msra.mxu0 0.0
    %452 = vmatpush.msra.mxu0 0.0
    %453 = vmatpush.msra.mxu0 0.0
    %454 = vmatpush.msra.mxu0 %v417
    %455 = vmatpush.msra.mxu0 %v416
    %456 = vmatpush.msra.mxu0 %v415
    %457 = vmatpush.msra.mxu0 %v414
    %458 = vmatmul.f32.gmra.mxu0 %v419
    %v459 = vpop.f32.mrf.mxu0
    %v460 = vadd.f32 0.0, %v459
    %461 = vmatmul.f32.gmra.mxu0 %v422
    %v462 = vpop.f32.mrf.mxu0
    %v463 = vadd.f32 0.0, %v462
    %464 = vmatmul.f32.gmra.mxu0 %v425
    %v465 = vpop.f32.mrf.mxu0
    %v466 = vadd.f32 0.0, %v465
    %467 = vmatmul.f32.gmra.mxu0 %v428
    %v468 = vpop.f32.mrf.mxu0
    %v469 = vadd.f32 0.0, %v468
    %470 = vmatmul.f32.gmra.mxu0 %v431
    %v471 = vpop.f32.mrf.mxu0
    %v472 = vadd.f32 0.0, %v471
    %473 = vmatmul.f32.gmra.mxu0 %v434
    %v474 = vpop.f32.mrf.mxu0
    %v475 = vadd.f32 0.0, %v474
    %476 = vmatmul.f32.gmra.mxu0 %v437
    %v477 = vpop.f32.mrf.mxu0
    %v478 = vadd.f32 0.0, %v477
    %479 = vmatmul.f32.gmra.mxu0 %v440
    %v480 = vpop.f32.mrf.mxu0
    %v481 = vadd.f32 0.0, %v480
    %482 = vdwg.mxu0
    %v483 = vld [vmem:[%s7] sm:$0x1]
    %v485 = vsel %vm348, %v483, 0
    %487 = vmatpush.xpose.msra.mxu0 0.0
    %488 = vmatpush.xpose.msra.mxu0 0.0
    %489 = vmatpush.xpose.msra.mxu0 0.0
    %490 = vmatpush.xpose.msra.mxu0 0.0
    %491 = vmatpush.xpose.msra.mxu0 0.0
    %492 = vmatpush.xpose.msra.mxu0 0.0
    %493 = vmatpush.xpose.msra.mxu0 0.0
    %494 = vmatpush.xpose.msra.mxu0 0.0
    %495 = vmatpush.xpose.msra.mxu0 %v440
    %496 = vmatpush.xpose.msra.mxu0 %v437
    %497 = vmatpush.xpose.msra.mxu0 %v434
    %498 = vmatpush.xpose.msra.mxu0 %v431
    %499 = vmatpush.xpose.msra.mxu0 %v428
    %500 = vmatpush.xpose.msra.mxu0 %v425
    %501 = vmatpush.xpose.msra.mxu0 %v422
    %502 = vmatpush.xpose.msra.mxu0 %v419
    %503 = vmatmul.f32.gmra.mxu0 %v485
    %v504 = vpop.f32.mrf.mxu0
    %v505 = vadd.f32 0.0, %v504
    %506 = vdwg.mxu0
    %508 = vset.pattern.permute.xlu0 0
    %509 = vperm.xlu0 %508, %v460
    %v510 = vpop.permute.xlu0 %509
    %513 = vset.pattern.permute.xlu0 0
    %514 = vperm.xlu0 %513, %v463
    %v515 = vpop.permute.xlu0 %514
    %518 = vset.pattern.permute.xlu0 0
    %519 = vperm.xlu0 %518, %v466
    %v520 = vpop.permute.xlu0 %519
    %523 = vset.pattern.permute.xlu0 0
    %524 = vperm.xlu0 %523, %v469
    %v525 = vpop.permute.xlu0 %524
    %528 = vset.pattern.permute.xlu0 0
    %529 = vperm.xlu0 %528, %v472
    %v530 = vpop.permute.xlu0 %529
    %533 = vset.pattern.permute.xlu0 0
    %534 = vperm.xlu0 %533, %v475
    %v535 = vpop.permute.xlu0 %534
    %538 = vset.pattern.permute.xlu0 0
    %539 = vperm.xlu0 %538, %v478
    %v540 = vpop.permute.xlu0 %539
    %543 = vset.pattern.permute.xlu0 0
    %544 = vperm.xlu0 %543, %v481
    %v545 = vpop.permute.xlu0 %544
    %v547 = vperm.slane %v505, 0
    %v548 = vadd.f32 %v510, %v547
    %v549 = vadd.f32 %v515, %v547
    %v550 = vadd.f32 %v520, %v547
    %v551 = vadd.f32 %v525, %v547
    %v552 = vadd.f32 %v530, %v547
    %v553 = vadd.f32 %v535, %v547
    %v554 = vadd.f32 %v540, %v547
    %v555 = vadd.f32 %v545, %v547
    %vm556 = vcmp.gt.f32.partialorder %v548, 0.0
    %vm557 = vcmp.gt.f32.partialorder %v549, 0.0
    %vm558 = vcmp.gt.f32.partialorder %v550, 0.0
    %vm559 = vcmp.gt.f32.partialorder %v551, 0.0
    %vm560 = vcmp.gt.f32.partialorder %v552, 0.0
    %vm561 = vcmp.gt.f32.partialorder %v553, 0.0
    %vm562 = vcmp.gt.f32.partialorder %v554, 0.0
    %vm563 = vcmp.gt.f32.partialorder %v555, 0.0
    %v564 = vmul.f32 %v548, 0.2
    %v565 = vmul.f32 %v549, 0.2
    %v566 = vmul.f32 %v550, 0.2
    %v567 = vmul.f32 %v551, 0.2
    %v568 = vmul.f32 %v552, 0.2
    %v569 = vmul.f32 %v553, 0.2
    %v570 = vmul.f32 %v554, 0.2
    %v571 = vmul.f32 %v555, 0.2
    %v572 = vsel %vm556, %v548, %v564
    %v573 = vsel %vm557, %v549, %v565
    %v574 = vsel %vm558, %v550, %v566
    %v575 = vsel %vm559, %v551, %v567
    %v576 = vsel %vm560, %v552, %v568
    %v577 = vsel %vm561, %v553, %v569
    %v578 = vsel %vm562, %v554, %v570
    %v579 = vsel %vm563, %v555, %v571
    %v580 = vld [vmem:[#allocation3] sm:$0xff]
    %v581 = vld [vmem:[#allocation3 + $0x8] sm:$0xff]
    %v582 = vld [vmem:[#allocation3 + $0x10] sm:$0xff]
    %v583 = vld [vmem:[#allocation3 + $0x18] sm:$0xff]
    %v584 = vld [vmem:[#allocation3 + $0x20] sm:$0xff]
    %v585 = vld [vmem:[#allocation3 + $0x28] sm:$0xff]
    %v586 = vld [vmem:[#allocation3 + $0x30] sm:$0xff]
    %v587 = vld [vmem:[#allocation3 + $0x38] sm:$0xff]
    %v588 = vadd.f32 %v572, %v580
    %v589 = vadd.f32 %v573, %v581
    %v590 = vadd.f32 %v574, %v582
    %v591 = vadd.f32 %v575, %v583
    %v592 = vadd.f32 %v576, %v584
    %v593 = vadd.f32 %v577, %v585
    %v594 = vadd.f32 %v578, %v586
    %v595 = vadd.f32 %v579, %v587
    %v596 = vsel %vm278, %v588, -inf
    %597 = vmax.xlane.f32.xlu0 %v596
    %v598 = vpop.xlane.xlu0 %597
    %v599 = vsel %vm278, %v589, -inf
    %600 = vmax.xlane.f32.xlu0 %v599
    %v601 = vpop.xlane.xlu0 %600
    %v602 = vsel %vm278, %v590, -inf
    %603 = vmax.xlane.f32.xlu0 %v602
    %v604 = vpop.xlane.xlu0 %603
    %v605 = vsel %vm278, %v591, -inf
    %606 = vmax.xlane.f32.xlu0 %v605
    %v607 = vpop.xlane.xlu0 %606
    %v608 = vsel %vm278, %v592, -inf
    %609 = vmax.xlane.f32.xlu0 %v608
    %v610 = vpop.xlane.xlu0 %609
    %v611 = vsel %vm278, %v593, -inf
    %612 = vmax.xlane.f32.xlu0 %v611
    %v613 = vpop.xlane.xlu0 %612
    %v614 = vsel %vm278, %v594, -inf
    %615 = vmax.xlane.f32.xlu0 %v614
    %v616 = vpop.xlane.xlu0 %615
    %v617 = vsel %vm278, %v595, -inf
    %618 = vmax.xlane.f32.xlu0 %v617
    %v619 = vpop.xlane.xlu0 %618
    %v620 = vsub.f32 %v588, %v598
    %v621 = vsub.f32 %v589, %v601
    %v622 = vsub.f32 %v590, %v604
    %v623 = vsub.f32 %v591, %v607
    %v624 = vsub.f32 %v592, %v610
    %v625 = vsub.f32 %v593, %v613
    %v626 = vsub.f32 %v594, %v616
    %v627 = vsub.f32 %v595, %v619
    %v628 = vmul.f32 %v620, 1.442695
    %v629 = vpow.pop %v628
    %v630 = vmul.f32 %v621, 1.442695
    %v631 = vpow.pop %v630
    %v632 = vmul.f32 %v622, 1.442695
    %v633 = vpow.pop %v632
    %v634 = vmul.f32 %v623, 1.442695
    %v635 = vpow.pop %v634
    %v636 = vmul.f32 %v624, 1.442695
    %v637 = vpow.pop %v636
    %v638 = vmul.f32 %v625, 1.442695
    %v639 = vpow.pop %v638
    %v640 = vmul.f32 %v626, 1.442695
    %v641 = vpow.pop %v640
    %v642 = vmul.f32 %v627, 1.442695
    %v643 = vpow.pop %v642
    %v644 = vsel %vm278, %v629, 0.0
    %645 = vadd.xlane.f32.xlu0 %v644
    %v646 = vpop.xlane.xlu0 %645
    %v647 = vsel %vm278, %v631, 0.0
    %648 = vadd.xlane.f32.xlu0 %v647
    %v649 = vpop.xlane.xlu0 %648
    %v650 = vsel %vm278, %v633, 0.0
    %651 = vadd.xlane.f32.xlu0 %v650
    %v652 = vpop.xlane.xlu0 %651
    %v653 = vsel %vm278, %v635, 0.0
    %654 = vadd.xlane.f32.xlu0 %v653
    %v655 = vpop.xlane.xlu0 %654
    %v656 = vsel %vm278, %v637, 0.0
    %657 = vadd.xlane.f32.xlu0 %v656
    %v658 = vpop.xlane.xlu0 %657
    %v659 = vsel %vm278, %v639, 0.0
    %660 = vadd.xlane.f32.xlu0 %v659
    %v661 = vpop.xlane.xlu0 %660
    %v662 = vsel %vm278, %v641, 0.0
    %663 = vadd.xlane.f32.xlu0 %v662
    %v664 = vpop.xlane.xlu0 %663
    %v665 = vsel %vm278, %v643, 0.0
    %666 = vadd.xlane.f32.xlu0 %v665
    %v667 = vpop.xlane.xlu0 %666
    %v668 = vrcp.pop %v646
    %v669 = vrcp.pop %v649
    %v670 = vrcp.pop %v652
    %v671 = vrcp.pop %v655
    %v672 = vrcp.pop %v658
    %v673 = vrcp.pop %v661
    %v674 = vrcp.pop %v664
    %v675 = vrcp.pop %v667
    %v676 = vmul.f32 %v629, %v668
    %v677 = vmul.f32 %v631, %v669
    %v678 = vmul.f32 %v633, %v670
    %v679 = vmul.f32 %v635, %v671
    %v680 = vmul.f32 %v637, %v672
    %v681 = vmul.f32 %v639, %v673
    %v682 = vmul.f32 %v641, %v674
    %v683 = vmul.f32 %v643, %v675
    %v685 = vsel %vm278, %v676, 0
    %v688 = vsel %vm278, %v677, 0
    %v691 = vsel %vm278, %v678, 0
    %v694 = vsel %vm278, %v679, 0
    %v697 = vsel %vm278, %v680, 0
    %v700 = vsel %vm278, %v681, 0
    %v703 = vsel %vm278, %v682, 0
    %v706 = vsel %vm278, %v683, 0
    %708 = vmatpush.msra.mxu0 0.0
    %709 = vmatpush.msra.mxu0 0.0
    %710 = vmatpush.msra.mxu0 0.0
    %711 = vmatpush.msra.mxu0 0.0
    %712 = vmatpush.msra.mxu0 0.0
    %713 = vmatpush.msra.mxu0 0.0
    %714 = vmatpush.msra.mxu0 0.0
    %715 = vmatpush.msra.mxu0 0.0
    %716 = vmatpush.msra.mxu0 %v412
    %717 = vmatpush.msra.mxu0 %v409
    %718 = vmatpush.msra.mxu0 %v406
    %719 = vmatpush.msra.mxu0 %v403
    %720 = vmatpush.msra.mxu0 %v400
    %721 = vmatpush.msra.mxu0 %v397
    %722 = vmatpush.msra.mxu0 %v394
    %723 = vmatpush.msra.mxu0 %v391
    %724 = vmatmul.f32.gmra.mxu0 %v685
    %v725 = vpop.f32.mrf.mxu0
    %v726 = vadd.f32 0.0, %v725
    %727 = vmatmul.f32.gmra.mxu0 %v688
    %v728 = vpop.f32.mrf.mxu0
    %v729 = vadd.f32 0.0, %v728
    %730 = vmatmul.f32.gmra.mxu0 %v691
    %v731 = vpop.f32.mrf.mxu0
    %v732 = vadd.f32 0.0, %v731
    %733 = vmatmul.f32.gmra.mxu0 %v694
    %v734 = vpop.f32.mrf.mxu0
    %v735 = vadd.f32 0.0, %v734
    %736 = vmatmul.f32.gmra.mxu0 %v697
    %v737 = vpop.f32.mrf.mxu0
    %v738 = vadd.f32 0.0, %v737
    %739 = vmatmul.f32.gmra.mxu0 %v700
    %v740 = vpop.f32.mrf.mxu0
    %v741 = vadd.f32 0.0, %v740
    %742 = vmatmul.f32.gmra.mxu0 %v703
    %v743 = vpop.f32.mrf.mxu0
    %v744 = vadd.f32 0.0, %v743
    %745 = vmatmul.f32.gmra.mxu0 %v706
    %v746 = vpop.f32.mrf.mxu0
    %v747 = vadd.f32 0.0, %v746
    %748 = vdwg.mxu0
    %749 = vxpose.xlu0.b32.start [1/16] %v726, 128
    %750 = vxpose.xlu0.b32.cont [2/16] %v729, 128
    %751 = vxpose.xlu0.b32.cont [3/16] %v732, 128
    %752 = vxpose.xlu0.b32.cont [4/16] %v735, 128
    %753 = vxpose.xlu0.b32.cont [5/16] 0.0, 128
    %754 = vxpose.xlu0.b32.cont [6/16] 0.0, 128
    %755 = vxpose.xlu0.b32.cont [7/16] 0.0, 128
    %756 = vxpose.xlu0.b32.cont [8/16] 0.0, 128
    %757 = vxpose.xlu0.b32.cont [9/16] 0.0, 128
    %758 = vxpose.xlu0.b32.cont [10/16] 0.0, 128
    %759 = vxpose.xlu0.b32.cont [11/16] 0.0, 128
    %760 = vxpose.xlu0.b32.cont [12/16] 0.0, 128
    %761 = vxpose.xlu0.b32.cont [13/16] 0.0, 128
    %762 = vxpose.xlu0.b32.cont [14/16] 0.0, 128
    %763 = vxpose.xlu0.b32.cont [15/16] 0.0, 128
    %764 = vxpose.xlu0.b32.end [16/16] 0.0, 128
    %v765 = vpop.trf.xlu0
    %v766 = vpop.trf.xlu0
    %v767 = vpop.trf.xlu0
    %v768 = vpop.trf.xlu0
    %v769 = vpop.trf.xlu0
    %v770 = vpop.trf.xlu0
    %v771 = vpop.trf.xlu0
    %v772 = vpop.trf.xlu0
    %v773 = vpop.trf.xlu0
    %v774 = vpop.trf.xlu0
    %v775 = vpop.trf.xlu0
    %v776 = vpop.trf.xlu0
    %v777 = vpop.trf.xlu0
    %v778 = vpop.trf.xlu0
    %v779 = vpop.trf.xlu0
    %v780 = vpop.trf.xlu0
    %781 = vxpose.xlu0.b32.start [1/16] %v738, 128
    %782 = vxpose.xlu0.b32.cont [2/16] %v741, 128
    %783 = vxpose.xlu0.b32.cont [3/16] %v744, 128
    %784 = vxpose.xlu0.b32.cont [4/16] %v747, 128
    %785 = vxpose.xlu0.b32.cont [5/16] 0.0, 128
    %786 = vxpose.xlu0.b32.cont [6/16] 0.0, 128
    %787 = vxpose.xlu0.b32.cont [7/16] 0.0, 128
    %788 = vxpose.xlu0.b32.cont [8/16] 0.0, 128
    %789 = vxpose.xlu0.b32.cont [9/16] 0.0, 128
    %790 = vxpose.xlu0.b32.cont [10/16] 0.0, 128
    %791 = vxpose.xlu0.b32.cont [11/16] 0.0, 128
    %792 = vxpose.xlu0.b32.cont [12/16] 0.0, 128
    %793 = vxpose.xlu0.b32.cont [13/16] 0.0, 128
    %794 = vxpose.xlu0.b32.cont [14/16] 0.0, 128
    %795 = vxpose.xlu0.b32.cont [15/16] 0.0, 128
    %796 = vxpose.xlu0.b32.end [16/16] 0.0, 128
    %v797 = vpop.trf.xlu0
    %v798 = vpop.trf.xlu0
    %v799 = vpop.trf.xlu0
    %v800 = vpop.trf.xlu0
    %v801 = vpop.trf.xlu0
    %v802 = vpop.trf.xlu0
    %v803 = vpop.trf.xlu0
    %v804 = vpop.trf.xlu0
    %v805 = vpop.trf.xlu0
    %v806 = vpop.trf.xlu0
    %v807 = vpop.trf.xlu0
    %v808 = vpop.trf.xlu0
    %v809 = vpop.trf.xlu0
    %v810 = vpop.trf.xlu0
    %v811 = vpop.trf.xlu0
    %v812 = vpop.trf.xlu0
    %v813 = vpack.c.bf16 %v766, %v765
    %v814 = vpack.c.bf16 %v768, %v767
    %v815 = vpack.c.bf16 %v798, %v797
    %v816 = vpack.c.bf16 %v800, %v799
    %v817 = vld [vmem:[#allocation6] sm:$0xf]
    %v818 = vld [vmem:[#allocation6 + $0x4] sm:$0xf]
    %v819 = vld [vmem:[#allocation6 + $0x8] sm:$0xf]
    %v820 = vld [vmem:[#allocation6 + $0xc] sm:$0xf]
    %v821 = vld [vmem:[#allocation8] sm:$0x1]
    %v823 = vperm.slane %v821, 0
    %v829 = vunpack.c.l.b16 %v817
    %v830 = vunpack.c.l.b16 %v818
    %v831 = vunpack.c.l.b16 %v819
    %v832 = vunpack.c.l.b16 %v820
    %v833 = vpack.c.b16 %v830, %v829
    %v834 = vpack.c.b16 %v832, %v831
    %v838 = vsel %vm348, %v813, 0
    %v841 = vsel %vm348, %v814, 0
    %v844 = vsel %vm348, %v815, 0
    %v847 = vsel %vm348, %v816, 0
    %849 = vmatpush.bf16.msra.mxu0 0
    %850 = vmatpush.bf16.msra.mxu0 0
    %851 = vmatpush.bf16.msra.mxu0 0
    %852 = vmatpush.bf16.msra.mxu0 0
    %853 = vmatpush.bf16.msra.mxu0 0
    %854 = vmatpush.bf16.msra.mxu0 0
    %855 = vmatpush.bf16.msra.mxu0 %v834
    %856 = vmatpush.bf16.msra.mxu0 %v833
    %857 = vmatmul.bf16.gmra.mxu0 %v838
    %v858 = vpop.f32.mrf.mxu0
    %v859 = vadd.f32 %v823, %v858
    %v860 = vpop.f32.mrf.mxu0
    %v861 = vadd.f32 %v823, %v860
    %862 = vmatmul.bf16.gmra.mxu0 %v841
    %v863 = vpop.f32.mrf.mxu0
    %v864 = vadd.f32 %v823, %v863
    %v865 = vpop.f32.mrf.mxu0
    %v866 = vadd.f32 %v823, %v865
    %867 = vmatmul.bf16.gmra.mxu0 %v844
    %v868 = vpop.f32.mrf.mxu0
    %v869 = vadd.f32 %v823, %v868
    %v870 = vpop.f32.mrf.mxu0
    %v871 = vadd.f32 %v823, %v870
    %872 = vmatmul.bf16.gmra.mxu0 %v847
    %v873 = vpop.f32.mrf.mxu0
    %v874 = vadd.f32 %v823, %v873
    %v875 = vpop.f32.mrf.mxu0
    %v876 = vadd.f32 %v823, %v875
    %877 = vdwg.mxu0
    %v878 = vmax.f32 %v859, 0.0
    %v879 = vmax.f32 %v861, 0.0
    %v880 = vmax.f32 %v864, 0.0
    %v881 = vmax.f32 %v866, 0.0
    %v882 = vmax.f32 %v869, 0.0
    %v883 = vmax.f32 %v871, 0.0
    %v884 = vmax.f32 %v874, 0.0
    %v885 = vmax.f32 %v876, 0.0
    %v886 = vpack.c.bf16 %v879, %v878
    %v887 = vpack.c.bf16 %v881, %v880
    %v888 = vpack.c.bf16 %v883, %v882
    %v889 = vpack.c.bf16 %v885, %v884
    %v890 = vld [vmem:[#allocation9] sm:$0xf]
    %v891 = vld [vmem:[#allocation9 + $0x4] sm:$0xf]
    %v892 = vld [vmem:[#allocation9 + $0x8] sm:$0xf]
    %v893 = vld [vmem:[#allocation9 + $0xc] sm:$0xf]
    %v894 = vld [vmem:[#allocation9 + $0x10] sm:$0xf]
    %v895 = vld [vmem:[#allocation9 + $0x14] sm:$0xf]
    %v896 = vld [vmem:[#allocation9 + $0x18] sm:$0xf]
    %v897 = vld [vmem:[#allocation9 + $0x1c] sm:$0xf]
    %v898 = vld [vmem:[#allocation11] sm:$0x1]
    %v900 = vperm.slane %v898, 0
    %v910 = vunpack.c.l.b16 %v890
    %v911 = vunpack.c.l.b16 %v891
    %v912 = vunpack.c.l.b16 %v892
    %v913 = vunpack.c.l.b16 %v893
    %v914 = vunpack.c.l.b16 %v894
    %v915 = vunpack.c.l.b16 %v895
    %v916 = vunpack.c.l.b16 %v896
    %v917 = vunpack.c.l.b16 %v897
    %v918 = vpack.c.b16 %v911, %v910
    %v919 = vpack.c.b16 %v913, %v912
    %v920 = vpack.c.b16 %v915, %v914
    %v921 = vpack.c.b16 %v917, %v916
    %v927 = vsel %vm278, %v886, 0
    %v930 = vsel %vm278, %v887, 0
    %v933 = vsel %vm278, %v888, 0
    %v936 = vsel %vm278, %v889, 0
    %938 = vmatpush.bf16.msra.mxu0 0
    %939 = vmatpush.bf16.msra.mxu0 0
    %940 = vmatpush.bf16.msra.mxu0 0
    %941 = vmatpush.bf16.msra.mxu0 0
    %942 = vmatpush.bf16.msra.mxu0 %v921
    %943 = vmatpush.bf16.msra.mxu0 %v920
    %944 = vmatpush.bf16.msra.mxu0 %v919
    %945 = vmatpush.bf16.msra.mxu0 %v918
    %946 = vmatmul.bf16.gmra.mxu0 %v927
    %v947 = vpop.f32.mrf.mxu0
    %v948 = vadd.f32 %v900, %v947
    %v949 = vpop.f32.mrf.mxu0
    %v950 = vadd.f32 %v900, %v949
    %951 = vmatmul.bf16.gmra.mxu0 %v930
    %v952 = vpop.f32.mrf.mxu0
    %v953 = vadd.f32 %v900, %v952
    %v954 = vpop.f32.mrf.mxu0
    %v955 = vadd.f32 %v900, %v954
    %956 = vmatmul.bf16.gmra.mxu0 %v933
    %v957 = vpop.f32.mrf.mxu0
    %v958 = vadd.f32 %v900, %v957
    %v959 = vpop.f32.mrf.mxu0
    %v960 = vadd.f32 %v900, %v959
    %961 = vmatmul.bf16.gmra.mxu0 %v936
    %v962 = vpop.f32.mrf.mxu0
    %v963 = vadd.f32 %v900, %v962
    %v964 = vpop.f32.mrf.mxu0
    %v965 = vadd.f32 %v900, %v964
    %966 = vdwg.mxu0
    %v967 = vpack.c.bf16 %v950, %v948
    %v968 = vpack.c.bf16 %v955, %v953
    %v969 = vpack.c.bf16 %v960, %v958
    %v970 = vpack.c.bf16 %v965, %v963
    %v971 = vld [vmem:[#allocation12] sm:$0xff]
    %v972 = vld [vmem:[#allocation12 + $0x8] sm:$0xf]
    %v973 = vld [vmem:[#allocation12 + $0xc] sm:$0xff]
    %v974 = vld [vmem:[#allocation12 + $0x14] sm:$0xf]
    %v975 = vld [vmem:[#allocation12 + $0x18] sm:$0xff]
    %v976 = vld [vmem:[#allocation12 + $0x20] sm:$0xf]
    %v977 = vld [vmem:[#allocation12 + $0x24] sm:$0xff]
    %v978 = vld [vmem:[#allocation12 + $0x2c] sm:$0xf]
    %v979 = vld [vmem:[#allocation12 + $0x30] sm:$0xff]
    %v980 = vld [vmem:[#allocation12 + $0x38] sm:$0xf]
    %v981 = vld [vmem:[#allocation12 + $0x3c] sm:$0xff]
    %v982 = vld [vmem:[#allocation12 + $0x44] sm:$0xf]
    %v983 = vld [vmem:[#allocation12 + $0x48] sm:$0xff]
    %v984 = vld [vmem:[#allocation12 + $0x50] sm:$0xf]
    %v985 = vld [vmem:[#allocation12 + $0x54] sm:$0xff]
    %v986 = vld [vmem:[#allocation12 + $0x5c] sm:$0xf]
    %v987 = vld [vmem:[#allocation12 + $0x60] sm:$0xff]
    %v988 = vld [vmem:[#allocation12 + $0x68] sm:$0xf]
    %v989 = vld [vmem:[#allocation12 + $0x6c] sm:$0xff]
    %v990 = vld [vmem:[#allocation12 + $0x74] sm:$0xf]
    %v991 = vld [vmem:[#allocation12 + $0x78] sm:$0xff]
    %v992 = vld [vmem:[#allocation12 + $0x80] sm:$0xf]
    %v993 = vld [vmem:[#allocation12 + $0x84] sm:$0xff]
    %v994 = vld [vmem:[#allocation12 + $0x8c] sm:$0xf]
    %v995 = vld [vmem:[#allocation12 + $0x90] sm:$0xff]
    %v996 = vld [vmem:[#allocation12 + $0x98] sm:$0xf]
    %v997 = vld [vmem:[#allocation12 + $0x9c] sm:$0xff]
    %v998 = vld [vmem:[#allocation12 + $0xa4] sm:$0xf]
    %v999 = vld [vmem:[#allocation12 + $0xa8] sm:$0xff]
    %v1000 = vld [vmem:[#allocation12 + $0xb0] sm:$0xf]
    %v1001 = vld [vmem:[#allocation12 + $0xb4] sm:$0xff]
    %v1002 = vld [vmem:[#allocation12 + $0xbc] sm:$0xf]
    %v1003 = vld [vmem:[#allocation14] sm:$0x7]
    %v1005 = vperm.slane %v1003, 0
    %v1006 = vperm.slane %v1003, 1
    %v1007 = vperm.slane %v1003, 2
    %v1043 = vunpack.c.l.b16 %v971
    %v1044 = vunpack.c.h.b16 %v971
    %v1045 = vunpack.c.l.b16 %v972
    %v1046 = vunpack.c.l.b16 %v973
    %v1047 = vunpack.c.h.b16 %v973
    %v1048 = vunpack.c.l.b16 %v974
    %v1049 = vunpack.c.l.b16 %v975
    %v1050 = vunpack.c.h.b16 %v975
    %v1051 = vunpack.c.l.b16 %v976
    %v1052 = vunpack.c.l.b16 %v977
    %v1053 = vunpack.c.h.b16 %v977
    %v1054 = vunpack.c.l.b16 %v978
    %v1055 = vunpack.c.l.b16 %v979
    %v1056 = vunpack.c.h.b16 %v979
    %v1057 = vunpack.c.l.b16 %v980
    %v1058 = vunpack.c.l.b16 %v981
    %v1059 = vunpack.c.h.b16 %v981
    %v1060 = vunpack.c.l.b16 %v982
    %v1061 = vunpack.c.l.b16 %v983
    %v1062 = vunpack.c.h.b16 %v983
    %v1063 = vunpack.c.l.b16 %v984
    %v1064 = vunpack.c.l.b16 %v985
    %v1065 = vunpack.c.h.b16 %v985
    %v1066 = vunpack.c.l.b16 %v986
    %v1067 = vunpack.c.l.b16 %v987
    %v1068 = vunpack.c.h.b16 %v987
    %v1069 = vunpack.c.l.b16 %v988
    %v1070 = vunpack.c.l.b16 %v989
    %v1071 = vunpack.c.h.b16 %v989
    %v1072 = vunpack.c.l.b16 %v990
    %v1073 = vunpack.c.l.b16 %v991
    %v1074 = vunpack.c.h.b16 %v991
    %v1075 = vunpack.c.l.b16 %v992
    %v1076 = vunpack.c.l.b16 %v993
    %v1077 = vunpack.c.h.b16 %v993
    %v1078 = vunpack.c.l.b16 %v994
    %v1079 = vunpack.c.l.b16 %v995
    %v1080 = vunpack.c.h.b16 %v995
    %v1081 = vunpack.c.l.b16 %v996
    %v1082 = vunpack.c.l.b16 %v997
    %v1083 = vunpack.c.h.b16 %v997
    %v1084 = vunpack.c.l.b16 %v998
    %v1085 = vunpack.c.l.b16 %v999
    %v1086 = vunpack.c.h.b16 %v999
    %v1087 = vunpack.c.l.b16 %v1000
    %v1088 = vunpack.c.l.b16 %v1001
    %v1089 = vunpack.c.h.b16 %v1001
    %v1090 = vunpack.c.l.b16 %v1002
    %v1091 = vpack.c.b16 %v1046, %v1043
    %v1092 = vpack.c.b16 %v1047, %v1044
    %v1093 = vpack.c.b16 %v1048, %v1045
    %v1094 = vpack.c.b16 %v1052, %v1049
    %v1095 = vpack.c.b16 %v1053, %v1050
    %v1096 = vpack.c.b16 %v1054, %v1051
    %v1097 = vpack.c.b16 %v1058, %v1055
    %v1098 = vpack.c.b16 %v1059, %v1056
    %v1099 = vpack.c.b16 %v1060, %v1057
    %v1100 = vpack.c.b16 %v1064, %v1061
    %v1101 = vpack.c.b16 %v1065, %v1062
    %v1102 = vpack.c.b16 %v1066, %v1063
    %v1103 = vpack.c.b16 %v1070, %v1067
    %v1104 = vpack.c.b16 %v1071, %v1068
    %v1105 = vpack.c.b16 %v1072, %v1069
    %v1106 = vpack.c.b16 %v1076, %v1073
    %v1107 = vpack.c.b16 %v1077, %v1074
    %v1108 = vpack.c.b16 %v1078, %v1075
    %v1109 = vpack.c.b16 %v1082, %v1079
    %v1110 = vpack.c.b16 %v1083, %v1080
    %v1111 = vpack.c.b16 %v1084, %v1081
    %v1112 = vpack.c.b16 %v1088, %v1085
    %v1113 = vpack.c.b16 %v1089, %v1086
    %v1114 = vpack.c.b16 %v1090, %v1087
    %1139 = vmatpush.bf16.msra.mxu0 %v1112
    %1140 = vmatpush.bf16.msra.mxu0 %v1109
    %1141 = vmatpush.bf16.msra.mxu0 %v1106
    %1142 = vmatpush.bf16.msra.mxu0 %v1103
    %1143 = vmatpush.bf16.msra.mxu0 %v1100
    %1144 = vmatpush.bf16.msra.mxu0 %v1097
    %1145 = vmatpush.bf16.msra.mxu0 %v1094
    %1146 = vmatpush.bf16.msra.mxu0 %v1091
    %1147 = vmatmul.bf16.gmra.mxu0 %v967
    %v1148 = vpop.f32.mrf.mxu0
    %v1149 = vadd.f32 %v1005, %v1148
    %v1150 = vpop.f32.mrf.mxu0
    %v1151 = vadd.f32 %v1005, %v1150
    %1152 = vmatmul.bf16.gmra.mxu0 %v968
    %v1153 = vpop.f32.mrf.mxu0
    %v1154 = vadd.f32 %v1005, %v1153
    %v1155 = vpop.f32.mrf.mxu0
    %v1156 = vadd.f32 %v1005, %v1155
    %1157 = vmatmul.bf16.gmra.mxu0 %v969
    %v1158 = vpop.f32.mrf.mxu0
    %v1159 = vadd.f32 %v1005, %v1158
    %v1160 = vpop.f32.mrf.mxu0
    %v1161 = vadd.f32 %v1005, %v1160
    %1162 = vmatmul.bf16.gmra.mxu0 %v970
    %v1163 = vpop.f32.mrf.mxu0
    %v1164 = vadd.f32 %v1005, %v1163
    %v1165 = vpop.f32.mrf.mxu0
    %v1166 = vadd.f32 %v1005, %v1165
    %1167 = vdwg.mxu0
    %1168 = vmatpush.bf16.msra.mxu0 %v1113
    %1169 = vmatpush.bf16.msra.mxu0 %v1110
    %1170 = vmatpush.bf16.msra.mxu0 %v1107
    %1171 = vmatpush.bf16.msra.mxu0 %v1104
    %1172 = vmatpush.bf16.msra.mxu0 %v1101
    %1173 = vmatpush.bf16.msra.mxu0 %v1098
    %1174 = vmatpush.bf16.msra.mxu0 %v1095
    %1175 = vmatpush.bf16.msra.mxu0 %v1092
    %1176 = vmatmul.bf16.gmra.mxu0 %v967
    %v1177 = vpop.f32.mrf.mxu0
    %v1178 = vadd.f32 %v1006, %v1177
    %v1179 = vpop.f32.mrf.mxu0
    %v1180 = vadd.f32 %v1006, %v1179
    %1181 = vmatmul.bf16.gmra.mxu0 %v968
    %v1182 = vpop.f32.mrf.mxu0
    %v1183 = vadd.f32 %v1006, %v1182
    %v1184 = vpop.f32.mrf.mxu0
    %v1185 = vadd.f32 %v1006, %v1184
    %1186 = vmatmul.bf16.gmra.mxu0 %v969
    %v1187 = vpop.f32.mrf.mxu0
    %v1188 = vadd.f32 %v1006, %v1187
    %v1189 = vpop.f32.mrf.mxu0
    %v1190 = vadd.f32 %v1006, %v1189
    %1191 = vmatmul.bf16.gmra.mxu0 %v970
    %v1192 = vpop.f32.mrf.mxu0
    %v1193 = vadd.f32 %v1006, %v1192
    %v1194 = vpop.f32.mrf.mxu0
    %v1195 = vadd.f32 %v1006, %v1194
    %1196 = vdwg.mxu0
    %1197 = vmatpush.bf16.msra.mxu0 %v1114
    %1198 = vmatpush.bf16.msra.mxu0 %v1111
    %1199 = vmatpush.bf16.msra.mxu0 %v1108
    %1200 = vmatpush.bf16.msra.mxu0 %v1105
    %1201 = vmatpush.bf16.msra.mxu0 %v1102
    %1202 = vmatpush.bf16.msra.mxu0 %v1099
    %1203 = vmatpush.bf16.msra.mxu0 %v1096
    %1204 = vmatpush.bf16.msra.mxu0 %v1093
    %1205 = vmatmul.bf16.gmra.mxu0 %v967
    %v1206 = vpop.f32.mrf.mxu0
    %v1207 = vadd.f32 %v1007, %v1206
    %v1208 = vpop.f32.mrf.mxu0
    %v1209 = vadd.f32 %v1007, %v1208
    %1210 = vmatmul.bf16.gmra.mxu0 %v968
    %v1211 = vpop.f32.mrf.mxu0
    %v1212 = vadd.f32 %v1007, %v1211
    %v1213 = vpop.f32.mrf.mxu0
    %v1214 = vadd.f32 %v1007, %v1213
    %1215 = vmatmul.bf16.gmra.mxu0 %v969
    %v1216 = vpop.f32.mrf.mxu0
    %v1217 = vadd.f32 %v1007, %v1216
    %v1218 = vpop.f32.mrf.mxu0
    %v1219 = vadd.f32 %v1007, %v1218
    %1220 = vmatmul.bf16.gmra.mxu0 %v970
    %v1221 = vpop.f32.mrf.mxu0
    %v1222 = vadd.f32 %v1007, %v1221
    %v1223 = vpop.f32.mrf.mxu0
    %v1224 = vadd.f32 %v1007, %v1223
    %1225 = vdwg.mxu0
    %1226 = vst [vmem:[#allocation2] sm:$0xff] %v1149
    %1227 = vst [vmem:[#allocation2 + $0x8] sm:$0xff] %v1178
    %1228 = vst [vmem:[#allocation2 + $0x10] sm:$0xff] %v1207
    %1229 = vst [vmem:[#allocation2 + $0x18] sm:$0xff] %v1151
    %1230 = vst [vmem:[#allocation2 + $0x20] sm:$0xff] %v1180
    %1231 = vst [vmem:[#allocation2 + $0x28] sm:$0xff] %v1209
    %1232 = vst [vmem:[#allocation2 + $0x30] sm:$0xff] %v1154
    %1233 = vst [vmem:[#allocation2 + $0x38] sm:$0xff] %v1183
    %1234 = vst [vmem:[#allocation2 + $0x40] sm:$0xff] %v1212
    %1235 = vst [vmem:[#allocation2 + $0x48] sm:$0xff] %v1156
    %1236 = vst [vmem:[#allocation2 + $0x50] sm:$0xff] %v1185
    %1237 = vst [vmem:[#allocation2 + $0x58] sm:$0xff] %v1214
    %1238 = vst [vmem:[#allocation2 + $0x60] sm:$0xff] %v1159
    %1239 = vst [vmem:[#allocation2 + $0x68] sm:$0xff] %v1188
    %1240 = vst [vmem:[#allocation2 + $0x70] sm:$0xff] %v1217
    %1241 = vst [vmem:[#allocation2 + $0x78] sm:$0xff] %v1161
    %1242 = vst [vmem:[#allocation2 + $0x80] sm:$0xff] %v1190
    %1243 = vst [vmem:[#allocation2 + $0x88] sm:$0xff] %v1219
    %1244 = vst [vmem:[#allocation2 + $0x90] sm:$0xff] %v1164
    %1245 = vst [vmem:[#allocation2 + $0x98] sm:$0xff] %v1193
    %1246 = vst [vmem:[#allocation2 + $0xa0] sm:$0xff] %v1222
    %1247 = vst [vmem:[#allocation2 + $0xa8] sm:$0xff] %v1166
    %1248 = vst [vmem:[#allocation2 + $0xb0] sm:$0xff] %v1195
    %1249 = vst [vmem:[#allocation2 + $0xb8] sm:$0xff] %v1224
    %v1250 = vld [vmem:[#allocation15] sm:$0xff]
    %v1251 = vld [vmem:[#allocation15 + $0x8] sm:$0xf]
    %v1252 = vld [vmem:[#allocation15 + $0xc] sm:$0xff]
    %v1253 = vld [vmem:[#allocation15 + $0x14] sm:$0xf]
    %v1254 = vld [vmem:[#allocation15 + $0x18] sm:$0xff]
    %v1255 = vld [vmem:[#allocation15 + $0x20] sm:$0xf]
    %v1256 = vld [vmem:[#allocation15 + $0x24] sm:$0xff]
    %v1257 = vld [vmem:[#allocation15 + $0x2c] sm:$0xf]
    %v1258 = vld [vmem:[#allocation15 + $0x30] sm:$0xff]
    %v1259 = vld [vmem:[#allocation15 + $0x38] sm:$0xf]
    %v1260 = vld [vmem:[#allocation15 + $0x3c] sm:$0xff]
    %v1261 = vld [vmem:[#allocation15 + $0x44] sm:$0xf]
    %v1262 = vld [vmem:[#allocation15 + $0x48] sm:$0xff]
    %v1263 = vld [vmem:[#allocation15 + $0x50] sm:$0xf]
    %v1264 = vld [vmem:[#allocation15 + $0x54] sm:$0xff]
    %v1265 = vld [vmem:[#allocation15 + $0x5c] sm:$0xf]
    %v1266 = vld [vmem:[#allocation15 + $0x60] sm:$0xff]
    %v1267 = vld [vmem:[#allocation15 + $0x68] sm:$0xf]
    %v1268 = vld [vmem:[#allocation15 + $0x6c] sm:$0xff]
    %v1269 = vld [vmem:[#allocation15 + $0x74] sm:$0xf]
    %v1270 = vld [vmem:[#allocation15 + $0x78] sm:$0xff]
    %v1271 = vld [vmem:[#allocation15 + $0x80] sm:$0xf]
    %v1272 = vld [vmem:[#allocation15 + $0x84] sm:$0xff]
    %v1273 = vld [vmem:[#allocation15 + $0x8c] sm:$0xf]
    %v1274 = vld [vmem:[#allocation15 + $0x90] sm:$0xff]
    %v1275 = vld [vmem:[#allocation15 + $0x98] sm:$0xf]
    %v1276 = vld [vmem:[#allocation15 + $0x9c] sm:$0xff]
    %v1277 = vld [vmem:[#allocation15 + $0xa4] sm:$0xf]
    %v1278 = vld [vmem:[#allocation15 + $0xa8] sm:$0xff]
    %v1279 = vld [vmem:[#allocation15 + $0xb0] sm:$0xf]
    %v1280 = vld [vmem:[#allocation15 + $0xb4] sm:$0xff]
    %v1281 = vld [vmem:[#allocation15 + $0xbc] sm:$0xf]
    %v1282 = vld [vmem:[#allocation17] sm:$0x7]
    %v1283 = vld [vmem:[#allocation2] ss:$8 sm:$0x7]
    %s1284 = scalar_lea.vmem [#allocation2], 96
    %v1285 = vld [vmem:[%s1284] ss:$8 sm:$0x7]
    %v1287 = vperm.slane %v1282, 0
    %v1288 = vperm.slane %v1282, 1
    %v1289 = vperm.slane %v1282, 2
    %v1325 = vunpack.c.l.b16 %v1250
    %v1326 = vunpack.c.h.b16 %v1250
    %v1327 = vunpack.c.l.b16 %v1251
    %v1328 = vunpack.c.l.b16 %v1252
    %v1329 = vunpack.c.h.b16 %v1252
    %v1330 = vunpack.c.l.b16 %v1253
    %v1331 = vunpack.c.l.b16 %v1254
    %v1332 = vunpack.c.h.b16 %v1254
    %v1333 = vunpack.c.l.b16 %v1255
    %v1334 = vunpack.c.l.b16 %v1256
    %v1335 = vunpack.c.h.b16 %v1256
    %v1336 = vunpack.c.l.b16 %v1257
    %v1337 = vunpack.c.l.b16 %v1258
    %v1338 = vunpack.c.h.b16 %v1258
    %v1339 = vunpack.c.l.b16 %v1259
    %v1340 = vunpack.c.l.b16 %v1260
    %v1341 = vunpack.c.h.b16 %v1260
    %v1342 = vunpack.c.l.b16 %v1261
    %v1343 = vunpack.c.l.b16 %v1262
    %v1344 = vunpack.c.h.b16 %v1262
    %v1345 = vunpack.c.l.b16 %v1263
    %v1346 = vunpack.c.l.b16 %v1264
    %v1347 = vunpack.c.h.b16 %v1264
    %v1348 = vunpack.c.l.b16 %v1265
    %v1349 = vunpack.c.l.b16 %v1266
    %v1350 = vunpack.c.h.b16 %v1266
    %v1351 = vunpack.c.l.b16 %v1267
    %v1352 = vunpack.c.l.b16 %v1268
    %v1353 = vunpack.c.h.b16 %v1268
    %v1354 = vunpack.c.l.b16 %v1269
    %v1355 = vunpack.c.l.b16 %v1270
    %v1356 = vunpack.c.h.b16 %v1270
    %v1357 = vunpack.c.l.b16 %v1271
    %v1358 = vunpack.c.l.b16 %v1272
    %v1359 = vunpack.c.h.b16 %v1272
    %v1360 = vunpack.c.l.b16 %v1273
    %v1361 = vunpack.c.l.b16 %v1274
    %v1362 = vunpack.c.h.b16 %v1274
    %v1363 = vunpack.c.l.b16 %v1275
    %v1364 = vunpack.c.l.b16 %v1276
    %v1365 = vunpack.c.h.b16 %v1276
    %v1366 = vunpack.c.l.b16 %v1277
    %v1367 = vunpack.c.l.b16 %v1278
    %v1368 = vunpack.c.h.b16 %v1278
    %v1369 = vunpack.c.l.b16 %v1279
    %v1370 = vunpack.c.l.b16 %v1280
    %v1371 = vunpack.c.h.b16 %v1280
    %v1372 = vunpack.c.l.b16 %v1281
    %v1373 = vpack.c.b16 %v1328, %v1325
    %v1374 = vpack.c.b16 %v1329, %v1326
    %v1375 = vpack.c.b16 %v1330, %v1327
    %v1376 = vpack.c.b16 %v1334, %v1331
    %v1377 = vpack.c.b16 %v1335, %v1332
    %v1378 = vpack.c.b16 %v1336, %v1333
    %v1379 = vpack.c.b16 %v1340, %v1337
    %v1380 = vpack.c.b16 %v1341, %v1338
    %v1381 = vpack.c.b16 %v1342, %v1339
    %v1382 = vpack.c.b16 %v1346, %v1343
    %v1383 = vpack.c.b16 %v1347, %v1344
    %v1384 = vpack.c.b16 %v1348, %v1345
    %v1385 = vpack.c.b16 %v1352, %v1349
    %v1386 = vpack.c.b16 %v1353, %v1350
    %v1387 = vpack.c.b16 %v1354, %v1351
    %v1388 = vpack.c.b16 %v1358, %v1355
    %v1389 = vpack.c.b16 %v1359, %v1356
    %v1390 = vpack.c.b16 %v1360, %v1357
    %v1391 = vpack.c.b16 %v1364, %v1361
    %v1392 = vpack.c.b16 %v1365, %v1362
    %v1393 = vpack.c.b16 %v1366, %v1363
    %v1394 = vpack.c.b16 %v1370, %v1367
    %v1395 = vpack.c.b16 %v1371, %v1368
    %v1396 = vpack.c.b16 %v1372, %v1369
    %1421 = vmatpush.bf16.msra.mxu0 %v1394
    %1422 = vmatpush.bf16.msra.mxu0 %v1391
    %1423 = vmatpush.bf16.msra.mxu0 %v1388
    %1424 = vmatpush.bf16.msra.mxu0 %v1385
    %1425 = vmatpush.bf16.msra.mxu0 %v1382
    %1426 = vmatpush.bf16.msra.mxu0 %v1379
    %1427 = vmatpush.bf16.msra.mxu0 %v1376
    %1428 = vmatpush.bf16.msra.mxu0 %v1373
    %1429 = vmatmul.bf16.gmra.mxu0 0
    %v1430 = vpop.f32.mrf.mxu0
    %v1431 = vadd.f32 %v1287, %v1430
    %v1432 = vpop.f32.mrf.mxu0
    %1433 = vdwg.mxu0
    %1434 = vmatpush.bf16.msra.mxu0 %v1395
    %1435 = vmatpush.bf16.msra.mxu0 %v1392
    %1436 = vmatpush.bf16.msra.mxu0 %v1389
    %1437 = vmatpush.bf16.msra.mxu0 %v1386
    %1438 = vmatpush.bf16.msra.mxu0 %v1383
    %1439 = vmatpush.bf16.msra.mxu0 %v1380
    %1440 = vmatpush.bf16.msra.mxu0 %v1377
    %1441 = vmatpush.bf16.msra.mxu0 %v1374
    %1442 = vmatmul.bf16.gmra.mxu0 0
    %v1443 = vpop.f32.mrf.mxu0
    %v1444 = vadd.f32 %v1288, %v1443
    %v1445 = vpop.f32.mrf.mxu0
    %1446 = vdwg.mxu0
    %1447 = vmatpush.bf16.msra.mxu0 %v1396
    %1448 = vmatpush.bf16.msra.mxu0 %v1393
    %1449 = vmatpush.bf16.msra.mxu0 %v1390
    %1450 = vmatpush.bf16.msra.mxu0 %v1387
    %1451 = vmatpush.bf16.msra.mxu0 %v1384
    %1452 = vmatpush.bf16.msra.mxu0 %v1381
    %1453 = vmatpush.bf16.msra.mxu0 %v1378
    %1454 = vmatpush.bf16.msra.mxu0 %v1375
    %1455 = vmatmul.bf16.gmra.mxu0 0
    %v1456 = vpop.f32.mrf.mxu0
    %v1457 = vadd.f32 %v1289, %v1456
    %v1458 = vpop.f32.mrf.mxu0
    %1459 = vdwg.mxu0
    %v1461 = vrot.slane %v1431, 1
    %v1463 = vadd.f32 %v1283, %v1431
    %v1464 = vadd.f32 %v1285, %v1461
    %v1465 = vxor.u32 %v1463, 2147483648
    %v1466 = vxor.u32 %v1464, 2147483648
    %v1467 = vmul.f32 %v1465, 1.442695
    %v1468 = vpow.pop %v1467
    %v1469 = vmul.f32 %v1466, 1.442695
    %v1470 = vpow.pop %v1469
    %v1471 = vadd.f32 %v1468, 1.0
    %v1472 = vadd.f32 %v1470, 1.0
    %v1473 = vrcp.pop %v1471
    %v1474 = vmul.f32 %v1471, %v1473
    %v1475 = vsub.f32 1.0, %v1474
    %v1476 = vmul.f32 %v1473, %v1475
    %v1477 = vadd.f32 %v1473, %v1476
    %vm1478 = vweird.f32 %v1471
    %vm1479 = vweird.f32 %v1473
    %vm1480 = vmor %vm1478, %vm1479
    %v1481 = vsel %vm1480, %v1473, %v1477
    %v1482 = vand.u32 2147483647, %v1471
    %vm1483 = vcmp.eq.f32.partialorder %v1482, 8.507059e+37
    %v1484 = vand.u32 %v1471, 2147483648
    %v1485 = vor.u32 1.1754944e-38, %v1484
    %v1486 = vsel %vm1483, %v1485, %v1481
    %v1487 = vmul.f32 1.0, %v1486
    %v1488 = vrcp.pop %v1472
    %v1489 = vmul.f32 %v1472, %v1488
    %v1490 = vsub.f32 1.0, %v1489
    %v1491 = vmul.f32 %v1488, %v1490
    %v1492 = vadd.f32 %v1488, %v1491
    %vm1493 = vweird.f32 %v1472
    %vm1494 = vweird.f32 %v1488
    %vm1495 = vmor %vm1493, %vm1494
    %v1496 = vsel %vm1495, %v1488, %v1492
    %v1497 = vand.u32 2147483647, %v1472
    %vm1498 = vcmp.eq.f32.partialorder %v1497, 8.507059e+37
    %v1499 = vand.u32 %v1472, 2147483648
    %v1500 = vor.u32 1.1754944e-38, %v1499
    %v1501 = vsel %vm1498, %v1500, %v1496
    %v1502 = vmul.f32 1.0, %v1501
    %v1505 = vrot.slane %v1283, 1
    %v1506 = vrot.slane %v1285, 1
    %v1510 = vrot.slane %v1444, 1
    %v1512 = vadd.f32 %v1505, %v1444
    %v1513 = vadd.f32 %v1506, %v1510
    %v1514 = vxor.u32 %v1512, 2147483648
    %v1515 = vxor.u32 %v1513, 2147483648
    %v1516 = vmul.f32 %v1514, 1.442695
    %v1517 = vpow.pop %v1516
    %v1518 = vmul.f32 %v1515, 1.442695
    %v1519 = vpow.pop %v1518
    %v1520 = vadd.f32 %v1517, 1.0
    %v1521 = vadd.f32 %v1519, 1.0
    %v1522 = vrcp.pop %v1520
    %v1523 = vmul.f32 %v1520, %v1522
    %v1524 = vsub.f32 1.0, %v1523
    %v1525 = vmul.f32 %v1522, %v1524
    %v1526 = vadd.f32 %v1522, %v1525
    %vm1527 = vweird.f32 %v1520
    %vm1528 = vweird.f32 %v1522
    %vm1529 = vmor %vm1527, %vm1528
    %v1530 = vsel %vm1529, %v1522, %v1526
    %v1531 = vand.u32 2147483647, %v1520
    %vm1532 = vcmp.eq.f32.partialorder %v1531, 8.507059e+37
    %v1533 = vand.u32 %v1520, 2147483648
    %v1534 = vor.u32 1.1754944e-38, %v1533
    %v1535 = vsel %vm1532, %v1534, %v1530
    %v1536 = vmul.f32 1.0, %v1535
    %v1537 = vrcp.pop %v1521
    %v1538 = vmul.f32 %v1521, %v1537
    %v1539 = vsub.f32 1.0, %v1538
    %v1540 = vmul.f32 %v1537, %v1539
    %v1541 = vadd.f32 %v1537, %v1540
    %vm1542 = vweird.f32 %v1521
    %vm1543 = vweird.f32 %v1537
    %vm1544 = vmor %vm1542, %vm1543
    %v1545 = vsel %vm1544, %v1537, %v1541
    %v1546 = vand.u32 2147483647, %v1521
    %vm1547 = vcmp.eq.f32.partialorder %v1546, 8.507059e+37
    %v1548 = vand.u32 %v1521, 2147483648
    %v1549 = vor.u32 1.1754944e-38, %v1548
    %v1550 = vsel %vm1547, %v1549, %v1545
    %v1551 = vmul.f32 1.0, %v1550
    %v1553 = vrot.slane %v1457, 1
    %v1555 = vmul.f32 %v1487, %v1457
    %v1556 = vmul.f32 %v1502, %v1553
    %v1557 = vrot.slane %v1283, 2
    %v1558 = vrot.slane %v1285, 2
    %v1561 = vadd.f32 %v1557, %v1555
    %v1562 = vadd.f32 %v1558, %v1556
    %v1563 = vtanh.pop %v1561
    %v1564 = vtanh.pop %v1562
    %v1565 = vsub.f32 1.0, %v1536
    %v1566 = vsub.f32 1.0, %v1551
    %v1567 = vmul.f32 %v1565, %v1563
    %v1568 = vmul.f32 %v1566, %v1564
    %v1569 = vmul.f32 %v1536, 0.0
    %v1570 = vmul.f32 %v1551, 0.0
    %v1571 = vadd.f32 %v1567, %v1569
    %v1572 = vadd.f32 %v1568, %v1570
    %s1573 = scalar_lea.vmem [#allocation2], 1
    %v1574 = vld [vmem:[%s1573] ss:$8 sm:$0x7]
    %s1575 = scalar_lea.vmem [#allocation2], 97
    %v1576 = vld [vmem:[%s1575] ss:$8 sm:$0x7]
    %v1577 = vpack.c.bf16 %v1571, %v1571
    %v1578 = vpack.c.bf16 %v1572, %v1572
    %v1581 = vunpack.c.l.b16 %v1577
    %v1582 = vunpack.c.l.b16 %v1578
    %v1583 = vrot.slane %v1582, 7
    %vm1584 = vcmask 1041409
    %v1585 = vsel %vm1584, %v1583, %v1581
    %v1586 = vpack.c.b16 %v1585, %v1585
    %1588 = vmatpush.bf16.msra.mxu0 %v1394
    %1589 = vmatpush.bf16.msra.mxu0 %v1391
    %1590 = vmatpush.bf16.msra.mxu0 %v1388
    %1591 = vmatpush.bf16.msra.mxu0 %v1385
    %1592 = vmatpush.bf16.msra.mxu0 %v1382
    %1593 = vmatpush.bf16.msra.mxu0 %v1379
    %1594 = vmatpush.bf16.msra.mxu0 %v1376
    %1595 = vmatpush.bf16.msra.mxu0 %v1373
    %1596 = vmatmul.bf16.gmra.mxu0 %v1586
    %v1597 = vpop.f32.mrf.mxu0
    %v1598 = vadd.f32 %v1287, %v1597
    %v1599 = vpop.f32.mrf.mxu0
    %1600 = vdwg.mxu0
    %1601 = vmatpush.bf16.msra.mxu0 %v1395
    %1602 = vmatpush.bf16.msra.mxu0 %v1392
    %1603 = vmatpush.bf16.msra.mxu0 %v1389
    %1604 = vmatpush.bf16.msra.mxu0 %v1386
    %1605 = vmatpush.bf16.msra.mxu0 %v1383
    %1606 = vmatpush.bf16.msra.mxu0 %v1380
    %1607 = vmatpush.bf16.msra.mxu0 %v1377
    %1608 = vmatpush.bf16.msra.mxu0 %v1374
    %1609 = vmatmul.bf16.gmra.mxu0 %v1586
    %v1610 = vpop.f32.mrf.mxu0
    %v1611 = vadd.f32 %v1288, %v1610
    %v1612 = vpop.f32.mrf.mxu0
    %1613 = vdwg.mxu0
    %1614 = vmatpush.bf16.msra.mxu0 %v1396
    %1615 = vmatpush.bf16.msra.mxu0 %v1393
    %1616 = vmatpush.bf16.msra.mxu0 %v1390
    %1617 = vmatpush.bf16.msra.mxu0 %v1387
    %1618 = vmatpush.bf16.msra.mxu0 %v1384
    %1619 = vmatpush.bf16.msra.mxu0 %v1381
    %1620 = vmatpush.bf16.msra.mxu0 %v1378
    %1621 = vmatpush.bf16.msra.mxu0 %v1375
    %1622 = vmatmul.bf16.gmra.mxu0 %v1586
    %v1623 = vpop.f32.mrf.mxu0
    %v1624 = vadd.f32 %v1289, %v1623
    %v1625 = vpop.f32.mrf.mxu0
    %1626 = vdwg.mxu0
    %v1628 = vrot.slane %v1598, 1
    %v1630 = vadd.f32 %v1574, %v1598
    %v1631 = vadd.f32 %v1576, %v1628
    %v1632 = vxor.u32 %v1630, 2147483648
    %v1633 = vxor.u32 %v1631, 2147483648
    %v1634 = vmul.f32 %v1632, 1.442695
    %v1635 = vpow.pop %v1634
    %v1636 = vmul.f32 %v1633, 1.442695
    %v1637 = vpow.pop %v1636
    %v1638 = vadd.f32 %v1635, 1.0
    %v1639 = vadd.f32 %v1637, 1.0
    %v1640 = vrcp.pop %v1638
    %v1641 = vmul.f32 %v1638, %v1640
    %v1642 = vsub.f32 1.0, %v1641
    %v1643 = vmul.f32 %v1640, %v1642
    %v1644 = vadd.f32 %v1640, %v1643
    %vm1645 = vweird.f32 %v1638
    %vm1646 = vweird.f32 %v1640
    %vm1647 = vmor %vm1645, %vm1646
    %v1648 = vsel %vm1647, %v1640, %v1644
    %v1649 = vand.u32 2147483647, %v1638
    %vm1650 = vcmp.eq.f32.partialorder %v1649, 8.507059e+37
    %v1651 = vand.u32 %v1638, 2147483648
    %v1652 = vor.u32 1.1754944e-38, %v1651
    %v1653 = vsel %vm1650, %v1652, %v1648
    %v1654 = vmul.f32 1.0, %v1653
    %v1655 = vrcp.pop %v1639
    %v1656 = vmul.f32 %v1639, %v1655
    %v1657 = vsub.f32 1.0, %v1656
    %v1658 = vmul.f32 %v1655, %v1657
    %v1659 = vadd.f32 %v1655, %v1658
    %vm1660 = vweird.f32 %v1639
    %vm1661 = vweird.f32 %v1655
    %vm1662 = vmor %vm1660, %vm1661
    %v1663 = vsel %vm1662, %v1655, %v1659
    %v1664 = vand.u32 2147483647, %v1639
    %vm1665 = vcmp.eq.f32.partialorder %v1664, 8.507059e+37
    %v1666 = vand.u32 %v1639, 2147483648
    %v1667 = vor.u32 1.1754944e-38, %v1666
    %v1668 = vsel %vm1665, %v1667, %v1663
    %v1669 = vmul.f32 1.0, %v1668
    %v1672 = vrot.slane %v1574, 1
    %v1673 = vrot.slane %v1576, 1
    %v1677 = vrot.slane %v1611, 1
    %v1679 = vadd.f32 %v1672, %v1611
    %v1680 = vadd.f32 %v1673, %v1677
    %v1681 = vxor.u32 %v1679, 2147483648
    %v1682 = vxor.u32 %v1680, 2147483648
    %v1683 = vmul.f32 %v1681, 1.442695
    %v1684 = vpow.pop %v1683
    %v1685 = vmul.f32 %v1682, 1.442695
    %v1686 = vpow.pop %v1685
    %v1687 = vadd.f32 %v1684, 1.0
    %v1688 = vadd.f32 %v1686, 1.0
    %v1689 = vrcp.pop %v1687
    %v1690 = vmul.f32 %v1687, %v1689
    %v1691 = vsub.f32 1.0, %v1690
    %v1692 = vmul.f32 %v1689, %v1691
    %v1693 = vadd.f32 %v1689, %v1692
    %vm1694 = vweird.f32 %v1687
    %vm1695 = vweird.f32 %v1689
    %vm1696 = vmor %vm1694, %vm1695
    %v1697 = vsel %vm1696, %v1689, %v1693
    %v1698 = vand.u32 2147483647, %v1687
    %vm1699 = vcmp.eq.f32.partialorder %v1698, 8.507059e+37
    %v1700 = vand.u32 %v1687, 2147483648
    %v1701 = vor.u32 1.1754944e-38, %v1700
    %v1702 = vsel %vm1699, %v1701, %v1697
    %v1703 = vmul.f32 1.0, %v1702
    %v1704 = vrcp.pop %v1688
    %v1705 = vmul.f32 %v1688, %v1704
    %v1706 = vsub.f32 1.0, %v1705
    %v1707 = vmul.f32 %v1704, %v1706
    %v1708 = vadd.f32 %v1704, %v1707
    %vm1709 = vweird.f32 %v1688
    %vm1710 = vweird.f32 %v1704
    %vm1711 = vmor %vm1709, %vm1710
    %v1712 = vsel %vm1711, %v1704, %v1708
    %v1713 = vand.u32 2147483647, %v1688
    %vm1714 = vcmp.eq.f32.partialorder %v1713, 8.507059e+37
    %v1715 = vand.u32 %v1688, 2147483648
    %v1716 = vor.u32 1.1754944e-38, %v1715
    %v1717 = vsel %vm1714, %v1716, %v1712
    %v1718 = vmul.f32 1.0, %v1717
    %v1720 = vrot.slane %v1624, 1
    %v1722 = vmul.f32 %v1654, %v1624
    %v1723 = vmul.f32 %v1669, %v1720
    %v1724 = vrot.slane %v1574, 2
    %v1725 = vrot.slane %v1576, 2
    %v1728 = vadd.f32 %v1724, %v1722
    %v1729 = vadd.f32 %v1725, %v1723
    %v1730 = vtanh.pop %v1728
    %v1731 = vtanh.pop %v1729
    %v1732 = vsub.f32 1.0, %v1703
    %v1733 = vsub.f32 1.0, %v1718
    %v1734 = vmul.f32 %v1732, %v1730
    %v1735 = vmul.f32 %v1733, %v1731
    %v1736 = vmul.f32 %v1703, %v1571
    %v1737 = vmul.f32 %v1718, %v1572
    %v1738 = vadd.f32 %v1734, %v1736
    %v1739 = vadd.f32 %v1735, %v1737
    %s1740 = scalar_lea.vmem [#allocation2], 2
    %v1741 = vld [vmem:[%s1740] ss:$8 sm:$0x7]
    %s1742 = scalar_lea.vmem [#allocation2], 98
    %v1743 = vld [vmem:[%s1742] ss:$8 sm:$0x7]
    %v1744 = vpack.c.bf16 %v1738, %v1738
    %v1745 = vpack.c.bf16 %v1739, %v1739
    %v1748 = vunpack.c.l.b16 %v1744
    %v1749 = vunpack.c.l.b16 %v1745
    %v1750 = vrot.slane %v1749, 7
    %v1751 = vsel %vm1584, %v1750, %v1748
    %v1752 = vpack.c.b16 %v1751, %v1751
    %1754 = vmatpush.bf16.msra.mxu0 %v1394
    %1755 = vmatpush.bf16.msra.mxu0 %v1391
    %1756 = vmatpush.bf16.msra.mxu0 %v1388
    %1757 = vmatpush.bf16.msra.mxu0 %v1385
    %1758 = vmatpush.bf16.msra.mxu0 %v1382
    %1759 = vmatpush.bf16.msra.mxu0 %v1379
    %1760 = vmatpush.bf16.msra.mxu0 %v1376
    %1761 = vmatpush.bf16.msra.mxu0 %v1373
    %1762 = vmatmul.bf16.gmra.mxu0 %v1752
    %v1763 = vpop.f32.mrf.mxu0
    %v1764 = vadd.f32 %v1287, %v1763
    %v1765 = vpop.f32.mrf.mxu0
    %1766 = vdwg.mxu0
    %1767 = vmatpush.bf16.msra.mxu0 %v1395
    %1768 = vmatpush.bf16.msra.mxu0 %v1392
    %1769 = vmatpush.bf16.msra.mxu0 %v1389
    %1770 = vmatpush.bf16.msra.mxu0 %v1386
    %1771 = vmatpush.bf16.msra.mxu0 %v1383
    %1772 = vmatpush.bf16.msra.mxu0 %v1380
    %1773 = vmatpush.bf16.msra.mxu0 %v1377
    %1774 = vmatpush.bf16.msra.mxu0 %v1374
    %1775 = vmatmul.bf16.gmra.mxu0 %v1752
    %v1776 = vpop.f32.mrf.mxu0
    %v1777 = vadd.f32 %v1288, %v1776
    %v1778 = vpop.f32.mrf.mxu0
    %1779 = vdwg.mxu0
    %1780 = vmatpush.bf16.msra.mxu0 %v1396
    %1781 = vmatpush.bf16.msra.mxu0 %v1393
    %1782 = vmatpush.bf16.msra.mxu0 %v1390
    %1783 = vmatpush.bf16.msra.mxu0 %v1387
    %1784 = vmatpush.bf16.msra.mxu0 %v1384
    %1785 = vmatpush.bf16.msra.mxu0 %v1381
    %1786 = vmatpush.bf16.msra.mxu0 %v1378
    %1787 = vmatpush.bf16.msra.mxu0 %v1375
    %1788 = vmatmul.bf16.gmra.mxu0 %v1752
    %v1789 = vpop.f32.mrf.mxu0
    %v1790 = vadd.f32 %v1289, %v1789
    %v1791 = vpop.f32.mrf.mxu0
    %1792 = vdwg.mxu0
    %v1794 = vrot.slane %v1764, 1
    %v1796 = vadd.f32 %v1741, %v1764
    %v1797 = vadd.f32 %v1743, %v1794
    %v1798 = vxor.u32 %v1796, 2147483648
    %v1799 = vxor.u32 %v1797, 2147483648
    %v1800 = vmul.f32 %v1798, 1.442695
    %v1801 = vpow.pop %v1800
    %v1802 = vmul.f32 %v1799, 1.442695
    %v1803 = vpow.pop %v1802
    %v1804 = vadd.f32 %v1801, 1.0
    %v1805 = vadd.f32 %v1803, 1.0
    %v1806 = vrcp.pop %v1804
    %v1807 = vmul.f32 %v1804, %v1806
    %v1808 = vsub.f32 1.0, %v1807
    %v1809 = vmul.f32 %v1806, %v1808
    %v1810 = vadd.f32 %v1806, %v1809
    %vm1811 = vweird.f32 %v1804
    %vm1812 = vweird.f32 %v1806
    %vm1813 = vmor %vm1811, %vm1812
    %v1814 = vsel %vm1813, %v1806, %v1810
    %v1815 = vand.u32 2147483647, %v1804
    %vm1816 = vcmp.eq.f32.partialorder %v1815, 8.507059e+37
    %v1817 = vand.u32 %v1804, 2147483648
    %v1818 = vor.u32 1.1754944e-38, %v1817
    %v1819 = vsel %vm1816, %v1818, %v1814
    %v1820 = vmul.f32 1.0, %v1819
    %v1821 = vrcp.pop %v1805
    %v1822 = vmul.f32 %v1805, %v1821
    %v1823 = vsub.f32 1.0, %v1822
    %v1824 = vmul.f32 %v1821, %v1823
    %v1825 = vadd.f32 %v1821, %v1824
    %vm1826 = vweird.f32 %v1805
    %vm1827 = vweird.f32 %v1821
    %vm1828 = vmor %vm1826, %vm1827
    %v1829 = vsel %vm1828, %v1821, %v1825
    %v1830 = vand.u32 2147483647, %v1805
    %vm1831 = vcmp.eq.f32.partialorder %v1830, 8.507059e+37
    %v1832 = vand.u32 %v1805, 2147483648
    %v1833 = vor.u32 1.1754944e-38, %v1832
    %v1834 = vsel %vm1831, %v1833, %v1829
    %v1835 = vmul.f32 1.0, %v1834
    %v1838 = vrot.slane %v1741, 1
    %v1839 = vrot.slane %v1743, 1
    %v1843 = vrot.slane %v1777, 1
    %v1845 = vadd.f32 %v1838, %v1777
    %v1846 = vadd.f32 %v1839, %v1843
    %v1847 = vxor.u32 %v1845, 2147483648
    %v1848 = vxor.u32 %v1846, 2147483648
    %v1849 = vmul.f32 %v1847, 1.442695
    %v1850 = vpow.pop %v1849
    %v1851 = vmul.f32 %v1848, 1.442695
    %v1852 = vpow.pop %v1851
    %v1853 = vadd.f32 %v1850, 1.0
    %v1854 = vadd.f32 %v1852, 1.0
    %v1855 = vrcp.pop %v1853
    %v1856 = vmul.f32 %v1853, %v1855
    %v1857 = vsub.f32 1.0, %v1856
    %v1858 = vmul.f32 %v1855, %v1857
    %v1859 = vadd.f32 %v1855, %v1858
    %vm1860 = vweird.f32 %v1853
    %vm1861 = vweird.f32 %v1855
    %vm1862 = vmor %vm1860, %vm1861
    %v1863 = vsel %vm1862, %v1855, %v1859
    %v1864 = vand.u32 2147483647, %v1853
    %vm1865 = vcmp.eq.f32.partialorder %v1864, 8.507059e+37
    %v1866 = vand.u32 %v1853, 2147483648
    %v1867 = vor.u32 1.1754944e-38, %v1866
    %v1868 = vsel %vm1865, %v1867, %v1863
    %v1869 = vmul.f32 1.0, %v1868
    %v1870 = vrcp.pop %v1854
    %v1871 = vmul.f32 %v1854, %v1870
    %v1872 = vsub.f32 1.0, %v1871
    %v1873 = vmul.f32 %v1870, %v1872
    %v1874 = vadd.f32 %v1870, %v1873
    %vm1875 = vweird.f32 %v1854
    %vm1876 = vweird.f32 %v1870
    %vm1877 = vmor %vm1875, %vm1876
    %v1878 = vsel %vm1877, %v1870, %v1874
    %v1879 = vand.u32 2147483647, %v1854
    %vm1880 = vcmp.eq.f32.partialorder %v1879, 8.507059e+37
    %v1881 = vand.u32 %v1854, 2147483648
    %v1882 = vor.u32 1.1754944e-38, %v1881
    %v1883 = vsel %vm1880, %v1882, %v1878
    %v1884 = vmul.f32 1.0, %v1883
    %v1886 = vrot.slane %v1790, 1
    %v1888 = vmul.f32 %v1820, %v1790
    %v1889 = vmul.f32 %v1835, %v1886
    %v1890 = vrot.slane %v1741, 2
    %v1891 = vrot.slane %v1743, 2
    %v1894 = vadd.f32 %v1890, %v1888
    %v1895 = vadd.f32 %v1891, %v1889
    %v1896 = vtanh.pop %v1894
    %v1897 = vtanh.pop %v1895
    %v1898 = vsub.f32 1.0, %v1869
    %v1899 = vsub.f32 1.0, %v1884
    %v1900 = vmul.f32 %v1898, %v1896
    %v1901 = vmul.f32 %v1899, %v1897
    %v1902 = vmul.f32 %v1869, %v1738
    %v1903 = vmul.f32 %v1884, %v1739
    %v1904 = vadd.f32 %v1900, %v1902
    %v1905 = vadd.f32 %v1901, %v1903
    %s1906 = scalar_lea.vmem [#allocation2], 3
    %v1907 = vld [vmem:[%s1906] ss:$8 sm:$0x7]
    %s1908 = scalar_lea.vmem [#allocation2], 99
    %v1909 = vld [vmem:[%s1908] ss:$8 sm:$0x7]
    %v1910 = vpack.c.bf16 %v1904, %v1904
    %v1911 = vpack.c.bf16 %v1905, %v1905
    %v1914 = vunpack.c.l.b16 %v1910
    %v1915 = vunpack.c.l.b16 %v1911
    %v1916 = vrot.slane %v1915, 7
    %v1917 = vsel %vm1584, %v1916, %v1914
    %v1918 = vpack.c.b16 %v1917, %v1917
    %1920 = vmatpush.bf16.msra.mxu0 %v1394
    %1921 = vmatpush.bf16.msra.mxu0 %v1391
    %1922 = vmatpush.bf16.msra.mxu0 %v1388
    %1923 = vmatpush.bf16.msra.mxu0 %v1385
    %1924 = vmatpush.bf16.msra.mxu0 %v1382
    %1925 = vmatpush.bf16.msra.mxu0 %v1379
    %1926 = vmatpush.bf16.msra.mxu0 %v1376
    %1927 = vmatpush.bf16.msra.mxu0 %v1373
    %1928 = vmatmul.bf16.gmra.mxu0 %v1918
    %v1929 = vpop.f32.mrf.mxu0
    %v1930 = vadd.f32 %v1287, %v1929
    %v1931 = vpop.f32.mrf.mxu0
    %1932 = vdwg.mxu0
    %1933 = vmatpush.bf16.msra.mxu0 %v1395
    %1934 = vmatpush.bf16.msra.mxu0 %v1392
    %1935 = vmatpush.bf16.msra.mxu0 %v1389
    %1936 = vmatpush.bf16.msra.mxu0 %v1386
    %1937 = vmatpush.bf16.msra.mxu0 %v1383
    %1938 = vmatpush.bf16.msra.mxu0 %v1380
    %1939 = vmatpush.bf16.msra.mxu0 %v1377
    %1940 = vmatpush.bf16.msra.mxu0 %v1374
    %1941 = vmatmul.bf16.gmra.mxu0 %v1918
    %v1942 = vpop.f32.mrf.mxu0
    %v1943 = vadd.f32 %v1288, %v1942
    %v1944 = vpop.f32.mrf.mxu0
    %1945 = vdwg.mxu0
    %1946 = vmatpush.bf16.msra.mxu0 %v1396
    %1947 = vmatpush.bf16.msra.mxu0 %v1393
    %1948 = vmatpush.bf16.msra.mxu0 %v1390
    %1949 = vmatpush.bf16.msra.mxu0 %v1387
    %1950 = vmatpush.bf16.msra.mxu0 %v1384
    %1951 = vmatpush.bf16.msra.mxu0 %v1381
    %1952 = vmatpush.bf16.msra.mxu0 %v1378
    %1953 = vmatpush.bf16.msra.mxu0 %v1375
    %1954 = vmatmul.bf16.gmra.mxu0 %v1918
    %v1955 = vpop.f32.mrf.mxu0
    %v1956 = vadd.f32 %v1289, %v1955
    %v1957 = vpop.f32.mrf.mxu0
    %1958 = vdwg.mxu0
    %v1960 = vrot.slane %v1930, 1
    %v1962 = vadd.f32 %v1907, %v1930
    %v1963 = vadd.f32 %v1909, %v1960
    %v1964 = vxor.u32 %v1962, 2147483648
    %v1965 = vxor.u32 %v1963, 2147483648
    %v1966 = vmul.f32 %v1964, 1.442695
    %v1967 = vpow.pop %v1966
    %v1968 = vmul.f32 %v1965, 1.442695
    %v1969 = vpow.pop %v1968
    %v1970 = vadd.f32 %v1967, 1.0
    %v1971 = vadd.f32 %v1969, 1.0
    %v1972 = vrcp.pop %v1970
    %v1973 = vmul.f32 %v1970, %v1972
    %v1974 = vsub.f32 1.0, %v1973
    %v1975 = vmul.f32 %v1972, %v1974
    %v1976 = vadd.f32 %v1972, %v1975
    %vm1977 = vweird.f32 %v1970
    %vm1978 = vweird.f32 %v1972
    %vm1979 = vmor %vm1977, %vm1978
    %v1980 = vsel %vm1979, %v1972, %v1976
    %v1981 = vand.u32 2147483647, %v1970
    %vm1982 = vcmp.eq.f32.partialorder %v1981, 8.507059e+37
    %v1983 = vand.u32 %v1970, 2147483648
    %v1984 = vor.u32 1.1754944e-38, %v1983
    %v1985 = vsel %vm1982, %v1984, %v1980
    %v1986 = vmul.f32 1.0, %v1985
    %v1987 = vrcp.pop %v1971
    %v1988 = vmul.f32 %v1971, %v1987
    %v1989 = vsub.f32 1.0, %v1988
    %v1990 = vmul.f32 %v1987, %v1989
    %v1991 = vadd.f32 %v1987, %v1990
    %vm1992 = vweird.f32 %v1971
    %vm1993 = vweird.f32 %v1987
    %vm1994 = vmor %vm1992, %vm1993
    %v1995 = vsel %vm1994, %v1987, %v1991
    %v1996 = vand.u32 2147483647, %v1971
    %vm1997 = vcmp.eq.f32.partialorder %v1996, 8.507059e+37
    %v1998 = vand.u32 %v1971, 2147483648
    %v1999 = vor.u32 1.1754944e-38, %v1998
    %v2000 = vsel %vm1997, %v1999, %v1995
    %v2001 = vmul.f32 1.0, %v2000
    %v2004 = vrot.slane %v1907, 1
    %v2005 = vrot.slane %v1909, 1
    %v2009 = vrot.slane %v1943, 1
    %v2011 = vadd.f32 %v2004, %v1943
    %v2012 = vadd.f32 %v2005, %v2009
    %v2013 = vxor.u32 %v2011, 2147483648
    %v2014 = vxor.u32 %v2012, 2147483648
    %v2015 = vmul.f32 %v2013, 1.442695
    %v2016 = vpow.pop %v2015
    %v2017 = vmul.f32 %v2014, 1.442695
    %v2018 = vpow.pop %v2017
    %v2019 = vadd.f32 %v2016, 1.0
    %v2020 = vadd.f32 %v2018, 1.0
    %v2021 = vrcp.pop %v2019
    %v2022 = vmul.f32 %v2019, %v2021
    %v2023 = vsub.f32 1.0, %v2022
    %v2024 = vmul.f32 %v2021, %v2023
    %v2025 = vadd.f32 %v2021, %v2024
    %vm2026 = vweird.f32 %v2019
    %vm2027 = vweird.f32 %v2021
    %vm2028 = vmor %vm2026, %vm2027
    %v2029 = vsel %vm2028, %v2021, %v2025
    %v2030 = vand.u32 2147483647, %v2019
    %vm2031 = vcmp.eq.f32.partialorder %v2030, 8.507059e+37
    %v2032 = vand.u32 %v2019, 2147483648
    %v2033 = vor.u32 1.1754944e-38, %v2032
    %v2034 = vsel %vm2031, %v2033, %v2029
    %v2035 = vmul.f32 1.0, %v2034
    %v2036 = vrcp.pop %v2020
    %v2037 = vmul.f32 %v2020, %v2036
    %v2038 = vsub.f32 1.0, %v2037
    %v2039 = vmul.f32 %v2036, %v2038
    %v2040 = vadd.f32 %v2036, %v2039
    %vm2041 = vweird.f32 %v2020
    %vm2042 = vweird.f32 %v2036
    %vm2043 = vmor %vm2041, %vm2042
    %v2044 = vsel %vm2043, %v2036, %v2040
    %v2045 = vand.u32 2147483647, %v2020
    %vm2046 = vcmp.eq.f32.partialorder %v2045, 8.507059e+37
    %v2047 = vand.u32 %v2020, 2147483648
    %v2048 = vor.u32 1.1754944e-38, %v2047
    %v2049 = vsel %vm2046, %v2048, %v2044
    %v2050 = vmul.f32 1.0, %v2049
    %v2052 = vrot.slane %v1956, 1
    %v2054 = vmul.f32 %v1986, %v1956
    %v2055 = vmul.f32 %v2001, %v2052
    %v2056 = vrot.slane %v1907, 2
    %v2057 = vrot.slane %v1909, 2
    %v2060 = vadd.f32 %v2056, %v2054
    %v2061 = vadd.f32 %v2057, %v2055
    %v2062 = vtanh.pop %v2060
    %v2063 = vtanh.pop %v2061
    %v2064 = vsub.f32 1.0, %v2035
    %v2065 = vsub.f32 1.0, %v2050
    %v2066 = vmul.f32 %v2064, %v2062
    %v2067 = vmul.f32 %v2065, %v2063
    %v2068 = vmul.f32 %v2035, %v1904
    %v2069 = vmul.f32 %v2050, %v1905
    %v2070 = vadd.f32 %v2066, %v2068
    %v2071 = vadd.f32 %v2067, %v2069
    %s2072 = scalar_lea.vmem [#allocation2], 4
    %v2073 = vld [vmem:[%s2072] ss:$8 sm:$0x7]
    %s2074 = scalar_lea.vmem [#allocation2], 100
    %v2075 = vld [vmem:[%s2074] ss:$8 sm:$0x7]
    %v2076 = vpack.c.bf16 %v2070, %v2070
    %v2077 = vpack.c.bf16 %v2071, %v2071
    %v2080 = vunpack.c.l.b16 %v2076
    %v2081 = vunpack.c.l.b16 %v2077
    %v2082 = vrot.slane %v2081, 7
    %v2083 = vsel %vm1584, %v2082, %v2080
    %v2084 = vpack.c.b16 %v2083, %v2083
    %2086 = vmatpush.bf16.msra.mxu0 %v1394
    %2087 = vmatpush.bf16.msra.mxu0 %v1391
    %2088 = vmatpush.bf16.msra.mxu0 %v1388
    %2089 = vmatpush.bf16.msra.mxu0 %v1385
    %2090 = vmatpush.bf16.msra.mxu0 %v1382
    %2091 = vmatpush.bf16.msra.mxu0 %v1379
    %2092 = vmatpush.bf16.msra.mxu0 %v1376
    %2093 = vmatpush.bf16.msra.mxu0 %v1373
    %2094 = vmatmul.bf16.gmra.mxu0 %v2084
    %v2095 = vpop.f32.mrf.mxu0
    %v2096 = vadd.f32 %v1287, %v2095
    %v2097 = vpop.f32.mrf.mxu0
    %2098 = vdwg.mxu0
    %2099 = vmatpush.bf16.msra.mxu0 %v1395
    %2100 = vmatpush.bf16.msra.mxu0 %v1392
    %2101 = vmatpush.bf16.msra.mxu0 %v1389
    %2102 = vmatpush.bf16.msra.mxu0 %v1386
    %2103 = vmatpush.bf16.msra.mxu0 %v1383
    %2104 = vmatpush.bf16.msra.mxu0 %v1380
    %2105 = vmatpush.bf16.msra.mxu0 %v1377
    %2106 = vmatpush.bf16.msra.mxu0 %v1374
    %2107 = vmatmul.bf16.gmra.mxu0 %v2084
    %v2108 = vpop.f32.mrf.mxu0
    %v2109 = vadd.f32 %v1288, %v2108
    %v2110 = vpop.f32.mrf.mxu0
    %2111 = vdwg.mxu0
    %2112 = vmatpush.bf16.msra.mxu0 %v1396
    %2113 = vmatpush.bf16.msra.mxu0 %v1393
    %2114 = vmatpush.bf16.msra.mxu0 %v1390
    %2115 = vmatpush.bf16.msra.mxu0 %v1387
    %2116 = vmatpush.bf16.msra.mxu0 %v1384
    %2117 = vmatpush.bf16.msra.mxu0 %v1381
    %2118 = vmatpush.bf16.msra.mxu0 %v1378
    %2119 = vmatpush.bf16.msra.mxu0 %v1375
    %2120 = vmatmul.bf16.gmra.mxu0 %v2084
    %v2121 = vpop.f32.mrf.mxu0
    %v2122 = vadd.f32 %v1289, %v2121
    %v2123 = vpop.f32.mrf.mxu0
    %2124 = vdwg.mxu0
    %v2126 = vrot.slane %v2096, 1
    %v2128 = vadd.f32 %v2073, %v2096
    %v2129 = vadd.f32 %v2075, %v2126
    %v2130 = vxor.u32 %v2128, 2147483648
    %v2131 = vxor.u32 %v2129, 2147483648
    %v2132 = vmul.f32 %v2130, 1.442695
    %v2133 = vpow.pop %v2132
    %v2134 = vmul.f32 %v2131, 1.442695
    %v2135 = vpow.pop %v2134
    %v2136 = vadd.f32 %v2133, 1.0
    %v2137 = vadd.f32 %v2135, 1.0
    %v2138 = vrcp.pop %v2136
    %v2139 = vmul.f32 %v2136, %v2138
    %v2140 = vsub.f32 1.0, %v2139
    %v2141 = vmul.f32 %v2138, %v2140
    %v2142 = vadd.f32 %v2138, %v2141
    %vm2143 = vweird.f32 %v2136
    %vm2144 = vweird.f32 %v2138
    %vm2145 = vmor %vm2143, %vm2144
    %v2146 = vsel %vm2145, %v2138, %v2142
    %v2147 = vand.u32 2147483647, %v2136
    %vm2148 = vcmp.eq.f32.partialorder %v2147, 8.507059e+37
    %v2149 = vand.u32 %v2136, 2147483648
    %v2150 = vor.u32 1.1754944e-38, %v2149
    %v2151 = vsel %vm2148, %v2150, %v2146
    %v2152 = vmul.f32 1.0, %v2151
    %v2153 = vrcp.pop %v2137
    %v2154 = vmul.f32 %v2137, %v2153
    %v2155 = vsub.f32 1.0, %v2154
    %v2156 = vmul.f32 %v2153, %v2155
    %v2157 = vadd.f32 %v2153, %v2156
    %vm2158 = vweird.f32 %v2137
    %vm2159 = vweird.f32 %v2153
    %vm2160 = vmor %vm2158, %vm2159
    %v2161 = vsel %vm2160, %v2153, %v2157
    %v2162 = vand.u32 2147483647, %v2137
    %vm2163 = vcmp.eq.f32.partialorder %v2162, 8.507059e+37
    %v2164 = vand.u32 %v2137, 2147483648
    %v2165 = vor.u32 1.1754944e-38, %v2164
    %v2166 = vsel %vm2163, %v2165, %v2161
    %v2167 = vmul.f32 1.0, %v2166
    %v2170 = vrot.slane %v2073, 1
    %v2171 = vrot.slane %v2075, 1
    %v2175 = vrot.slane %v2109, 1
    %v2177 = vadd.f32 %v2170, %v2109
    %v2178 = vadd.f32 %v2171, %v2175
    %v2179 = vxor.u32 %v2177, 2147483648
    %v2180 = vxor.u32 %v2178, 2147483648
    %v2181 = vmul.f32 %v2179, 1.442695
    %v2182 = vpow.pop %v2181
    %v2183 = vmul.f32 %v2180, 1.442695
    %v2184 = vpow.pop %v2183
    %v2185 = vadd.f32 %v2182, 1.0
    %v2186 = vadd.f32 %v2184, 1.0
    %v2187 = vrcp.pop %v2185
    %v2188 = vmul.f32 %v2185, %v2187
    %v2189 = vsub.f32 1.0, %v2188
    %v2190 = vmul.f32 %v2187, %v2189
    %v2191 = vadd.f32 %v2187, %v2190
    %vm2192 = vweird.f32 %v2185
    %vm2193 = vweird.f32 %v2187
    %vm2194 = vmor %vm2192, %vm2193
    %v2195 = vsel %vm2194, %v2187, %v2191
    %v2196 = vand.u32 2147483647, %v2185
    %vm2197 = vcmp.eq.f32.partialorder %v2196, 8.507059e+37
    %v2198 = vand.u32 %v2185, 2147483648
    %v2199 = vor.u32 1.1754944e-38, %v2198
    %v2200 = vsel %vm2197, %v2199, %v2195
    %v2201 = vmul.f32 1.0, %v2200
    %v2202 = vrcp.pop %v2186
    %v2203 = vmul.f32 %v2186, %v2202
    %v2204 = vsub.f32 1.0, %v2203
    %v2205 = vmul.f32 %v2202, %v2204
    %v2206 = vadd.f32 %v2202, %v2205
    %vm2207 = vweird.f32 %v2186
    %vm2208 = vweird.f32 %v2202
    %vm2209 = vmor %vm2207, %vm2208
    %v2210 = vsel %vm2209, %v2202, %v2206
    %v2211 = vand.u32 2147483647, %v2186
    %vm2212 = vcmp.eq.f32.partialorder %v2211, 8.507059e+37
    %v2213 = vand.u32 %v2186, 2147483648
    %v2214 = vor.u32 1.1754944e-38, %v2213
    %v2215 = vsel %vm2212, %v2214, %v2210
    %v2216 = vmul.f32 1.0, %v2215
    %v2218 = vrot.slane %v2122, 1
    %v2220 = vmul.f32 %v2152, %v2122
    %v2221 = vmul.f32 %v2167, %v2218
    %v2222 = vrot.slane %v2073, 2
    %v2223 = vrot.slane %v2075, 2
    %v2226 = vadd.f32 %v2222, %v2220
    %v2227 = vadd.f32 %v2223, %v2221
    %v2228 = vtanh.pop %v2226
    %v2229 = vtanh.pop %v2227
    %v2230 = vsub.f32 1.0, %v2201
    %v2231 = vsub.f32 1.0, %v2216
    %v2232 = vmul.f32 %v2230, %v2228
    %v2233 = vmul.f32 %v2231, %v2229
    %v2234 = vmul.f32 %v2201, %v2070
    %v2235 = vmul.f32 %v2216, %v2071
    %v2236 = vadd.f32 %v2232, %v2234
    %v2237 = vadd.f32 %v2233, %v2235
    %s2238 = scalar_lea.vmem [#allocation2], 5
    %v2239 = vld [vmem:[%s2238] ss:$8 sm:$0x7]
    %s2240 = scalar_lea.vmem [#allocation2], 101
    %v2241 = vld [vmem:[%s2240] ss:$8 sm:$0x7]
    %v2242 = vpack.c.bf16 %v2236, %v2236
    %v2243 = vpack.c.bf16 %v2237, %v2237
    %v2246 = vunpack.c.l.b16 %v2242
    %v2247 = vunpack.c.l.b16 %v2243
    %v2248 = vrot.slane %v2247, 7
    %v2249 = vsel %vm1584, %v2248, %v2246
    %v2250 = vpack.c.b16 %v2249, %v2249
    %2252 = vmatpush.bf16.msra.mxu0 %v1394
    %2253 = vmatpush.bf16.msra.mxu0 %v1391
    %2254 = vmatpush.bf16.msra.mxu0 %v1388
    %2255 = vmatpush.bf16.msra.mxu0 %v1385
    %2256 = vmatpush.bf16.msra.mxu0 %v1382
    %2257 = vmatpush.bf16.msra.mxu0 %v1379
    %2258 = vmatpush.bf16.msra.mxu0 %v1376
    %2259 = vmatpush.bf16.msra.mxu0 %v1373
    %2260 = vmatmul.bf16.gmra.mxu0 %v2250
    %v2261 = vpop.f32.mrf.mxu0
    %v2262 = vadd.f32 %v1287, %v2261
    %v2263 = vpop.f32.mrf.mxu0
    %2264 = vdwg.mxu0
    %2265 = vmatpush.bf16.msra.mxu0 %v1395
    %2266 = vmatpush.bf16.msra.mxu0 %v1392
    %2267 = vmatpush.bf16.msra.mxu0 %v1389
    %2268 = vmatpush.bf16.msra.mxu0 %v1386
    %2269 = vmatpush.bf16.msra.mxu0 %v1383
    %2270 = vmatpush.bf16.msra.mxu0 %v1380
    %2271 = vmatpush.bf16.msra.mxu0 %v1377
    %2272 = vmatpush.bf16.msra.mxu0 %v1374
    %2273 = vmatmul.bf16.gmra.mxu0 %v2250
    %v2274 = vpop.f32.mrf.mxu0
    %v2275 = vadd.f32 %v1288, %v2274
    %v2276 = vpop.f32.mrf.mxu0
    %2277 = vdwg.mxu0
    %2278 = vmatpush.bf16.msra.mxu0 %v1396
    %2279 = vmatpush.bf16.msra.mxu0 %v1393
    %2280 = vmatpush.bf16.msra.mxu0 %v1390
    %2281 = vmatpush.bf16.msra.mxu0 %v1387
    %2282 = vmatpush.bf16.msra.mxu0 %v1384
    %2283 = vmatpush.bf16.msra.mxu0 %v1381
    %2284 = vmatpush.bf16.msra.mxu0 %v1378
    %2285 = vmatpush.bf16.msra.mxu0 %v1375
    %2286 = vmatmul.bf16.gmra.mxu0 %v2250
    %v2287 = vpop.f32.mrf.mxu0
    %v2288 = vadd.f32 %v1289, %v2287
    %v2289 = vpop.f32.mrf.mxu0
    %2290 = vdwg.mxu0
    %v2292 = vrot.slane %v2262, 1
    %v2294 = vadd.f32 %v2239, %v2262
    %v2295 = vadd.f32 %v2241, %v2292
    %v2296 = vxor.u32 %v2294, 2147483648
    %v2297 = vxor.u32 %v2295, 2147483648
    %v2298 = vmul.f32 %v2296, 1.442695
    %v2299 = vpow.pop %v2298
    %v2300 = vmul.f32 %v2297, 1.442695
    %v2301 = vpow.pop %v2300
    %v2302 = vadd.f32 %v2299, 1.0
    %v2303 = vadd.f32 %v2301, 1.0
    %v2304 = vrcp.pop %v2302
    %v2305 = vmul.f32 %v2302, %v2304
    %v2306 = vsub.f32 1.0, %v2305
    %v2307 = vmul.f32 %v2304, %v2306
    %v2308 = vadd.f32 %v2304, %v2307
    %vm2309 = vweird.f32 %v2302
    %vm2310 = vweird.f32 %v2304
    %vm2311 = vmor %vm2309, %vm2310
    %v2312 = vsel %vm2311, %v2304, %v2308
    %v2313 = vand.u32 2147483647, %v2302
    %vm2314 = vcmp.eq.f32.partialorder %v2313, 8.507059e+37
    %v2315 = vand.u32 %v2302, 2147483648
    %v2316 = vor.u32 1.1754944e-38, %v2315
    %v2317 = vsel %vm2314, %v2316, %v2312
    %v2318 = vmul.f32 1.0, %v2317
    %v2319 = vrcp.pop %v2303
    %v2320 = vmul.f32 %v2303, %v2319
    %v2321 = vsub.f32 1.0, %v2320
    %v2322 = vmul.f32 %v2319, %v2321
    %v2323 = vadd.f32 %v2319, %v2322
    %vm2324 = vweird.f32 %v2303
    %vm2325 = vweird.f32 %v2319
    %vm2326 = vmor %vm2324, %vm2325
    %v2327 = vsel %vm2326, %v2319, %v2323
    %v2328 = vand.u32 2147483647, %v2303
    %vm2329 = vcmp.eq.f32.partialorder %v2328, 8.507059e+37
    %v2330 = vand.u32 %v2303, 2147483648
    %v2331 = vor.u32 1.1754944e-38, %v2330
    %v2332 = vsel %vm2329, %v2331, %v2327
    %v2333 = vmul.f32 1.0, %v2332
    %v2336 = vrot.slane %v2239, 1
    %v2337 = vrot.slane %v2241, 1
    %v2341 = vrot.slane %v2275, 1
    %v2343 = vadd.f32 %v2336, %v2275
    %v2344 = vadd.f32 %v2337, %v2341
    %v2345 = vxor.u32 %v2343, 2147483648
    %v2346 = vxor.u32 %v2344, 2147483648
    %v2347 = vmul.f32 %v2345, 1.442695
    %v2348 = vpow.pop %v2347
    %v2349 = vmul.f32 %v2346, 1.442695
    %v2350 = vpow.pop %v2349
    %v2351 = vadd.f32 %v2348, 1.0
    %v2352 = vadd.f32 %v2350, 1.0
    %v2353 = vrcp.pop %v2351
    %v2354 = vmul.f32 %v2351, %v2353
    %v2355 = vsub.f32 1.0, %v2354
    %v2356 = vmul.f32 %v2353, %v2355
    %v2357 = vadd.f32 %v2353, %v2356
    %vm2358 = vweird.f32 %v2351
    %vm2359 = vweird.f32 %v2353
    %vm2360 = vmor %vm2358, %vm2359
    %v2361 = vsel %vm2360, %v2353, %v2357
    %v2362 = vand.u32 2147483647, %v2351
    %vm2363 = vcmp.eq.f32.partialorder %v2362, 8.507059e+37
    %v2364 = vand.u32 %v2351, 2147483648
    %v2365 = vor.u32 1.1754944e-38, %v2364
    %v2366 = vsel %vm2363, %v2365, %v2361
    %v2367 = vmul.f32 1.0, %v2366
    %v2368 = vrcp.pop %v2352
    %v2369 = vmul.f32 %v2352, %v2368
    %v2370 = vsub.f32 1.0, %v2369
    %v2371 = vmul.f32 %v2368, %v2370
    %v2372 = vadd.f32 %v2368, %v2371
    %vm2373 = vweird.f32 %v2352
    %vm2374 = vweird.f32 %v2368
    %vm2375 = vmor %vm2373, %vm2374
    %v2376 = vsel %vm2375, %v2368, %v2372
    %v2377 = vand.u32 2147483647, %v2352
    %vm2378 = vcmp.eq.f32.partialorder %v2377, 8.507059e+37
    %v2379 = vand.u32 %v2352, 2147483648
    %v2380 = vor.u32 1.1754944e-38, %v2379
    %v2381 = vsel %vm2378, %v2380, %v2376
    %v2382 = vmul.f32 1.0, %v2381
    %v2384 = vrot.slane %v2288, 1
    %v2386 = vmul.f32 %v2318, %v2288
    %v2387 = vmul.f32 %v2333, %v2384
    %v2388 = vrot.slane %v2239, 2
    %v2389 = vrot.slane %v2241, 2
    %v2392 = vadd.f32 %v2388, %v2386
    %v2393 = vadd.f32 %v2389, %v2387
    %v2394 = vtanh.pop %v2392
    %v2395 = vtanh.pop %v2393
    %v2396 = vsub.f32 1.0, %v2367
    %v2397 = vsub.f32 1.0, %v2382
    %v2398 = vmul.f32 %v2396, %v2394
    %v2399 = vmul.f32 %v2397, %v2395
    %v2400 = vmul.f32 %v2367, %v2236
    %v2401 = vmul.f32 %v2382, %v2237
    %v2402 = vadd.f32 %v2398, %v2400
    %v2403 = vadd.f32 %v2399, %v2401
    %s2404 = scalar_lea.vmem [#allocation2], 6
    %v2405 = vld [vmem:[%s2404] ss:$8 sm:$0x7]
    %s2406 = scalar_lea.vmem [#allocation2], 102
    %v2407 = vld [vmem:[%s2406] ss:$8 sm:$0x7]
    %v2408 = vpack.c.bf16 %v2402, %v2402
    %v2409 = vpack.c.bf16 %v2403, %v2403
    %v2412 = vunpack.c.l.b16 %v2408
    %v2413 = vunpack.c.l.b16 %v2409
    %v2414 = vrot.slane %v2413, 7
    %v2415 = vsel %vm1584, %v2414, %v2412
    %v2416 = vpack.c.b16 %v2415, %v2415
    %2418 = vmatpush.bf16.msra.mxu0 %v1394
    %2419 = vmatpush.bf16.msra.mxu0 %v1391
    %2420 = vmatpush.bf16.msra.mxu0 %v1388
    %2421 = vmatpush.bf16.msra.mxu0 %v1385
    %2422 = vmatpush.bf16.msra.mxu0 %v1382
    %2423 = vmatpush.bf16.msra.mxu0 %v1379
    %2424 = vmatpush.bf16.msra.mxu0 %v1376
    %2425 = vmatpush.bf16.msra.mxu0 %v1373
    %2426 = vmatmul.bf16.gmra.mxu0 %v2416
    %v2427 = vpop.f32.mrf.mxu0
    %v2428 = vadd.f32 %v1287, %v2427
    %v2429 = vpop.f32.mrf.mxu0
    %2430 = vdwg.mxu0
    %2431 = vmatpush.bf16.msra.mxu0 %v1395
    %2432 = vmatpush.bf16.msra.mxu0 %v1392
    %2433 = vmatpush.bf16.msra.mxu0 %v1389
    %2434 = vmatpush.bf16.msra.mxu0 %v1386
    %2435 = vmatpush.bf16.msra.mxu0 %v1383
    %2436 = vmatpush.bf16.msra.mxu0 %v1380
    %2437 = vmatpush.bf16.msra.mxu0 %v1377
    %2438 = vmatpush.bf16.msra.mxu0 %v1374
    %2439 = vmatmul.bf16.gmra.mxu0 %v2416
    %v2440 = vpop.f32.mrf.mxu0
    %v2441 = vadd.f32 %v1288, %v2440
    %v2442 = vpop.f32.mrf.mxu0
    %2443 = vdwg.mxu0
    %2444 = vmatpush.bf16.msra.mxu0 %v1396
    %2445 = vmatpush.bf16.msra.mxu0 %v1393
    %2446 = vmatpush.bf16.msra.mxu0 %v1390
    %2447 = vmatpush.bf16.msra.mxu0 %v1387
    %2448 = vmatpush.bf16.msra.mxu0 %v1384
    %2449 = vmatpush.bf16.msra.mxu0 %v1381
    %2450 = vmatpush.bf16.msra.mxu0 %v1378
    %2451 = vmatpush.bf16.msra.mxu0 %v1375
    %2452 = vmatmul.bf16.gmra.mxu0 %v2416
    %v2453 = vpop.f32.mrf.mxu0
    %v2454 = vadd.f32 %v1289, %v2453
    %v2455 = vpop.f32.mrf.mxu0
    %2456 = vdwg.mxu0
    %v2458 = vrot.slane %v2428, 1
    %v2460 = vadd.f32 %v2405, %v2428
    %v2461 = vadd.f32 %v2407, %v2458
    %v2462 = vxor.u32 %v2460, 2147483648
    %v2463 = vxor.u32 %v2461, 2147483648
    %v2464 = vmul.f32 %v2462, 1.442695
    %v2465 = vpow.pop %v2464
    %v2466 = vmul.f32 %v2463, 1.442695
    %v2467 = vpow.pop %v2466
    %v2468 = vadd.f32 %v2465, 1.0
    %v2469 = vadd.f32 %v2467, 1.0
    %v2470 = vrcp.pop %v2468
    %v2471 = vmul.f32 %v2468, %v2470
    %v2472 = vsub.f32 1.0, %v2471
    %v2473 = vmul.f32 %v2470, %v2472
    %v2474 = vadd.f32 %v2470, %v2473
    %vm2475 = vweird.f32 %v2468
    %vm2476 = vweird.f32 %v2470
    %vm2477 = vmor %vm2475, %vm2476
    %v2478 = vsel %vm2477, %v2470, %v2474
    %v2479 = vand.u32 2147483647, %v2468
    %vm2480 = vcmp.eq.f32.partialorder %v2479, 8.507059e+37
    %v2481 = vand.u32 %v2468, 2147483648
    %v2482 = vor.u32 1.1754944e-38, %v2481
    %v2483 = vsel %vm2480, %v2482, %v2478
    %v2484 = vmul.f32 1.0, %v2483
    %v2485 = vrcp.pop %v2469
    %v2486 = vmul.f32 %v2469, %v2485
    %v2487 = vsub.f32 1.0, %v2486
    %v2488 = vmul.f32 %v2485, %v2487
    %v2489 = vadd.f32 %v2485, %v2488
    %vm2490 = vweird.f32 %v2469
    %vm2491 = vweird.f32 %v2485
    %vm2492 = vmor %vm2490, %vm2491
    %v2493 = vsel %vm2492, %v2485, %v2489
    %v2494 = vand.u32 2147483647, %v2469
    %vm2495 = vcmp.eq.f32.partialorder %v2494, 8.507059e+37
    %v2496 = vand.u32 %v2469, 2147483648
    %v2497 = vor.u32 1.1754944e-38, %v2496
    %v2498 = vsel %vm2495, %v2497, %v2493
    %v2499 = vmul.f32 1.0, %v2498
    %v2502 = vrot.slane %v2405, 1
    %v2503 = vrot.slane %v2407, 1
    %v2507 = vrot.slane %v2441, 1
    %v2509 = vadd.f32 %v2502, %v2441
    %v2510 = vadd.f32 %v2503, %v2507
    %v2511 = vxor.u32 %v2509, 2147483648
    %v2512 = vxor.u32 %v2510, 2147483648
    %v2513 = vmul.f32 %v2511, 1.442695
    %v2514 = vpow.pop %v2513
    %v2515 = vmul.f32 %v2512, 1.442695
    %v2516 = vpow.pop %v2515
    %v2517 = vadd.f32 %v2514, 1.0
    %v2518 = vadd.f32 %v2516, 1.0
    %v2519 = vrcp.pop %v2517
    %v2520 = vmul.f32 %v2517, %v2519
    %v2521 = vsub.f32 1.0, %v2520
    %v2522 = vmul.f32 %v2519, %v2521
    %v2523 = vadd.f32 %v2519, %v2522
    %vm2524 = vweird.f32 %v2517
    %vm2525 = vweird.f32 %v2519
    %vm2526 = vmor %vm2524, %vm2525
    %v2527 = vsel %vm2526, %v2519, %v2523
    %v2528 = vand.u32 2147483647, %v2517
    %vm2529 = vcmp.eq.f32.partialorder %v2528, 8.507059e+37
    %v2530 = vand.u32 %v2517, 2147483648
    %v2531 = vor.u32 1.1754944e-38, %v2530
    %v2532 = vsel %vm2529, %v2531, %v2527
    %v2533 = vmul.f32 1.0, %v2532
    %v2534 = vrcp.pop %v2518
    %v2535 = vmul.f32 %v2518, %v2534
    %v2536 = vsub.f32 1.0, %v2535
    %v2537 = vmul.f32 %v2534, %v2536
    %v2538 = vadd.f32 %v2534, %v2537
    %vm2539 = vweird.f32 %v2518
    %vm2540 = vweird.f32 %v2534
    %vm2541 = vmor %vm2539, %vm2540
    %v2542 = vsel %vm2541, %v2534, %v2538
    %v2543 = vand.u32 2147483647, %v2518
    %vm2544 = vcmp.eq.f32.partialorder %v2543, 8.507059e+37
    %v2545 = vand.u32 %v2518, 2147483648
    %v2546 = vor.u32 1.1754944e-38, %v2545
    %v2547 = vsel %vm2544, %v2546, %v2542
    %v2548 = vmul.f32 1.0, %v2547
    %v2550 = vrot.slane %v2454, 1
    %v2552 = vmul.f32 %v2484, %v2454
    %v2553 = vmul.f32 %v2499, %v2550
    %v2554 = vrot.slane %v2405, 2
    %v2555 = vrot.slane %v2407, 2
    %v2558 = vadd.f32 %v2554, %v2552
    %v2559 = vadd.f32 %v2555, %v2553
    %v2560 = vtanh.pop %v2558
    %v2561 = vtanh.pop %v2559
    %v2562 = vsub.f32 1.0, %v2533
    %v2563 = vsub.f32 1.0, %v2548
    %v2564 = vmul.f32 %v2562, %v2560
    %v2565 = vmul.f32 %v2563, %v2561
    %v2566 = vmul.f32 %v2533, %v2402
    %v2567 = vmul.f32 %v2548, %v2403
    %v2568 = vadd.f32 %v2564, %v2566
    %v2569 = vadd.f32 %v2565, %v2567
    %s2570 = scalar_lea.vmem [#allocation2], 7
    %v2571 = vld [vmem:[%s2570] ss:$8 sm:$0x7]
    %s2572 = scalar_lea.vmem [#allocation2], 103
    %v2573 = vld [vmem:[%s2572] ss:$8 sm:$0x7]
    %v2574 = vpack.c.bf16 %v2568, %v2568
    %v2575 = vpack.c.bf16 %v2569, %v2569
    %v2578 = vunpack.c.l.b16 %v2574
    %v2579 = vunpack.c.l.b16 %v2575
    %v2580 = vrot.slane %v2579, 7
    %v2581 = vsel %vm1584, %v2580, %v2578
    %v2582 = vpack.c.b16 %v2581, %v2581
    %2584 = vmatpush.bf16.msra.mxu0 %v1394
    %2585 = vmatpush.bf16.msra.mxu0 %v1391
    %2586 = vmatpush.bf16.msra.mxu0 %v1388
    %2587 = vmatpush.bf16.msra.mxu0 %v1385
    %2588 = vmatpush.bf16.msra.mxu0 %v1382
    %2589 = vmatpush.bf16.msra.mxu0 %v1379
    %2590 = vmatpush.bf16.msra.mxu0 %v1376
    %2591 = vmatpush.bf16.msra.mxu0 %v1373
    %2592 = vmatmul.bf16.gmra.mxu0 %v2582
    %v2593 = vpop.f32.mrf.mxu0
    %v2594 = vadd.f32 %v1287, %v2593
    %v2595 = vpop.f32.mrf.mxu0
    %2596 = vdwg.mxu0
    %2597 = vmatpush.bf16.msra.mxu0 %v1395
    %2598 = vmatpush.bf16.msra.mxu0 %v1392
    %2599 = vmatpush.bf16.msra.mxu0 %v1389
    %2600 = vmatpush.bf16.msra.mxu0 %v1386
    %2601 = vmatpush.bf16.msra.mxu0 %v1383
    %2602 = vmatpush.bf16.msra.mxu0 %v1380
    %2603 = vmatpush.bf16.msra.mxu0 %v1377
    %2604 = vmatpush.bf16.msra.mxu0 %v1374
    %2605 = vmatmul.bf16.gmra.mxu0 %v2582
    %v2606 = vpop.f32.mrf.mxu0
    %v2607 = vadd.f32 %v1288, %v2606
    %v2608 = vpop.f32.mrf.mxu0
    %2609 = vdwg.mxu0
    %2610 = vmatpush.bf16.msra.mxu0 %v1396
    %2611 = vmatpush.bf16.msra.mxu0 %v1393
    %2612 = vmatpush.bf16.msra.mxu0 %v1390
    %2613 = vmatpush.bf16.msra.mxu0 %v1387
    %2614 = vmatpush.bf16.msra.mxu0 %v1384
    %2615 = vmatpush.bf16.msra.mxu0 %v1381
    %2616 = vmatpush.bf16.msra.mxu0 %v1378
    %2617 = vmatpush.bf16.msra.mxu0 %v1375
    %2618 = vmatmul.bf16.gmra.mxu0 %v2582
    %v2619 = vpop.f32.mrf.mxu0
    %v2620 = vadd.f32 %v1289, %v2619
    %v2621 = vpop.f32.mrf.mxu0
    %2622 = vdwg.mxu0
    %v2624 = vrot.slane %v2594, 1
    %v2626 = vadd.f32 %v2571, %v2594
    %v2627 = vadd.f32 %v2573, %v2624
    %v2628 = vxor.u32 %v2626, 2147483648
    %v2629 = vxor.u32 %v2627, 2147483648
    %v2630 = vmul.f32 %v2628, 1.442695
    %v2631 = vpow.pop %v2630
    %v2632 = vmul.f32 %v2629, 1.442695
    %v2633 = vpow.pop %v2632
    %v2634 = vadd.f32 %v2631, 1.0
    %v2635 = vadd.f32 %v2633, 1.0
    %v2636 = vrcp.pop %v2634
    %v2637 = vmul.f32 %v2634, %v2636
    %v2638 = vsub.f32 1.0, %v2637
    %v2639 = vmul.f32 %v2636, %v2638
    %v2640 = vadd.f32 %v2636, %v2639
    %vm2641 = vweird.f32 %v2634
    %vm2642 = vweird.f32 %v2636
    %vm2643 = vmor %vm2641, %vm2642
    %v2644 = vsel %vm2643, %v2636, %v2640
    %v2645 = vand.u32 2147483647, %v2634
    %vm2646 = vcmp.eq.f32.partialorder %v2645, 8.507059e+37
    %v2647 = vand.u32 %v2634, 2147483648
    %v2648 = vor.u32 1.1754944e-38, %v2647
    %v2649 = vsel %vm2646, %v2648, %v2644
    %v2650 = vmul.f32 1.0, %v2649
    %v2651 = vrcp.pop %v2635
    %v2652 = vmul.f32 %v2635, %v2651
    %v2653 = vsub.f32 1.0, %v2652
    %v2654 = vmul.f32 %v2651, %v2653
    %v2655 = vadd.f32 %v2651, %v2654
    %vm2656 = vweird.f32 %v2635
    %vm2657 = vweird.f32 %v2651
    %vm2658 = vmor %vm2656, %vm2657
    %v2659 = vsel %vm2658, %v2651, %v2655
    %v2660 = vand.u32 2147483647, %v2635
    %vm2661 = vcmp.eq.f32.partialorder %v2660, 8.507059e+37
    %v2662 = vand.u32 %v2635, 2147483648
    %v2663 = vor.u32 1.1754944e-38, %v2662
    %v2664 = vsel %vm2661, %v2663, %v2659
    %v2665 = vmul.f32 1.0, %v2664
    %v2668 = vrot.slane %v2571, 1
    %v2669 = vrot.slane %v2573, 1
    %v2673 = vrot.slane %v2607, 1
    %v2675 = vadd.f32 %v2668, %v2607
    %v2676 = vadd.f32 %v2669, %v2673
    %v2677 = vxor.u32 %v2675, 2147483648
    %v2678 = vxor.u32 %v2676, 2147483648
    %v2679 = vmul.f32 %v2677, 1.442695
    %v2680 = vpow.pop %v2679
    %v2681 = vmul.f32 %v2678, 1.442695
    %v2682 = vpow.pop %v2681
    %v2683 = vadd.f32 %v2680, 1.0
    %v2684 = vadd.f32 %v2682, 1.0
    %v2685 = vrcp.pop %v2683
    %v2686 = vmul.f32 %v2683, %v2685
    %v2687 = vsub.f32 1.0, %v2686
    %v2688 = vmul.f32 %v2685, %v2687
    %v2689 = vadd.f32 %v2685, %v2688
    %vm2690 = vweird.f32 %v2683
    %vm2691 = vweird.f32 %v2685
    %vm2692 = vmor %vm2690, %vm2691
    %v2693 = vsel %vm2692, %v2685, %v2689
    %v2694 = vand.u32 2147483647, %v2683
    %vm2695 = vcmp.eq.f32.partialorder %v2694, 8.507059e+37
    %v2696 = vand.u32 %v2683, 2147483648
    %v2697 = vor.u32 1.1754944e-38, %v2696
    %v2698 = vsel %vm2695, %v2697, %v2693
    %v2699 = vmul.f32 1.0, %v2698
    %v2700 = vrcp.pop %v2684
    %v2701 = vmul.f32 %v2684, %v2700
    %v2702 = vsub.f32 1.0, %v2701
    %v2703 = vmul.f32 %v2700, %v2702
    %v2704 = vadd.f32 %v2700, %v2703
    %vm2705 = vweird.f32 %v2684
    %vm2706 = vweird.f32 %v2700
    %vm2707 = vmor %vm2705, %vm2706
    %v2708 = vsel %vm2707, %v2700, %v2704
    %v2709 = vand.u32 2147483647, %v2684
    %vm2710 = vcmp.eq.f32.partialorder %v2709, 8.507059e+37
    %v2711 = vand.u32 %v2684, 2147483648
    %v2712 = vor.u32 1.1754944e-38, %v2711
    %v2713 = vsel %vm2710, %v2712, %v2708
    %v2714 = vmul.f32 1.0, %v2713
    %v2716 = vrot.slane %v2620, 1
    %v2718 = vmul.f32 %v2650, %v2620
    %v2719 = vmul.f32 %v2665, %v2716
    %v2720 = vrot.slane %v2571, 2
    %v2721 = vrot.slane %v2573, 2
    %v2724 = vadd.f32 %v2720, %v2718
    %v2725 = vadd.f32 %v2721, %v2719
    %v2726 = vtanh.pop %v2724
    %v2727 = vtanh.pop %v2725
    %v2728 = vsub.f32 1.0, %v2699
    %v2729 = vsub.f32 1.0, %v2714
    %v2730 = vmul.f32 %v2728, %v2726
    %v2731 = vmul.f32 %v2729, %v2727
    %v2732 = vmul.f32 %v2699, %v2568
    %v2733 = vmul.f32 %v2714, %v2569
    %v2734 = vadd.f32 %v2730, %v2732
    %v2735 = vadd.f32 %v2731, %v2733
    %s2736 = scalar_lea.vmem [#allocation2], 24
    %v2737 = vld [vmem:[%s2736] ss:$8 sm:$0x7]
    %s2738 = scalar_lea.vmem [#allocation2], 120
    %v2739 = vld [vmem:[%s2738] ss:$8 sm:$0x7]
    %v2740 = vpack.c.bf16 %v2734, %v2734
    %v2741 = vpack.c.bf16 %v2735, %v2735
    %v2744 = vunpack.c.l.b16 %v2740
    %v2745 = vunpack.c.l.b16 %v2741
    %v2746 = vrot.slane %v2745, 7
    %v2747 = vsel %vm1584, %v2746, %v2744
    %v2748 = vpack.c.b16 %v2747, %v2747
    %2750 = vmatpush.bf16.msra.mxu0 %v1394
    %2751 = vmatpush.bf16.msra.mxu0 %v1391
    %2752 = vmatpush.bf16.msra.mxu0 %v1388
    %2753 = vmatpush.bf16.msra.mxu0 %v1385
    %2754 = vmatpush.bf16.msra.mxu0 %v1382
    %2755 = vmatpush.bf16.msra.mxu0 %v1379
    %2756 = vmatpush.bf16.msra.mxu0 %v1376
    %2757 = vmatpush.bf16.msra.mxu0 %v1373
    %2758 = vmatmul.bf16.gmra.mxu0 %v2748
    %v2759 = vpop.f32.mrf.mxu0
    %v2760 = vadd.f32 %v1287, %v2759
    %v2761 = vpop.f32.mrf.mxu0
    %2762 = vdwg.mxu0
    %2763 = vmatpush.bf16.msra.mxu0 %v1395
    %2764 = vmatpush.bf16.msra.mxu0 %v1392
    %2765 = vmatpush.bf16.msra.mxu0 %v1389
    %2766 = vmatpush.bf16.msra.mxu0 %v1386
    %2767 = vmatpush.bf16.msra.mxu0 %v1383
    %2768 = vmatpush.bf16.msra.mxu0 %v1380
    %2769 = vmatpush.bf16.msra.mxu0 %v1377
    %2770 = vmatpush.bf16.msra.mxu0 %v1374
    %2771 = vmatmul.bf16.gmra.mxu0 %v2748
    %v2772 = vpop.f32.mrf.mxu0
    %v2773 = vadd.f32 %v1288, %v2772
    %v2774 = vpop.f32.mrf.mxu0
    %2775 = vdwg.mxu0
    %2776 = vmatpush.bf16.msra.mxu0 %v1396
    %2777 = vmatpush.bf16.msra.mxu0 %v1393
    %2778 = vmatpush.bf16.msra.mxu0 %v1390
    %2779 = vmatpush.bf16.msra.mxu0 %v1387
    %2780 = vmatpush.bf16.msra.mxu0 %v1384
    %2781 = vmatpush.bf16.msra.mxu0 %v1381
    %2782 = vmatpush.bf16.msra.mxu0 %v1378
    %2783 = vmatpush.bf16.msra.mxu0 %v1375
    %2784 = vmatmul.bf16.gmra.mxu0 %v2748
    %v2785 = vpop.f32.mrf.mxu0
    %v2786 = vadd.f32 %v1289, %v2785
    %v2787 = vpop.f32.mrf.mxu0
    %2788 = vdwg.mxu0
    %v2790 = vrot.slane %v2760, 1
    %v2792 = vadd.f32 %v2737, %v2760
    %v2793 = vadd.f32 %v2739, %v2790
    %v2794 = vxor.u32 %v2792, 2147483648
    %v2795 = vxor.u32 %v2793, 2147483648
    %v2796 = vmul.f32 %v2794, 1.442695
    %v2797 = vpow.pop %v2796
    %v2798 = vmul.f32 %v2795, 1.442695
    %v2799 = vpow.pop %v2798
    %v2800 = vadd.f32 %v2797, 1.0
    %v2801 = vadd.f32 %v2799, 1.0
    %v2802 = vrcp.pop %v2800
    %v2803 = vmul.f32 %v2800, %v2802
    %v2804 = vsub.f32 1.0, %v2803
    %v2805 = vmul.f32 %v2802, %v2804
    %v2806 = vadd.f32 %v2802, %v2805
    %vm2807 = vweird.f32 %v2800
    %vm2808 = vweird.f32 %v2802
    %vm2809 = vmor %vm2807, %vm2808
    %v2810 = vsel %vm2809, %v2802, %v2806
    %v2811 = vand.u32 2147483647, %v2800
    %vm2812 = vcmp.eq.f32.partialorder %v2811, 8.507059e+37
    %v2813 = vand.u32 %v2800, 2147483648
    %v2814 = vor.u32 1.1754944e-38, %v2813
    %v2815 = vsel %vm2812, %v2814, %v2810
    %v2816 = vmul.f32 1.0, %v2815
    %v2817 = vrcp.pop %v2801
    %v2818 = vmul.f32 %v2801, %v2817
    %v2819 = vsub.f32 1.0, %v2818
    %v2820 = vmul.f32 %v2817, %v2819
    %v2821 = vadd.f32 %v2817, %v2820
    %vm2822 = vweird.f32 %v2801
    %vm2823 = vweird.f32 %v2817
    %vm2824 = vmor %vm2822, %vm2823
    %v2825 = vsel %vm2824, %v2817, %v2821
    %v2826 = vand.u32 2147483647, %v2801
    %vm2827 = vcmp.eq.f32.partialorder %v2826, 8.507059e+37
    %v2828 = vand.u32 %v2801, 2147483648
    %v2829 = vor.u32 1.1754944e-38, %v2828
    %v2830 = vsel %vm2827, %v2829, %v2825
    %v2831 = vmul.f32 1.0, %v2830
    %v2834 = vrot.slane %v2737, 1
    %v2835 = vrot.slane %v2739, 1
    %v2839 = vrot.slane %v2773, 1
    %v2841 = vadd.f32 %v2834, %v2773
    %v2842 = vadd.f32 %v2835, %v2839
    %v2843 = vxor.u32 %v2841, 2147483648
    %v2844 = vxor.u32 %v2842, 2147483648
    %v2845 = vmul.f32 %v2843, 1.442695
    %v2846 = vpow.pop %v2845
    %v2847 = vmul.f32 %v2844, 1.442695
    %v2848 = vpow.pop %v2847
    %v2849 = vadd.f32 %v2846, 1.0
    %v2850 = vadd.f32 %v2848, 1.0
    %v2851 = vrcp.pop %v2849
    %v2852 = vmul.f32 %v2849, %v2851
    %v2853 = vsub.f32 1.0, %v2852
    %v2854 = vmul.f32 %v2851, %v2853
    %v2855 = vadd.f32 %v2851, %v2854
    %vm2856 = vweird.f32 %v2849
    %vm2857 = vweird.f32 %v2851
    %vm2858 = vmor %vm2856, %vm2857
    %v2859 = vsel %vm2858, %v2851, %v2855
    %v2860 = vand.u32 2147483647, %v2849
    %vm2861 = vcmp.eq.f32.partialorder %v2860, 8.507059e+37
    %v2862 = vand.u32 %v2849, 2147483648
    %v2863 = vor.u32 1.1754944e-38, %v2862
    %v2864 = vsel %vm2861, %v2863, %v2859
    %v2865 = vmul.f32 1.0, %v2864
    %v2866 = vrcp.pop %v2850
    %v2867 = vmul.f32 %v2850, %v2866
    %v2868 = vsub.f32 1.0, %v2867
    %v2869 = vmul.f32 %v2866, %v2868
    %v2870 = vadd.f32 %v2866, %v2869
    %vm2871 = vweird.f32 %v2850
    %vm2872 = vweird.f32 %v2866
    %vm2873 = vmor %vm2871, %vm2872
    %v2874 = vsel %vm2873, %v2866, %v2870
    %v2875 = vand.u32 2147483647, %v2850
    %vm2876 = vcmp.eq.f32.partialorder %v2875, 8.507059e+37
    %v2877 = vand.u32 %v2850, 2147483648
    %v2878 = vor.u32 1.1754944e-38, %v2877
    %v2879 = vsel %vm2876, %v2878, %v2874
    %v2880 = vmul.f32 1.0, %v2879
    %v2882 = vrot.slane %v2786, 1
    %v2884 = vmul.f32 %v2816, %v2786
    %v2885 = vmul.f32 %v2831, %v2882
    %v2886 = vrot.slane %v2737, 2
    %v2887 = vrot.slane %v2739, 2
    %v2890 = vadd.f32 %v2886, %v2884
    %v2891 = vadd.f32 %v2887, %v2885
    %v2892 = vtanh.pop %v2890
    %v2893 = vtanh.pop %v2891
    %v2894 = vsub.f32 1.0, %v2865
    %v2895 = vsub.f32 1.0, %v2880
    %v2896 = vmul.f32 %v2894, %v2892
    %v2897 = vmul.f32 %v2895, %v2893
    %v2898 = vmul.f32 %v2865, %v2734
    %v2899 = vmul.f32 %v2880, %v2735
    %v2900 = vadd.f32 %v2896, %v2898
    %v2901 = vadd.f32 %v2897, %v2899
    %s2902 = scalar_lea.vmem [#allocation2], 25
    %v2903 = vld [vmem:[%s2902] ss:$8 sm:$0x7]
    %s2904 = scalar_lea.vmem [#allocation2], 121
    %v2905 = vld [vmem:[%s2904] ss:$8 sm:$0x7]
    %v2906 = vpack.c.bf16 %v2900, %v2900
    %v2907 = vpack.c.bf16 %v2901, %v2901
    %v2910 = vunpack.c.l.b16 %v2906
    %v2911 = vunpack.c.l.b16 %v2907
    %v2912 = vrot.slane %v2911, 7
    %v2913 = vsel %vm1584, %v2912, %v2910
    %v2914 = vpack.c.b16 %v2913, %v2913
    %2916 = vmatpush.bf16.msra.mxu0 %v1394
    %2917 = vmatpush.bf16.msra.mxu0 %v1391
    %2918 = vmatpush.bf16.msra.mxu0 %v1388
    %2919 = vmatpush.bf16.msra.mxu0 %v1385
    %2920 = vmatpush.bf16.msra.mxu0 %v1382
    %2921 = vmatpush.bf16.msra.mxu0 %v1379
    %2922 = vmatpush.bf16.msra.mxu0 %v1376
    %2923 = vmatpush.bf16.msra.mxu0 %v1373
    %2924 = vmatmul.bf16.gmra.mxu0 %v2914
    %v2925 = vpop.f32.mrf.mxu0
    %v2926 = vadd.f32 %v1287, %v2925
    %v2927 = vpop.f32.mrf.mxu0
    %2928 = vdwg.mxu0
    %2929 = vmatpush.bf16.msra.mxu0 %v1395
    %2930 = vmatpush.bf16.msra.mxu0 %v1392
    %2931 = vmatpush.bf16.msra.mxu0 %v1389
    %2932 = vmatpush.bf16.msra.mxu0 %v1386
    %2933 = vmatpush.bf16.msra.mxu0 %v1383
    %2934 = vmatpush.bf16.msra.mxu0 %v1380
    %2935 = vmatpush.bf16.msra.mxu0 %v1377
    %2936 = vmatpush.bf16.msra.mxu0 %v1374
    %2937 = vmatmul.bf16.gmra.mxu0 %v2914
    %v2938 = vpop.f32.mrf.mxu0
    %v2939 = vadd.f32 %v1288, %v2938
    %v2940 = vpop.f32.mrf.mxu0
    %2941 = vdwg.mxu0
    %2942 = vmatpush.bf16.msra.mxu0 %v1396
    %2943 = vmatpush.bf16.msra.mxu0 %v1393
    %2944 = vmatpush.bf16.msra.mxu0 %v1390
    %2945 = vmatpush.bf16.msra.mxu0 %v1387
    %2946 = vmatpush.bf16.msra.mxu0 %v1384
    %2947 = vmatpush.bf16.msra.mxu0 %v1381
    %2948 = vmatpush.bf16.msra.mxu0 %v1378
    %2949 = vmatpush.bf16.msra.mxu0 %v1375
    %2950 = vmatmul.bf16.gmra.mxu0 %v2914
    %v2951 = vpop.f32.mrf.mxu0
    %v2952 = vadd.f32 %v1289, %v2951
    %v2953 = vpop.f32.mrf.mxu0
    %2954 = vdwg.mxu0
    %v2956 = vrot.slane %v2926, 1
    %v2958 = vadd.f32 %v2903, %v2926
    %v2959 = vadd.f32 %v2905, %v2956
    %v2960 = vxor.u32 %v2958, 2147483648
    %v2961 = vxor.u32 %v2959, 2147483648
    %v2962 = vmul.f32 %v2960, 1.442695
    %v2963 = vpow.pop %v2962
    %v2964 = vmul.f32 %v2961, 1.442695
    %v2965 = vpow.pop %v2964
    %v2966 = vadd.f32 %v2963, 1.0
    %v2967 = vadd.f32 %v2965, 1.0
    %v2968 = vrcp.pop %v2966
    %v2969 = vmul.f32 %v2966, %v2968
    %v2970 = vsub.f32 1.0, %v2969
    %v2971 = vmul.f32 %v2968, %v2970
    %v2972 = vadd.f32 %v2968, %v2971
    %vm2973 = vweird.f32 %v2966
    %vm2974 = vweird.f32 %v2968
    %vm2975 = vmor %vm2973, %vm2974
    %v2976 = vsel %vm2975, %v2968, %v2972
    %v2977 = vand.u32 2147483647, %v2966
    %vm2978 = vcmp.eq.f32.partialorder %v2977, 8.507059e+37
    %v2979 = vand.u32 %v2966, 2147483648
    %v2980 = vor.u32 1.1754944e-38, %v2979
    %v2981 = vsel %vm2978, %v2980, %v2976
    %v2982 = vmul.f32 1.0, %v2981
    %v2983 = vrcp.pop %v2967
    %v2984 = vmul.f32 %v2967, %v2983
    %v2985 = vsub.f32 1.0, %v2984
    %v2986 = vmul.f32 %v2983, %v2985
    %v2987 = vadd.f32 %v2983, %v2986
    %vm2988 = vweird.f32 %v2967
    %vm2989 = vweird.f32 %v2983
    %vm2990 = vmor %vm2988, %vm2989
    %v2991 = vsel %vm2990, %v2983, %v2987
    %v2992 = vand.u32 2147483647, %v2967
    %vm2993 = vcmp.eq.f32.partialorder %v2992, 8.507059e+37
    %v2994 = vand.u32 %v2967, 2147483648
    %v2995 = vor.u32 1.1754944e-38, %v2994
    %v2996 = vsel %vm2993, %v2995, %v2991
    %v2997 = vmul.f32 1.0, %v2996
    %v3000 = vrot.slane %v2903, 1
    %v3001 = vrot.slane %v2905, 1
    %v3005 = vrot.slane %v2939, 1
    %v3007 = vadd.f32 %v3000, %v2939
    %v3008 = vadd.f32 %v3001, %v3005
    %v3009 = vxor.u32 %v3007, 2147483648
    %v3010 = vxor.u32 %v3008, 2147483648
    %v3011 = vmul.f32 %v3009, 1.442695
    %v3012 = vpow.pop %v3011
    %v3013 = vmul.f32 %v3010, 1.442695
    %v3014 = vpow.pop %v3013
    %v3015 = vadd.f32 %v3012, 1.0
    %v3016 = vadd.f32 %v3014, 1.0
    %v3017 = vrcp.pop %v3015
    %v3018 = vmul.f32 %v3015, %v3017
    %v3019 = vsub.f32 1.0, %v3018
    %v3020 = vmul.f32 %v3017, %v3019
    %v3021 = vadd.f32 %v3017, %v3020
    %vm3022 = vweird.f32 %v3015
    %vm3023 = vweird.f32 %v3017
    %vm3024 = vmor %vm3022, %vm3023
    %v3025 = vsel %vm3024, %v3017, %v3021
    %v3026 = vand.u32 2147483647, %v3015
    %vm3027 = vcmp.eq.f32.partialorder %v3026, 8.507059e+37
    %v3028 = vand.u32 %v3015, 2147483648
    %v3029 = vor.u32 1.1754944e-38, %v3028
    %v3030 = vsel %vm3027, %v3029, %v3025
    %v3031 = vmul.f32 1.0, %v3030
    %v3032 = vrcp.pop %v3016
    %v3033 = vmul.f32 %v3016, %v3032
    %v3034 = vsub.f32 1.0, %v3033
    %v3035 = vmul.f32 %v3032, %v3034
    %v3036 = vadd.f32 %v3032, %v3035
    %vm3037 = vweird.f32 %v3016
    %vm3038 = vweird.f32 %v3032
    %vm3039 = vmor %vm3037, %vm3038
    %v3040 = vsel %vm3039, %v3032, %v3036
    %v3041 = vand.u32 2147483647, %v3016
    %vm3042 = vcmp.eq.f32.partialorder %v3041, 8.507059e+37
    %v3043 = vand.u32 %v3016, 2147483648
    %v3044 = vor.u32 1.1754944e-38, %v3043
    %v3045 = vsel %vm3042, %v3044, %v3040
    %v3046 = vmul.f32 1.0, %v3045
    %v3048 = vrot.slane %v2952, 1
    %v3050 = vmul.f32 %v2982, %v2952
    %v3051 = vmul.f32 %v2997, %v3048
    %v3052 = vrot.slane %v2903, 2
    %v3053 = vrot.slane %v2905, 2
    %v3056 = vadd.f32 %v3052, %v3050
    %v3057 = vadd.f32 %v3053, %v3051
    %v3058 = vtanh.pop %v3056
    %v3059 = vtanh.pop %v3057
    %v3060 = vsub.f32 1.0, %v3031
    %v3061 = vsub.f32 1.0, %v3046
    %v3062 = vmul.f32 %v3060, %v3058
    %v3063 = vmul.f32 %v3061, %v3059
    %v3064 = vmul.f32 %v3031, %v2900
    %v3065 = vmul.f32 %v3046, %v2901
    %v3066 = vadd.f32 %v3062, %v3064
    %v3067 = vadd.f32 %v3063, %v3065
    %s3068 = scalar_lea.vmem [#allocation2], 26
    %v3069 = vld [vmem:[%s3068] ss:$8 sm:$0x7]
    %s3070 = scalar_lea.vmem [#allocation2], 122
    %v3071 = vld [vmem:[%s3070] ss:$8 sm:$0x7]
    %v3072 = vpack.c.bf16 %v3066, %v3066
    %v3073 = vpack.c.bf16 %v3067, %v3067
    %v3076 = vunpack.c.l.b16 %v3072
    %v3077 = vunpack.c.l.b16 %v3073
    %v3078 = vrot.slane %v3077, 7
    %v3079 = vsel %vm1584, %v3078, %v3076
    %v3080 = vpack.c.b16 %v3079, %v3079
    %3082 = vmatpush.bf16.msra.mxu0 %v1394
    %3083 = vmatpush.bf16.msra.mxu0 %v1391
    %3084 = vmatpush.bf16.msra.mxu0 %v1388
    %3085 = vmatpush.bf16.msra.mxu0 %v1385
    %3086 = vmatpush.bf16.msra.mxu0 %v1382
    %3087 = vmatpush.bf16.msra.mxu0 %v1379
    %3088 = vmatpush.bf16.msra.mxu0 %v1376
    %3089 = vmatpush.bf16.msra.mxu0 %v1373
    %3090 = vmatmul.bf16.gmra.mxu0 %v3080
    %v3091 = vpop.f32.mrf.mxu0
    %v3092 = vadd.f32 %v1287, %v3091
    %v3093 = vpop.f32.mrf.mxu0
    %3094 = vdwg.mxu0
    %3095 = vmatpush.bf16.msra.mxu0 %v1395
    %3096 = vmatpush.bf16.msra.mxu0 %v1392
    %3097 = vmatpush.bf16.msra.mxu0 %v1389
    %3098 = vmatpush.bf16.msra.mxu0 %v1386
    %3099 = vmatpush.bf16.msra.mxu0 %v1383
    %3100 = vmatpush.bf16.msra.mxu0 %v1380
    %3101 = vmatpush.bf16.msra.mxu0 %v1377
    %3102 = vmatpush.bf16.msra.mxu0 %v1374
    %3103 = vmatmul.bf16.gmra.mxu0 %v3080
    %v3104 = vpop.f32.mrf.mxu0
    %v3105 = vadd.f32 %v1288, %v3104
    %v3106 = vpop.f32.mrf.mxu0
    %3107 = vdwg.mxu0
    %3108 = vmatpush.bf16.msra.mxu0 %v1396
    %3109 = vmatpush.bf16.msra.mxu0 %v1393
    %3110 = vmatpush.bf16.msra.mxu0 %v1390
    %3111 = vmatpush.bf16.msra.mxu0 %v1387
    %3112 = vmatpush.bf16.msra.mxu0 %v1384
    %3113 = vmatpush.bf16.msra.mxu0 %v1381
    %3114 = vmatpush.bf16.msra.mxu0 %v1378
    %3115 = vmatpush.bf16.msra.mxu0 %v1375
    %3116 = vmatmul.bf16.gmra.mxu0 %v3080
    %v3117 = vpop.f32.mrf.mxu0
    %v3118 = vadd.f32 %v1289, %v3117
    %v3119 = vpop.f32.mrf.mxu0
    %3120 = vdwg.mxu0
    %v3122 = vrot.slane %v3092, 1
    %v3124 = vadd.f32 %v3069, %v3092
    %v3125 = vadd.f32 %v3071, %v3122
    %v3126 = vxor.u32 %v3124, 2147483648
    %v3127 = vxor.u32 %v3125, 2147483648
    %v3128 = vmul.f32 %v3126, 1.442695
    %v3129 = vpow.pop %v3128
    %v3130 = vmul.f32 %v3127, 1.442695
    %v3131 = vpow.pop %v3130
    %v3132 = vadd.f32 %v3129, 1.0
    %v3133 = vadd.f32 %v3131, 1.0
    %v3134 = vrcp.pop %v3132
    %v3135 = vmul.f32 %v3132, %v3134
    %v3136 = vsub.f32 1.0, %v3135
    %v3137 = vmul.f32 %v3134, %v3136
    %v3138 = vadd.f32 %v3134, %v3137
    %vm3139 = vweird.f32 %v3132
    %vm3140 = vweird.f32 %v3134
    %vm3141 = vmor %vm3139, %vm3140
    %v3142 = vsel %vm3141, %v3134, %v3138
    %v3143 = vand.u32 2147483647, %v3132
    %vm3144 = vcmp.eq.f32.partialorder %v3143, 8.507059e+37
    %v3145 = vand.u32 %v3132, 2147483648
    %v3146 = vor.u32 1.1754944e-38, %v3145
    %v3147 = vsel %vm3144, %v3146, %v3142
    %v3148 = vmul.f32 1.0, %v3147
    %v3149 = vrcp.pop %v3133
    %v3150 = vmul.f32 %v3133, %v3149
    %v3151 = vsub.f32 1.0, %v3150
    %v3152 = vmul.f32 %v3149, %v3151
    %v3153 = vadd.f32 %v3149, %v3152
    %vm3154 = vweird.f32 %v3133
    %vm3155 = vweird.f32 %v3149
    %vm3156 = vmor %vm3154, %vm3155
    %v3157 = vsel %vm3156, %v3149, %v3153
    %v3158 = vand.u32 2147483647, %v3133
    %vm3159 = vcmp.eq.f32.partialorder %v3158, 8.507059e+37
    %v3160 = vand.u32 %v3133, 2147483648
    %v3161 = vor.u32 1.1754944e-38, %v3160
    %v3162 = vsel %vm3159, %v3161, %v3157
    %v3163 = vmul.f32 1.0, %v3162
    %v3166 = vrot.slane %v3069, 1
    %v3167 = vrot.slane %v3071, 1
    %v3171 = vrot.slane %v3105, 1
    %v3173 = vadd.f32 %v3166, %v3105
    %v3174 = vadd.f32 %v3167, %v3171
    %v3175 = vxor.u32 %v3173, 2147483648
    %v3176 = vxor.u32 %v3174, 2147483648
    %v3177 = vmul.f32 %v3175, 1.442695
    %v3178 = vpow.pop %v3177
    %v3179 = vmul.f32 %v3176, 1.442695
    %v3180 = vpow.pop %v3179
    %v3181 = vadd.f32 %v3178, 1.0
    %v3182 = vadd.f32 %v3180, 1.0
    %v3183 = vrcp.pop %v3181
    %v3184 = vmul.f32 %v3181, %v3183
    %v3185 = vsub.f32 1.0, %v3184
    %v3186 = vmul.f32 %v3183, %v3185
    %v3187 = vadd.f32 %v3183, %v3186
    %vm3188 = vweird.f32 %v3181
    %vm3189 = vweird.f32 %v3183
    %vm3190 = vmor %vm3188, %vm3189
    %v3191 = vsel %vm3190, %v3183, %v3187
    %v3192 = vand.u32 2147483647, %v3181
    %vm3193 = vcmp.eq.f32.partialorder %v3192, 8.507059e+37
    %v3194 = vand.u32 %v3181, 2147483648
    %v3195 = vor.u32 1.1754944e-38, %v3194
    %v3196 = vsel %vm3193, %v3195, %v3191
    %v3197 = vmul.f32 1.0, %v3196
    %v3198 = vrcp.pop %v3182
    %v3199 = vmul.f32 %v3182, %v3198
    %v3200 = vsub.f32 1.0, %v3199
    %v3201 = vmul.f32 %v3198, %v3200
    %v3202 = vadd.f32 %v3198, %v3201
    %vm3203 = vweird.f32 %v3182
    %vm3204 = vweird.f32 %v3198
    %vm3205 = vmor %vm3203, %vm3204
    %v3206 = vsel %vm3205, %v3198, %v3202
    %v3207 = vand.u32 2147483647, %v3182
    %vm3208 = vcmp.eq.f32.partialorder %v3207, 8.507059e+37
    %v3209 = vand.u32 %v3182, 2147483648
    %v3210 = vor.u32 1.1754944e-38, %v3209
    %v3211 = vsel %vm3208, %v3210, %v3206
    %v3212 = vmul.f32 1.0, %v3211
    %v3214 = vrot.slane %v3118, 1
    %v3216 = vmul.f32 %v3148, %v3118
    %v3217 = vmul.f32 %v3163, %v3214
    %v3218 = vrot.slane %v3069, 2
    %v3219 = vrot.slane %v3071, 2
    %v3222 = vadd.f32 %v3218, %v3216
    %v3223 = vadd.f32 %v3219, %v3217
    %v3224 = vtanh.pop %v3222
    %v3225 = vtanh.pop %v3223
    %v3226 = vsub.f32 1.0, %v3197
    %v3227 = vsub.f32 1.0, %v3212
    %v3228 = vmul.f32 %v3226, %v3224
    %v3229 = vmul.f32 %v3227, %v3225
    %v3230 = vmul.f32 %v3197, %v3066
    %v3231 = vmul.f32 %v3212, %v3067
    %v3232 = vadd.f32 %v3228, %v3230
    %v3233 = vadd.f32 %v3229, %v3231
    %s3234 = scalar_lea.vmem [#allocation2], 27
    %v3235 = vld [vmem:[%s3234] ss:$8 sm:$0x7]
    %s3236 = scalar_lea.vmem [#allocation2], 123
    %v3237 = vld [vmem:[%s3236] ss:$8 sm:$0x7]
    %v3238 = vpack.c.bf16 %v3232, %v3232
    %v3239 = vpack.c.bf16 %v3233, %v3233
    %v3242 = vunpack.c.l.b16 %v3238
    %v3243 = vunpack.c.l.b16 %v3239
    %v3244 = vrot.slane %v3243, 7
    %v3245 = vsel %vm1584, %v3244, %v3242
    %v3246 = vpack.c.b16 %v3245, %v3245
    %3248 = vmatpush.bf16.msra.mxu0 %v1394
    %3249 = vmatpush.bf16.msra.mxu0 %v1391
    %3250 = vmatpush.bf16.msra.mxu0 %v1388
    %3251 = vmatpush.bf16.msra.mxu0 %v1385
    %3252 = vmatpush.bf16.msra.mxu0 %v1382
    %3253 = vmatpush.bf16.msra.mxu0 %v1379
    %3254 = vmatpush.bf16.msra.mxu0 %v1376
    %3255 = vmatpush.bf16.msra.mxu0 %v1373
    %3256 = vmatmul.bf16.gmra.mxu0 %v3246
    %v3257 = vpop.f32.mrf.mxu0
    %v3258 = vadd.f32 %v1287, %v3257
    %v3259 = vpop.f32.mrf.mxu0
    %3260 = vdwg.mxu0
    %3261 = vmatpush.bf16.msra.mxu0 %v1395
    %3262 = vmatpush.bf16.msra.mxu0 %v1392
    %3263 = vmatpush.bf16.msra.mxu0 %v1389
    %3264 = vmatpush.bf16.msra.mxu0 %v1386
    %3265 = vmatpush.bf16.msra.mxu0 %v1383
    %3266 = vmatpush.bf16.msra.mxu0 %v1380
    %3267 = vmatpush.bf16.msra.mxu0 %v1377
    %3268 = vmatpush.bf16.msra.mxu0 %v1374
    %3269 = vmatmul.bf16.gmra.mxu0 %v3246
    %v3270 = vpop.f32.mrf.mxu0
    %v3271 = vadd.f32 %v1288, %v3270
    %v3272 = vpop.f32.mrf.mxu0
    %3273 = vdwg.mxu0
    %3274 = vmatpush.bf16.msra.mxu0 %v1396
    %3275 = vmatpush.bf16.msra.mxu0 %v1393
    %3276 = vmatpush.bf16.msra.mxu0 %v1390
    %3277 = vmatpush.bf16.msra.mxu0 %v1387
    %3278 = vmatpush.bf16.msra.mxu0 %v1384
    %3279 = vmatpush.bf16.msra.mxu0 %v1381
    %3280 = vmatpush.bf16.msra.mxu0 %v1378
    %3281 = vmatpush.bf16.msra.mxu0 %v1375
    %3282 = vmatmul.bf16.gmra.mxu0 %v3246
    %v3283 = vpop.f32.mrf.mxu0
    %v3284 = vadd.f32 %v1289, %v3283
    %v3285 = vpop.f32.mrf.mxu0
    %3286 = vdwg.mxu0
    %v3288 = vrot.slane %v3258, 1
    %v3290 = vadd.f32 %v3235, %v3258
    %v3291 = vadd.f32 %v3237, %v3288
    %v3292 = vxor.u32 %v3290, 2147483648
    %v3293 = vxor.u32 %v3291, 2147483648
    %v3294 = vmul.f32 %v3292, 1.442695
    %v3295 = vpow.pop %v3294
    %v3296 = vmul.f32 %v3293, 1.442695
    %v3297 = vpow.pop %v3296
    %v3298 = vadd.f32 %v3295, 1.0
    %v3299 = vadd.f32 %v3297, 1.0
    %v3300 = vrcp.pop %v3298
    %v3301 = vmul.f32 %v3298, %v3300
    %v3302 = vsub.f32 1.0, %v3301
    %v3303 = vmul.f32 %v3300, %v3302
    %v3304 = vadd.f32 %v3300, %v3303
    %vm3305 = vweird.f32 %v3298
    %vm3306 = vweird.f32 %v3300
    %vm3307 = vmor %vm3305, %vm3306
    %v3308 = vsel %vm3307, %v3300, %v3304
    %v3309 = vand.u32 2147483647, %v3298
    %vm3310 = vcmp.eq.f32.partialorder %v3309, 8.507059e+37
    %v3311 = vand.u32 %v3298, 2147483648
    %v3312 = vor.u32 1.1754944e-38, %v3311
    %v3313 = vsel %vm3310, %v3312, %v3308
    %v3314 = vmul.f32 1.0, %v3313
    %v3315 = vrcp.pop %v3299
    %v3316 = vmul.f32 %v3299, %v3315
    %v3317 = vsub.f32 1.0, %v3316
    %v3318 = vmul.f32 %v3315, %v3317
    %v3319 = vadd.f32 %v3315, %v3318
    %vm3320 = vweird.f32 %v3299
    %vm3321 = vweird.f32 %v3315
    %vm3322 = vmor %vm3320, %vm3321
    %v3323 = vsel %vm3322, %v3315, %v3319
    %v3324 = vand.u32 2147483647, %v3299
    %vm3325 = vcmp.eq.f32.partialorder %v3324, 8.507059e+37
    %v3326 = vand.u32 %v3299, 2147483648
    %v3327 = vor.u32 1.1754944e-38, %v3326
    %v3328 = vsel %vm3325, %v3327, %v3323
    %v3329 = vmul.f32 1.0, %v3328
    %v3332 = vrot.slane %v3235, 1
    %v3333 = vrot.slane %v3237, 1
    %v3337 = vrot.slane %v3271, 1
    %v3339 = vadd.f32 %v3332, %v3271
    %v3340 = vadd.f32 %v3333, %v3337
    %v3341 = vxor.u32 %v3339, 2147483648
    %v3342 = vxor.u32 %v3340, 2147483648
    %v3343 = vmul.f32 %v3341, 1.442695
    %v3344 = vpow.pop %v3343
    %v3345 = vmul.f32 %v3342, 1.442695
    %v3346 = vpow.pop %v3345
    %v3347 = vadd.f32 %v3344, 1.0
    %v3348 = vadd.f32 %v3346, 1.0
    %v3349 = vrcp.pop %v3347
    %v3350 = vmul.f32 %v3347, %v3349
    %v3351 = vsub.f32 1.0, %v3350
    %v3352 = vmul.f32 %v3349, %v3351
    %v3353 = vadd.f32 %v3349, %v3352
    %vm3354 = vweird.f32 %v3347
    %vm3355 = vweird.f32 %v3349
    %vm3356 = vmor %vm3354, %vm3355
    %v3357 = vsel %vm3356, %v3349, %v3353
    %v3358 = vand.u32 2147483647, %v3347
    %vm3359 = vcmp.eq.f32.partialorder %v3358, 8.507059e+37
    %v3360 = vand.u32 %v3347, 2147483648
    %v3361 = vor.u32 1.1754944e-38, %v3360
    %v3362 = vsel %vm3359, %v3361, %v3357
    %v3363 = vmul.f32 1.0, %v3362
    %v3364 = vrcp.pop %v3348
    %v3365 = vmul.f32 %v3348, %v3364
    %v3366 = vsub.f32 1.0, %v3365
    %v3367 = vmul.f32 %v3364, %v3366
    %v3368 = vadd.f32 %v3364, %v3367
    %vm3369 = vweird.f32 %v3348
    %vm3370 = vweird.f32 %v3364
    %vm3371 = vmor %vm3369, %vm3370
    %v3372 = vsel %vm3371, %v3364, %v3368
    %v3373 = vand.u32 2147483647, %v3348
    %vm3374 = vcmp.eq.f32.partialorder %v3373, 8.507059e+37
    %v3375 = vand.u32 %v3348, 2147483648
    %v3376 = vor.u32 1.1754944e-38, %v3375
    %v3377 = vsel %vm3374, %v3376, %v3372
    %v3378 = vmul.f32 1.0, %v3377
    %v3380 = vrot.slane %v3284, 1
    %v3382 = vmul.f32 %v3314, %v3284
    %v3383 = vmul.f32 %v3329, %v3380
    %v3384 = vrot.slane %v3235, 2
    %v3385 = vrot.slane %v3237, 2
    %v3388 = vadd.f32 %v3384, %v3382
    %v3389 = vadd.f32 %v3385, %v3383
    %v3390 = vtanh.pop %v3388
    %v3391 = vtanh.pop %v3389
    %v3392 = vsub.f32 1.0, %v3363
    %v3393 = vsub.f32 1.0, %v3378
    %v3394 = vmul.f32 %v3392, %v3390
    %v3395 = vmul.f32 %v3393, %v3391
    %v3396 = vmul.f32 %v3363, %v3232
    %v3397 = vmul.f32 %v3378, %v3233
    %v3398 = vadd.f32 %v3394, %v3396
    %v3399 = vadd.f32 %v3395, %v3397
    %s3400 = scalar_lea.vmem [#allocation2], 28
    %v3401 = vld [vmem:[%s3400] ss:$8 sm:$0x7]
    %s3402 = scalar_lea.vmem [#allocation2], 124
    %v3403 = vld [vmem:[%s3402] ss:$8 sm:$0x7]
    %v3404 = vpack.c.bf16 %v3398, %v3398
    %v3405 = vpack.c.bf16 %v3399, %v3399
    %v3408 = vunpack.c.l.b16 %v3404
    %v3409 = vunpack.c.l.b16 %v3405
    %v3410 = vrot.slane %v3409, 7
    %v3411 = vsel %vm1584, %v3410, %v3408
    %v3412 = vpack.c.b16 %v3411, %v3411
    %3414 = vmatpush.bf16.msra.mxu0 %v1394
    %3415 = vmatpush.bf16.msra.mxu0 %v1391
    %3416 = vmatpush.bf16.msra.mxu0 %v1388
    %3417 = vmatpush.bf16.msra.mxu0 %v1385
    %3418 = vmatpush.bf16.msra.mxu0 %v1382
    %3419 = vmatpush.bf16.msra.mxu0 %v1379
    %3420 = vmatpush.bf16.msra.mxu0 %v1376
    %3421 = vmatpush.bf16.msra.mxu0 %v1373
    %3422 = vmatmul.bf16.gmra.mxu0 %v3412
    %v3423 = vpop.f32.mrf.mxu0
    %v3424 = vadd.f32 %v1287, %v3423
    %v3425 = vpop.f32.mrf.mxu0
    %3426 = vdwg.mxu0
    %3427 = vmatpush.bf16.msra.mxu0 %v1395
    %3428 = vmatpush.bf16.msra.mxu0 %v1392
    %3429 = vmatpush.bf16.msra.mxu0 %v1389
    %3430 = vmatpush.bf16.msra.mxu0 %v1386
    %3431 = vmatpush.bf16.msra.mxu0 %v1383
    %3432 = vmatpush.bf16.msra.mxu0 %v1380
    %3433 = vmatpush.bf16.msra.mxu0 %v1377
    %3434 = vmatpush.bf16.msra.mxu0 %v1374
    %3435 = vmatmul.bf16.gmra.mxu0 %v3412
    %v3436 = vpop.f32.mrf.mxu0
    %v3437 = vadd.f32 %v1288, %v3436
    %v3438 = vpop.f32.mrf.mxu0
    %3439 = vdwg.mxu0
    %3440 = vmatpush.bf16.msra.mxu0 %v1396
    %3441 = vmatpush.bf16.msra.mxu0 %v1393
    %3442 = vmatpush.bf16.msra.mxu0 %v1390
    %3443 = vmatpush.bf16.msra.mxu0 %v1387
    %3444 = vmatpush.bf16.msra.mxu0 %v1384
    %3445 = vmatpush.bf16.msra.mxu0 %v1381
    %3446 = vmatpush.bf16.msra.mxu0 %v1378
    %3447 = vmatpush.bf16.msra.mxu0 %v1375
    %3448 = vmatmul.bf16.gmra.mxu0 %v3412
    %v3449 = vpop.f32.mrf.mxu0
    %v3450 = vadd.f32 %v1289, %v3449
    %v3451 = vpop.f32.mrf.mxu0
    %3452 = vdwg.mxu0
    %v3454 = vrot.slane %v3424, 1
    %v3456 = vadd.f32 %v3401, %v3424
    %v3457 = vadd.f32 %v3403, %v3454
    %v3458 = vxor.u32 %v3456, 2147483648
    %v3459 = vxor.u32 %v3457, 2147483648
    %v3460 = vmul.f32 %v3458, 1.442695
    %v3461 = vpow.pop %v3460
    %v3462 = vmul.f32 %v3459, 1.442695
    %v3463 = vpow.pop %v3462
    %v3464 = vadd.f32 %v3461, 1.0
    %v3465 = vadd.f32 %v3463, 1.0
    %v3466 = vrcp.pop %v3464
    %v3467 = vmul.f32 %v3464, %v3466
    %v3468 = vsub.f32 1.0, %v3467
    %v3469 = vmul.f32 %v3466, %v3468
    %v3470 = vadd.f32 %v3466, %v3469
    %vm3471 = vweird.f32 %v3464
    %vm3472 = vweird.f32 %v3466
    %vm3473 = vmor %vm3471, %vm3472
    %v3474 = vsel %vm3473, %v3466, %v3470
    %v3475 = vand.u32 2147483647, %v3464
    %vm3476 = vcmp.eq.f32.partialorder %v3475, 8.507059e+37
    %v3477 = vand.u32 %v3464, 2147483648
    %v3478 = vor.u32 1.1754944e-38, %v3477
    %v3479 = vsel %vm3476, %v3478, %v3474
    %v3480 = vmul.f32 1.0, %v3479
    %v3481 = vrcp.pop %v3465
    %v3482 = vmul.f32 %v3465, %v3481
    %v3483 = vsub.f32 1.0, %v3482
    %v3484 = vmul.f32 %v3481, %v3483
    %v3485 = vadd.f32 %v3481, %v3484
    %vm3486 = vweird.f32 %v3465
    %vm3487 = vweird.f32 %v3481
    %vm3488 = vmor %vm3486, %vm3487
    %v3489 = vsel %vm3488, %v3481, %v3485
    %v3490 = vand.u32 2147483647, %v3465
    %vm3491 = vcmp.eq.f32.partialorder %v3490, 8.507059e+37
    %v3492 = vand.u32 %v3465, 2147483648
    %v3493 = vor.u32 1.1754944e-38, %v3492
    %v3494 = vsel %vm3491, %v3493, %v3489
    %v3495 = vmul.f32 1.0, %v3494
    %v3498 = vrot.slane %v3401, 1
    %v3499 = vrot.slane %v3403, 1
    %v3503 = vrot.slane %v3437, 1
    %v3505 = vadd.f32 %v3498, %v3437
    %v3506 = vadd.f32 %v3499, %v3503
    %v3507 = vxor.u32 %v3505, 2147483648
    %v3508 = vxor.u32 %v3506, 2147483648
    %v3509 = vmul.f32 %v3507, 1.442695
    %v3510 = vpow.pop %v3509
    %v3511 = vmul.f32 %v3508, 1.442695
    %v3512 = vpow.pop %v3511
    %v3513 = vadd.f32 %v3510, 1.0
    %v3514 = vadd.f32 %v3512, 1.0
    %v3515 = vrcp.pop %v3513
    %v3516 = vmul.f32 %v3513, %v3515
    %v3517 = vsub.f32 1.0, %v3516
    %v3518 = vmul.f32 %v3515, %v3517
    %v3519 = vadd.f32 %v3515, %v3518
    %vm3520 = vweird.f32 %v3513
    %vm3521 = vweird.f32 %v3515
    %vm3522 = vmor %vm3520, %vm3521
    %v3523 = vsel %vm3522, %v3515, %v3519
    %v3524 = vand.u32 2147483647, %v3513
    %vm3525 = vcmp.eq.f32.partialorder %v3524, 8.507059e+37
    %v3526 = vand.u32 %v3513, 2147483648
    %v3527 = vor.u32 1.1754944e-38, %v3526
    %v3528 = vsel %vm3525, %v3527, %v3523
    %v3529 = vmul.f32 1.0, %v3528
    %v3530 = vrcp.pop %v3514
    %v3531 = vmul.f32 %v3514, %v3530
    %v3532 = vsub.f32 1.0, %v3531
    %v3533 = vmul.f32 %v3530, %v3532
    %v3534 = vadd.f32 %v3530, %v3533
    %vm3535 = vweird.f32 %v3514
    %vm3536 = vweird.f32 %v3530
    %vm3537 = vmor %vm3535, %vm3536
    %v3538 = vsel %vm3537, %v3530, %v3534
    %v3539 = vand.u32 2147483647, %v3514
    %vm3540 = vcmp.eq.f32.partialorder %v3539, 8.507059e+37
    %v3541 = vand.u32 %v3514, 2147483648
    %v3542 = vor.u32 1.1754944e-38, %v3541
    %v3543 = vsel %vm3540, %v3542, %v3538
    %v3544 = vmul.f32 1.0, %v3543
    %v3546 = vrot.slane %v3450, 1
    %v3548 = vmul.f32 %v3480, %v3450
    %v3549 = vmul.f32 %v3495, %v3546
    %v3550 = vrot.slane %v3401, 2
    %v3551 = vrot.slane %v3403, 2
    %v3554 = vadd.f32 %v3550, %v3548
    %v3555 = vadd.f32 %v3551, %v3549
    %v3556 = vtanh.pop %v3554
    %v3557 = vtanh.pop %v3555
    %v3558 = vsub.f32 1.0, %v3529
    %v3559 = vsub.f32 1.0, %v3544
    %v3560 = vmul.f32 %v3558, %v3556
    %v3561 = vmul.f32 %v3559, %v3557
    %v3562 = vmul.f32 %v3529, %v3398
    %v3563 = vmul.f32 %v3544, %v3399
    %v3564 = vadd.f32 %v3560, %v3562
    %v3565 = vadd.f32 %v3561, %v3563
    %s3566 = scalar_lea.vmem [#allocation2], 29
    %v3567 = vld [vmem:[%s3566] ss:$8 sm:$0x7]
    %s3568 = scalar_lea.vmem [#allocation2], 125
    %v3569 = vld [vmem:[%s3568] ss:$8 sm:$0x7]
    %v3570 = vpack.c.bf16 %v3564, %v3564
    %v3571 = vpack.c.bf16 %v3565, %v3565
    %v3574 = vunpack.c.l.b16 %v3570
    %v3575 = vunpack.c.l.b16 %v3571
    %v3576 = vrot.slane %v3575, 7
    %v3577 = vsel %vm1584, %v3576, %v3574
    %v3578 = vpack.c.b16 %v3577, %v3577
    %3580 = vmatpush.bf16.msra.mxu0 %v1394
    %3581 = vmatpush.bf16.msra.mxu0 %v1391
    %3582 = vmatpush.bf16.msra.mxu0 %v1388
    %3583 = vmatpush.bf16.msra.mxu0 %v1385
    %3584 = vmatpush.bf16.msra.mxu0 %v1382
    %3585 = vmatpush.bf16.msra.mxu0 %v1379
    %3586 = vmatpush.bf16.msra.mxu0 %v1376
    %3587 = vmatpush.bf16.msra.mxu0 %v1373
    %3588 = vmatmul.bf16.gmra.mxu0 %v3578
    %v3589 = vpop.f32.mrf.mxu0
    %v3590 = vadd.f32 %v1287, %v3589
    %v3591 = vpop.f32.mrf.mxu0
    %3592 = vdwg.mxu0
    %3593 = vmatpush.bf16.msra.mxu0 %v1395
    %3594 = vmatpush.bf16.msra.mxu0 %v1392
    %3595 = vmatpush.bf16.msra.mxu0 %v1389
    %3596 = vmatpush.bf16.msra.mxu0 %v1386
    %3597 = vmatpush.bf16.msra.mxu0 %v1383
    %3598 = vmatpush.bf16.msra.mxu0 %v1380
    %3599 = vmatpush.bf16.msra.mxu0 %v1377
    %3600 = vmatpush.bf16.msra.mxu0 %v1374
    %3601 = vmatmul.bf16.gmra.mxu0 %v3578
    %v3602 = vpop.f32.mrf.mxu0
    %v3603 = vadd.f32 %v1288, %v3602
    %v3604 = vpop.f32.mrf.mxu0
    %3605 = vdwg.mxu0
    %3606 = vmatpush.bf16.msra.mxu0 %v1396
    %3607 = vmatpush.bf16.msra.mxu0 %v1393
    %3608 = vmatpush.bf16.msra.mxu0 %v1390
    %3609 = vmatpush.bf16.msra.mxu0 %v1387
    %3610 = vmatpush.bf16.msra.mxu0 %v1384
    %3611 = vmatpush.bf16.msra.mxu0 %v1381
    %3612 = vmatpush.bf16.msra.mxu0 %v1378
    %3613 = vmatpush.bf16.msra.mxu0 %v1375
    %3614 = vmatmul.bf16.gmra.mxu0 %v3578
    %v3615 = vpop.f32.mrf.mxu0
    %v3616 = vadd.f32 %v1289, %v3615
    %v3617 = vpop.f32.mrf.mxu0
    %3618 = vdwg.mxu0
    %v3620 = vrot.slane %v3590, 1
    %v3622 = vadd.f32 %v3567, %v3590
    %v3623 = vadd.f32 %v3569, %v3620
    %v3624 = vxor.u32 %v3622, 2147483648
    %v3625 = vxor.u32 %v3623, 2147483648
    %v3626 = vmul.f32 %v3624, 1.442695
    %v3627 = vpow.pop %v3626
    %v3628 = vmul.f32 %v3625, 1.442695
    %v3629 = vpow.pop %v3628
    %v3630 = vadd.f32 %v3627, 1.0
    %v3631 = vadd.f32 %v3629, 1.0
    %v3632 = vrcp.pop %v3630
    %v3633 = vmul.f32 %v3630, %v3632
    %v3634 = vsub.f32 1.0, %v3633
    %v3635 = vmul.f32 %v3632, %v3634
    %v3636 = vadd.f32 %v3632, %v3635
    %vm3637 = vweird.f32 %v3630
    %vm3638 = vweird.f32 %v3632
    %vm3639 = vmor %vm3637, %vm3638
    %v3640 = vsel %vm3639, %v3632, %v3636
    %v3641 = vand.u32 2147483647, %v3630
    %vm3642 = vcmp.eq.f32.partialorder %v3641, 8.507059e+37
    %v3643 = vand.u32 %v3630, 2147483648
    %v3644 = vor.u32 1.1754944e-38, %v3643
    %v3645 = vsel %vm3642, %v3644, %v3640
    %v3646 = vmul.f32 1.0, %v3645
    %v3647 = vrcp.pop %v3631
    %v3648 = vmul.f32 %v3631, %v3647
    %v3649 = vsub.f32 1.0, %v3648
    %v3650 = vmul.f32 %v3647, %v3649
    %v3651 = vadd.f32 %v3647, %v3650
    %vm3652 = vweird.f32 %v3631
    %vm3653 = vweird.f32 %v3647
    %vm3654 = vmor %vm3652, %vm3653
    %v3655 = vsel %vm3654, %v3647, %v3651
    %v3656 = vand.u32 2147483647, %v3631
    %vm3657 = vcmp.eq.f32.partialorder %v3656, 8.507059e+37
    %v3658 = vand.u32 %v3631, 2147483648
    %v3659 = vor.u32 1.1754944e-38, %v3658
    %v3660 = vsel %vm3657, %v3659, %v3655
    %v3661 = vmul.f32 1.0, %v3660
    %v3664 = vrot.slane %v3567, 1
    %v3665 = vrot.slane %v3569, 1
    %v3669 = vrot.slane %v3603, 1
    %v3671 = vadd.f32 %v3664, %v3603
    %v3672 = vadd.f32 %v3665, %v3669
    %v3673 = vxor.u32 %v3671, 2147483648
    %v3674 = vxor.u32 %v3672, 2147483648
    %v3675 = vmul.f32 %v3673, 1.442695
    %v3676 = vpow.pop %v3675
    %v3677 = vmul.f32 %v3674, 1.442695
    %v3678 = vpow.pop %v3677
    %v3679 = vadd.f32 %v3676, 1.0
    %v3680 = vadd.f32 %v3678, 1.0
    %v3681 = vrcp.pop %v3679
    %v3682 = vmul.f32 %v3679, %v3681
    %v3683 = vsub.f32 1.0, %v3682
    %v3684 = vmul.f32 %v3681, %v3683
    %v3685 = vadd.f32 %v3681, %v3684
    %vm3686 = vweird.f32 %v3679
    %vm3687 = vweird.f32 %v3681
    %vm3688 = vmor %vm3686, %vm3687
    %v3689 = vsel %vm3688, %v3681, %v3685
    %v3690 = vand.u32 2147483647, %v3679
    %vm3691 = vcmp.eq.f32.partialorder %v3690, 8.507059e+37
    %v3692 = vand.u32 %v3679, 2147483648
    %v3693 = vor.u32 1.1754944e-38, %v3692
    %v3694 = vsel %vm3691, %v3693, %v3689
    %v3695 = vmul.f32 1.0, %v3694
    %v3696 = vrcp.pop %v3680
    %v3697 = vmul.f32 %v3680, %v3696
    %v3698 = vsub.f32 1.0, %v3697
    %v3699 = vmul.f32 %v3696, %v3698
    %v3700 = vadd.f32 %v3696, %v3699
    %vm3701 = vweird.f32 %v3680
    %vm3702 = vweird.f32 %v3696
    %vm3703 = vmor %vm3701, %vm3702
    %v3704 = vsel %vm3703, %v3696, %v3700
    %v3705 = vand.u32 2147483647, %v3680
    %vm3706 = vcmp.eq.f32.partialorder %v3705, 8.507059e+37
    %v3707 = vand.u32 %v3680, 2147483648
    %v3708 = vor.u32 1.1754944e-38, %v3707
    %v3709 = vsel %vm3706, %v3708, %v3704
    %v3710 = vmul.f32 1.0, %v3709
    %v3712 = vrot.slane %v3616, 1
    %v3714 = vmul.f32 %v3646, %v3616
    %v3715 = vmul.f32 %v3661, %v3712
    %v3716 = vrot.slane %v3567, 2
    %v3717 = vrot.slane %v3569, 2
    %v3720 = vadd.f32 %v3716, %v3714
    %v3721 = vadd.f32 %v3717, %v3715
    %v3722 = vtanh.pop %v3720
    %v3723 = vtanh.pop %v3721
    %v3724 = vsub.f32 1.0, %v3695
    %v3725 = vsub.f32 1.0, %v3710
    %v3726 = vmul.f32 %v3724, %v3722
    %v3727 = vmul.f32 %v3725, %v3723
    %v3728 = vmul.f32 %v3695, %v3564
    %v3729 = vmul.f32 %v3710, %v3565
    %v3730 = vadd.f32 %v3726, %v3728
    %v3731 = vadd.f32 %v3727, %v3729
    %s3732 = scalar_lea.vmem [#allocation2], 30
    %v3733 = vld [vmem:[%s3732] ss:$8 sm:$0x7]
    %s3734 = scalar_lea.vmem [#allocation2], 126
    %v3735 = vld [vmem:[%s3734] ss:$8 sm:$0x7]
    %v3736 = vpack.c.bf16 %v3730, %v3730
    %v3737 = vpack.c.bf16 %v3731, %v3731
    %v3740 = vunpack.c.l.b16 %v3736
    %v3741 = vunpack.c.l.b16 %v3737
    %v3742 = vrot.slane %v3741, 7
    %v3743 = vsel %vm1584, %v3742, %v3740
    %v3744 = vpack.c.b16 %v3743, %v3743
    %3746 = vmatpush.bf16.msra.mxu0 %v1394
    %3747 = vmatpush.bf16.msra.mxu0 %v1391
    %3748 = vmatpush.bf16.msra.mxu0 %v1388
    %3749 = vmatpush.bf16.msra.mxu0 %v1385
    %3750 = vmatpush.bf16.msra.mxu0 %v1382
    %3751 = vmatpush.bf16.msra.mxu0 %v1379
    %3752 = vmatpush.bf16.msra.mxu0 %v1376
    %3753 = vmatpush.bf16.msra.mxu0 %v1373
    %3754 = vmatmul.bf16.gmra.mxu0 %v3744
    %v3755 = vpop.f32.mrf.mxu0
    %v3756 = vadd.f32 %v1287, %v3755
    %v3757 = vpop.f32.mrf.mxu0
    %3758 = vdwg.mxu0
    %3759 = vmatpush.bf16.msra.mxu0 %v1395
    %3760 = vmatpush.bf16.msra.mxu0 %v1392
    %3761 = vmatpush.bf16.msra.mxu0 %v1389
    %3762 = vmatpush.bf16.msra.mxu0 %v1386
    %3763 = vmatpush.bf16.msra.mxu0 %v1383
    %3764 = vmatpush.bf16.msra.mxu0 %v1380
    %3765 = vmatpush.bf16.msra.mxu0 %v1377
    %3766 = vmatpush.bf16.msra.mxu0 %v1374
    %3767 = vmatmul.bf16.gmra.mxu0 %v3744
    %v3768 = vpop.f32.mrf.mxu0
    %v3769 = vadd.f32 %v1288, %v3768
    %v3770 = vpop.f32.mrf.mxu0
    %3771 = vdwg.mxu0
    %3772 = vmatpush.bf16.msra.mxu0 %v1396
    %3773 = vmatpush.bf16.msra.mxu0 %v1393
    %3774 = vmatpush.bf16.msra.mxu0 %v1390
    %3775 = vmatpush.bf16.msra.mxu0 %v1387
    %3776 = vmatpush.bf16.msra.mxu0 %v1384
    %3777 = vmatpush.bf16.msra.mxu0 %v1381
    %3778 = vmatpush.bf16.msra.mxu0 %v1378
    %3779 = vmatpush.bf16.msra.mxu0 %v1375
    %3780 = vmatmul.bf16.gmra.mxu0 %v3744
    %v3781 = vpop.f32.mrf.mxu0
    %v3782 = vadd.f32 %v1289, %v3781
    %v3783 = vpop.f32.mrf.mxu0
    %3784 = vdwg.mxu0
    %v3786 = vrot.slane %v3756, 1
    %v3788 = vadd.f32 %v3733, %v3756
    %v3789 = vadd.f32 %v3735, %v3786
    %v3790 = vxor.u32 %v3788, 2147483648
    %v3791 = vxor.u32 %v3789, 2147483648
    %v3792 = vmul.f32 %v3790, 1.442695
    %v3793 = vpow.pop %v3792
    %v3794 = vmul.f32 %v3791, 1.442695
    %v3795 = vpow.pop %v3794
    %v3796 = vadd.f32 %v3793, 1.0
    %v3797 = vadd.f32 %v3795, 1.0
    %v3798 = vrcp.pop %v3796
    %v3799 = vmul.f32 %v3796, %v3798
    %v3800 = vsub.f32 1.0, %v3799
    %v3801 = vmul.f32 %v3798, %v3800
    %v3802 = vadd.f32 %v3798, %v3801
    %vm3803 = vweird.f32 %v3796
    %vm3804 = vweird.f32 %v3798
    %vm3805 = vmor %vm3803, %vm3804
    %v3806 = vsel %vm3805, %v3798, %v3802
    %v3807 = vand.u32 2147483647, %v3796
    %vm3808 = vcmp.eq.f32.partialorder %v3807, 8.507059e+37
    %v3809 = vand.u32 %v3796, 2147483648
    %v3810 = vor.u32 1.1754944e-38, %v3809
    %v3811 = vsel %vm3808, %v3810, %v3806
    %v3812 = vmul.f32 1.0, %v3811
    %v3813 = vrcp.pop %v3797
    %v3814 = vmul.f32 %v3797, %v3813
    %v3815 = vsub.f32 1.0, %v3814
    %v3816 = vmul.f32 %v3813, %v3815
    %v3817 = vadd.f32 %v3813, %v3816
    %vm3818 = vweird.f32 %v3797
    %vm3819 = vweird.f32 %v3813
    %vm3820 = vmor %vm3818, %vm3819
    %v3821 = vsel %vm3820, %v3813, %v3817
    %v3822 = vand.u32 2147483647, %v3797
    %vm3823 = vcmp.eq.f32.partialorder %v3822, 8.507059e+37
    %v3824 = vand.u32 %v3797, 2147483648
    %v3825 = vor.u32 1.1754944e-38, %v3824
    %v3826 = vsel %vm3823, %v3825, %v3821
    %v3827 = vmul.f32 1.0, %v3826
    %v3830 = vrot.slane %v3733, 1
    %v3831 = vrot.slane %v3735, 1
    %v3835 = vrot.slane %v3769, 1
    %v3837 = vadd.f32 %v3830, %v3769
    %v3838 = vadd.f32 %v3831, %v3835
    %v3839 = vxor.u32 %v3837, 2147483648
    %v3840 = vxor.u32 %v3838, 2147483648
    %v3841 = vmul.f32 %v3839, 1.442695
    %v3842 = vpow.pop %v3841
    %v3843 = vmul.f32 %v3840, 1.442695
    %v3844 = vpow.pop %v3843
    %v3845 = vadd.f32 %v3842, 1.0
    %v3846 = vadd.f32 %v3844, 1.0
    %v3847 = vrcp.pop %v3845
    %v3848 = vmul.f32 %v3845, %v3847
    %v3849 = vsub.f32 1.0, %v3848
    %v3850 = vmul.f32 %v3847, %v3849
    %v3851 = vadd.f32 %v3847, %v3850
    %vm3852 = vweird.f32 %v3845
    %vm3853 = vweird.f32 %v3847
    %vm3854 = vmor %vm3852, %vm3853
    %v3855 = vsel %vm3854, %v3847, %v3851
    %v3856 = vand.u32 2147483647, %v3845
    %vm3857 = vcmp.eq.f32.partialorder %v3856, 8.507059e+37
    %v3858 = vand.u32 %v3845, 2147483648
    %v3859 = vor.u32 1.1754944e-38, %v3858
    %v3860 = vsel %vm3857, %v3859, %v3855
    %v3861 = vmul.f32 1.0, %v3860
    %v3862 = vrcp.pop %v3846
    %v3863 = vmul.f32 %v3846, %v3862
    %v3864 = vsub.f32 1.0, %v3863
    %v3865 = vmul.f32 %v3862, %v3864
    %v3866 = vadd.f32 %v3862, %v3865
    %vm3867 = vweird.f32 %v3846
    %vm3868 = vweird.f32 %v3862
    %vm3869 = vmor %vm3867, %vm3868
    %v3870 = vsel %vm3869, %v3862, %v3866
    %v3871 = vand.u32 2147483647, %v3846
    %vm3872 = vcmp.eq.f32.partialorder %v3871, 8.507059e+37
    %v3873 = vand.u32 %v3846, 2147483648
    %v3874 = vor.u32 1.1754944e-38, %v3873
    %v3875 = vsel %vm3872, %v3874, %v3870
    %v3876 = vmul.f32 1.0, %v3875
    %v3878 = vrot.slane %v3782, 1
    %v3880 = vmul.f32 %v3812, %v3782
    %v3881 = vmul.f32 %v3827, %v3878
    %v3882 = vrot.slane %v3733, 2
    %v3883 = vrot.slane %v3735, 2
    %v3886 = vadd.f32 %v3882, %v3880
    %v3887 = vadd.f32 %v3883, %v3881
    %v3888 = vtanh.pop %v3886
    %v3889 = vtanh.pop %v3887
    %v3890 = vsub.f32 1.0, %v3861
    %v3891 = vsub.f32 1.0, %v3876
    %v3892 = vmul.f32 %v3890, %v3888
    %v3893 = vmul.f32 %v3891, %v3889
    %v3894 = vmul.f32 %v3861, %v3730
    %v3895 = vmul.f32 %v3876, %v3731
    %v3896 = vadd.f32 %v3892, %v3894
    %v3897 = vadd.f32 %v3893, %v3895
    %s3898 = scalar_lea.vmem [#allocation2], 31
    %v3899 = vld [vmem:[%s3898] ss:$8 sm:$0x7]
    %s3900 = scalar_lea.vmem [#allocation2], 127
    %v3901 = vld [vmem:[%s3900] ss:$8 sm:$0x7]
    %v3902 = vpack.c.bf16 %v3896, %v3896
    %v3903 = vpack.c.bf16 %v3897, %v3897
    %v3906 = vunpack.c.l.b16 %v3902
    %v3907 = vunpack.c.l.b16 %v3903
    %v3908 = vrot.slane %v3907, 7
    %v3909 = vsel %vm1584, %v3908, %v3906
    %v3910 = vpack.c.b16 %v3909, %v3909
    %3912 = vmatpush.bf16.msra.mxu0 %v1394
    %3913 = vmatpush.bf16.msra.mxu0 %v1391
    %3914 = vmatpush.bf16.msra.mxu0 %v1388
    %3915 = vmatpush.bf16.msra.mxu0 %v1385
    %3916 = vmatpush.bf16.msra.mxu0 %v1382
    %3917 = vmatpush.bf16.msra.mxu0 %v1379
    %3918 = vmatpush.bf16.msra.mxu0 %v1376
    %3919 = vmatpush.bf16.msra.mxu0 %v1373
    %3920 = vmatmul.bf16.gmra.mxu0 %v3910
    %v3921 = vpop.f32.mrf.mxu0
    %v3922 = vadd.f32 %v1287, %v3921
    %v3923 = vpop.f32.mrf.mxu0
    %3924 = vdwg.mxu0
    %3925 = vmatpush.bf16.msra.mxu0 %v1395
    %3926 = vmatpush.bf16.msra.mxu0 %v1392
    %3927 = vmatpush.bf16.msra.mxu0 %v1389
    %3928 = vmatpush.bf16.msra.mxu0 %v1386
    %3929 = vmatpush.bf16.msra.mxu0 %v1383
    %3930 = vmatpush.bf16.msra.mxu0 %v1380
    %3931 = vmatpush.bf16.msra.mxu0 %v1377
    %3932 = vmatpush.bf16.msra.mxu0 %v1374
    %3933 = vmatmul.bf16.gmra.mxu0 %v3910
    %v3934 = vpop.f32.mrf.mxu0
    %v3935 = vadd.f32 %v1288, %v3934
    %v3936 = vpop.f32.mrf.mxu0
    %3937 = vdwg.mxu0
    %3938 = vmatpush.bf16.msra.mxu0 %v1396
    %3939 = vmatpush.bf16.msra.mxu0 %v1393
    %3940 = vmatpush.bf16.msra.mxu0 %v1390
    %3941 = vmatpush.bf16.msra.mxu0 %v1387
    %3942 = vmatpush.bf16.msra.mxu0 %v1384
    %3943 = vmatpush.bf16.msra.mxu0 %v1381
    %3944 = vmatpush.bf16.msra.mxu0 %v1378
    %3945 = vmatpush.bf16.msra.mxu0 %v1375
    %3946 = vmatmul.bf16.gmra.mxu0 %v3910
    %v3947 = vpop.f32.mrf.mxu0
    %v3948 = vadd.f32 %v1289, %v3947
    %v3949 = vpop.f32.mrf.mxu0
    %3950 = vdwg.mxu0
    %v3952 = vrot.slane %v3922, 1
    %v3954 = vadd.f32 %v3899, %v3922
    %v3955 = vadd.f32 %v3901, %v3952
    %v3956 = vxor.u32 %v3954, 2147483648
    %v3957 = vxor.u32 %v3955, 2147483648
    %v3958 = vmul.f32 %v3956, 1.442695
    %v3959 = vpow.pop %v3958
    %v3960 = vmul.f32 %v3957, 1.442695
    %v3961 = vpow.pop %v3960
    %v3962 = vadd.f32 %v3959, 1.0
    %v3963 = vadd.f32 %v3961, 1.0
    %v3964 = vrcp.pop %v3962
    %v3965 = vmul.f32 %v3962, %v3964
    %v3966 = vsub.f32 1.0, %v3965
    %v3967 = vmul.f32 %v3964, %v3966
    %v3968 = vadd.f32 %v3964, %v3967
    %vm3969 = vweird.f32 %v3962
    %vm3970 = vweird.f32 %v3964
    %vm3971 = vmor %vm3969, %vm3970
    %v3972 = vsel %vm3971, %v3964, %v3968
    %v3973 = vand.u32 2147483647, %v3962
    %vm3974 = vcmp.eq.f32.partialorder %v3973, 8.507059e+37
    %v3975 = vand.u32 %v3962, 2147483648
    %v3976 = vor.u32 1.1754944e-38, %v3975
    %v3977 = vsel %vm3974, %v3976, %v3972
    %v3978 = vmul.f32 1.0, %v3977
    %v3979 = vrcp.pop %v3963
    %v3980 = vmul.f32 %v3963, %v3979
    %v3981 = vsub.f32 1.0, %v3980
    %v3982 = vmul.f32 %v3979, %v3981
    %v3983 = vadd.f32 %v3979, %v3982
    %vm3984 = vweird.f32 %v3963
    %vm3985 = vweird.f32 %v3979
    %vm3986 = vmor %vm3984, %vm3985
    %v3987 = vsel %vm3986, %v3979, %v3983
    %v3988 = vand.u32 2147483647, %v3963
    %vm3989 = vcmp.eq.f32.partialorder %v3988, 8.507059e+37
    %v3990 = vand.u32 %v3963, 2147483648
    %v3991 = vor.u32 1.1754944e-38, %v3990
    %v3992 = vsel %vm3989, %v3991, %v3987
    %v3993 = vmul.f32 1.0, %v3992
    %v3996 = vrot.slane %v3899, 1
    %v3997 = vrot.slane %v3901, 1
    %v4001 = vrot.slane %v3935, 1
    %v4003 = vadd.f32 %v3996, %v3935
    %v4004 = vadd.f32 %v3997, %v4001
    %v4005 = vxor.u32 %v4003, 2147483648
    %v4006 = vxor.u32 %v4004, 2147483648
    %v4007 = vmul.f32 %v4005, 1.442695
    %v4008 = vpow.pop %v4007
    %v4009 = vmul.f32 %v4006, 1.442695
    %v4010 = vpow.pop %v4009
    %v4011 = vadd.f32 %v4008, 1.0
    %v4012 = vadd.f32 %v4010, 1.0
    %v4013 = vrcp.pop %v4011
    %v4014 = vmul.f32 %v4011, %v4013
    %v4015 = vsub.f32 1.0, %v4014
    %v4016 = vmul.f32 %v4013, %v4015
    %v4017 = vadd.f32 %v4013, %v4016
    %vm4018 = vweird.f32 %v4011
    %vm4019 = vweird.f32 %v4013
    %vm4020 = vmor %vm4018, %vm4019
    %v4021 = vsel %vm4020, %v4013, %v4017
    %v4022 = vand.u32 2147483647, %v4011
    %vm4023 = vcmp.eq.f32.partialorder %v4022, 8.507059e+37
    %v4024 = vand.u32 %v4011, 2147483648
    %v4025 = vor.u32 1.1754944e-38, %v4024
    %v4026 = vsel %vm4023, %v4025, %v4021
    %v4027 = vmul.f32 1.0, %v4026
    %v4028 = vrcp.pop %v4012
    %v4029 = vmul.f32 %v4012, %v4028
    %v4030 = vsub.f32 1.0, %v4029
    %v4031 = vmul.f32 %v4028, %v4030
    %v4032 = vadd.f32 %v4028, %v4031
    %vm4033 = vweird.f32 %v4012
    %vm4034 = vweird.f32 %v4028
    %vm4035 = vmor %vm4033, %vm4034
    %v4036 = vsel %vm4035, %v4028, %v4032
    %v4037 = vand.u32 2147483647, %v4012
    %vm4038 = vcmp.eq.f32.partialorder %v4037, 8.507059e+37
    %v4039 = vand.u32 %v4012, 2147483648
    %v4040 = vor.u32 1.1754944e-38, %v4039
    %v4041 = vsel %vm4038, %v4040, %v4036
    %v4042 = vmul.f32 1.0, %v4041
    %v4044 = vrot.slane %v3948, 1
    %v4046 = vmul.f32 %v3978, %v3948
    %v4047 = vmul.f32 %v3993, %v4044
    %v4048 = vrot.slane %v3899, 2
    %v4049 = vrot.slane %v3901, 2
    %v4052 = vadd.f32 %v4048, %v4046
    %v4053 = vadd.f32 %v4049, %v4047
    %v4054 = vtanh.pop %v4052
    %v4055 = vtanh.pop %v4053
    %v4056 = vsub.f32 1.0, %v4027
    %v4057 = vsub.f32 1.0, %v4042
    %v4058 = vmul.f32 %v4056, %v4054
    %v4059 = vmul.f32 %v4057, %v4055
    %v4060 = vmul.f32 %v4027, %v3896
    %v4061 = vmul.f32 %v4042, %v3897
    %v4062 = vadd.f32 %v4058, %v4060
    %v4063 = vadd.f32 %v4059, %v4061
    %s4064 = scalar_lea.vmem [#allocation2], 48
    %v4065 = vld [vmem:[%s4064] ss:$8 sm:$0x7]
    %s4066 = scalar_lea.vmem [#allocation2], 144
    %v4067 = vld [vmem:[%s4066] ss:$8 sm:$0x7]
    %v4068 = vpack.c.bf16 %v4062, %v4062
    %v4069 = vpack.c.bf16 %v4063, %v4063
    %v4072 = vunpack.c.l.b16 %v4068
    %v4073 = vunpack.c.l.b16 %v4069
    %v4074 = vrot.slane %v4073, 7
    %v4075 = vsel %vm1584, %v4074, %v4072
    %v4076 = vpack.c.b16 %v4075, %v4075
    %4078 = vmatpush.bf16.msra.mxu0 %v1394
    %4079 = vmatpush.bf16.msra.mxu0 %v1391
    %4080 = vmatpush.bf16.msra.mxu0 %v1388
    %4081 = vmatpush.bf16.msra.mxu0 %v1385
    %4082 = vmatpush.bf16.msra.mxu0 %v1382
    %4083 = vmatpush.bf16.msra.mxu0 %v1379
    %4084 = vmatpush.bf16.msra.mxu0 %v1376
    %4085 = vmatpush.bf16.msra.mxu0 %v1373
    %4086 = vmatmul.bf16.gmra.mxu0 %v4076
    %v4087 = vpop.f32.mrf.mxu0
    %v4088 = vadd.f32 %v1287, %v4087
    %v4089 = vpop.f32.mrf.mxu0
    %4090 = vdwg.mxu0
    %4091 = vmatpush.bf16.msra.mxu0 %v1395
    %4092 = vmatpush.bf16.msra.mxu0 %v1392
    %4093 = vmatpush.bf16.msra.mxu0 %v1389
    %4094 = vmatpush.bf16.msra.mxu0 %v1386
    %4095 = vmatpush.bf16.msra.mxu0 %v1383
    %4096 = vmatpush.bf16.msra.mxu0 %v1380
    %4097 = vmatpush.bf16.msra.mxu0 %v1377
    %4098 = vmatpush.bf16.msra.mxu0 %v1374
    %4099 = vmatmul.bf16.gmra.mxu0 %v4076
    %v4100 = vpop.f32.mrf.mxu0
    %v4101 = vadd.f32 %v1288, %v4100
    %v4102 = vpop.f32.mrf.mxu0
    %4103 = vdwg.mxu0
    %4104 = vmatpush.bf16.msra.mxu0 %v1396
    %4105 = vmatpush.bf16.msra.mxu0 %v1393
    %4106 = vmatpush.bf16.msra.mxu0 %v1390
    %4107 = vmatpush.bf16.msra.mxu0 %v1387
    %4108 = vmatpush.bf16.msra.mxu0 %v1384
    %4109 = vmatpush.bf16.msra.mxu0 %v1381
    %4110 = vmatpush.bf16.msra.mxu0 %v1378
    %4111 = vmatpush.bf16.msra.mxu0 %v1375
    %4112 = vmatmul.bf16.gmra.mxu0 %v4076
    %v4113 = vpop.f32.mrf.mxu0
    %v4114 = vadd.f32 %v1289, %v4113
    %v4115 = vpop.f32.mrf.mxu0
    %4116 = vdwg.mxu0
    %v4118 = vrot.slane %v4088, 1
    %v4120 = vadd.f32 %v4065, %v4088
    %v4121 = vadd.f32 %v4067, %v4118
    %v4122 = vxor.u32 %v4120, 2147483648
    %v4123 = vxor.u32 %v4121, 2147483648
    %v4124 = vmul.f32 %v4122, 1.442695
    %v4125 = vpow.pop %v4124
    %v4126 = vmul.f32 %v4123, 1.442695
    %v4127 = vpow.pop %v4126
    %v4128 = vadd.f32 %v4125, 1.0
    %v4129 = vadd.f32 %v4127, 1.0
    %v4130 = vrcp.pop %v4128
    %v4131 = vmul.f32 %v4128, %v4130
    %v4132 = vsub.f32 1.0, %v4131
    %v4133 = vmul.f32 %v4130, %v4132
    %v4134 = vadd.f32 %v4130, %v4133
    %vm4135 = vweird.f32 %v4128
    %vm4136 = vweird.f32 %v4130
    %vm4137 = vmor %vm4135, %vm4136
    %v4138 = vsel %vm4137, %v4130, %v4134
    %v4139 = vand.u32 2147483647, %v4128
    %vm4140 = vcmp.eq.f32.partialorder %v4139, 8.507059e+37
    %v4141 = vand.u32 %v4128, 2147483648
    %v4142 = vor.u32 1.1754944e-38, %v4141
    %v4143 = vsel %vm4140, %v4142, %v4138
    %v4144 = vmul.f32 1.0, %v4143
    %v4145 = vrcp.pop %v4129
    %v4146 = vmul.f32 %v4129, %v4145
    %v4147 = vsub.f32 1.0, %v4146
    %v4148 = vmul.f32 %v4145, %v4147
    %v4149 = vadd.f32 %v4145, %v4148
    %vm4150 = vweird.f32 %v4129
    %vm4151 = vweird.f32 %v4145
    %vm4152 = vmor %vm4150, %vm4151
    %v4153 = vsel %vm4152, %v4145, %v4149
    %v4154 = vand.u32 2147483647, %v4129
    %vm4155 = vcmp.eq.f32.partialorder %v4154, 8.507059e+37
    %v4156 = vand.u32 %v4129, 2147483648
    %v4157 = vor.u32 1.1754944e-38, %v4156
    %v4158 = vsel %vm4155, %v4157, %v4153
    %v4159 = vmul.f32 1.0, %v4158
    %v4162 = vrot.slane %v4065, 1
    %v4163 = vrot.slane %v4067, 1
    %v4167 = vrot.slane %v4101, 1
    %v4169 = vadd.f32 %v4162, %v4101
    %v4170 = vadd.f32 %v4163, %v4167
    %v4171 = vxor.u32 %v4169, 2147483648
    %v4172 = vxor.u32 %v4170, 2147483648
    %v4173 = vmul.f32 %v4171, 1.442695
    %v4174 = vpow.pop %v4173
    %v4175 = vmul.f32 %v4172, 1.442695
    %v4176 = vpow.pop %v4175
    %v4177 = vadd.f32 %v4174, 1.0
    %v4178 = vadd.f32 %v4176, 1.0
    %v4179 = vrcp.pop %v4177
    %v4180 = vmul.f32 %v4177, %v4179
    %v4181 = vsub.f32 1.0, %v4180
    %v4182 = vmul.f32 %v4179, %v4181
    %v4183 = vadd.f32 %v4179, %v4182
    %vm4184 = vweird.f32 %v4177
    %vm4185 = vweird.f32 %v4179
    %vm4186 = vmor %vm4184, %vm4185
    %v4187 = vsel %vm4186, %v4179, %v4183
    %v4188 = vand.u32 2147483647, %v4177
    %vm4189 = vcmp.eq.f32.partialorder %v4188, 8.507059e+37
    %v4190 = vand.u32 %v4177, 2147483648
    %v4191 = vor.u32 1.1754944e-38, %v4190
    %v4192 = vsel %vm4189, %v4191, %v4187
    %v4193 = vmul.f32 1.0, %v4192
    %v4194 = vrcp.pop %v4178
    %v4195 = vmul.f32 %v4178, %v4194
    %v4196 = vsub.f32 1.0, %v4195
    %v4197 = vmul.f32 %v4194, %v4196
    %v4198 = vadd.f32 %v4194, %v4197
    %vm4199 = vweird.f32 %v4178
    %vm4200 = vweird.f32 %v4194
    %vm4201 = vmor %vm4199, %vm4200
    %v4202 = vsel %vm4201, %v4194, %v4198
    %v4203 = vand.u32 2147483647, %v4178
    %vm4204 = vcmp.eq.f32.partialorder %v4203, 8.507059e+37
    %v4205 = vand.u32 %v4178, 2147483648
    %v4206 = vor.u32 1.1754944e-38, %v4205
    %v4207 = vsel %vm4204, %v4206, %v4202
    %v4208 = vmul.f32 1.0, %v4207
    %v4210 = vrot.slane %v4114, 1
    %v4212 = vmul.f32 %v4144, %v4114
    %v4213 = vmul.f32 %v4159, %v4210
    %v4214 = vrot.slane %v4065, 2
    %v4215 = vrot.slane %v4067, 2
    %v4218 = vadd.f32 %v4214, %v4212
    %v4219 = vadd.f32 %v4215, %v4213
    %v4220 = vtanh.pop %v4218
    %v4221 = vtanh.pop %v4219
    %v4222 = vsub.f32 1.0, %v4193
    %v4223 = vsub.f32 1.0, %v4208
    %v4224 = vmul.f32 %v4222, %v4220
    %v4225 = vmul.f32 %v4223, %v4221
    %v4226 = vmul.f32 %v4193, %v4062
    %v4227 = vmul.f32 %v4208, %v4063
    %v4228 = vadd.f32 %v4224, %v4226
    %v4229 = vadd.f32 %v4225, %v4227
    %s4230 = scalar_lea.vmem [#allocation2], 49
    %v4231 = vld [vmem:[%s4230] ss:$8 sm:$0x7]
    %s4232 = scalar_lea.vmem [#allocation2], 145
    %v4233 = vld [vmem:[%s4232] ss:$8 sm:$0x7]
    %v4234 = vpack.c.bf16 %v4228, %v4228
    %v4235 = vpack.c.bf16 %v4229, %v4229
    %v4238 = vunpack.c.l.b16 %v4234
    %v4239 = vunpack.c.l.b16 %v4235
    %v4240 = vrot.slane %v4239, 7
    %v4241 = vsel %vm1584, %v4240, %v4238
    %v4242 = vpack.c.b16 %v4241, %v4241
    %4244 = vmatpush.bf16.msra.mxu0 %v1394
    %4245 = vmatpush.bf16.msra.mxu0 %v1391
    %4246 = vmatpush.bf16.msra.mxu0 %v1388
    %4247 = vmatpush.bf16.msra.mxu0 %v1385
    %4248 = vmatpush.bf16.msra.mxu0 %v1382
    %4249 = vmatpush.bf16.msra.mxu0 %v1379
    %4250 = vmatpush.bf16.msra.mxu0 %v1376
    %4251 = vmatpush.bf16.msra.mxu0 %v1373
    %4252 = vmatmul.bf16.gmra.mxu0 %v4242
    %v4253 = vpop.f32.mrf.mxu0
    %v4254 = vadd.f32 %v1287, %v4253
    %v4255 = vpop.f32.mrf.mxu0
    %4256 = vdwg.mxu0
    %4257 = vmatpush.bf16.msra.mxu0 %v1395
    %4258 = vmatpush.bf16.msra.mxu0 %v1392
    %4259 = vmatpush.bf16.msra.mxu0 %v1389
    %4260 = vmatpush.bf16.msra.mxu0 %v1386
    %4261 = vmatpush.bf16.msra.mxu0 %v1383
    %4262 = vmatpush.bf16.msra.mxu0 %v1380
    %4263 = vmatpush.bf16.msra.mxu0 %v1377
    %4264 = vmatpush.bf16.msra.mxu0 %v1374
    %4265 = vmatmul.bf16.gmra.mxu0 %v4242
    %v4266 = vpop.f32.mrf.mxu0
    %v4267 = vadd.f32 %v1288, %v4266
    %v4268 = vpop.f32.mrf.mxu0
    %4269 = vdwg.mxu0
    %4270 = vmatpush.bf16.msra.mxu0 %v1396
    %4271 = vmatpush.bf16.msra.mxu0 %v1393
    %4272 = vmatpush.bf16.msra.mxu0 %v1390
    %4273 = vmatpush.bf16.msra.mxu0 %v1387
    %4274 = vmatpush.bf16.msra.mxu0 %v1384
    %4275 = vmatpush.bf16.msra.mxu0 %v1381
    %4276 = vmatpush.bf16.msra.mxu0 %v1378
    %4277 = vmatpush.bf16.msra.mxu0 %v1375
    %4278 = vmatmul.bf16.gmra.mxu0 %v4242
    %v4279 = vpop.f32.mrf.mxu0
    %v4280 = vadd.f32 %v1289, %v4279
    %v4281 = vpop.f32.mrf.mxu0
    %4282 = vdwg.mxu0
    %v4284 = vrot.slane %v4254, 1
    %v4286 = vadd.f32 %v4231, %v4254
    %v4287 = vadd.f32 %v4233, %v4284
    %v4288 = vxor.u32 %v4286, 2147483648
    %v4289 = vxor.u32 %v4287, 2147483648
    %v4290 = vmul.f32 %v4288, 1.442695
    %v4291 = vpow.pop %v4290
    %v4292 = vmul.f32 %v4289, 1.442695
    %v4293 = vpow.pop %v4292
    %v4294 = vadd.f32 %v4291, 1.0
    %v4295 = vadd.f32 %v4293, 1.0
    %v4296 = vrcp.pop %v4294
    %v4297 = vmul.f32 %v4294, %v4296
    %v4298 = vsub.f32 1.0, %v4297
    %v4299 = vmul.f32 %v4296, %v4298
    %v4300 = vadd.f32 %v4296, %v4299
    %vm4301 = vweird.f32 %v4294
    %vm4302 = vweird.f32 %v4296
    %vm4303 = vmor %vm4301, %vm4302
    %v4304 = vsel %vm4303, %v4296, %v4300
    %v4305 = vand.u32 2147483647, %v4294
    %vm4306 = vcmp.eq.f32.partialorder %v4305, 8.507059e+37
    %v4307 = vand.u32 %v4294, 2147483648
    %v4308 = vor.u32 1.1754944e-38, %v4307
    %v4309 = vsel %vm4306, %v4308, %v4304
    %v4310 = vmul.f32 1.0, %v4309
    %v4311 = vrcp.pop %v4295
    %v4312 = vmul.f32 %v4295, %v4311
    %v4313 = vsub.f32 1.0, %v4312
    %v4314 = vmul.f32 %v4311, %v4313
    %v4315 = vadd.f32 %v4311, %v4314
    %vm4316 = vweird.f32 %v4295
    %vm4317 = vweird.f32 %v4311
    %vm4318 = vmor %vm4316, %vm4317
    %v4319 = vsel %vm4318, %v4311, %v4315
    %v4320 = vand.u32 2147483647, %v4295
    %vm4321 = vcmp.eq.f32.partialorder %v4320, 8.507059e+37
    %v4322 = vand.u32 %v4295, 2147483648
    %v4323 = vor.u32 1.1754944e-38, %v4322
    %v4324 = vsel %vm4321, %v4323, %v4319
    %v4325 = vmul.f32 1.0, %v4324
    %v4328 = vrot.slane %v4231, 1
    %v4329 = vrot.slane %v4233, 1
    %v4333 = vrot.slane %v4267, 1
    %v4335 = vadd.f32 %v4328, %v4267
    %v4336 = vadd.f32 %v4329, %v4333
    %v4337 = vxor.u32 %v4335, 2147483648
    %v4338 = vxor.u32 %v4336, 2147483648
    %v4339 = vmul.f32 %v4337, 1.442695
    %v4340 = vpow.pop %v4339
    %v4341 = vmul.f32 %v4338, 1.442695
    %v4342 = vpow.pop %v4341
    %v4343 = vadd.f32 %v4340, 1.0
    %v4344 = vadd.f32 %v4342, 1.0
    %v4345 = vrcp.pop %v4343
    %v4346 = vmul.f32 %v4343, %v4345
    %v4347 = vsub.f32 1.0, %v4346
    %v4348 = vmul.f32 %v4345, %v4347
    %v4349 = vadd.f32 %v4345, %v4348
    %vm4350 = vweird.f32 %v4343
    %vm4351 = vweird.f32 %v4345
    %vm4352 = vmor %vm4350, %vm4351
    %v4353 = vsel %vm4352, %v4345, %v4349
    %v4354 = vand.u32 2147483647, %v4343
    %vm4355 = vcmp.eq.f32.partialorder %v4354, 8.507059e+37
    %v4356 = vand.u32 %v4343, 2147483648
    %v4357 = vor.u32 1.1754944e-38, %v4356
    %v4358 = vsel %vm4355, %v4357, %v4353
    %v4359 = vmul.f32 1.0, %v4358
    %v4360 = vrcp.pop %v4344
    %v4361 = vmul.f32 %v4344, %v4360
    %v4362 = vsub.f32 1.0, %v4361
    %v4363 = vmul.f32 %v4360, %v4362
    %v4364 = vadd.f32 %v4360, %v4363
    %vm4365 = vweird.f32 %v4344
    %vm4366 = vweird.f32 %v4360
    %vm4367 = vmor %vm4365, %vm4366
    %v4368 = vsel %vm4367, %v4360, %v4364
    %v4369 = vand.u32 2147483647, %v4344
    %vm4370 = vcmp.eq.f32.partialorder %v4369, 8.507059e+37
    %v4371 = vand.u32 %v4344, 2147483648
    %v4372 = vor.u32 1.1754944e-38, %v4371
    %v4373 = vsel %vm4370, %v4372, %v4368
    %v4374 = vmul.f32 1.0, %v4373
    %v4376 = vrot.slane %v4280, 1
    %v4378 = vmul.f32 %v4310, %v4280
    %v4379 = vmul.f32 %v4325, %v4376
    %v4380 = vrot.slane %v4231, 2
    %v4381 = vrot.slane %v4233, 2
    %v4384 = vadd.f32 %v4380, %v4378
    %v4385 = vadd.f32 %v4381, %v4379
    %v4386 = vtanh.pop %v4384
    %v4387 = vtanh.pop %v4385
    %v4388 = vsub.f32 1.0, %v4359
    %v4389 = vsub.f32 1.0, %v4374
    %v4390 = vmul.f32 %v4388, %v4386
    %v4391 = vmul.f32 %v4389, %v4387
    %v4392 = vmul.f32 %v4359, %v4228
    %v4393 = vmul.f32 %v4374, %v4229
    %v4394 = vadd.f32 %v4390, %v4392
    %v4395 = vadd.f32 %v4391, %v4393
    %s4396 = scalar_lea.vmem [#allocation2], 50
    %v4397 = vld [vmem:[%s4396] ss:$8 sm:$0x7]
    %s4398 = scalar_lea.vmem [#allocation2], 146
    %v4399 = vld [vmem:[%s4398] ss:$8 sm:$0x7]
    %v4400 = vpack.c.bf16 %v4394, %v4394
    %v4401 = vpack.c.bf16 %v4395, %v4395
    %v4404 = vunpack.c.l.b16 %v4400
    %v4405 = vunpack.c.l.b16 %v4401
    %v4406 = vrot.slane %v4405, 7
    %v4407 = vsel %vm1584, %v4406, %v4404
    %v4408 = vpack.c.b16 %v4407, %v4407
    %4410 = vmatpush.bf16.msra.mxu0 %v1394
    %4411 = vmatpush.bf16.msra.mxu0 %v1391
    %4412 = vmatpush.bf16.msra.mxu0 %v1388
    %4413 = vmatpush.bf16.msra.mxu0 %v1385
    %4414 = vmatpush.bf16.msra.mxu0 %v1382
    %4415 = vmatpush.bf16.msra.mxu0 %v1379
    %4416 = vmatpush.bf16.msra.mxu0 %v1376
    %4417 = vmatpush.bf16.msra.mxu0 %v1373
    %4418 = vmatmul.bf16.gmra.mxu0 %v4408
    %v4419 = vpop.f32.mrf.mxu0
    %v4420 = vadd.f32 %v1287, %v4419
    %v4421 = vpop.f32.mrf.mxu0
    %4422 = vdwg.mxu0
    %4423 = vmatpush.bf16.msra.mxu0 %v1395
    %4424 = vmatpush.bf16.msra.mxu0 %v1392
    %4425 = vmatpush.bf16.msra.mxu0 %v1389
    %4426 = vmatpush.bf16.msra.mxu0 %v1386
    %4427 = vmatpush.bf16.msra.mxu0 %v1383
    %4428 = vmatpush.bf16.msra.mxu0 %v1380
    %4429 = vmatpush.bf16.msra.mxu0 %v1377
    %4430 = vmatpush.bf16.msra.mxu0 %v1374
    %4431 = vmatmul.bf16.gmra.mxu0 %v4408
    %v4432 = vpop.f32.mrf.mxu0
    %v4433 = vadd.f32 %v1288, %v4432
    %v4434 = vpop.f32.mrf.mxu0
    %4435 = vdwg.mxu0
    %4436 = vmatpush.bf16.msra.mxu0 %v1396
    %4437 = vmatpush.bf16.msra.mxu0 %v1393
    %4438 = vmatpush.bf16.msra.mxu0 %v1390
    %4439 = vmatpush.bf16.msra.mxu0 %v1387
    %4440 = vmatpush.bf16.msra.mxu0 %v1384
    %4441 = vmatpush.bf16.msra.mxu0 %v1381
    %4442 = vmatpush.bf16.msra.mxu0 %v1378
    %4443 = vmatpush.bf16.msra.mxu0 %v1375
    %4444 = vmatmul.bf16.gmra.mxu0 %v4408
    %v4445 = vpop.f32.mrf.mxu0
    %v4446 = vadd.f32 %v1289, %v4445
    %v4447 = vpop.f32.mrf.mxu0
    %4448 = vdwg.mxu0
    %v4450 = vrot.slane %v4420, 1
    %v4452 = vadd.f32 %v4397, %v4420
    %v4453 = vadd.f32 %v4399, %v4450
    %v4454 = vxor.u32 %v4452, 2147483648
    %v4455 = vxor.u32 %v4453, 2147483648
    %v4456 = vmul.f32 %v4454, 1.442695
    %v4457 = vpow.pop %v4456
    %v4458 = vmul.f32 %v4455, 1.442695
    %v4459 = vpow.pop %v4458
    %v4460 = vadd.f32 %v4457, 1.0
    %v4461 = vadd.f32 %v4459, 1.0
    %v4462 = vrcp.pop %v4460
    %v4463 = vmul.f32 %v4460, %v4462
    %v4464 = vsub.f32 1.0, %v4463
    %v4465 = vmul.f32 %v4462, %v4464
    %v4466 = vadd.f32 %v4462, %v4465
    %vm4467 = vweird.f32 %v4460
    %vm4468 = vweird.f32 %v4462
    %vm4469 = vmor %vm4467, %vm4468
    %v4470 = vsel %vm4469, %v4462, %v4466
    %v4471 = vand.u32 2147483647, %v4460
    %vm4472 = vcmp.eq.f32.partialorder %v4471, 8.507059e+37
    %v4473 = vand.u32 %v4460, 2147483648
    %v4474 = vor.u32 1.1754944e-38, %v4473
    %v4475 = vsel %vm4472, %v4474, %v4470
    %v4476 = vmul.f32 1.0, %v4475
    %v4477 = vrcp.pop %v4461
    %v4478 = vmul.f32 %v4461, %v4477
    %v4479 = vsub.f32 1.0, %v4478
    %v4480 = vmul.f32 %v4477, %v4479
    %v4481 = vadd.f32 %v4477, %v4480
    %vm4482 = vweird.f32 %v4461
    %vm4483 = vweird.f32 %v4477
    %vm4484 = vmor %vm4482, %vm4483
    %v4485 = vsel %vm4484, %v4477, %v4481
    %v4486 = vand.u32 2147483647, %v4461
    %vm4487 = vcmp.eq.f32.partialorder %v4486, 8.507059e+37
    %v4488 = vand.u32 %v4461, 2147483648
    %v4489 = vor.u32 1.1754944e-38, %v4488
    %v4490 = vsel %vm4487, %v4489, %v4485
    %v4491 = vmul.f32 1.0, %v4490
    %v4494 = vrot.slane %v4397, 1
    %v4495 = vrot.slane %v4399, 1
    %v4499 = vrot.slane %v4433, 1
    %v4501 = vadd.f32 %v4494, %v4433
    %v4502 = vadd.f32 %v4495, %v4499
    %v4503 = vxor.u32 %v4501, 2147483648
    %v4504 = vxor.u32 %v4502, 2147483648
    %v4505 = vmul.f32 %v4503, 1.442695
    %v4506 = vpow.pop %v4505
    %v4507 = vmul.f32 %v4504, 1.442695
    %v4508 = vpow.pop %v4507
    %v4509 = vadd.f32 %v4506, 1.0
    %v4510 = vadd.f32 %v4508, 1.0
    %v4511 = vrcp.pop %v4509
    %v4512 = vmul.f32 %v4509, %v4511
    %v4513 = vsub.f32 1.0, %v4512
    %v4514 = vmul.f32 %v4511, %v4513
    %v4515 = vadd.f32 %v4511, %v4514
    %vm4516 = vweird.f32 %v4509
    %vm4517 = vweird.f32 %v4511
    %vm4518 = vmor %vm4516, %vm4517
    %v4519 = vsel %vm4518, %v4511, %v4515
    %v4520 = vand.u32 2147483647, %v4509
    %vm4521 = vcmp.eq.f32.partialorder %v4520, 8.507059e+37
    %v4522 = vand.u32 %v4509, 2147483648
    %v4523 = vor.u32 1.1754944e-38, %v4522
    %v4524 = vsel %vm4521, %v4523, %v4519
    %v4525 = vmul.f32 1.0, %v4524
    %v4526 = vrcp.pop %v4510
    %v4527 = vmul.f32 %v4510, %v4526
    %v4528 = vsub.f32 1.0, %v4527
    %v4529 = vmul.f32 %v4526, %v4528
    %v4530 = vadd.f32 %v4526, %v4529
    %vm4531 = vweird.f32 %v4510
    %vm4532 = vweird.f32 %v4526
    %vm4533 = vmor %vm4531, %vm4532
    %v4534 = vsel %vm4533, %v4526, %v4530
    %v4535 = vand.u32 2147483647, %v4510
    %vm4536 = vcmp.eq.f32.partialorder %v4535, 8.507059e+37
    %v4537 = vand.u32 %v4510, 2147483648
    %v4538 = vor.u32 1.1754944e-38, %v4537
    %v4539 = vsel %vm4536, %v4538, %v4534
    %v4540 = vmul.f32 1.0, %v4539
    %v4542 = vrot.slane %v4446, 1
    %v4544 = vmul.f32 %v4476, %v4446
    %v4545 = vmul.f32 %v4491, %v4542
    %v4546 = vrot.slane %v4397, 2
    %v4547 = vrot.slane %v4399, 2
    %v4550 = vadd.f32 %v4546, %v4544
    %v4551 = vadd.f32 %v4547, %v4545
    %v4552 = vtanh.pop %v4550
    %v4553 = vtanh.pop %v4551
    %v4554 = vsub.f32 1.0, %v4525
    %v4555 = vsub.f32 1.0, %v4540
    %v4556 = vmul.f32 %v4554, %v4552
    %v4557 = vmul.f32 %v4555, %v4553
    %v4558 = vmul.f32 %v4525, %v4394
    %v4559 = vmul.f32 %v4540, %v4395
    %v4560 = vadd.f32 %v4556, %v4558
    %v4561 = vadd.f32 %v4557, %v4559
    %s4562 = scalar_lea.vmem [#allocation2], 51
    %v4563 = vld [vmem:[%s4562] ss:$8 sm:$0x7]
    %s4564 = scalar_lea.vmem [#allocation2], 147
    %v4565 = vld [vmem:[%s4564] ss:$8 sm:$0x7]
    %v4566 = vpack.c.bf16 %v4560, %v4560
    %v4567 = vpack.c.bf16 %v4561, %v4561
    %v4570 = vunpack.c.l.b16 %v4566
    %v4571 = vunpack.c.l.b16 %v4567
    %v4572 = vrot.slane %v4571, 7
    %v4573 = vsel %vm1584, %v4572, %v4570
    %v4574 = vpack.c.b16 %v4573, %v4573
    %4576 = vmatpush.bf16.msra.mxu0 %v1394
    %4577 = vmatpush.bf16.msra.mxu0 %v1391
    %4578 = vmatpush.bf16.msra.mxu0 %v1388
    %4579 = vmatpush.bf16.msra.mxu0 %v1385
    %4580 = vmatpush.bf16.msra.mxu0 %v1382
    %4581 = vmatpush.bf16.msra.mxu0 %v1379
    %4582 = vmatpush.bf16.msra.mxu0 %v1376
    %4583 = vmatpush.bf16.msra.mxu0 %v1373
    %4584 = vmatmul.bf16.gmra.mxu0 %v4574
    %v4585 = vpop.f32.mrf.mxu0
    %v4586 = vadd.f32 %v1287, %v4585
    %v4587 = vpop.f32.mrf.mxu0
    %4588 = vdwg.mxu0
    %4589 = vmatpush.bf16.msra.mxu0 %v1395
    %4590 = vmatpush.bf16.msra.mxu0 %v1392
    %4591 = vmatpush.bf16.msra.mxu0 %v1389
    %4592 = vmatpush.bf16.msra.mxu0 %v1386
    %4593 = vmatpush.bf16.msra.mxu0 %v1383
    %4594 = vmatpush.bf16.msra.mxu0 %v1380
    %4595 = vmatpush.bf16.msra.mxu0 %v1377
    %4596 = vmatpush.bf16.msra.mxu0 %v1374
    %4597 = vmatmul.bf16.gmra.mxu0 %v4574
    %v4598 = vpop.f32.mrf.mxu0
    %v4599 = vadd.f32 %v1288, %v4598
    %v4600 = vpop.f32.mrf.mxu0
    %4601 = vdwg.mxu0
    %4602 = vmatpush.bf16.msra.mxu0 %v1396
    %4603 = vmatpush.bf16.msra.mxu0 %v1393
    %4604 = vmatpush.bf16.msra.mxu0 %v1390
    %4605 = vmatpush.bf16.msra.mxu0 %v1387
    %4606 = vmatpush.bf16.msra.mxu0 %v1384
    %4607 = vmatpush.bf16.msra.mxu0 %v1381
    %4608 = vmatpush.bf16.msra.mxu0 %v1378
    %4609 = vmatpush.bf16.msra.mxu0 %v1375
    %4610 = vmatmul.bf16.gmra.mxu0 %v4574
    %v4611 = vpop.f32.mrf.mxu0
    %v4612 = vadd.f32 %v1289, %v4611
    %v4613 = vpop.f32.mrf.mxu0
    %4614 = vdwg.mxu0
    %v4616 = vrot.slane %v4586, 1
    %v4618 = vadd.f32 %v4563, %v4586
    %v4619 = vadd.f32 %v4565, %v4616
    %v4620 = vxor.u32 %v4618, 2147483648
    %v4621 = vxor.u32 %v4619, 2147483648
    %v4622 = vmul.f32 %v4620, 1.442695
    %v4623 = vpow.pop %v4622
    %v4624 = vmul.f32 %v4621, 1.442695
    %v4625 = vpow.pop %v4624
    %v4626 = vadd.f32 %v4623, 1.0
    %v4627 = vadd.f32 %v4625, 1.0
    %v4628 = vrcp.pop %v4626
    %v4629 = vmul.f32 %v4626, %v4628
    %v4630 = vsub.f32 1.0, %v4629
    %v4631 = vmul.f32 %v4628, %v4630
    %v4632 = vadd.f32 %v4628, %v4631
    %vm4633 = vweird.f32 %v4626
    %vm4634 = vweird.f32 %v4628
    %vm4635 = vmor %vm4633, %vm4634
    %v4636 = vsel %vm4635, %v4628, %v4632
    %v4637 = vand.u32 2147483647, %v4626
    %vm4638 = vcmp.eq.f32.partialorder %v4637, 8.507059e+37
    %v4639 = vand.u32 %v4626, 2147483648
    %v4640 = vor.u32 1.1754944e-38, %v4639
    %v4641 = vsel %vm4638, %v4640, %v4636
    %v4642 = vmul.f32 1.0, %v4641
    %v4643 = vrcp.pop %v4627
    %v4644 = vmul.f32 %v4627, %v4643
    %v4645 = vsub.f32 1.0, %v4644
    %v4646 = vmul.f32 %v4643, %v4645
    %v4647 = vadd.f32 %v4643, %v4646
    %vm4648 = vweird.f32 %v4627
    %vm4649 = vweird.f32 %v4643
    %vm4650 = vmor %vm4648, %vm4649
    %v4651 = vsel %vm4650, %v4643, %v4647
    %v4652 = vand.u32 2147483647, %v4627
    %vm4653 = vcmp.eq.f32.partialorder %v4652, 8.507059e+37
    %v4654 = vand.u32 %v4627, 2147483648
    %v4655 = vor.u32 1.1754944e-38, %v4654
    %v4656 = vsel %vm4653, %v4655, %v4651
    %v4657 = vmul.f32 1.0, %v4656
    %v4660 = vrot.slane %v4563, 1
    %v4661 = vrot.slane %v4565, 1
    %v4665 = vrot.slane %v4599, 1
    %v4667 = vadd.f32 %v4660, %v4599
    %v4668 = vadd.f32 %v4661, %v4665
    %v4669 = vxor.u32 %v4667, 2147483648
    %v4670 = vxor.u32 %v4668, 2147483648
    %v4671 = vmul.f32 %v4669, 1.442695
    %v4672 = vpow.pop %v4671
    %v4673 = vmul.f32 %v4670, 1.442695
    %v4674 = vpow.pop %v4673
    %v4675 = vadd.f32 %v4672, 1.0
    %v4676 = vadd.f32 %v4674, 1.0
    %v4677 = vrcp.pop %v4675
    %v4678 = vmul.f32 %v4675, %v4677
    %v4679 = vsub.f32 1.0, %v4678
    %v4680 = vmul.f32 %v4677, %v4679
    %v4681 = vadd.f32 %v4677, %v4680
    %vm4682 = vweird.f32 %v4675
    %vm4683 = vweird.f32 %v4677
    %vm4684 = vmor %vm4682, %vm4683
    %v4685 = vsel %vm4684, %v4677, %v4681
    %v4686 = vand.u32 2147483647, %v4675
    %vm4687 = vcmp.eq.f32.partialorder %v4686, 8.507059e+37
    %v4688 = vand.u32 %v4675, 2147483648
    %v4689 = vor.u32 1.1754944e-38, %v4688
    %v4690 = vsel %vm4687, %v4689, %v4685
    %v4691 = vmul.f32 1.0, %v4690
    %v4692 = vrcp.pop %v4676
    %v4693 = vmul.f32 %v4676, %v4692
    %v4694 = vsub.f32 1.0, %v4693
    %v4695 = vmul.f32 %v4692, %v4694
    %v4696 = vadd.f32 %v4692, %v4695
    %vm4697 = vweird.f32 %v4676
    %vm4698 = vweird.f32 %v4692
    %vm4699 = vmor %vm4697, %vm4698
    %v4700 = vsel %vm4699, %v4692, %v4696
    %v4701 = vand.u32 2147483647, %v4676
    %vm4702 = vcmp.eq.f32.partialorder %v4701, 8.507059e+37
    %v4703 = vand.u32 %v4676, 2147483648
    %v4704 = vor.u32 1.1754944e-38, %v4703
    %v4705 = vsel %vm4702, %v4704, %v4700
    %v4706 = vmul.f32 1.0, %v4705
    %v4708 = vrot.slane %v4612, 1
    %v4710 = vmul.f32 %v4642, %v4612
    %v4711 = vmul.f32 %v4657, %v4708
    %v4712 = vrot.slane %v4563, 2
    %v4713 = vrot.slane %v4565, 2
    %v4716 = vadd.f32 %v4712, %v4710
    %v4717 = vadd.f32 %v4713, %v4711
    %v4718 = vtanh.pop %v4716
    %v4719 = vtanh.pop %v4717
    %v4720 = vsub.f32 1.0, %v4691
    %v4721 = vsub.f32 1.0, %v4706
    %v4722 = vmul.f32 %v4720, %v4718
    %v4723 = vmul.f32 %v4721, %v4719
    %v4724 = vmul.f32 %v4691, %v4560
    %v4725 = vmul.f32 %v4706, %v4561
    %v4726 = vadd.f32 %v4722, %v4724
    %v4727 = vadd.f32 %v4723, %v4725
    %s4728 = scalar_lea.vmem [#allocation2], 52
    %v4729 = vld [vmem:[%s4728] ss:$8 sm:$0x7]
    %s4730 = scalar_lea.vmem [#allocation2], 148
    %v4731 = vld [vmem:[%s4730] ss:$8 sm:$0x7]
    %v4732 = vpack.c.bf16 %v4726, %v4726
    %v4733 = vpack.c.bf16 %v4727, %v4727
    %v4736 = vunpack.c.l.b16 %v4732
    %v4737 = vunpack.c.l.b16 %v4733
    %v4738 = vrot.slane %v4737, 7
    %v4739 = vsel %vm1584, %v4738, %v4736
    %v4740 = vpack.c.b16 %v4739, %v4739
    %4742 = vmatpush.bf16.msra.mxu0 %v1394
    %4743 = vmatpush.bf16.msra.mxu0 %v1391
    %4744 = vmatpush.bf16.msra.mxu0 %v1388
    %4745 = vmatpush.bf16.msra.mxu0 %v1385
    %4746 = vmatpush.bf16.msra.mxu0 %v1382
    %4747 = vmatpush.bf16.msra.mxu0 %v1379
    %4748 = vmatpush.bf16.msra.mxu0 %v1376
    %4749 = vmatpush.bf16.msra.mxu0 %v1373
    %4750 = vmatmul.bf16.gmra.mxu0 %v4740
    %v4751 = vpop.f32.mrf.mxu0
    %v4752 = vadd.f32 %v1287, %v4751
    %v4753 = vpop.f32.mrf.mxu0
    %4754 = vdwg.mxu0
    %4755 = vmatpush.bf16.msra.mxu0 %v1395
    %4756 = vmatpush.bf16.msra.mxu0 %v1392
    %4757 = vmatpush.bf16.msra.mxu0 %v1389
    %4758 = vmatpush.bf16.msra.mxu0 %v1386
    %4759 = vmatpush.bf16.msra.mxu0 %v1383
    %4760 = vmatpush.bf16.msra.mxu0 %v1380
    %4761 = vmatpush.bf16.msra.mxu0 %v1377
    %4762 = vmatpush.bf16.msra.mxu0 %v1374
    %4763 = vmatmul.bf16.gmra.mxu0 %v4740
    %v4764 = vpop.f32.mrf.mxu0
    %v4765 = vadd.f32 %v1288, %v4764
    %v4766 = vpop.f32.mrf.mxu0
    %4767 = vdwg.mxu0
    %4768 = vmatpush.bf16.msra.mxu0 %v1396
    %4769 = vmatpush.bf16.msra.mxu0 %v1393
    %4770 = vmatpush.bf16.msra.mxu0 %v1390
    %4771 = vmatpush.bf16.msra.mxu0 %v1387
    %4772 = vmatpush.bf16.msra.mxu0 %v1384
    %4773 = vmatpush.bf16.msra.mxu0 %v1381
    %4774 = vmatpush.bf16.msra.mxu0 %v1378
    %4775 = vmatpush.bf16.msra.mxu0 %v1375
    %4776 = vmatmul.bf16.gmra.mxu0 %v4740
    %v4777 = vpop.f32.mrf.mxu0
    %v4778 = vadd.f32 %v1289, %v4777
    %v4779 = vpop.f32.mrf.mxu0
    %4780 = vdwg.mxu0
    %v4782 = vrot.slane %v4752, 1
    %v4784 = vadd.f32 %v4729, %v4752
    %v4785 = vadd.f32 %v4731, %v4782
    %v4786 = vxor.u32 %v4784, 2147483648
    %v4787 = vxor.u32 %v4785, 2147483648
    %v4788 = vmul.f32 %v4786, 1.442695
    %v4789 = vpow.pop %v4788
    %v4790 = vmul.f32 %v4787, 1.442695
    %v4791 = vpow.pop %v4790
    %v4792 = vadd.f32 %v4789, 1.0
    %v4793 = vadd.f32 %v4791, 1.0
    %v4794 = vrcp.pop %v4792
    %v4795 = vmul.f32 %v4792, %v4794
    %v4796 = vsub.f32 1.0, %v4795
    %v4797 = vmul.f32 %v4794, %v4796
    %v4798 = vadd.f32 %v4794, %v4797
    %vm4799 = vweird.f32 %v4792
    %vm4800 = vweird.f32 %v4794
    %vm4801 = vmor %vm4799, %vm4800
    %v4802 = vsel %vm4801, %v4794, %v4798
    %v4803 = vand.u32 2147483647, %v4792
    %vm4804 = vcmp.eq.f32.partialorder %v4803, 8.507059e+37
    %v4805 = vand.u32 %v4792, 2147483648
    %v4806 = vor.u32 1.1754944e-38, %v4805
    %v4807 = vsel %vm4804, %v4806, %v4802
    %v4808 = vmul.f32 1.0, %v4807
    %v4809 = vrcp.pop %v4793
    %v4810 = vmul.f32 %v4793, %v4809
    %v4811 = vsub.f32 1.0, %v4810
    %v4812 = vmul.f32 %v4809, %v4811
    %v4813 = vadd.f32 %v4809, %v4812
    %vm4814 = vweird.f32 %v4793
    %vm4815 = vweird.f32 %v4809
    %vm4816 = vmor %vm4814, %vm4815
    %v4817 = vsel %vm4816, %v4809, %v4813
    %v4818 = vand.u32 2147483647, %v4793
    %vm4819 = vcmp.eq.f32.partialorder %v4818, 8.507059e+37
    %v4820 = vand.u32 %v4793, 2147483648
    %v4821 = vor.u32 1.1754944e-38, %v4820
    %v4822 = vsel %vm4819, %v4821, %v4817
    %v4823 = vmul.f32 1.0, %v4822
    %v4826 = vrot.slane %v4729, 1
    %v4827 = vrot.slane %v4731, 1
    %v4831 = vrot.slane %v4765, 1
    %v4833 = vadd.f32 %v4826, %v4765
    %v4834 = vadd.f32 %v4827, %v4831
    %v4835 = vxor.u32 %v4833, 2147483648
    %v4836 = vxor.u32 %v4834, 2147483648
    %v4837 = vmul.f32 %v4835, 1.442695
    %v4838 = vpow.pop %v4837
    %v4839 = vmul.f32 %v4836, 1.442695
    %v4840 = vpow.pop %v4839
    %v4841 = vadd.f32 %v4838, 1.0
    %v4842 = vadd.f32 %v4840, 1.0
    %v4843 = vrcp.pop %v4841
    %v4844 = vmul.f32 %v4841, %v4843
    %v4845 = vsub.f32 1.0, %v4844
    %v4846 = vmul.f32 %v4843, %v4845
    %v4847 = vadd.f32 %v4843, %v4846
    %vm4848 = vweird.f32 %v4841
    %vm4849 = vweird.f32 %v4843
    %vm4850 = vmor %vm4848, %vm4849
    %v4851 = vsel %vm4850, %v4843, %v4847
    %v4852 = vand.u32 2147483647, %v4841
    %vm4853 = vcmp.eq.f32.partialorder %v4852, 8.507059e+37
    %v4854 = vand.u32 %v4841, 2147483648
    %v4855 = vor.u32 1.1754944e-38, %v4854
    %v4856 = vsel %vm4853, %v4855, %v4851
    %v4857 = vmul.f32 1.0, %v4856
    %v4858 = vrcp.pop %v4842
    %v4859 = vmul.f32 %v4842, %v4858
    %v4860 = vsub.f32 1.0, %v4859
    %v4861 = vmul.f32 %v4858, %v4860
    %v4862 = vadd.f32 %v4858, %v4861
    %vm4863 = vweird.f32 %v4842
    %vm4864 = vweird.f32 %v4858
    %vm4865 = vmor %vm4863, %vm4864
    %v4866 = vsel %vm4865, %v4858, %v4862
    %v4867 = vand.u32 2147483647, %v4842
    %vm4868 = vcmp.eq.f32.partialorder %v4867, 8.507059e+37
    %v4869 = vand.u32 %v4842, 2147483648
    %v4870 = vor.u32 1.1754944e-38, %v4869
    %v4871 = vsel %vm4868, %v4870, %v4866
    %v4872 = vmul.f32 1.0, %v4871
    %v4874 = vrot.slane %v4778, 1
    %v4876 = vmul.f32 %v4808, %v4778
    %v4877 = vmul.f32 %v4823, %v4874
    %v4878 = vrot.slane %v4729, 2
    %v4879 = vrot.slane %v4731, 2
    %v4882 = vadd.f32 %v4878, %v4876
    %v4883 = vadd.f32 %v4879, %v4877
    %v4884 = vtanh.pop %v4882
    %v4885 = vtanh.pop %v4883
    %v4886 = vsub.f32 1.0, %v4857
    %v4887 = vsub.f32 1.0, %v4872
    %v4888 = vmul.f32 %v4886, %v4884
    %v4889 = vmul.f32 %v4887, %v4885
    %v4890 = vmul.f32 %v4857, %v4726
    %v4891 = vmul.f32 %v4872, %v4727
    %v4892 = vadd.f32 %v4888, %v4890
    %v4893 = vadd.f32 %v4889, %v4891
    %s4894 = scalar_lea.vmem [#allocation2], 53
    %v4895 = vld [vmem:[%s4894] ss:$8 sm:$0x7]
    %s4896 = scalar_lea.vmem [#allocation2], 149
    %v4897 = vld [vmem:[%s4896] ss:$8 sm:$0x7]
    %v4898 = vpack.c.bf16 %v4892, %v4892
    %v4899 = vpack.c.bf16 %v4893, %v4893
    %v4902 = vunpack.c.l.b16 %v4898
    %v4903 = vunpack.c.l.b16 %v4899
    %v4904 = vrot.slane %v4903, 7
    %v4905 = vsel %vm1584, %v4904, %v4902
    %v4906 = vpack.c.b16 %v4905, %v4905
    %4908 = vmatpush.bf16.msra.mxu0 %v1394
    %4909 = vmatpush.bf16.msra.mxu0 %v1391
    %4910 = vmatpush.bf16.msra.mxu0 %v1388
    %4911 = vmatpush.bf16.msra.mxu0 %v1385
    %4912 = vmatpush.bf16.msra.mxu0 %v1382
    %4913 = vmatpush.bf16.msra.mxu0 %v1379
    %4914 = vmatpush.bf16.msra.mxu0 %v1376
    %4915 = vmatpush.bf16.msra.mxu0 %v1373
    %4916 = vmatmul.bf16.gmra.mxu0 %v4906
    %v4917 = vpop.f32.mrf.mxu0
    %v4918 = vadd.f32 %v1287, %v4917
    %v4919 = vpop.f32.mrf.mxu0
    %4920 = vdwg.mxu0
    %4921 = vmatpush.bf16.msra.mxu0 %v1395
    %4922 = vmatpush.bf16.msra.mxu0 %v1392
    %4923 = vmatpush.bf16.msra.mxu0 %v1389
    %4924 = vmatpush.bf16.msra.mxu0 %v1386
    %4925 = vmatpush.bf16.msra.mxu0 %v1383
    %4926 = vmatpush.bf16.msra.mxu0 %v1380
    %4927 = vmatpush.bf16.msra.mxu0 %v1377
    %4928 = vmatpush.bf16.msra.mxu0 %v1374
    %4929 = vmatmul.bf16.gmra.mxu0 %v4906
    %v4930 = vpop.f32.mrf.mxu0
    %v4931 = vadd.f32 %v1288, %v4930
    %v4932 = vpop.f32.mrf.mxu0
    %4933 = vdwg.mxu0
    %4934 = vmatpush.bf16.msra.mxu0 %v1396
    %4935 = vmatpush.bf16.msra.mxu0 %v1393
    %4936 = vmatpush.bf16.msra.mxu0 %v1390
    %4937 = vmatpush.bf16.msra.mxu0 %v1387
    %4938 = vmatpush.bf16.msra.mxu0 %v1384
    %4939 = vmatpush.bf16.msra.mxu0 %v1381
    %4940 = vmatpush.bf16.msra.mxu0 %v1378
    %4941 = vmatpush.bf16.msra.mxu0 %v1375
    %4942 = vmatmul.bf16.gmra.mxu0 %v4906
    %v4943 = vpop.f32.mrf.mxu0
    %v4944 = vadd.f32 %v1289, %v4943
    %v4945 = vpop.f32.mrf.mxu0
    %4946 = vdwg.mxu0
    %v4948 = vrot.slane %v4918, 1
    %v4950 = vadd.f32 %v4895, %v4918
    %v4951 = vadd.f32 %v4897, %v4948
    %v4952 = vxor.u32 %v4950, 2147483648
    %v4953 = vxor.u32 %v4951, 2147483648
    %v4954 = vmul.f32 %v4952, 1.442695
    %v4955 = vpow.pop %v4954
    %v4956 = vmul.f32 %v4953, 1.442695
    %v4957 = vpow.pop %v4956
    %v4958 = vadd.f32 %v4955, 1.0
    %v4959 = vadd.f32 %v4957, 1.0
    %v4960 = vrcp.pop %v4958
    %v4961 = vmul.f32 %v4958, %v4960
    %v4962 = vsub.f32 1.0, %v4961
    %v4963 = vmul.f32 %v4960, %v4962
    %v4964 = vadd.f32 %v4960, %v4963
    %vm4965 = vweird.f32 %v4958
    %vm4966 = vweird.f32 %v4960
    %vm4967 = vmor %vm4965, %vm4966
    %v4968 = vsel %vm4967, %v4960, %v4964
    %v4969 = vand.u32 2147483647, %v4958
    %vm4970 = vcmp.eq.f32.partialorder %v4969, 8.507059e+37
    %v4971 = vand.u32 %v4958, 2147483648
    %v4972 = vor.u32 1.1754944e-38, %v4971
    %v4973 = vsel %vm4970, %v4972, %v4968
    %v4974 = vmul.f32 1.0, %v4973
    %v4975 = vrcp.pop %v4959
    %v4976 = vmul.f32 %v4959, %v4975
    %v4977 = vsub.f32 1.0, %v4976
    %v4978 = vmul.f32 %v4975, %v4977
    %v4979 = vadd.f32 %v4975, %v4978
    %vm4980 = vweird.f32 %v4959
    %vm4981 = vweird.f32 %v4975
    %vm4982 = vmor %vm4980, %vm4981
    %v4983 = vsel %vm4982, %v4975, %v4979
    %v4984 = vand.u32 2147483647, %v4959
    %vm4985 = vcmp.eq.f32.partialorder %v4984, 8.507059e+37
    %v4986 = vand.u32 %v4959, 2147483648
    %v4987 = vor.u32 1.1754944e-38, %v4986
    %v4988 = vsel %vm4985, %v4987, %v4983
    %v4989 = vmul.f32 1.0, %v4988
    %v4992 = vrot.slane %v4895, 1
    %v4993 = vrot.slane %v4897, 1
    %v4997 = vrot.slane %v4931, 1
    %v4999 = vadd.f32 %v4992, %v4931
    %v5000 = vadd.f32 %v4993, %v4997
    %v5001 = vxor.u32 %v4999, 2147483648
    %v5002 = vxor.u32 %v5000, 2147483648
    %v5003 = vmul.f32 %v5001, 1.442695
    %v5004 = vpow.pop %v5003
    %v5005 = vmul.f32 %v5002, 1.442695
    %v5006 = vpow.pop %v5005
    %v5007 = vadd.f32 %v5004, 1.0
    %v5008 = vadd.f32 %v5006, 1.0
    %v5009 = vrcp.pop %v5007
    %v5010 = vmul.f32 %v5007, %v5009
    %v5011 = vsub.f32 1.0, %v5010
    %v5012 = vmul.f32 %v5009, %v5011
    %v5013 = vadd.f32 %v5009, %v5012
    %vm5014 = vweird.f32 %v5007
    %vm5015 = vweird.f32 %v5009
    %vm5016 = vmor %vm5014, %vm5015
    %v5017 = vsel %vm5016, %v5009, %v5013
    %v5018 = vand.u32 2147483647, %v5007
    %vm5019 = vcmp.eq.f32.partialorder %v5018, 8.507059e+37
    %v5020 = vand.u32 %v5007, 2147483648
    %v5021 = vor.u32 1.1754944e-38, %v5020
    %v5022 = vsel %vm5019, %v5021, %v5017
    %v5023 = vmul.f32 1.0, %v5022
    %v5024 = vrcp.pop %v5008
    %v5025 = vmul.f32 %v5008, %v5024
    %v5026 = vsub.f32 1.0, %v5025
    %v5027 = vmul.f32 %v5024, %v5026
    %v5028 = vadd.f32 %v5024, %v5027
    %vm5029 = vweird.f32 %v5008
    %vm5030 = vweird.f32 %v5024
    %vm5031 = vmor %vm5029, %vm5030
    %v5032 = vsel %vm5031, %v5024, %v5028
    %v5033 = vand.u32 2147483647, %v5008
    %vm5034 = vcmp.eq.f32.partialorder %v5033, 8.507059e+37
    %v5035 = vand.u32 %v5008, 2147483648
    %v5036 = vor.u32 1.1754944e-38, %v5035
    %v5037 = vsel %vm5034, %v5036, %v5032
    %v5038 = vmul.f32 1.0, %v5037
    %v5040 = vrot.slane %v4944, 1
    %v5042 = vmul.f32 %v4974, %v4944
    %v5043 = vmul.f32 %v4989, %v5040
    %v5044 = vrot.slane %v4895, 2
    %v5045 = vrot.slane %v4897, 2
    %v5048 = vadd.f32 %v5044, %v5042
    %v5049 = vadd.f32 %v5045, %v5043
    %v5050 = vtanh.pop %v5048
    %v5051 = vtanh.pop %v5049
    %v5052 = vsub.f32 1.0, %v5023
    %v5053 = vsub.f32 1.0, %v5038
    %v5054 = vmul.f32 %v5052, %v5050
    %v5055 = vmul.f32 %v5053, %v5051
    %v5056 = vmul.f32 %v5023, %v4892
    %v5057 = vmul.f32 %v5038, %v4893
    %v5058 = vadd.f32 %v5054, %v5056
    %v5059 = vadd.f32 %v5055, %v5057
    %s5060 = scalar_lea.vmem [#allocation2], 54
    %v5061 = vld [vmem:[%s5060] ss:$8 sm:$0x7]
    %s5062 = scalar_lea.vmem [#allocation2], 150
    %v5063 = vld [vmem:[%s5062] ss:$8 sm:$0x7]
    %v5064 = vpack.c.bf16 %v5058, %v5058
    %v5065 = vpack.c.bf16 %v5059, %v5059
    %v5068 = vunpack.c.l.b16 %v5064
    %v5069 = vunpack.c.l.b16 %v5065
    %v5070 = vrot.slane %v5069, 7
    %v5071 = vsel %vm1584, %v5070, %v5068
    %v5072 = vpack.c.b16 %v5071, %v5071
    %5074 = vmatpush.bf16.msra.mxu0 %v1394
    %5075 = vmatpush.bf16.msra.mxu0 %v1391
    %5076 = vmatpush.bf16.msra.mxu0 %v1388
    %5077 = vmatpush.bf16.msra.mxu0 %v1385
    %5078 = vmatpush.bf16.msra.mxu0 %v1382
    %5079 = vmatpush.bf16.msra.mxu0 %v1379
    %5080 = vmatpush.bf16.msra.mxu0 %v1376
    %5081 = vmatpush.bf16.msra.mxu0 %v1373
    %5082 = vmatmul.bf16.gmra.mxu0 %v5072
    %v5083 = vpop.f32.mrf.mxu0
    %v5084 = vadd.f32 %v1287, %v5083
    %v5085 = vpop.f32.mrf.mxu0
    %5086 = vdwg.mxu0
    %5087 = vmatpush.bf16.msra.mxu0 %v1395
    %5088 = vmatpush.bf16.msra.mxu0 %v1392
    %5089 = vmatpush.bf16.msra.mxu0 %v1389
    %5090 = vmatpush.bf16.msra.mxu0 %v1386
    %5091 = vmatpush.bf16.msra.mxu0 %v1383
    %5092 = vmatpush.bf16.msra.mxu0 %v1380
    %5093 = vmatpush.bf16.msra.mxu0 %v1377
    %5094 = vmatpush.bf16.msra.mxu0 %v1374
    %5095 = vmatmul.bf16.gmra.mxu0 %v5072
    %v5096 = vpop.f32.mrf.mxu0
    %v5097 = vadd.f32 %v1288, %v5096
    %v5098 = vpop.f32.mrf.mxu0
    %5099 = vdwg.mxu0
    %5100 = vmatpush.bf16.msra.mxu0 %v1396
    %5101 = vmatpush.bf16.msra.mxu0 %v1393
    %5102 = vmatpush.bf16.msra.mxu0 %v1390
    %5103 = vmatpush.bf16.msra.mxu0 %v1387
    %5104 = vmatpush.bf16.msra.mxu0 %v1384
    %5105 = vmatpush.bf16.msra.mxu0 %v1381
    %5106 = vmatpush.bf16.msra.mxu0 %v1378
    %5107 = vmatpush.bf16.msra.mxu0 %v1375
    %5108 = vmatmul.bf16.gmra.mxu0 %v5072
    %v5109 = vpop.f32.mrf.mxu0
    %v5110 = vadd.f32 %v1289, %v5109
    %v5111 = vpop.f32.mrf.mxu0
    %5112 = vdwg.mxu0
    %v5114 = vrot.slane %v5084, 1
    %v5116 = vadd.f32 %v5061, %v5084
    %v5117 = vadd.f32 %v5063, %v5114
    %v5118 = vxor.u32 %v5116, 2147483648
    %v5119 = vxor.u32 %v5117, 2147483648
    %v5120 = vmul.f32 %v5118, 1.442695
    %v5121 = vpow.pop %v5120
    %v5122 = vmul.f32 %v5119, 1.442695
    %v5123 = vpow.pop %v5122
    %v5124 = vadd.f32 %v5121, 1.0
    %v5125 = vadd.f32 %v5123, 1.0
    %v5126 = vrcp.pop %v5124
    %v5127 = vmul.f32 %v5124, %v5126
    %v5128 = vsub.f32 1.0, %v5127
    %v5129 = vmul.f32 %v5126, %v5128
    %v5130 = vadd.f32 %v5126, %v5129
    %vm5131 = vweird.f32 %v5124
    %vm5132 = vweird.f32 %v5126
    %vm5133 = vmor %vm5131, %vm5132
    %v5134 = vsel %vm5133, %v5126, %v5130
    %v5135 = vand.u32 2147483647, %v5124
    %vm5136 = vcmp.eq.f32.partialorder %v5135, 8.507059e+37
    %v5137 = vand.u32 %v5124, 2147483648
    %v5138 = vor.u32 1.1754944e-38, %v5137
    %v5139 = vsel %vm5136, %v5138, %v5134
    %v5140 = vmul.f32 1.0, %v5139
    %v5141 = vrcp.pop %v5125
    %v5142 = vmul.f32 %v5125, %v5141
    %v5143 = vsub.f32 1.0, %v5142
    %v5144 = vmul.f32 %v5141, %v5143
    %v5145 = vadd.f32 %v5141, %v5144
    %vm5146 = vweird.f32 %v5125
    %vm5147 = vweird.f32 %v5141
    %vm5148 = vmor %vm5146, %vm5147
    %v5149 = vsel %vm5148, %v5141, %v5145
    %v5150 = vand.u32 2147483647, %v5125
    %vm5151 = vcmp.eq.f32.partialorder %v5150, 8.507059e+37
    %v5152 = vand.u32 %v5125, 2147483648
    %v5153 = vor.u32 1.1754944e-38, %v5152
    %v5154 = vsel %vm5151, %v5153, %v5149
    %v5155 = vmul.f32 1.0, %v5154
    %v5158 = vrot.slane %v5061, 1
    %v5159 = vrot.slane %v5063, 1
    %v5163 = vrot.slane %v5097, 1
    %v5165 = vadd.f32 %v5158, %v5097
    %v5166 = vadd.f32 %v5159, %v5163
    %v5167 = vxor.u32 %v5165, 2147483648
    %v5168 = vxor.u32 %v5166, 2147483648
    %v5169 = vmul.f32 %v5167, 1.442695
    %v5170 = vpow.pop %v5169
    %v5171 = vmul.f32 %v5168, 1.442695
    %v5172 = vpow.pop %v5171
    %v5173 = vadd.f32 %v5170, 1.0
    %v5174 = vadd.f32 %v5172, 1.0
    %v5175 = vrcp.pop %v5173
    %v5176 = vmul.f32 %v5173, %v5175
    %v5177 = vsub.f32 1.0, %v5176
    %v5178 = vmul.f32 %v5175, %v5177
    %v5179 = vadd.f32 %v5175, %v5178
    %vm5180 = vweird.f32 %v5173
    %vm5181 = vweird.f32 %v5175
    %vm5182 = vmor %vm5180, %vm5181
    %v5183 = vsel %vm5182, %v5175, %v5179
    %v5184 = vand.u32 2147483647, %v5173
    %vm5185 = vcmp.eq.f32.partialorder %v5184, 8.507059e+37
    %v5186 = vand.u32 %v5173, 2147483648
    %v5187 = vor.u32 1.1754944e-38, %v5186
    %v5188 = vsel %vm5185, %v5187, %v5183
    %v5189 = vmul.f32 1.0, %v5188
    %v5190 = vrcp.pop %v5174
    %v5191 = vmul.f32 %v5174, %v5190
    %v5192 = vsub.f32 1.0, %v5191
    %v5193 = vmul.f32 %v5190, %v5192
    %v5194 = vadd.f32 %v5190, %v5193
    %vm5195 = vweird.f32 %v5174
    %vm5196 = vweird.f32 %v5190
    %vm5197 = vmor %vm5195, %vm5196
    %v5198 = vsel %vm5197, %v5190, %v5194
    %v5199 = vand.u32 2147483647, %v5174
    %vm5200 = vcmp.eq.f32.partialorder %v5199, 8.507059e+37
    %v5201 = vand.u32 %v5174, 2147483648
    %v5202 = vor.u32 1.1754944e-38, %v5201
    %v5203 = vsel %vm5200, %v5202, %v5198
    %v5204 = vmul.f32 1.0, %v5203
    %v5206 = vrot.slane %v5110, 1
    %v5208 = vmul.f32 %v5140, %v5110
    %v5209 = vmul.f32 %v5155, %v5206
    %v5210 = vrot.slane %v5061, 2
    %v5211 = vrot.slane %v5063, 2
    %v5214 = vadd.f32 %v5210, %v5208
    %v5215 = vadd.f32 %v5211, %v5209
    %v5216 = vtanh.pop %v5214
    %v5217 = vtanh.pop %v5215
    %v5218 = vsub.f32 1.0, %v5189
    %v5219 = vsub.f32 1.0, %v5204
    %v5220 = vmul.f32 %v5218, %v5216
    %v5221 = vmul.f32 %v5219, %v5217
    %v5222 = vmul.f32 %v5189, %v5058
    %v5223 = vmul.f32 %v5204, %v5059
    %v5224 = vadd.f32 %v5220, %v5222
    %v5225 = vadd.f32 %v5221, %v5223
    %s5226 = scalar_lea.vmem [#allocation2], 55
    %v5227 = vld [vmem:[%s5226] ss:$8 sm:$0x7]
    %s5228 = scalar_lea.vmem [#allocation2], 151
    %v5229 = vld [vmem:[%s5228] ss:$8 sm:$0x7]
    %v5230 = vpack.c.bf16 %v5224, %v5224
    %v5231 = vpack.c.bf16 %v5225, %v5225
    %v5234 = vunpack.c.l.b16 %v5230
    %v5235 = vunpack.c.l.b16 %v5231
    %v5236 = vrot.slane %v5235, 7
    %v5237 = vsel %vm1584, %v5236, %v5234
    %v5238 = vpack.c.b16 %v5237, %v5237
    %5240 = vmatpush.bf16.msra.mxu0 %v1394
    %5241 = vmatpush.bf16.msra.mxu0 %v1391
    %5242 = vmatpush.bf16.msra.mxu0 %v1388
    %5243 = vmatpush.bf16.msra.mxu0 %v1385
    %5244 = vmatpush.bf16.msra.mxu0 %v1382
    %5245 = vmatpush.bf16.msra.mxu0 %v1379
    %5246 = vmatpush.bf16.msra.mxu0 %v1376
    %5247 = vmatpush.bf16.msra.mxu0 %v1373
    %5248 = vmatmul.bf16.gmra.mxu0 %v5238
    %v5249 = vpop.f32.mrf.mxu0
    %v5250 = vadd.f32 %v1287, %v5249
    %v5251 = vpop.f32.mrf.mxu0
    %5252 = vdwg.mxu0
    %5253 = vmatpush.bf16.msra.mxu0 %v1395
    %5254 = vmatpush.bf16.msra.mxu0 %v1392
    %5255 = vmatpush.bf16.msra.mxu0 %v1389
    %5256 = vmatpush.bf16.msra.mxu0 %v1386
    %5257 = vmatpush.bf16.msra.mxu0 %v1383
    %5258 = vmatpush.bf16.msra.mxu0 %v1380
    %5259 = vmatpush.bf16.msra.mxu0 %v1377
    %5260 = vmatpush.bf16.msra.mxu0 %v1374
    %5261 = vmatmul.bf16.gmra.mxu0 %v5238
    %v5262 = vpop.f32.mrf.mxu0
    %v5263 = vadd.f32 %v1288, %v5262
    %v5264 = vpop.f32.mrf.mxu0
    %5265 = vdwg.mxu0
    %5266 = vmatpush.bf16.msra.mxu0 %v1396
    %5267 = vmatpush.bf16.msra.mxu0 %v1393
    %5268 = vmatpush.bf16.msra.mxu0 %v1390
    %5269 = vmatpush.bf16.msra.mxu0 %v1387
    %5270 = vmatpush.bf16.msra.mxu0 %v1384
    %5271 = vmatpush.bf16.msra.mxu0 %v1381
    %5272 = vmatpush.bf16.msra.mxu0 %v1378
    %5273 = vmatpush.bf16.msra.mxu0 %v1375
    %5274 = vmatmul.bf16.gmra.mxu0 %v5238
    %v5275 = vpop.f32.mrf.mxu0
    %v5276 = vadd.f32 %v1289, %v5275
    %v5277 = vpop.f32.mrf.mxu0
    %5278 = vdwg.mxu0
    %v5280 = vrot.slane %v5250, 1
    %v5282 = vadd.f32 %v5227, %v5250
    %v5283 = vadd.f32 %v5229, %v5280
    %v5284 = vxor.u32 %v5282, 2147483648
    %v5285 = vxor.u32 %v5283, 2147483648
    %v5286 = vmul.f32 %v5284, 1.442695
    %v5287 = vpow.pop %v5286
    %v5288 = vmul.f32 %v5285, 1.442695
    %v5289 = vpow.pop %v5288
    %v5290 = vadd.f32 %v5287, 1.0
    %v5291 = vadd.f32 %v5289, 1.0
    %v5292 = vrcp.pop %v5290
    %v5293 = vmul.f32 %v5290, %v5292
    %v5294 = vsub.f32 1.0, %v5293
    %v5295 = vmul.f32 %v5292, %v5294
    %v5296 = vadd.f32 %v5292, %v5295
    %vm5297 = vweird.f32 %v5290
    %vm5298 = vweird.f32 %v5292
    %vm5299 = vmor %vm5297, %vm5298
    %v5300 = vsel %vm5299, %v5292, %v5296
    %v5301 = vand.u32 2147483647, %v5290
    %vm5302 = vcmp.eq.f32.partialorder %v5301, 8.507059e+37
    %v5303 = vand.u32 %v5290, 2147483648
    %v5304 = vor.u32 1.1754944e-38, %v5303
    %v5305 = vsel %vm5302, %v5304, %v5300
    %v5306 = vmul.f32 1.0, %v5305
    %v5307 = vrcp.pop %v5291
    %v5308 = vmul.f32 %v5291, %v5307
    %v5309 = vsub.f32 1.0, %v5308
    %v5310 = vmul.f32 %v5307, %v5309
    %v5311 = vadd.f32 %v5307, %v5310
    %vm5312 = vweird.f32 %v5291
    %vm5313 = vweird.f32 %v5307
    %vm5314 = vmor %vm5312, %vm5313
    %v5315 = vsel %vm5314, %v5307, %v5311
    %v5316 = vand.u32 2147483647, %v5291
    %vm5317 = vcmp.eq.f32.partialorder %v5316, 8.507059e+37
    %v5318 = vand.u32 %v5291, 2147483648
    %v5319 = vor.u32 1.1754944e-38, %v5318
    %v5320 = vsel %vm5317, %v5319, %v5315
    %v5321 = vmul.f32 1.0, %v5320
    %v5324 = vrot.slane %v5227, 1
    %v5325 = vrot.slane %v5229, 1
    %v5329 = vrot.slane %v5263, 1
    %v5331 = vadd.f32 %v5324, %v5263
    %v5332 = vadd.f32 %v5325, %v5329
    %v5333 = vxor.u32 %v5331, 2147483648
    %v5334 = vxor.u32 %v5332, 2147483648
    %v5335 = vmul.f32 %v5333, 1.442695
    %v5336 = vpow.pop %v5335
    %v5337 = vmul.f32 %v5334, 1.442695
    %v5338 = vpow.pop %v5337
    %v5339 = vadd.f32 %v5336, 1.0
    %v5340 = vadd.f32 %v5338, 1.0
    %v5341 = vrcp.pop %v5339
    %v5342 = vmul.f32 %v5339, %v5341
    %v5343 = vsub.f32 1.0, %v5342
    %v5344 = vmul.f32 %v5341, %v5343
    %v5345 = vadd.f32 %v5341, %v5344
    %vm5346 = vweird.f32 %v5339
    %vm5347 = vweird.f32 %v5341
    %vm5348 = vmor %vm5346, %vm5347
    %v5349 = vsel %vm5348, %v5341, %v5345
    %v5350 = vand.u32 2147483647, %v5339
    %vm5351 = vcmp.eq.f32.partialorder %v5350, 8.507059e+37
    %v5352 = vand.u32 %v5339, 2147483648
    %v5353 = vor.u32 1.1754944e-38, %v5352
    %v5354 = vsel %vm5351, %v5353, %v5349
    %v5355 = vmul.f32 1.0, %v5354
    %v5356 = vrcp.pop %v5340
    %v5357 = vmul.f32 %v5340, %v5356
    %v5358 = vsub.f32 1.0, %v5357
    %v5359 = vmul.f32 %v5356, %v5358
    %v5360 = vadd.f32 %v5356, %v5359
    %vm5361 = vweird.f32 %v5340
    %vm5362 = vweird.f32 %v5356
    %vm5363 = vmor %vm5361, %vm5362
    %v5364 = vsel %vm5363, %v5356, %v5360
    %v5365 = vand.u32 2147483647, %v5340
    %vm5366 = vcmp.eq.f32.partialorder %v5365, 8.507059e+37
    %v5367 = vand.u32 %v5340, 2147483648
    %v5368 = vor.u32 1.1754944e-38, %v5367
    %v5369 = vsel %vm5366, %v5368, %v5364
    %v5370 = vmul.f32 1.0, %v5369
    %v5372 = vrot.slane %v5276, 1
    %v5374 = vmul.f32 %v5306, %v5276
    %v5375 = vmul.f32 %v5321, %v5372
    %v5376 = vrot.slane %v5227, 2
    %v5377 = vrot.slane %v5229, 2
    %v5380 = vadd.f32 %v5376, %v5374
    %v5381 = vadd.f32 %v5377, %v5375
    %v5382 = vtanh.pop %v5380
    %v5383 = vtanh.pop %v5381
    %v5384 = vsub.f32 1.0, %v5355
    %v5385 = vsub.f32 1.0, %v5370
    %v5386 = vmul.f32 %v5384, %v5382
    %v5387 = vmul.f32 %v5385, %v5383
    %v5388 = vmul.f32 %v5355, %v5224
    %v5389 = vmul.f32 %v5370, %v5225
    %v5390 = vadd.f32 %v5386, %v5388
    %v5391 = vadd.f32 %v5387, %v5389
    %s5392 = scalar_lea.vmem [#allocation2], 72
    %v5393 = vld [vmem:[%s5392] ss:$8 sm:$0x7]
    %s5394 = scalar_lea.vmem [#allocation2], 168
    %v5395 = vld [vmem:[%s5394] ss:$8 sm:$0x7]
    %v5396 = vpack.c.bf16 %v5390, %v5390
    %v5397 = vpack.c.bf16 %v5391, %v5391
    %v5400 = vunpack.c.l.b16 %v5396
    %v5401 = vunpack.c.l.b16 %v5397
    %v5402 = vrot.slane %v5401, 7
    %v5403 = vsel %vm1584, %v5402, %v5400
    %v5404 = vpack.c.b16 %v5403, %v5403
    %5406 = vmatpush.bf16.msra.mxu0 %v1394
    %5407 = vmatpush.bf16.msra.mxu0 %v1391
    %5408 = vmatpush.bf16.msra.mxu0 %v1388
    %5409 = vmatpush.bf16.msra.mxu0 %v1385
    %5410 = vmatpush.bf16.msra.mxu0 %v1382
    %5411 = vmatpush.bf16.msra.mxu0 %v1379
    %5412 = vmatpush.bf16.msra.mxu0 %v1376
    %5413 = vmatpush.bf16.msra.mxu0 %v1373
    %5414 = vmatmul.bf16.gmra.mxu0 %v5404
    %v5415 = vpop.f32.mrf.mxu0
    %v5416 = vadd.f32 %v1287, %v5415
    %v5417 = vpop.f32.mrf.mxu0
    %5418 = vdwg.mxu0
    %5419 = vmatpush.bf16.msra.mxu0 %v1395
    %5420 = vmatpush.bf16.msra.mxu0 %v1392
    %5421 = vmatpush.bf16.msra.mxu0 %v1389
    %5422 = vmatpush.bf16.msra.mxu0 %v1386
    %5423 = vmatpush.bf16.msra.mxu0 %v1383
    %5424 = vmatpush.bf16.msra.mxu0 %v1380
    %5425 = vmatpush.bf16.msra.mxu0 %v1377
    %5426 = vmatpush.bf16.msra.mxu0 %v1374
    %5427 = vmatmul.bf16.gmra.mxu0 %v5404
    %v5428 = vpop.f32.mrf.mxu0
    %v5429 = vadd.f32 %v1288, %v5428
    %v5430 = vpop.f32.mrf.mxu0
    %5431 = vdwg.mxu0
    %5432 = vmatpush.bf16.msra.mxu0 %v1396
    %5433 = vmatpush.bf16.msra.mxu0 %v1393
    %5434 = vmatpush.bf16.msra.mxu0 %v1390
    %5435 = vmatpush.bf16.msra.mxu0 %v1387
    %5436 = vmatpush.bf16.msra.mxu0 %v1384
    %5437 = vmatpush.bf16.msra.mxu0 %v1381
    %5438 = vmatpush.bf16.msra.mxu0 %v1378
    %5439 = vmatpush.bf16.msra.mxu0 %v1375
    %5440 = vmatmul.bf16.gmra.mxu0 %v5404
    %v5441 = vpop.f32.mrf.mxu0
    %v5442 = vadd.f32 %v1289, %v5441
    %v5443 = vpop.f32.mrf.mxu0
    %5444 = vdwg.mxu0
    %v5446 = vrot.slane %v5416, 1
    %v5448 = vadd.f32 %v5393, %v5416
    %v5449 = vadd.f32 %v5395, %v5446
    %v5450 = vxor.u32 %v5448, 2147483648
    %v5451 = vxor.u32 %v5449, 2147483648
    %v5452 = vmul.f32 %v5450, 1.442695
    %v5453 = vpow.pop %v5452
    %v5454 = vmul.f32 %v5451, 1.442695
    %v5455 = vpow.pop %v5454
    %v5456 = vadd.f32 %v5453, 1.0
    %v5457 = vadd.f32 %v5455, 1.0
    %v5458 = vrcp.pop %v5456
    %v5459 = vmul.f32 %v5456, %v5458
    %v5460 = vsub.f32 1.0, %v5459
    %v5461 = vmul.f32 %v5458, %v5460
    %v5462 = vadd.f32 %v5458, %v5461
    %vm5463 = vweird.f32 %v5456
    %vm5464 = vweird.f32 %v5458
    %vm5465 = vmor %vm5463, %vm5464
    %v5466 = vsel %vm5465, %v5458, %v5462
    %v5467 = vand.u32 2147483647, %v5456
    %vm5468 = vcmp.eq.f32.partialorder %v5467, 8.507059e+37
    %v5469 = vand.u32 %v5456, 2147483648
    %v5470 = vor.u32 1.1754944e-38, %v5469
    %v5471 = vsel %vm5468, %v5470, %v5466
    %v5472 = vmul.f32 1.0, %v5471
    %v5473 = vrcp.pop %v5457
    %v5474 = vmul.f32 %v5457, %v5473
    %v5475 = vsub.f32 1.0, %v5474
    %v5476 = vmul.f32 %v5473, %v5475
    %v5477 = vadd.f32 %v5473, %v5476
    %vm5478 = vweird.f32 %v5457
    %vm5479 = vweird.f32 %v5473
    %vm5480 = vmor %vm5478, %vm5479
    %v5481 = vsel %vm5480, %v5473, %v5477
    %v5482 = vand.u32 2147483647, %v5457
    %vm5483 = vcmp.eq.f32.partialorder %v5482, 8.507059e+37
    %v5484 = vand.u32 %v5457, 2147483648
    %v5485 = vor.u32 1.1754944e-38, %v5484
    %v5486 = vsel %vm5483, %v5485, %v5481
    %v5487 = vmul.f32 1.0, %v5486
    %v5490 = vrot.slane %v5393, 1
    %v5491 = vrot.slane %v5395, 1
    %v5495 = vrot.slane %v5429, 1
    %v5497 = vadd.f32 %v5490, %v5429
    %v5498 = vadd.f32 %v5491, %v5495
    %v5499 = vxor.u32 %v5497, 2147483648
    %v5500 = vxor.u32 %v5498, 2147483648
    %v5501 = vmul.f32 %v5499, 1.442695
    %v5502 = vpow.pop %v5501
    %v5503 = vmul.f32 %v5500, 1.442695
    %v5504 = vpow.pop %v5503
    %v5505 = vadd.f32 %v5502, 1.0
    %v5506 = vadd.f32 %v5504, 1.0
    %v5507 = vrcp.pop %v5505
    %v5508 = vmul.f32 %v5505, %v5507
    %v5509 = vsub.f32 1.0, %v5508
    %v5510 = vmul.f32 %v5507, %v5509
    %v5511 = vadd.f32 %v5507, %v5510
    %vm5512 = vweird.f32 %v5505
    %vm5513 = vweird.f32 %v5507
    %vm5514 = vmor %vm5512, %vm5513
    %v5515 = vsel %vm5514, %v5507, %v5511
    %v5516 = vand.u32 2147483647, %v5505
    %vm5517 = vcmp.eq.f32.partialorder %v5516, 8.507059e+37
    %v5518 = vand.u32 %v5505, 2147483648
    %v5519 = vor.u32 1.1754944e-38, %v5518
    %v5520 = vsel %vm5517, %v5519, %v5515
    %v5521 = vmul.f32 1.0, %v5520
    %v5522 = vrcp.pop %v5506
    %v5523 = vmul.f32 %v5506, %v5522
    %v5524 = vsub.f32 1.0, %v5523
    %v5525 = vmul.f32 %v5522, %v5524
    %v5526 = vadd.f32 %v5522, %v5525
    %vm5527 = vweird.f32 %v5506
    %vm5528 = vweird.f32 %v5522
    %vm5529 = vmor %vm5527, %vm5528
    %v5530 = vsel %vm5529, %v5522, %v5526
    %v5531 = vand.u32 2147483647, %v5506
    %vm5532 = vcmp.eq.f32.partialorder %v5531, 8.507059e+37
    %v5533 = vand.u32 %v5506, 2147483648
    %v5534 = vor.u32 1.1754944e-38, %v5533
    %v5535 = vsel %vm5532, %v5534, %v5530
    %v5536 = vmul.f32 1.0, %v5535
    %v5538 = vrot.slane %v5442, 1
    %v5540 = vmul.f32 %v5472, %v5442
    %v5541 = vmul.f32 %v5487, %v5538
    %v5542 = vrot.slane %v5393, 2
    %v5543 = vrot.slane %v5395, 2
    %v5546 = vadd.f32 %v5542, %v5540
    %v5547 = vadd.f32 %v5543, %v5541
    %v5548 = vtanh.pop %v5546
    %v5549 = vtanh.pop %v5547
    %v5550 = vsub.f32 1.0, %v5521
    %v5551 = vsub.f32 1.0, %v5536
    %v5552 = vmul.f32 %v5550, %v5548
    %v5553 = vmul.f32 %v5551, %v5549
    %v5554 = vmul.f32 %v5521, %v5390
    %v5555 = vmul.f32 %v5536, %v5391
    %v5556 = vadd.f32 %v5552, %v5554
    %v5557 = vadd.f32 %v5553, %v5555
    %s5558 = scalar_lea.vmem [#allocation2], 73
    %v5559 = vld [vmem:[%s5558] ss:$8 sm:$0x7]
    %s5560 = scalar_lea.vmem [#allocation2], 169
    %v5561 = vld [vmem:[%s5560] ss:$8 sm:$0x7]
    %v5562 = vpack.c.bf16 %v5556, %v5556
    %v5563 = vpack.c.bf16 %v5557, %v5557
    %v5566 = vunpack.c.l.b16 %v5562
    %v5567 = vunpack.c.l.b16 %v5563
    %v5568 = vrot.slane %v5567, 7
    %v5569 = vsel %vm1584, %v5568, %v5566
    %v5570 = vpack.c.b16 %v5569, %v5569
    %5572 = vmatpush.bf16.msra.mxu0 %v1394
    %5573 = vmatpush.bf16.msra.mxu0 %v1391
    %5574 = vmatpush.bf16.msra.mxu0 %v1388
    %5575 = vmatpush.bf16.msra.mxu0 %v1385
    %5576 = vmatpush.bf16.msra.mxu0 %v1382
    %5577 = vmatpush.bf16.msra.mxu0 %v1379
    %5578 = vmatpush.bf16.msra.mxu0 %v1376
    %5579 = vmatpush.bf16.msra.mxu0 %v1373
    %5580 = vmatmul.bf16.gmra.mxu0 %v5570
    %v5581 = vpop.f32.mrf.mxu0
    %v5582 = vadd.f32 %v1287, %v5581
    %v5583 = vpop.f32.mrf.mxu0
    %5584 = vdwg.mxu0
    %5585 = vmatpush.bf16.msra.mxu0 %v1395
    %5586 = vmatpush.bf16.msra.mxu0 %v1392
    %5587 = vmatpush.bf16.msra.mxu0 %v1389
    %5588 = vmatpush.bf16.msra.mxu0 %v1386
    %5589 = vmatpush.bf16.msra.mxu0 %v1383
    %5590 = vmatpush.bf16.msra.mxu0 %v1380
    %5591 = vmatpush.bf16.msra.mxu0 %v1377
    %5592 = vmatpush.bf16.msra.mxu0 %v1374
    %5593 = vmatmul.bf16.gmra.mxu0 %v5570
    %v5594 = vpop.f32.mrf.mxu0
    %v5595 = vadd.f32 %v1288, %v5594
    %v5596 = vpop.f32.mrf.mxu0
    %5597 = vdwg.mxu0
    %5598 = vmatpush.bf16.msra.mxu0 %v1396
    %5599 = vmatpush.bf16.msra.mxu0 %v1393
    %5600 = vmatpush.bf16.msra.mxu0 %v1390
    %5601 = vmatpush.bf16.msra.mxu0 %v1387
    %5602 = vmatpush.bf16.msra.mxu0 %v1384
    %5603 = vmatpush.bf16.msra.mxu0 %v1381
    %5604 = vmatpush.bf16.msra.mxu0 %v1378
    %5605 = vmatpush.bf16.msra.mxu0 %v1375
    %5606 = vmatmul.bf16.gmra.mxu0 %v5570
    %v5607 = vpop.f32.mrf.mxu0
    %v5608 = vadd.f32 %v1289, %v5607
    %v5609 = vpop.f32.mrf.mxu0
    %5610 = vdwg.mxu0
    %v5612 = vrot.slane %v5582, 1
    %v5614 = vadd.f32 %v5559, %v5582
    %v5615 = vadd.f32 %v5561, %v5612
    %v5616 = vxor.u32 %v5614, 2147483648
    %v5617 = vxor.u32 %v5615, 2147483648
    %v5618 = vmul.f32 %v5616, 1.442695
    %v5619 = vpow.pop %v5618
    %v5620 = vmul.f32 %v5617, 1.442695
    %v5621 = vpow.pop %v5620
    %v5622 = vadd.f32 %v5619, 1.0
    %v5623 = vadd.f32 %v5621, 1.0
    %v5624 = vrcp.pop %v5622
    %v5625 = vmul.f32 %v5622, %v5624
    %v5626 = vsub.f32 1.0, %v5625
    %v5627 = vmul.f32 %v5624, %v5626
    %v5628 = vadd.f32 %v5624, %v5627
    %vm5629 = vweird.f32 %v5622
    %vm5630 = vweird.f32 %v5624
    %vm5631 = vmor %vm5629, %vm5630
    %v5632 = vsel %vm5631, %v5624, %v5628
    %v5633 = vand.u32 2147483647, %v5622
    %vm5634 = vcmp.eq.f32.partialorder %v5633, 8.507059e+37
    %v5635 = vand.u32 %v5622, 2147483648
    %v5636 = vor.u32 1.1754944e-38, %v5635
    %v5637 = vsel %vm5634, %v5636, %v5632
    %v5638 = vmul.f32 1.0, %v5637
    %v5639 = vrcp.pop %v5623
    %v5640 = vmul.f32 %v5623, %v5639
    %v5641 = vsub.f32 1.0, %v5640
    %v5642 = vmul.f32 %v5639, %v5641
    %v5643 = vadd.f32 %v5639, %v5642
    %vm5644 = vweird.f32 %v5623
    %vm5645 = vweird.f32 %v5639
    %vm5646 = vmor %vm5644, %vm5645
    %v5647 = vsel %vm5646, %v5639, %v5643
    %v5648 = vand.u32 2147483647, %v5623
    %vm5649 = vcmp.eq.f32.partialorder %v5648, 8.507059e+37
    %v5650 = vand.u32 %v5623, 2147483648
    %v5651 = vor.u32 1.1754944e-38, %v5650
    %v5652 = vsel %vm5649, %v5651, %v5647
    %v5653 = vmul.f32 1.0, %v5652
    %v5656 = vrot.slane %v5559, 1
    %v5657 = vrot.slane %v5561, 1
    %v5661 = vrot.slane %v5595, 1
    %v5663 = vadd.f32 %v5656, %v5595
    %v5664 = vadd.f32 %v5657, %v5661
    %v5665 = vxor.u32 %v5663, 2147483648
    %v5666 = vxor.u32 %v5664, 2147483648
    %v5667 = vmul.f32 %v5665, 1.442695
    %v5668 = vpow.pop %v5667
    %v5669 = vmul.f32 %v5666, 1.442695
    %v5670 = vpow.pop %v5669
    %v5671 = vadd.f32 %v5668, 1.0
    %v5672 = vadd.f32 %v5670, 1.0
    %v5673 = vrcp.pop %v5671
    %v5674 = vmul.f32 %v5671, %v5673
    %v5675 = vsub.f32 1.0, %v5674
    %v5676 = vmul.f32 %v5673, %v5675
    %v5677 = vadd.f32 %v5673, %v5676
    %vm5678 = vweird.f32 %v5671
    %vm5679 = vweird.f32 %v5673
    %vm5680 = vmor %vm5678, %vm5679
    %v5681 = vsel %vm5680, %v5673, %v5677
    %v5682 = vand.u32 2147483647, %v5671
    %vm5683 = vcmp.eq.f32.partialorder %v5682, 8.507059e+37
    %v5684 = vand.u32 %v5671, 2147483648
    %v5685 = vor.u32 1.1754944e-38, %v5684
    %v5686 = vsel %vm5683, %v5685, %v5681
    %v5687 = vmul.f32 1.0, %v5686
    %v5688 = vrcp.pop %v5672
    %v5689 = vmul.f32 %v5672, %v5688
    %v5690 = vsub.f32 1.0, %v5689
    %v5691 = vmul.f32 %v5688, %v5690
    %v5692 = vadd.f32 %v5688, %v5691
    %vm5693 = vweird.f32 %v5672
    %vm5694 = vweird.f32 %v5688
    %vm5695 = vmor %vm5693, %vm5694
    %v5696 = vsel %vm5695, %v5688, %v5692
    %v5697 = vand.u32 2147483647, %v5672
    %vm5698 = vcmp.eq.f32.partialorder %v5697, 8.507059e+37
    %v5699 = vand.u32 %v5672, 2147483648
    %v5700 = vor.u32 1.1754944e-38, %v5699
    %v5701 = vsel %vm5698, %v5700, %v5696
    %v5702 = vmul.f32 1.0, %v5701
    %v5704 = vrot.slane %v5608, 1
    %v5706 = vmul.f32 %v5638, %v5608
    %v5707 = vmul.f32 %v5653, %v5704
    %v5708 = vrot.slane %v5559, 2
    %v5709 = vrot.slane %v5561, 2
    %v5712 = vadd.f32 %v5708, %v5706
    %v5713 = vadd.f32 %v5709, %v5707
    %v5714 = vtanh.pop %v5712
    %v5715 = vtanh.pop %v5713
    %v5716 = vsub.f32 1.0, %v5687
    %v5717 = vsub.f32 1.0, %v5702
    %v5718 = vmul.f32 %v5716, %v5714
    %v5719 = vmul.f32 %v5717, %v5715
    %v5720 = vmul.f32 %v5687, %v5556
    %v5721 = vmul.f32 %v5702, %v5557
    %v5722 = vadd.f32 %v5718, %v5720
    %v5723 = vadd.f32 %v5719, %v5721
    %s5724 = scalar_lea.vmem [#allocation2], 74
    %v5725 = vld [vmem:[%s5724] ss:$8 sm:$0x7]
    %s5726 = scalar_lea.vmem [#allocation2], 170
    %v5727 = vld [vmem:[%s5726] ss:$8 sm:$0x7]
    %v5728 = vpack.c.bf16 %v5722, %v5722
    %v5729 = vpack.c.bf16 %v5723, %v5723
    %v5732 = vunpack.c.l.b16 %v5728
    %v5733 = vunpack.c.l.b16 %v5729
    %v5734 = vrot.slane %v5733, 7
    %v5735 = vsel %vm1584, %v5734, %v5732
    %v5736 = vpack.c.b16 %v5735, %v5735
    %5738 = vmatpush.bf16.msra.mxu0 %v1394
    %5739 = vmatpush.bf16.msra.mxu0 %v1391
    %5740 = vmatpush.bf16.msra.mxu0 %v1388
    %5741 = vmatpush.bf16.msra.mxu0 %v1385
    %5742 = vmatpush.bf16.msra.mxu0 %v1382
    %5743 = vmatpush.bf16.msra.mxu0 %v1379
    %5744 = vmatpush.bf16.msra.mxu0 %v1376
    %5745 = vmatpush.bf16.msra.mxu0 %v1373
    %5746 = vmatmul.bf16.gmra.mxu0 %v5736
    %v5747 = vpop.f32.mrf.mxu0
    %v5748 = vadd.f32 %v1287, %v5747
    %v5749 = vpop.f32.mrf.mxu0
    %5750 = vdwg.mxu0
    %5751 = vmatpush.bf16.msra.mxu0 %v1395
    %5752 = vmatpush.bf16.msra.mxu0 %v1392
    %5753 = vmatpush.bf16.msra.mxu0 %v1389
    %5754 = vmatpush.bf16.msra.mxu0 %v1386
    %5755 = vmatpush.bf16.msra.mxu0 %v1383
    %5756 = vmatpush.bf16.msra.mxu0 %v1380
    %5757 = vmatpush.bf16.msra.mxu0 %v1377
    %5758 = vmatpush.bf16.msra.mxu0 %v1374
    %5759 = vmatmul.bf16.gmra.mxu0 %v5736
    %v5760 = vpop.f32.mrf.mxu0
    %v5761 = vadd.f32 %v1288, %v5760
    %v5762 = vpop.f32.mrf.mxu0
    %5763 = vdwg.mxu0
    %5764 = vmatpush.bf16.msra.mxu0 %v1396
    %5765 = vmatpush.bf16.msra.mxu0 %v1393
    %5766 = vmatpush.bf16.msra.mxu0 %v1390
    %5767 = vmatpush.bf16.msra.mxu0 %v1387
    %5768 = vmatpush.bf16.msra.mxu0 %v1384
    %5769 = vmatpush.bf16.msra.mxu0 %v1381
    %5770 = vmatpush.bf16.msra.mxu0 %v1378
    %5771 = vmatpush.bf16.msra.mxu0 %v1375
    %5772 = vmatmul.bf16.gmra.mxu0 %v5736
    %v5773 = vpop.f32.mrf.mxu0
    %v5774 = vadd.f32 %v1289, %v5773
    %v5775 = vpop.f32.mrf.mxu0
    %5776 = vdwg.mxu0
    %v5778 = vrot.slane %v5748, 1
    %v5780 = vadd.f32 %v5725, %v5748
    %v5781 = vadd.f32 %v5727, %v5778
    %v5782 = vxor.u32 %v5780, 2147483648
    %v5783 = vxor.u32 %v5781, 2147483648
    %v5784 = vmul.f32 %v5782, 1.442695
    %v5785 = vpow.pop %v5784
    %v5786 = vmul.f32 %v5783, 1.442695
    %v5787 = vpow.pop %v5786
    %v5788 = vadd.f32 %v5785, 1.0
    %v5789 = vadd.f32 %v5787, 1.0
    %v5790 = vrcp.pop %v5788
    %v5791 = vmul.f32 %v5788, %v5790
    %v5792 = vsub.f32 1.0, %v5791
    %v5793 = vmul.f32 %v5790, %v5792
    %v5794 = vadd.f32 %v5790, %v5793
    %vm5795 = vweird.f32 %v5788
    %vm5796 = vweird.f32 %v5790
    %vm5797 = vmor %vm5795, %vm5796
    %v5798 = vsel %vm5797, %v5790, %v5794
    %v5799 = vand.u32 2147483647, %v5788
    %vm5800 = vcmp.eq.f32.partialorder %v5799, 8.507059e+37
    %v5801 = vand.u32 %v5788, 2147483648
    %v5802 = vor.u32 1.1754944e-38, %v5801
    %v5803 = vsel %vm5800, %v5802, %v5798
    %v5804 = vmul.f32 1.0, %v5803
    %v5805 = vrcp.pop %v5789
    %v5806 = vmul.f32 %v5789, %v5805
    %v5807 = vsub.f32 1.0, %v5806
    %v5808 = vmul.f32 %v5805, %v5807
    %v5809 = vadd.f32 %v5805, %v5808
    %vm5810 = vweird.f32 %v5789
    %vm5811 = vweird.f32 %v5805
    %vm5812 = vmor %vm5810, %vm5811
    %v5813 = vsel %vm5812, %v5805, %v5809
    %v5814 = vand.u32 2147483647, %v5789
    %vm5815 = vcmp.eq.f32.partialorder %v5814, 8.507059e+37
    %v5816 = vand.u32 %v5789, 2147483648
    %v5817 = vor.u32 1.1754944e-38, %v5816
    %v5818 = vsel %vm5815, %v5817, %v5813
    %v5819 = vmul.f32 1.0, %v5818
    %v5822 = vrot.slane %v5725, 1
    %v5823 = vrot.slane %v5727, 1
    %v5827 = vrot.slane %v5761, 1
    %v5829 = vadd.f32 %v5822, %v5761
    %v5830 = vadd.f32 %v5823, %v5827
    %v5831 = vxor.u32 %v5829, 2147483648
    %v5832 = vxor.u32 %v5830, 2147483648
    %v5833 = vmul.f32 %v5831, 1.442695
    %v5834 = vpow.pop %v5833
    %v5835 = vmul.f32 %v5832, 1.442695
    %v5836 = vpow.pop %v5835
    %v5837 = vadd.f32 %v5834, 1.0
    %v5838 = vadd.f32 %v5836, 1.0
    %v5839 = vrcp.pop %v5837
    %v5840 = vmul.f32 %v5837, %v5839
    %v5841 = vsub.f32 1.0, %v5840
    %v5842 = vmul.f32 %v5839, %v5841
    %v5843 = vadd.f32 %v5839, %v5842
    %vm5844 = vweird.f32 %v5837
    %vm5845 = vweird.f32 %v5839
    %vm5846 = vmor %vm5844, %vm5845
    %v5847 = vsel %vm5846, %v5839, %v5843
    %v5848 = vand.u32 2147483647, %v5837
    %vm5849 = vcmp.eq.f32.partialorder %v5848, 8.507059e+37
    %v5850 = vand.u32 %v5837, 2147483648
    %v5851 = vor.u32 1.1754944e-38, %v5850
    %v5852 = vsel %vm5849, %v5851, %v5847
    %v5853 = vmul.f32 1.0, %v5852
    %v5854 = vrcp.pop %v5838
    %v5855 = vmul.f32 %v5838, %v5854
    %v5856 = vsub.f32 1.0, %v5855
    %v5857 = vmul.f32 %v5854, %v5856
    %v5858 = vadd.f32 %v5854, %v5857
    %vm5859 = vweird.f32 %v5838
    %vm5860 = vweird.f32 %v5854
    %vm5861 = vmor %vm5859, %vm5860
    %v5862 = vsel %vm5861, %v5854, %v5858
    %v5863 = vand.u32 2147483647, %v5838
    %vm5864 = vcmp.eq.f32.partialorder %v5863, 8.507059e+37
    %v5865 = vand.u32 %v5838, 2147483648
    %v5866 = vor.u32 1.1754944e-38, %v5865
    %v5867 = vsel %vm5864, %v5866, %v5862
    %v5868 = vmul.f32 1.0, %v5867
    %v5870 = vrot.slane %v5774, 1
    %v5872 = vmul.f32 %v5804, %v5774
    %v5873 = vmul.f32 %v5819, %v5870
    %v5874 = vrot.slane %v5725, 2
    %v5875 = vrot.slane %v5727, 2
    %v5878 = vadd.f32 %v5874, %v5872
    %v5879 = vadd.f32 %v5875, %v5873
    %v5880 = vtanh.pop %v5878
    %v5881 = vtanh.pop %v5879
    %v5882 = vsub.f32 1.0, %v5853
    %v5883 = vsub.f32 1.0, %v5868
    %v5884 = vmul.f32 %v5882, %v5880
    %v5885 = vmul.f32 %v5883, %v5881
    %v5886 = vmul.f32 %v5853, %v5722
    %v5887 = vmul.f32 %v5868, %v5723
    %v5888 = vadd.f32 %v5884, %v5886
    %v5889 = vadd.f32 %v5885, %v5887
    %s5890 = scalar_lea.vmem [#allocation2], 75
    %v5891 = vld [vmem:[%s5890] ss:$8 sm:$0x7]
    %s5892 = scalar_lea.vmem [#allocation2], 171
    %v5893 = vld [vmem:[%s5892] ss:$8 sm:$0x7]
    %v5894 = vpack.c.bf16 %v5888, %v5888
    %v5895 = vpack.c.bf16 %v5889, %v5889
    %v5898 = vunpack.c.l.b16 %v5894
    %v5899 = vunpack.c.l.b16 %v5895
    %v5900 = vrot.slane %v5899, 7
    %v5901 = vsel %vm1584, %v5900, %v5898
    %v5902 = vpack.c.b16 %v5901, %v5901
    %5904 = vmatpush.bf16.msra.mxu0 %v1394
    %5905 = vmatpush.bf16.msra.mxu0 %v1391
    %5906 = vmatpush.bf16.msra.mxu0 %v1388
    %5907 = vmatpush.bf16.msra.mxu0 %v1385
    %5908 = vmatpush.bf16.msra.mxu0 %v1382
    %5909 = vmatpush.bf16.msra.mxu0 %v1379
    %5910 = vmatpush.bf16.msra.mxu0 %v1376
    %5911 = vmatpush.bf16.msra.mxu0 %v1373
    %5912 = vmatmul.bf16.gmra.mxu0 %v5902
    %v5913 = vpop.f32.mrf.mxu0
    %v5914 = vadd.f32 %v1287, %v5913
    %v5915 = vpop.f32.mrf.mxu0
    %5916 = vdwg.mxu0
    %5917 = vmatpush.bf16.msra.mxu0 %v1395
    %5918 = vmatpush.bf16.msra.mxu0 %v1392
    %5919 = vmatpush.bf16.msra.mxu0 %v1389
    %5920 = vmatpush.bf16.msra.mxu0 %v1386
    %5921 = vmatpush.bf16.msra.mxu0 %v1383
    %5922 = vmatpush.bf16.msra.mxu0 %v1380
    %5923 = vmatpush.bf16.msra.mxu0 %v1377
    %5924 = vmatpush.bf16.msra.mxu0 %v1374
    %5925 = vmatmul.bf16.gmra.mxu0 %v5902
    %v5926 = vpop.f32.mrf.mxu0
    %v5927 = vadd.f32 %v1288, %v5926
    %v5928 = vpop.f32.mrf.mxu0
    %5929 = vdwg.mxu0
    %5930 = vmatpush.bf16.msra.mxu0 %v1396
    %5931 = vmatpush.bf16.msra.mxu0 %v1393
    %5932 = vmatpush.bf16.msra.mxu0 %v1390
    %5933 = vmatpush.bf16.msra.mxu0 %v1387
    %5934 = vmatpush.bf16.msra.mxu0 %v1384
    %5935 = vmatpush.bf16.msra.mxu0 %v1381
    %5936 = vmatpush.bf16.msra.mxu0 %v1378
    %5937 = vmatpush.bf16.msra.mxu0 %v1375
    %5938 = vmatmul.bf16.gmra.mxu0 %v5902
    %v5939 = vpop.f32.mrf.mxu0
    %v5940 = vadd.f32 %v1289, %v5939
    %v5941 = vpop.f32.mrf.mxu0
    %5942 = vdwg.mxu0
    %v5944 = vrot.slane %v5914, 1
    %v5946 = vadd.f32 %v5891, %v5914
    %v5947 = vadd.f32 %v5893, %v5944
    %v5948 = vxor.u32 %v5946, 2147483648
    %v5949 = vxor.u32 %v5947, 2147483648
    %v5950 = vmul.f32 %v5948, 1.442695
    %v5951 = vpow.pop %v5950
    %v5952 = vmul.f32 %v5949, 1.442695
    %v5953 = vpow.pop %v5952
    %v5954 = vadd.f32 %v5951, 1.0
    %v5955 = vadd.f32 %v5953, 1.0
    %v5956 = vrcp.pop %v5954
    %v5957 = vmul.f32 %v5954, %v5956
    %v5958 = vsub.f32 1.0, %v5957
    %v5959 = vmul.f32 %v5956, %v5958
    %v5960 = vadd.f32 %v5956, %v5959
    %vm5961 = vweird.f32 %v5954
    %vm5962 = vweird.f32 %v5956
    %vm5963 = vmor %vm5961, %vm5962
    %v5964 = vsel %vm5963, %v5956, %v5960
    %v5965 = vand.u32 2147483647, %v5954
    %vm5966 = vcmp.eq.f32.partialorder %v5965, 8.507059e+37
    %v5967 = vand.u32 %v5954, 2147483648
    %v5968 = vor.u32 1.1754944e-38, %v5967
    %v5969 = vsel %vm5966, %v5968, %v5964
    %v5970 = vmul.f32 1.0, %v5969
    %v5971 = vrcp.pop %v5955
    %v5972 = vmul.f32 %v5955, %v5971
    %v5973 = vsub.f32 1.0, %v5972
    %v5974 = vmul.f32 %v5971, %v5973
    %v5975 = vadd.f32 %v5971, %v5974
    %vm5976 = vweird.f32 %v5955
    %vm5977 = vweird.f32 %v5971
    %vm5978 = vmor %vm5976, %vm5977
    %v5979 = vsel %vm5978, %v5971, %v5975
    %v5980 = vand.u32 2147483647, %v5955
    %vm5981 = vcmp.eq.f32.partialorder %v5980, 8.507059e+37
    %v5982 = vand.u32 %v5955, 2147483648
    %v5983 = vor.u32 1.1754944e-38, %v5982
    %v5984 = vsel %vm5981, %v5983, %v5979
    %v5985 = vmul.f32 1.0, %v5984
    %v5988 = vrot.slane %v5891, 1
    %v5989 = vrot.slane %v5893, 1
    %v5993 = vrot.slane %v5927, 1
    %v5995 = vadd.f32 %v5988, %v5927
    %v5996 = vadd.f32 %v5989, %v5993
    %v5997 = vxor.u32 %v5995, 2147483648
    %v5998 = vxor.u32 %v5996, 2147483648
    %v5999 = vmul.f32 %v5997, 1.442695
    %v6000 = vpow.pop %v5999
    %v6001 = vmul.f32 %v5998, 1.442695
    %v6002 = vpow.pop %v6001
    %v6003 = vadd.f32 %v6000, 1.0
    %v6004 = vadd.f32 %v6002, 1.0
    %v6005 = vrcp.pop %v6003
    %v6006 = vmul.f32 %v6003, %v6005
    %v6007 = vsub.f32 1.0, %v6006
    %v6008 = vmul.f32 %v6005, %v6007
    %v6009 = vadd.f32 %v6005, %v6008
    %vm6010 = vweird.f32 %v6003
    %vm6011 = vweird.f32 %v6005
    %vm6012 = vmor %vm6010, %vm6011
    %v6013 = vsel %vm6012, %v6005, %v6009
    %v6014 = vand.u32 2147483647, %v6003
    %vm6015 = vcmp.eq.f32.partialorder %v6014, 8.507059e+37
    %v6016 = vand.u32 %v6003, 2147483648
    %v6017 = vor.u32 1.1754944e-38, %v6016
    %v6018 = vsel %vm6015, %v6017, %v6013
    %v6019 = vmul.f32 1.0, %v6018
    %v6020 = vrcp.pop %v6004
    %v6021 = vmul.f32 %v6004, %v6020
    %v6022 = vsub.f32 1.0, %v6021
    %v6023 = vmul.f32 %v6020, %v6022
    %v6024 = vadd.f32 %v6020, %v6023
    %vm6025 = vweird.f32 %v6004
    %vm6026 = vweird.f32 %v6020
    %vm6027 = vmor %vm6025, %vm6026
    %v6028 = vsel %vm6027, %v6020, %v6024
    %v6029 = vand.u32 2147483647, %v6004
    %vm6030 = vcmp.eq.f32.partialorder %v6029, 8.507059e+37
    %v6031 = vand.u32 %v6004, 2147483648
    %v6032 = vor.u32 1.1754944e-38, %v6031
    %v6033 = vsel %vm6030, %v6032, %v6028
    %v6034 = vmul.f32 1.0, %v6033
    %v6036 = vrot.slane %v5940, 1
    %v6038 = vmul.f32 %v5970, %v5940
    %v6039 = vmul.f32 %v5985, %v6036
    %v6040 = vrot.slane %v5891, 2
    %v6041 = vrot.slane %v5893, 2
    %v6044 = vadd.f32 %v6040, %v6038
    %v6045 = vadd.f32 %v6041, %v6039
    %v6046 = vtanh.pop %v6044
    %v6047 = vtanh.pop %v6045
    %v6048 = vsub.f32 1.0, %v6019
    %v6049 = vsub.f32 1.0, %v6034
    %v6050 = vmul.f32 %v6048, %v6046
    %v6051 = vmul.f32 %v6049, %v6047
    %v6052 = vmul.f32 %v6019, %v5888
    %v6053 = vmul.f32 %v6034, %v5889
    %v6054 = vadd.f32 %v6050, %v6052
    %v6055 = vadd.f32 %v6051, %v6053
    %s6056 = scalar_lea.vmem [#allocation2], 76
    %v6057 = vld [vmem:[%s6056] ss:$8 sm:$0x7]
    %s6058 = scalar_lea.vmem [#allocation2], 172
    %v6059 = vld [vmem:[%s6058] ss:$8 sm:$0x7]
    %v6060 = vpack.c.bf16 %v6054, %v6054
    %v6061 = vpack.c.bf16 %v6055, %v6055
    %v6064 = vunpack.c.l.b16 %v6060
    %v6065 = vunpack.c.l.b16 %v6061
    %v6066 = vrot.slane %v6065, 7
    %v6067 = vsel %vm1584, %v6066, %v6064
    %v6068 = vpack.c.b16 %v6067, %v6067
    %6070 = vmatpush.bf16.msra.mxu0 %v1394
    %6071 = vmatpush.bf16.msra.mxu0 %v1391
    %6072 = vmatpush.bf16.msra.mxu0 %v1388
    %6073 = vmatpush.bf16.msra.mxu0 %v1385
    %6074 = vmatpush.bf16.msra.mxu0 %v1382
    %6075 = vmatpush.bf16.msra.mxu0 %v1379
    %6076 = vmatpush.bf16.msra.mxu0 %v1376
    %6077 = vmatpush.bf16.msra.mxu0 %v1373
    %6078 = vmatmul.bf16.gmra.mxu0 %v6068
    %v6079 = vpop.f32.mrf.mxu0
    %v6080 = vadd.f32 %v1287, %v6079
    %v6081 = vpop.f32.mrf.mxu0
    %6082 = vdwg.mxu0
    %6083 = vmatpush.bf16.msra.mxu0 %v1395
    %6084 = vmatpush.bf16.msra.mxu0 %v1392
    %6085 = vmatpush.bf16.msra.mxu0 %v1389
    %6086 = vmatpush.bf16.msra.mxu0 %v1386
    %6087 = vmatpush.bf16.msra.mxu0 %v1383
    %6088 = vmatpush.bf16.msra.mxu0 %v1380
    %6089 = vmatpush.bf16.msra.mxu0 %v1377
    %6090 = vmatpush.bf16.msra.mxu0 %v1374
    %6091 = vmatmul.bf16.gmra.mxu0 %v6068
    %v6092 = vpop.f32.mrf.mxu0
    %v6093 = vadd.f32 %v1288, %v6092
    %v6094 = vpop.f32.mrf.mxu0
    %6095 = vdwg.mxu0
    %6096 = vmatpush.bf16.msra.mxu0 %v1396
    %6097 = vmatpush.bf16.msra.mxu0 %v1393
    %6098 = vmatpush.bf16.msra.mxu0 %v1390
    %6099 = vmatpush.bf16.msra.mxu0 %v1387
    %6100 = vmatpush.bf16.msra.mxu0 %v1384
    %6101 = vmatpush.bf16.msra.mxu0 %v1381
    %6102 = vmatpush.bf16.msra.mxu0 %v1378
    %6103 = vmatpush.bf16.msra.mxu0 %v1375
    %6104 = vmatmul.bf16.gmra.mxu0 %v6068
    %v6105 = vpop.f32.mrf.mxu0
    %v6106 = vadd.f32 %v1289, %v6105
    %v6107 = vpop.f32.mrf.mxu0
    %6108 = vdwg.mxu0
    %v6110 = vrot.slane %v6080, 1
    %v6112 = vadd.f32 %v6057, %v6080
    %v6113 = vadd.f32 %v6059, %v6110
    %v6114 = vxor.u32 %v6112, 2147483648
    %v6115 = vxor.u32 %v6113, 2147483648
    %v6116 = vmul.f32 %v6114, 1.442695
    %v6117 = vpow.pop %v6116
    %v6118 = vmul.f32 %v6115, 1.442695
    %v6119 = vpow.pop %v6118
    %v6120 = vadd.f32 %v6117, 1.0
    %v6121 = vadd.f32 %v6119, 1.0
    %v6122 = vrcp.pop %v6120
    %v6123 = vmul.f32 %v6120, %v6122
    %v6124 = vsub.f32 1.0, %v6123
    %v6125 = vmul.f32 %v6122, %v6124
    %v6126 = vadd.f32 %v6122, %v6125
    %vm6127 = vweird.f32 %v6120
    %vm6128 = vweird.f32 %v6122
    %vm6129 = vmor %vm6127, %vm6128
    %v6130 = vsel %vm6129, %v6122, %v6126
    %v6131 = vand.u32 2147483647, %v6120
    %vm6132 = vcmp.eq.f32.partialorder %v6131, 8.507059e+37
    %v6133 = vand.u32 %v6120, 2147483648
    %v6134 = vor.u32 1.1754944e-38, %v6133
    %v6135 = vsel %vm6132, %v6134, %v6130
    %v6136 = vmul.f32 1.0, %v6135
    %v6137 = vrcp.pop %v6121
    %v6138 = vmul.f32 %v6121, %v6137
    %v6139 = vsub.f32 1.0, %v6138
    %v6140 = vmul.f32 %v6137, %v6139
    %v6141 = vadd.f32 %v6137, %v6140
    %vm6142 = vweird.f32 %v6121
    %vm6143 = vweird.f32 %v6137
    %vm6144 = vmor %vm6142, %vm6143
    %v6145 = vsel %vm6144, %v6137, %v6141
    %v6146 = vand.u32 2147483647, %v6121
    %vm6147 = vcmp.eq.f32.partialorder %v6146, 8.507059e+37
    %v6148 = vand.u32 %v6121, 2147483648
    %v6149 = vor.u32 1.1754944e-38, %v6148
    %v6150 = vsel %vm6147, %v6149, %v6145
    %v6151 = vmul.f32 1.0, %v6150
    %v6154 = vrot.slane %v6057, 1
    %v6155 = vrot.slane %v6059, 1
    %v6159 = vrot.slane %v6093, 1
    %v6161 = vadd.f32 %v6154, %v6093
    %v6162 = vadd.f32 %v6155, %v6159
    %v6163 = vxor.u32 %v6161, 2147483648
    %v6164 = vxor.u32 %v6162, 2147483648
    %v6165 = vmul.f32 %v6163, 1.442695
    %v6166 = vpow.pop %v6165
    %v6167 = vmul.f32 %v6164, 1.442695
    %v6168 = vpow.pop %v6167
    %v6169 = vadd.f32 %v6166, 1.0
    %v6170 = vadd.f32 %v6168, 1.0
    %v6171 = vrcp.pop %v6169
    %v6172 = vmul.f32 %v6169, %v6171
    %v6173 = vsub.f32 1.0, %v6172
    %v6174 = vmul.f32 %v6171, %v6173
    %v6175 = vadd.f32 %v6171, %v6174
    %vm6176 = vweird.f32 %v6169
    %vm6177 = vweird.f32 %v6171
    %vm6178 = vmor %vm6176, %vm6177
    %v6179 = vsel %vm6178, %v6171, %v6175
    %v6180 = vand.u32 2147483647, %v6169
    %vm6181 = vcmp.eq.f32.partialorder %v6180, 8.507059e+37
    %v6182 = vand.u32 %v6169, 2147483648
    %v6183 = vor.u32 1.1754944e-38, %v6182
    %v6184 = vsel %vm6181, %v6183, %v6179
    %v6185 = vmul.f32 1.0, %v6184
    %v6186 = vrcp.pop %v6170
    %v6187 = vmul.f32 %v6170, %v6186
    %v6188 = vsub.f32 1.0, %v6187
    %v6189 = vmul.f32 %v6186, %v6188
    %v6190 = vadd.f32 %v6186, %v6189
    %vm6191 = vweird.f32 %v6170
    %vm6192 = vweird.f32 %v6186
    %vm6193 = vmor %vm6191, %vm6192
    %v6194 = vsel %vm6193, %v6186, %v6190
    %v6195 = vand.u32 2147483647, %v6170
    %vm6196 = vcmp.eq.f32.partialorder %v6195, 8.507059e+37
    %v6197 = vand.u32 %v6170, 2147483648
    %v6198 = vor.u32 1.1754944e-38, %v6197
    %v6199 = vsel %vm6196, %v6198, %v6194
    %v6200 = vmul.f32 1.0, %v6199
    %v6202 = vrot.slane %v6106, 1
    %v6204 = vmul.f32 %v6136, %v6106
    %v6205 = vmul.f32 %v6151, %v6202
    %v6206 = vrot.slane %v6057, 2
    %v6207 = vrot.slane %v6059, 2
    %v6210 = vadd.f32 %v6206, %v6204
    %v6211 = vadd.f32 %v6207, %v6205
    %v6212 = vtanh.pop %v6210
    %v6213 = vtanh.pop %v6211
    %v6214 = vsub.f32 1.0, %v6185
    %v6215 = vsub.f32 1.0, %v6200
    %v6216 = vmul.f32 %v6214, %v6212
    %v6217 = vmul.f32 %v6215, %v6213
    %v6218 = vmul.f32 %v6185, %v6054
    %v6219 = vmul.f32 %v6200, %v6055
    %v6220 = vadd.f32 %v6216, %v6218
    %v6221 = vadd.f32 %v6217, %v6219
    %s6222 = scalar_lea.vmem [#allocation2], 77
    %v6223 = vld [vmem:[%s6222] ss:$8 sm:$0x7]
    %s6224 = scalar_lea.vmem [#allocation2], 173
    %v6225 = vld [vmem:[%s6224] ss:$8 sm:$0x7]
    %v6226 = vpack.c.bf16 %v6220, %v6220
    %v6227 = vpack.c.bf16 %v6221, %v6221
    %v6230 = vunpack.c.l.b16 %v6226
    %v6231 = vunpack.c.l.b16 %v6227
    %v6232 = vrot.slane %v6231, 7
    %v6233 = vsel %vm1584, %v6232, %v6230
    %v6234 = vpack.c.b16 %v6233, %v6233
    %6236 = vmatpush.bf16.msra.mxu0 %v1394
    %6237 = vmatpush.bf16.msra.mxu0 %v1391
    %6238 = vmatpush.bf16.msra.mxu0 %v1388
    %6239 = vmatpush.bf16.msra.mxu0 %v1385
    %6240 = vmatpush.bf16.msra.mxu0 %v1382
    %6241 = vmatpush.bf16.msra.mxu0 %v1379
    %6242 = vmatpush.bf16.msra.mxu0 %v1376
    %6243 = vmatpush.bf16.msra.mxu0 %v1373
    %6244 = vmatmul.bf16.gmra.mxu0 %v6234
    %v6245 = vpop.f32.mrf.mxu0
    %v6246 = vadd.f32 %v1287, %v6245
    %v6247 = vpop.f32.mrf.mxu0
    %6248 = vdwg.mxu0
    %6249 = vmatpush.bf16.msra.mxu0 %v1395
    %6250 = vmatpush.bf16.msra.mxu0 %v1392
    %6251 = vmatpush.bf16.msra.mxu0 %v1389
    %6252 = vmatpush.bf16.msra.mxu0 %v1386
    %6253 = vmatpush.bf16.msra.mxu0 %v1383
    %6254 = vmatpush.bf16.msra.mxu0 %v1380
    %6255 = vmatpush.bf16.msra.mxu0 %v1377
    %6256 = vmatpush.bf16.msra.mxu0 %v1374
    %6257 = vmatmul.bf16.gmra.mxu0 %v6234
    %v6258 = vpop.f32.mrf.mxu0
    %v6259 = vadd.f32 %v1288, %v6258
    %v6260 = vpop.f32.mrf.mxu0
    %6261 = vdwg.mxu0
    %6262 = vmatpush.bf16.msra.mxu0 %v1396
    %6263 = vmatpush.bf16.msra.mxu0 %v1393
    %6264 = vmatpush.bf16.msra.mxu0 %v1390
    %6265 = vmatpush.bf16.msra.mxu0 %v1387
    %6266 = vmatpush.bf16.msra.mxu0 %v1384
    %6267 = vmatpush.bf16.msra.mxu0 %v1381
    %6268 = vmatpush.bf16.msra.mxu0 %v1378
    %6269 = vmatpush.bf16.msra.mxu0 %v1375
    %6270 = vmatmul.bf16.gmra.mxu0 %v6234
    %v6271 = vpop.f32.mrf.mxu0
    %v6272 = vadd.f32 %v1289, %v6271
    %v6273 = vpop.f32.mrf.mxu0
    %6274 = vdwg.mxu0
    %v6276 = vrot.slane %v6246, 1
    %v6278 = vadd.f32 %v6223, %v6246
    %v6279 = vadd.f32 %v6225, %v6276
    %v6280 = vxor.u32 %v6278, 2147483648
    %v6281 = vxor.u32 %v6279, 2147483648
    %v6282 = vmul.f32 %v6280, 1.442695
    %v6283 = vpow.pop %v6282
    %v6284 = vmul.f32 %v6281, 1.442695
    %v6285 = vpow.pop %v6284
    %v6286 = vadd.f32 %v6283, 1.0
    %v6287 = vadd.f32 %v6285, 1.0
    %v6288 = vrcp.pop %v6286
    %v6289 = vmul.f32 %v6286, %v6288
    %v6290 = vsub.f32 1.0, %v6289
    %v6291 = vmul.f32 %v6288, %v6290
    %v6292 = vadd.f32 %v6288, %v6291
    %vm6293 = vweird.f32 %v6286
    %vm6294 = vweird.f32 %v6288
    %vm6295 = vmor %vm6293, %vm6294
    %v6296 = vsel %vm6295, %v6288, %v6292
    %v6297 = vand.u32 2147483647, %v6286
    %vm6298 = vcmp.eq.f32.partialorder %v6297, 8.507059e+37
    %v6299 = vand.u32 %v6286, 2147483648
    %v6300 = vor.u32 1.1754944e-38, %v6299
    %v6301 = vsel %vm6298, %v6300, %v6296
    %v6302 = vmul.f32 1.0, %v6301
    %v6303 = vrcp.pop %v6287
    %v6304 = vmul.f32 %v6287, %v6303
    %v6305 = vsub.f32 1.0, %v6304
    %v6306 = vmul.f32 %v6303, %v6305
    %v6307 = vadd.f32 %v6303, %v6306
    %vm6308 = vweird.f32 %v6287
    %vm6309 = vweird.f32 %v6303
    %vm6310 = vmor %vm6308, %vm6309
    %v6311 = vsel %vm6310, %v6303, %v6307
    %v6312 = vand.u32 2147483647, %v6287
    %vm6313 = vcmp.eq.f32.partialorder %v6312, 8.507059e+37
    %v6314 = vand.u32 %v6287, 2147483648
    %v6315 = vor.u32 1.1754944e-38, %v6314
    %v6316 = vsel %vm6313, %v6315, %v6311
    %v6317 = vmul.f32 1.0, %v6316
    %v6320 = vrot.slane %v6223, 1
    %v6321 = vrot.slane %v6225, 1
    %v6325 = vrot.slane %v6259, 1
    %v6327 = vadd.f32 %v6320, %v6259
    %v6328 = vadd.f32 %v6321, %v6325
    %v6329 = vxor.u32 %v6327, 2147483648
    %v6330 = vxor.u32 %v6328, 2147483648
    %v6331 = vmul.f32 %v6329, 1.442695
    %v6332 = vpow.pop %v6331
    %v6333 = vmul.f32 %v6330, 1.442695
    %v6334 = vpow.pop %v6333
    %v6335 = vadd.f32 %v6332, 1.0
    %v6336 = vadd.f32 %v6334, 1.0
    %v6337 = vrcp.pop %v6335
    %v6338 = vmul.f32 %v6335, %v6337
    %v6339 = vsub.f32 1.0, %v6338
    %v6340 = vmul.f32 %v6337, %v6339
    %v6341 = vadd.f32 %v6337, %v6340
    %vm6342 = vweird.f32 %v6335
    %vm6343 = vweird.f32 %v6337
    %vm6344 = vmor %vm6342, %vm6343
    %v6345 = vsel %vm6344, %v6337, %v6341
    %v6346 = vand.u32 2147483647, %v6335
    %vm6347 = vcmp.eq.f32.partialorder %v6346, 8.507059e+37
    %v6348 = vand.u32 %v6335, 2147483648
    %v6349 = vor.u32 1.1754944e-38, %v6348
    %v6350 = vsel %vm6347, %v6349, %v6345
    %v6351 = vmul.f32 1.0, %v6350
    %v6352 = vrcp.pop %v6336
    %v6353 = vmul.f32 %v6336, %v6352
    %v6354 = vsub.f32 1.0, %v6353
    %v6355 = vmul.f32 %v6352, %v6354
    %v6356 = vadd.f32 %v6352, %v6355
    %vm6357 = vweird.f32 %v6336
    %vm6358 = vweird.f32 %v6352
    %vm6359 = vmor %vm6357, %vm6358
    %v6360 = vsel %vm6359, %v6352, %v6356
    %v6361 = vand.u32 2147483647, %v6336
    %vm6362 = vcmp.eq.f32.partialorder %v6361, 8.507059e+37
    %v6363 = vand.u32 %v6336, 2147483648
    %v6364 = vor.u32 1.1754944e-38, %v6363
    %v6365 = vsel %vm6362, %v6364, %v6360
    %v6366 = vmul.f32 1.0, %v6365
    %v6368 = vrot.slane %v6272, 1
    %v6370 = vmul.f32 %v6302, %v6272
    %v6371 = vmul.f32 %v6317, %v6368
    %v6372 = vrot.slane %v6223, 2
    %v6373 = vrot.slane %v6225, 2
    %v6376 = vadd.f32 %v6372, %v6370
    %v6377 = vadd.f32 %v6373, %v6371
    %v6378 = vtanh.pop %v6376
    %v6379 = vtanh.pop %v6377
    %v6380 = vsub.f32 1.0, %v6351
    %v6381 = vsub.f32 1.0, %v6366
    %v6382 = vmul.f32 %v6380, %v6378
    %v6383 = vmul.f32 %v6381, %v6379
    %v6384 = vmul.f32 %v6351, %v6220
    %v6385 = vmul.f32 %v6366, %v6221
    %v6386 = vadd.f32 %v6382, %v6384
    %v6387 = vadd.f32 %v6383, %v6385
    %s6388 = scalar_lea.vmem [#allocation2], 78
    %v6389 = vld [vmem:[%s6388] ss:$8 sm:$0x7]
    %s6390 = scalar_lea.vmem [#allocation2], 174
    %v6391 = vld [vmem:[%s6390] ss:$8 sm:$0x7]
    %v6392 = vpack.c.bf16 %v6386, %v6386
    %v6393 = vpack.c.bf16 %v6387, %v6387
    %v6396 = vunpack.c.l.b16 %v6392
    %v6397 = vunpack.c.l.b16 %v6393
    %v6398 = vrot.slane %v6397, 7
    %v6399 = vsel %vm1584, %v6398, %v6396
    %v6400 = vpack.c.b16 %v6399, %v6399
    %6402 = vmatpush.bf16.msra.mxu0 %v1394
    %6403 = vmatpush.bf16.msra.mxu0 %v1391
    %6404 = vmatpush.bf16.msra.mxu0 %v1388
    %6405 = vmatpush.bf16.msra.mxu0 %v1385
    %6406 = vmatpush.bf16.msra.mxu0 %v1382
    %6407 = vmatpush.bf16.msra.mxu0 %v1379
    %6408 = vmatpush.bf16.msra.mxu0 %v1376
    %6409 = vmatpush.bf16.msra.mxu0 %v1373
    %6410 = vmatmul.bf16.gmra.mxu0 %v6400
    %v6411 = vpop.f32.mrf.mxu0
    %v6412 = vadd.f32 %v1287, %v6411
    %v6413 = vpop.f32.mrf.mxu0
    %6414 = vdwg.mxu0
    %6415 = vmatpush.bf16.msra.mxu0 %v1395
    %6416 = vmatpush.bf16.msra.mxu0 %v1392
    %6417 = vmatpush.bf16.msra.mxu0 %v1389
    %6418 = vmatpush.bf16.msra.mxu0 %v1386
    %6419 = vmatpush.bf16.msra.mxu0 %v1383
    %6420 = vmatpush.bf16.msra.mxu0 %v1380
    %6421 = vmatpush.bf16.msra.mxu0 %v1377
    %6422 = vmatpush.bf16.msra.mxu0 %v1374
    %6423 = vmatmul.bf16.gmra.mxu0 %v6400
    %v6424 = vpop.f32.mrf.mxu0
    %v6425 = vadd.f32 %v1288, %v6424
    %v6426 = vpop.f32.mrf.mxu0
    %6427 = vdwg.mxu0
    %6428 = vmatpush.bf16.msra.mxu0 %v1396
    %6429 = vmatpush.bf16.msra.mxu0 %v1393
    %6430 = vmatpush.bf16.msra.mxu0 %v1390
    %6431 = vmatpush.bf16.msra.mxu0 %v1387
    %6432 = vmatpush.bf16.msra.mxu0 %v1384
    %6433 = vmatpush.bf16.msra.mxu0 %v1381
    %6434 = vmatpush.bf16.msra.mxu0 %v1378
    %6435 = vmatpush.bf16.msra.mxu0 %v1375
    %6436 = vmatmul.bf16.gmra.mxu0 %v6400
    %v6437 = vpop.f32.mrf.mxu0
    %v6438 = vadd.f32 %v1289, %v6437
    %v6439 = vpop.f32.mrf.mxu0
    %6440 = vdwg.mxu0
    %v6442 = vrot.slane %v6412, 1
    %v6444 = vadd.f32 %v6389, %v6412
    %v6445 = vadd.f32 %v6391, %v6442
    %v6446 = vxor.u32 %v6444, 2147483648
    %v6447 = vxor.u32 %v6445, 2147483648
    %v6448 = vmul.f32 %v6446, 1.442695
    %v6449 = vpow.pop %v6448
    %v6450 = vmul.f32 %v6447, 1.442695
    %v6451 = vpow.pop %v6450
    %v6452 = vadd.f32 %v6449, 1.0
    %v6453 = vadd.f32 %v6451, 1.0
    %v6454 = vrcp.pop %v6452
    %v6455 = vmul.f32 %v6452, %v6454
    %v6456 = vsub.f32 1.0, %v6455
    %v6457 = vmul.f32 %v6454, %v6456
    %v6458 = vadd.f32 %v6454, %v6457
    %vm6459 = vweird.f32 %v6452
    %vm6460 = vweird.f32 %v6454
    %vm6461 = vmor %vm6459, %vm6460
    %v6462 = vsel %vm6461, %v6454, %v6458
    %v6463 = vand.u32 2147483647, %v6452
    %vm6464 = vcmp.eq.f32.partialorder %v6463, 8.507059e+37
    %v6465 = vand.u32 %v6452, 2147483648
    %v6466 = vor.u32 1.1754944e-38, %v6465
    %v6467 = vsel %vm6464, %v6466, %v6462
    %v6468 = vmul.f32 1.0, %v6467
    %v6469 = vrcp.pop %v6453
    %v6470 = vmul.f32 %v6453, %v6469
    %v6471 = vsub.f32 1.0, %v6470
    %v6472 = vmul.f32 %v6469, %v6471
    %v6473 = vadd.f32 %v6469, %v6472
    %vm6474 = vweird.f32 %v6453
    %vm6475 = vweird.f32 %v6469
    %vm6476 = vmor %vm6474, %vm6475
    %v6477 = vsel %vm6476, %v6469, %v6473
    %v6478 = vand.u32 2147483647, %v6453
    %vm6479 = vcmp.eq.f32.partialorder %v6478, 8.507059e+37
    %v6480 = vand.u32 %v6453, 2147483648
    %v6481 = vor.u32 1.1754944e-38, %v6480
    %v6482 = vsel %vm6479, %v6481, %v6477
    %v6483 = vmul.f32 1.0, %v6482
    %v6486 = vrot.slane %v6389, 1
    %v6487 = vrot.slane %v6391, 1
    %v6491 = vrot.slane %v6425, 1
    %v6493 = vadd.f32 %v6486, %v6425
    %v6494 = vadd.f32 %v6487, %v6491
    %v6495 = vxor.u32 %v6493, 2147483648
    %v6496 = vxor.u32 %v6494, 2147483648
    %v6497 = vmul.f32 %v6495, 1.442695
    %v6498 = vpow.pop %v6497
    %v6499 = vmul.f32 %v6496, 1.442695
    %v6500 = vpow.pop %v6499
    %v6501 = vadd.f32 %v6498, 1.0
    %v6502 = vadd.f32 %v6500, 1.0
    %v6503 = vrcp.pop %v6501
    %v6504 = vmul.f32 %v6501, %v6503
    %v6505 = vsub.f32 1.0, %v6504
    %v6506 = vmul.f32 %v6503, %v6505
    %v6507 = vadd.f32 %v6503, %v6506
    %vm6508 = vweird.f32 %v6501
    %vm6509 = vweird.f32 %v6503
    %vm6510 = vmor %vm6508, %vm6509
    %v6511 = vsel %vm6510, %v6503, %v6507
    %v6512 = vand.u32 2147483647, %v6501
    %vm6513 = vcmp.eq.f32.partialorder %v6512, 8.507059e+37
    %v6514 = vand.u32 %v6501, 2147483648
    %v6515 = vor.u32 1.1754944e-38, %v6514
    %v6516 = vsel %vm6513, %v6515, %v6511
    %v6517 = vmul.f32 1.0, %v6516
    %v6518 = vrcp.pop %v6502
    %v6519 = vmul.f32 %v6502, %v6518
    %v6520 = vsub.f32 1.0, %v6519
    %v6521 = vmul.f32 %v6518, %v6520
    %v6522 = vadd.f32 %v6518, %v6521
    %vm6523 = vweird.f32 %v6502
    %vm6524 = vweird.f32 %v6518
    %vm6525 = vmor %vm6523, %vm6524
    %v6526 = vsel %vm6525, %v6518, %v6522
    %v6527 = vand.u32 2147483647, %v6502
    %vm6528 = vcmp.eq.f32.partialorder %v6527, 8.507059e+37
    %v6529 = vand.u32 %v6502, 2147483648
    %v6530 = vor.u32 1.1754944e-38, %v6529
    %v6531 = vsel %vm6528, %v6530, %v6526
    %v6532 = vmul.f32 1.0, %v6531
    %v6534 = vrot.slane %v6438, 1
    %v6536 = vmul.f32 %v6468, %v6438
    %v6537 = vmul.f32 %v6483, %v6534
    %v6538 = vrot.slane %v6389, 2
    %v6539 = vrot.slane %v6391, 2
    %v6542 = vadd.f32 %v6538, %v6536
    %v6543 = vadd.f32 %v6539, %v6537
    %v6544 = vtanh.pop %v6542
    %v6545 = vtanh.pop %v6543
    %v6546 = vsub.f32 1.0, %v6517
    %v6547 = vsub.f32 1.0, %v6532
    %v6548 = vmul.f32 %v6546, %v6544
    %v6549 = vmul.f32 %v6547, %v6545
    %v6550 = vmul.f32 %v6517, %v6386
    %v6551 = vmul.f32 %v6532, %v6387
    %v6552 = vadd.f32 %v6548, %v6550
    %v6553 = vadd.f32 %v6549, %v6551
    %s6554 = scalar_lea.vmem [#allocation2], 79
    %v6555 = vld [vmem:[%s6554] ss:$8 sm:$0x7]
    %s6556 = scalar_lea.vmem [#allocation2], 175
    %v6557 = vld [vmem:[%s6556] ss:$8 sm:$0x7]
    %v6558 = vpack.c.bf16 %v6552, %v6552
    %v6559 = vpack.c.bf16 %v6553, %v6553
    %v6562 = vunpack.c.l.b16 %v6558
    %v6563 = vunpack.c.l.b16 %v6559
    %v6564 = vrot.slane %v6563, 7
    %v6565 = vsel %vm1584, %v6564, %v6562
    %v6566 = vpack.c.b16 %v6565, %v6565
    %6568 = vmatpush.bf16.msra.mxu0 %v1394
    %6569 = vmatpush.bf16.msra.mxu0 %v1391
    %6570 = vmatpush.bf16.msra.mxu0 %v1388
    %6571 = vmatpush.bf16.msra.mxu0 %v1385
    %6572 = vmatpush.bf16.msra.mxu0 %v1382
    %6573 = vmatpush.bf16.msra.mxu0 %v1379
    %6574 = vmatpush.bf16.msra.mxu0 %v1376
    %6575 = vmatpush.bf16.msra.mxu0 %v1373
    %6576 = vmatmul.bf16.gmra.mxu0 %v6566
    %v6577 = vpop.f32.mrf.mxu0
    %v6578 = vadd.f32 %v1287, %v6577
    %v6579 = vpop.f32.mrf.mxu0
    %6580 = vdwg.mxu0
    %6581 = vmatpush.bf16.msra.mxu0 %v1395
    %6582 = vmatpush.bf16.msra.mxu0 %v1392
    %6583 = vmatpush.bf16.msra.mxu0 %v1389
    %6584 = vmatpush.bf16.msra.mxu0 %v1386
    %6585 = vmatpush.bf16.msra.mxu0 %v1383
    %6586 = vmatpush.bf16.msra.mxu0 %v1380
    %6587 = vmatpush.bf16.msra.mxu0 %v1377
    %6588 = vmatpush.bf16.msra.mxu0 %v1374
    %6589 = vmatmul.bf16.gmra.mxu0 %v6566
    %v6590 = vpop.f32.mrf.mxu0
    %v6591 = vadd.f32 %v1288, %v6590
    %v6592 = vpop.f32.mrf.mxu0
    %6593 = vdwg.mxu0
    %6594 = vmatpush.bf16.msra.mxu0 %v1396
    %6595 = vmatpush.bf16.msra.mxu0 %v1393
    %6596 = vmatpush.bf16.msra.mxu0 %v1390
    %6597 = vmatpush.bf16.msra.mxu0 %v1387
    %6598 = vmatpush.bf16.msra.mxu0 %v1384
    %6599 = vmatpush.bf16.msra.mxu0 %v1381
    %6600 = vmatpush.bf16.msra.mxu0 %v1378
    %6601 = vmatpush.bf16.msra.mxu0 %v1375
    %6602 = vmatmul.bf16.gmra.mxu0 %v6566
    %v6603 = vpop.f32.mrf.mxu0
    %v6604 = vadd.f32 %v1289, %v6603
    %v6605 = vpop.f32.mrf.mxu0
    %6606 = vdwg.mxu0
    %v6608 = vrot.slane %v6578, 1
    %v6610 = vadd.f32 %v6555, %v6578
    %v6611 = vadd.f32 %v6557, %v6608
    %v6612 = vxor.u32 %v6610, 2147483648
    %v6613 = vxor.u32 %v6611, 2147483648
    %v6614 = vmul.f32 %v6612, 1.442695
    %v6615 = vpow.pop %v6614
    %v6616 = vmul.f32 %v6613, 1.442695
    %v6617 = vpow.pop %v6616
    %v6618 = vadd.f32 %v6615, 1.0
    %v6619 = vadd.f32 %v6617, 1.0
    %v6620 = vrcp.pop %v6618
    %v6621 = vmul.f32 %v6618, %v6620
    %v6622 = vsub.f32 1.0, %v6621
    %v6623 = vmul.f32 %v6620, %v6622
    %v6624 = vadd.f32 %v6620, %v6623
    %vm6625 = vweird.f32 %v6618
    %vm6626 = vweird.f32 %v6620
    %vm6627 = vmor %vm6625, %vm6626
    %v6628 = vsel %vm6627, %v6620, %v6624
    %v6629 = vand.u32 2147483647, %v6618
    %vm6630 = vcmp.eq.f32.partialorder %v6629, 8.507059e+37
    %v6631 = vand.u32 %v6618, 2147483648
    %v6632 = vor.u32 1.1754944e-38, %v6631
    %v6633 = vsel %vm6630, %v6632, %v6628
    %v6634 = vmul.f32 1.0, %v6633
    %v6635 = vrcp.pop %v6619
    %v6636 = vmul.f32 %v6619, %v6635
    %v6637 = vsub.f32 1.0, %v6636
    %v6638 = vmul.f32 %v6635, %v6637
    %v6639 = vadd.f32 %v6635, %v6638
    %vm6640 = vweird.f32 %v6619
    %vm6641 = vweird.f32 %v6635
    %vm6642 = vmor %vm6640, %vm6641
    %v6643 = vsel %vm6642, %v6635, %v6639
    %v6644 = vand.u32 2147483647, %v6619
    %vm6645 = vcmp.eq.f32.partialorder %v6644, 8.507059e+37
    %v6646 = vand.u32 %v6619, 2147483648
    %v6647 = vor.u32 1.1754944e-38, %v6646
    %v6648 = vsel %vm6645, %v6647, %v6643
    %v6649 = vmul.f32 1.0, %v6648
    %v6652 = vrot.slane %v6555, 1
    %v6653 = vrot.slane %v6557, 1
    %v6657 = vrot.slane %v6591, 1
    %v6659 = vadd.f32 %v6652, %v6591
    %v6660 = vadd.f32 %v6653, %v6657
    %v6661 = vxor.u32 %v6659, 2147483648
    %v6662 = vxor.u32 %v6660, 2147483648
    %v6663 = vmul.f32 %v6661, 1.442695
    %v6664 = vpow.pop %v6663
    %v6665 = vmul.f32 %v6662, 1.442695
    %v6666 = vpow.pop %v6665
    %v6667 = vadd.f32 %v6664, 1.0
    %v6668 = vadd.f32 %v6666, 1.0
    %v6669 = vrcp.pop %v6667
    %v6670 = vmul.f32 %v6667, %v6669
    %v6671 = vsub.f32 1.0, %v6670
    %v6672 = vmul.f32 %v6669, %v6671
    %v6673 = vadd.f32 %v6669, %v6672
    %vm6674 = vweird.f32 %v6667
    %vm6675 = vweird.f32 %v6669
    %vm6676 = vmor %vm6674, %vm6675
    %v6677 = vsel %vm6676, %v6669, %v6673
    %v6678 = vand.u32 2147483647, %v6667
    %vm6679 = vcmp.eq.f32.partialorder %v6678, 8.507059e+37
    %v6680 = vand.u32 %v6667, 2147483648
    %v6681 = vor.u32 1.1754944e-38, %v6680
    %v6682 = vsel %vm6679, %v6681, %v6677
    %v6683 = vmul.f32 1.0, %v6682
    %v6684 = vrcp.pop %v6668
    %v6685 = vmul.f32 %v6668, %v6684
    %v6686 = vsub.f32 1.0, %v6685
    %v6687 = vmul.f32 %v6684, %v6686
    %v6688 = vadd.f32 %v6684, %v6687
    %vm6689 = vweird.f32 %v6668
    %vm6690 = vweird.f32 %v6684
    %vm6691 = vmor %vm6689, %vm6690
    %v6692 = vsel %vm6691, %v6684, %v6688
    %v6693 = vand.u32 2147483647, %v6668
    %vm6694 = vcmp.eq.f32.partialorder %v6693, 8.507059e+37
    %v6695 = vand.u32 %v6668, 2147483648
    %v6696 = vor.u32 1.1754944e-38, %v6695
    %v6697 = vsel %vm6694, %v6696, %v6692
    %v6698 = vmul.f32 1.0, %v6697
    %v6700 = vrot.slane %v6604, 1
    %v6702 = vmul.f32 %v6634, %v6604
    %v6703 = vmul.f32 %v6649, %v6700
    %v6704 = vrot.slane %v6555, 2
    %v6705 = vrot.slane %v6557, 2
    %v6708 = vadd.f32 %v6704, %v6702
    %v6709 = vadd.f32 %v6705, %v6703
    %v6710 = vtanh.pop %v6708
    %v6711 = vtanh.pop %v6709
    %v6712 = vsub.f32 1.0, %v6683
    %v6713 = vsub.f32 1.0, %v6698
    %v6714 = vmul.f32 %v6712, %v6710
    %v6715 = vmul.f32 %v6713, %v6711
    %v6716 = vmul.f32 %v6683, %v6552
    %v6717 = vmul.f32 %v6698, %v6553
    %v6718 = vadd.f32 %v6714, %v6716
    %v6719 = vadd.f32 %v6715, %v6717
    %6722 = vst [vmem:[#allocation1] ss:$9 sm:$0xff] %v6718
    %s6723 = scalar_lea.vmem [#allocation1], 1
    %6724 = vst [vmem:[%s6723] ss:$9 sm:$0xff] %v6719
    %v6725 = vld [vmem:[#allocation1] sm:$0xff]
    %6727 = vst [vmem:[#allocation18] sm:$0x3] %v6725
    // Predicated region
    $region102: #{acc_modal_forward.1} parent=1 // pred_check
      _
    $region103: #{acc_modal_forward.1} parent=1 // pred_check_branch
      %6729 = sbr.rel (0) target = $region105
    $region104: #{acc_modal_forward.1} parent=1 // pred_region
      %6731 = vsyncadd [#allocation5], 0
      %s6733 = sshll.u32 [#allocation18], 4
      %s6734 = int_to_ptr.vmem [resolvable:$true] %s6733
      %s6735 = sshll.u32 %s16, 4
      %s6736 = int_to_ptr.hbm [resolvable:$true] %s6735
      %6738 = dma.vmem_to_hbm [thread:$0]  %s6734, 32, %s6736, [#allocation5]
    $region105: #{acc_modal_forward.1} parent=1 // pred_fallthru
      _
    // Predicated region
    $region106: #{acc_modal_forward.1} parent=1 // pred_check
      _
    $region107: #{acc_modal_forward.1} parent=1 // pred_check_branch
      %6740 = sbr.rel (0) target = $region109
    $region108: #{acc_modal_forward.1} parent=1 // pred_region
      %6742 = dma.done [#allocation5], 32
    $region109: #{acc_modal_forward.1} parent=1 // pred_fallthru
      _
    %6743 = vsyncpa [#allocation4], 1
    %6744 = vsyncpa [#allocation7], 1
    %6745 = vsyncpa [#allocation10], 1
    %6746 = vsyncpa [#allocation13], 1
    %6747 = vsyncpa [#allocation16], 1
    %6748 = vsyncpa [#allocation5], 1

</llo_original>
